<compile_context>
chip_gen: v6e
topology: v6e:2x2x1
jax: 0.10.0
libtpu: 0.0.40
codegen_flags: <defaults>
</compile_context>

<pallas_src>
import numpy as np

import jax
import jax.numpy as jnp
from jax import lax
from jax.experimental import pallas as pl
from jax.experimental.pallas import tpu as pltpu

_VMEM = pl.BlockSpec(memory_space=pltpu.MemorySpace.VMEM)
_NEG = 1e30  # stands in for -inf in the max-pool padding mask


# ----------------------------------------------------------------------------
# static index tables (numpy, computed once at import time)
# ----------------------------------------------------------------------------
def _build_index_tables():
    # axes: (t2, t4, ho, wo, kh1, kw1); t2/t4 = conv2 / conv4 3x3 tap ids (kh*3+kw)
    kh2 = (np.arange(9) // 3).reshape(9, 1, 1, 1, 1, 1)
    kw2 = (np.arange(9) % 3).reshape(9, 1, 1, 1, 1, 1)
    kh4 = (np.arange(9) // 3).reshape(1, 9, 1, 1, 1, 1)
    kw4 = (np.arange(9) % 3).reshape(1, 9, 1, 1, 1, 1)
    ho = np.arange(4).reshape(1, 1, 4, 1, 1, 1)
    wo = np.arange(4).reshape(1, 1, 1, 4, 1, 1)
    kh1 = np.arange(3).reshape(1, 1, 1, 1, 3, 1)
    kw1 = np.arange(3).reshape(1, 1, 1, 1, 1, 3)

    ph = 2 * ho + kh4 - 1                      # position on the 8x8 (h2/h3) grid
    pw = 2 * wo + kw4 - 1
    qh = 2 * ph + kh2 - 1                      # position on the 16x16 (h1) grid
    qw = 2 * pw + kw2 - 1
    q_valid = (qh >= 0) & (qh < 16) & (qw >= 0) & (qw < 16)
    p_valid = (ph >= 0) & (ph < 8) & (pw >= 0) & (pw < 8)

    src_h = np.clip(2 * qh + kh1, 0, 33)       # row in the zero-padded 34x34 input
    src_w = np.clip(2 * qw + kw1, 0, 33)
    src_h, src_w, q_valid_b = np.broadcast_arrays(src_h, src_w, q_valid)

    gate = np.broadcast_to(q_valid, (9, 9, 4, 4, 1, 1))[..., 0, 0]       # (9,9,4,4)
    pv = np.broadcast_to(p_valid, (1, 9, 4, 4, 1, 1))[0, ..., 0, 0]      # (9,4,4)
    ph_c = np.clip(np.broadcast_to(ph, (1, 9, 4, 4, 1, 1)), 0, 7)[0, ..., 0, 0]
    pw_c = np.clip(np.broadcast_to(pw, (1, 9, 4, 4, 1, 1)), 0, 7)[0, ..., 0, 0]
    return (src_h.astype(np.int32), src_w.astype(np.int32),
            q_valid_b.astype(np.float32), gate.astype(np.float32),
            pv.astype(np.float32), ph_c.astype(np.int32), pw_c.astype(np.int32))


_SRC_H, _SRC_W, _QVALID, _GATE, _PVALID, _PH, _PW = _build_index_tables()


def _pool_matrix(n):
    """Constant (4, N, N*16) matrix implementing AvgPool2d(2) on the 4x4 grid.

    h5 rows are ordered (n, y, x); block b = 2*by + bx."""
    pool = np.zeros((4, n, n * 16), np.float32)
    for by in range(2):
        for bx in range(2):
            b = 2 * by + bx
            for s in range(n):
                for dy in range(2):
                    for dx in range(2):
                        pool[b, s, s * 16 + (2 * by + dy) * 4 + (2 * bx + dx)] = 0.25
    return pool


# ----------------------------------------------------------------------------
# the single fused Pallas kernel
# ----------------------------------------------------------------------------
def _micro_resnet_kernel(p1_ref, sk1_ref, m4_ref, w1_ref, w2_ref, b2_ref,
                         w3_ref, b3_ref, w4_ref, b4_ref, w5_ref, b5_ref,
                         pool_ref, wf_ref, bl_ref, out_ref):
    f32 = jnp.float32
    r2 = p1_ref.shape[0] // 9      # rows of the 8x8 maps, duplicated per conv4/skip2 tap
    r4 = r2 // 9                   # rows of the 4x4 maps (= N * 16)

    # conv1(3x3,s2)+ReLU fused with conv2(3x3,s2): accumulate conv2 tap by tap.
    # Patch row blocks are contiguous per conv2 tap; the extra gate column folds in
    # conv1's bias and implements conv2's zero padding.
    w1 = w1_ref[...]                                                    # (10, 4)
    z2 = jnp.zeros((r2, b2_ref.shape[1]), f32)
    for t in range(9):
        rows = pl.ds(t * r2, r2)
        h1_t = jnp.maximum(jnp.dot(p1_ref[rows, :], w1,
                                   preferred_element_type=f32), 0.0)    # (r2, 4)
        z2 = z2 + jnp.dot(h1_t, w2_ref[t], preferred_element_type=f32)
    h2 = jnp.maximum(z2 + b2_ref[...] + sk1_ref[...], 0.0)              # (r2, 16)

    # skip2 = MaxPool2d(3, stride 2, pad 1) over the 8x8 grid: taps = row blocks
    h2m = h2 + (m4_ref[...] - 1.0) * _NEG                               # -inf padding
    sk2 = h2m[0:r4, :]
    for t in range(1, 9):
        sk2 = jnp.maximum(sk2, h2m[t * r4:(t + 1) * r4, :])             # (r4, 16)

    # conv3(1x1)+ReLU; rows that act as conv4 zero padding are forced to 0
    h3 = jnp.maximum(jnp.dot(h2, w3_ref[...], preferred_element_type=f32)
                     + b3_ref[...], 0.0) * m4_ref[...]                  # (r2, 4)

    # conv4(3x3,s2)+ReLU
    z4 = jnp.zeros((r4, b4_ref.shape[1]), f32)
    for t in range(9):
        z4 = z4 + jnp.dot(h3[t * r4:(t + 1) * r4, :], w4_ref[t],
                          preferred_element_type=f32)
    h4 = jnp.maximum(z4 + b4_ref[...], 0.0)                             # (r4, 4)

    # conv5(1x1) + skip2 + ReLU
    h5 = jnp.maximum(jnp.dot(h4, w5_ref[...], preferred_element_type=f32)
                     + b5_ref[...] + sk2, 0.0)                          # (r4, 16)

    # AvgPool2d(2) + Flatten + Linear, folded into 4 block matmuls
    out = jnp.zeros(out_ref.shape, f32) + bl_ref[...]
    for b in range(4):
        pooled = jnp.dot(pool_ref[b], h5, preferred_element_type=f32)   # (N, 16)
        out = out + jnp.dot(pooled, wf_ref[b], preferred_element_type=f32)
    out_ref[...] = out


# ----------------------------------------------------------------------------
# host/XLA-side preparation (touches only the raw input and the weights)
# ----------------------------------------------------------------------------
def _prepare_inputs(x):
    """x: (N, 1, 32, 32) float32 -> duplicated conv1 patches, skip1 values, mask."""
    n = x.shape[0]
    xs = x[:, 0].astype(jnp.float32)                                # (N, 32, 32)
    x_pad = jnp.pad(xs, ((0, 0), (1, 1), (1, 1)))                   # conv1 padding

    # conv1 im2col patches, duplicated per (conv2 tap, conv4 tap, output pixel)
    vals = x_pad[:, _SRC_H, _SRC_W] * _QVALID                       # (N,9,9,4,4,3,3)
    vals = jnp.transpose(vals, (1, 2, 0, 3, 4, 5, 6))               # (9,9,N,4,4,3,3)
    p1 = vals.reshape(9 * 9 * n * 16, 9)
    gate = np.broadcast_to(_GATE[:, :, None, :, :], (9, 9, n, 4, 4)).reshape(-1, 1)
    p1 = jnp.concatenate([p1, jnp.asarray(gate)], axis=1)           # (R1, 10)

    # skip1 = MaxPool2d(5, stride 4, pad 2)(x), gathered in the duplicated order
    sk1 = lax.reduce_window(xs, -jnp.inf, lax.max, (1, 5, 5), (1, 4, 4),
                            ((0, 0), (2, 2), (2, 2)))               # (N, 8, 8)
    sk1 = sk1[:, _PH, _PW] * _PVALID                                # (N, 9, 4, 4)
    sk1 = jnp.transpose(sk1, (1, 0, 2, 3)).reshape(9 * n * 16, 1)

    m4 = np.broadcast_to(_PVALID[:, None], (9, n, 4, 4)).reshape(-1, 1)
    return p1, sk1, jnp.asarray(m4)


def _fold_params(p, n):
    def taps(w):   # (cout, cin, 3, 3) -> (9, cin, cout), tap id = kh*3 + kw
        cout, cin = w.shape[0], w.shape[1]
        return jnp.transpose(w, (2, 3, 1, 0)).reshape(9, cin, cout)

    w1 = taps(p['w1']).reshape(9, 4)                                # cin = 1
    w1 = jnp.concatenate([w1, p['b1'].reshape(1, 4)], axis=0)       # bias via gate col
    w2 = taps(p['w2'])                                              # (9, 4, 16)
    w3 = jnp.transpose(p['w3'][:, :, 0, 0])                         # (16, 4)
    w4 = taps(p['w4'])                                              # (9, 4, 4)
    w5 = jnp.transpose(p['w5'][:, :, 0, 0])                         # (4, 16)
    # AvgPool+Flatten+Linear folding: wf[b, c, k] = W[k, 4*c + b]
    wf = jnp.transpose(p['linear_w'].reshape(10, 16, 4), (2, 1, 0))
    return (w1, w2, p['b2'].reshape(1, 16), w3, p['b3'].reshape(1, 4),
            w4, p['b4'].reshape(1, 4), w5, p['b5'].reshape(1, 16),
            jnp.asarray(_pool_matrix(n)), wf, p['linear_b'].reshape(1, 10))


@jax.jit
def forward(params, x_nchw):
    n = x_nchw.shape[0]
    p1, sk1, m4 = _prepare_inputs(x_nchw)
    folded = _fold_params(params, n)
    return pl.pallas_call(
        _micro_resnet_kernel,
        out_shape=jax.ShapeDtypeStruct((n, 10), jnp.float32),
        in_specs=[_VMEM] * 15,
        out_specs=_VMEM,
    )(p1, sk1, m4, *folded)


# ----------------------------------------------------------------------------
# parameters (PyTorch-shaped) and a pure-JAX reference for validation
# ----------------------------------------------------------------------------
def init_params(key):
    ks = jax.random.split(key, 12)

    def xavier(k, shape, fan_in, fan_out):
        std = float(np.sqrt(2.0 / (fan_in + fan_out)))
        return std * jax.random.normal(k, shape, jnp.float32)

    def bias(k, nout, fan_in):
        lim = 1.0 / float(np.sqrt(fan_in))
        return jax.random.uniform(k, (nout,), jnp.float32, -lim, lim)

    p = {}
    p['w1'] = xavier(ks[0], (4, 1, 3, 3), 1 * 9, 4 * 9);   p['b1'] = bias(ks[1], 4, 1 * 9)
    p['w2'] = xavier(ks[2], (16, 4, 3, 3), 4 * 9, 16 * 9); p['b2'] = bias(ks[3], 16, 4 * 9)
    p['w3'] = xavier(ks[4], (4, 16, 1, 1), 16, 4);         p['b3'] = bias(ks[5], 4, 16)
    p['w4'] = xavier(ks[6], (4, 4, 3, 3), 4 * 9, 4 * 9);   p['b4'] = bias(ks[7], 4, 4 * 9)
    p['w5'] = xavier(ks[8], (16, 4, 1, 1), 4, 16);         p['b5'] = bias(ks[9], 16, 4)
    p['linear_w'] = xavier(ks[10], (10, 64), 64, 10)
    p['linear_b'] = bias(ks[11], 10, 64)
    return p


@jax.jit
def reference_forward(p, x):
    def conv(v, w, b, stride, pad):
        y = lax.conv_general_dilated(v, w, (stride, stride), [(pad, pad), (pad, pad)],
                                     dimension_numbers=('NCHW', 'OIHW', 'NCHW'))
        return y + b.reshape(1, -1, 1, 1)

    def maxpool(v, k, s, pd):
        return lax.reduce_window(v, -jnp.inf, lax.max, (1, 1, k, k), (1, 1, s, s),
                                 ((0, 0), (0, 0), (pd, pd), (pd, pd)))

    relu = lambda v: jnp.maximum(v, 0.0)
    sk1 = maxpool(x, 5, 4, 2)
    y = relu(conv(x, p['w1'], p['b1'], 2, 1))
    y = relu(conv(y, p['w2'], p['b2'], 2, 1) + sk1)
    sk2 = maxpool(y, 3, 2, 1)
    y = relu(conv(y, p['w3'], p['b3'], 1, 0))
    y = relu(conv(y, p['w4'], p['b4'], 2, 1))
    y = relu(conv(y, p['w5'], p['b5'], 1, 0) + sk2)
    y = lax.reduce_window(y, 0.0, lax.add, (1, 1, 2, 2), (1, 1, 2, 2), 'VALID') / 4.0
    y = y.reshape(y.shape[0], -1)
    return y @ p['linear_w'].T + p['linear_b']


if __name__ == "__main__":
    key = jax.random.PRNGKey(0)
    xkey, pkey = jax.random.split(key)
    # PyTorch-convention input: NCHW, 1x32x32 (required so Flatten yields 64 features)
    x = jax.random.normal(xkey, (2, 1, 32, 32), jnp.float32)
    params = init_params(pkey)

    out = forward(params, x)
    out = jax.block_until_ready(out)
    assert out.shape == (2, 10) and out.dtype == jnp.float32

    ref = jax.block_until_ready(reference_forward(params, x))
    np.testing.assert_allclose(np.asarray(out), np.asarray(ref), rtol=5e-2, atol=5e-2)

    print("KERNEL_OK")
</pallas_src>

<mosaic_0001>
module attributes {stable_mosaic.version = 11 : i64} {
  func.func @_micro_resnet_kernel(%arg0: memref<2592x10xf32, #tpu.memory_space<vmem>>, %arg1: memref<288x1xf32, #tpu.memory_space<vmem>>, %arg2: memref<288x1xf32, #tpu.memory_space<vmem>>, %arg3: memref<10x4xf32, #tpu.memory_space<vmem>>, %arg4: memref<9x4x16xf32, #tpu.memory_space<vmem>>, %arg5: memref<1x16xf32, #tpu.memory_space<vmem>>, %arg6: memref<16x4xf32, #tpu.memory_space<vmem>>, %arg7: memref<1x4xf32, #tpu.memory_space<vmem>>, %arg8: memref<9x4x4xf32, #tpu.memory_space<vmem>>, %arg9: memref<1x4xf32, #tpu.memory_space<vmem>>, %arg10: memref<4x16xf32, #tpu.memory_space<vmem>>, %arg11: memref<1x16xf32, #tpu.memory_space<vmem>>, %arg12: memref<4x2x32xf32, #tpu.memory_space<vmem>>, %arg13: memref<4x16x10xf32, #tpu.memory_space<vmem>>, %arg14: memref<1x10xf32, #tpu.memory_space<vmem>>, %arg15: memref<2x10xf32, #tpu.memory_space<vmem>>) attributes {dimension_semantics = [], scalar_prefetch = 0 : i64, scratch_operands = 0 : i64, tpu.core_type = #tpu.core_type<tc>} {
    %c0 = arith.constant 0 : index
    %c0_0 = arith.constant 0 : index
    %0 = vector.load %arg3[%c0, %c0_0] : memref<10x4xf32, #tpu.memory_space<vmem>>, vector<10x4xf32>
    %cst = arith.constant 0.000000e+00 : f32
    %1 = vector.broadcast %cst : f32 to vector<288x16xf32>
    %c0_1 = arith.constant 0 : index
    %c0_2 = arith.constant 0 : index
    %2 = vector.load %arg0[%c0_1, %c0_2] : memref<2592x10xf32, #tpu.memory_space<vmem>>, vector<288x10xf32>
    %cst_3 = arith.constant dense<0.000000e+00> : vector<288x4xf32>
    %3 = tpu.matmul %2, %0, %cst_3 {dimension_numbers = #tpu.dot_dimension_numbers<[1], [0], [0], [1], [0, 0, 1, 1], [], []>} : vector<288x10xf32>, vector<10x4xf32>, vector<288x4xf32> -> vector<288x4xf32>
    %cst_4 = arith.constant 0.000000e+00 : f32
    %4 = vector.broadcast %cst_4 : f32 to vector<288x4xf32>
    %5 = arith.maximumf %3, %4 : vector<288x4xf32>
    %c0_5 = arith.constant 0 : index
    %c0_6 = arith.constant 0 : index
    %c0_7 = arith.constant 0 : index
    %6 = vector.load %arg4[%c0_5, %c0_6, %c0_7] : memref<9x4x16xf32, #tpu.memory_space<vmem>>, vector<1x4x16xf32>
    %7 = vector.shape_cast %6 : vector<1x4x16xf32> to vector<4x16xf32>
    %cst_8 = arith.constant dense<0.000000e+00> : vector<288x16xf32>
    %8 = tpu.matmul %5, %7, %cst_8 {dimension_numbers = #tpu.dot_dimension_numbers<[1], [0], [0], [1], [0, 0, 1, 1], [], []>} : vector<288x4xf32>, vector<4x16xf32>, vector<288x16xf32> -> vector<288x16xf32>
    %9 = arith.addf %1, %8 : vector<288x16xf32>
    %c288 = arith.constant 288 : index
    %c0_9 = arith.constant 0 : index
    %10 = vector.load %arg0[%c288, %c0_9] : memref<2592x10xf32, #tpu.memory_space<vmem>>, vector<288x10xf32>
    %cst_10 = arith.constant dense<0.000000e+00> : vector<288x4xf32>
    %11 = tpu.matmul %10, %0, %cst_10 {dimension_numbers = #tpu.dot_dimension_numbers<[1], [0], [0], [1], [0, 0, 1, 1], [], []>} : vector<288x10xf32>, vector<10x4xf32>, vector<288x4xf32> -> vector<288x4xf32>
    %cst_11 = arith.constant 0.000000e+00 : f32
    %12 = vector.broadcast %cst_11 : f32 to vector<288x4xf32>
    %13 = arith.maximumf %11, %12 : vector<288x4xf32>
    %c1 = arith.constant 1 : index
    %c0_12 = arith.constant 0 : index
    %c0_13 = arith.constant 0 : index
    %14 = vector.load %arg4[%c1, %c0_12, %c0_13] : memref<9x4x16xf32, #tpu.memory_space<vmem>>, vector<1x4x16xf32>
    %15 = vector.shape_cast %14 : vector<1x4x16xf32> to vector<4x16xf32>
    %cst_14 = arith.constant dense<0.000000e+00> : vector<288x16xf32>
    %16 = tpu.matmul %13, %15, %cst_14 {dimension_numbers = #tpu.dot_dimension_numbers<[1], [0], [0], [1], [0, 0, 1, 1], [], []>} : vector<288x4xf32>, vector<4x16xf32>, vector<288x16xf32> -> vector<288x16xf32>
    %17 = arith.addf %9, %16 : vector<288x16xf32>
    %c576 = arith.constant 576 : index
    %c0_15 = arith.constant 0 : index
    %18 = vector.load %arg0[%c576, %c0_15] : memref<2592x10xf32, #tpu.memory_space<vmem>>, vector<288x10xf32>
    %cst_16 = arith.constant dense<0.000000e+00> : vector<288x4xf32>
    %19 = tpu.matmul %18, %0, %cst_16 {dimension_numbers = #tpu.dot_dimension_numbers<[1], [0], [0], [1], [0, 0, 1, 1], [], []>} : vector<288x10xf32>, vector<10x4xf32>, vector<288x4xf32> -> vector<288x4xf32>
    %cst_17 = arith.constant 0.000000e+00 : f32
    %20 = vector.broadcast %cst_17 : f32 to vector<288x4xf32>
    %21 = arith.maximumf %19, %20 : vector<288x4xf32>
    %c2 = arith.constant 2 : index
    %c0_18 = arith.constant 0 : index
    %c0_19 = arith.constant 0 : index
    %22 = vector.load %arg4[%c2, %c0_18, %c0_19] : memref<9x4x16xf32, #tpu.memory_space<vmem>>, vector<1x4x16xf32>
    %23 = vector.shape_cast %22 : vector<1x4x16xf32> to vector<4x16xf32>
    %cst_20 = arith.constant dense<0.000000e+00> : vector<288x16xf32>
    %24 = tpu.matmul %21, %23, %cst_20 {dimension_numbers = #tpu.dot_dimension_numbers<[1], [0], [0], [1], [0, 0, 1, 1], [], []>} : vector<288x4xf32>, vector<4x16xf32>, vector<288x16xf32> -> vector<288x16xf32>
    %25 = arith.addf %17, %24 : vector<288x16xf32>
    %c864 = arith.constant 864 : index
    %c0_21 = arith.constant 0 : index
    %26 = vector.load %arg0[%c864, %c0_21] : memref<2592x10xf32, #tpu.memory_space<vmem>>, vector<288x10xf32>
    %cst_22 = arith.constant dense<0.000000e+00> : vector<288x4xf32>
    %27 = tpu.matmul %26, %0, %cst_22 {dimension_numbers = #tpu.dot_dimension_numbers<[1], [0], [0], [1], [0, 0, 1, 1], [], []>} : vector<288x10xf32>, vector<10x4xf32>, vector<288x4xf32> -> vector<288x4xf32>
    %cst_23 = arith.constant 0.000000e+00 : f32
    %28 = vector.broadcast %cst_23 : f32 to vector<288x4xf32>
    %29 = arith.maximumf %27, %28 : vector<288x4xf32>
    %c3 = arith.constant 3 : index
    %c0_24 = arith.constant 0 : index
    %c0_25 = arith.constant 0 : index
    %30 = vector.load %arg4[%c3, %c0_24, %c0_25] : memref<9x4x16xf32, #tpu.memory_space<vmem>>, vector<1x4x16xf32>
    %31 = vector.shape_cast %30 : vector<1x4x16xf32> to vector<4x16xf32>
    %cst_26 = arith.constant dense<0.000000e+00> : vector<288x16xf32>
    %32 = tpu.matmul %29, %31, %cst_26 {dimension_numbers = #tpu.dot_dimension_numbers<[1], [0], [0], [1], [0, 0, 1, 1], [], []>} : vector<288x4xf32>, vector<4x16xf32>, vector<288x16xf32> -> vector<288x16xf32>
    %33 = arith.addf %25, %32 : vector<288x16xf32>
    %c1152 = arith.constant 1152 : index
    %c0_27 = arith.constant 0 : index
    %34 = vector.load %arg0[%c1152, %c0_27] : memref<2592x10xf32, #tpu.memory_space<vmem>>, vector<288x10xf32>
    %cst_28 = arith.constant dense<0.000000e+00> : vector<288x4xf32>
    %35 = tpu.matmul %34, %0, %cst_28 {dimension_numbers = #tpu.dot_dimension_numbers<[1], [0], [0], [1], [0, 0, 1, 1], [], []>} : vector<288x10xf32>, vector<10x4xf32>, vector<288x4xf32> -> vector<288x4xf32>
    %cst_29 = arith.constant 0.000000e+00 : f32
    %36 = vector.broadcast %cst_29 : f32 to vector<288x4xf32>
    %37 = arith.maximumf %35, %36 : vector<288x4xf32>
    %c4 = arith.constant 4 : index
    %c0_30 = arith.constant 0 : index
    %c0_31 = arith.constant 0 : index
    %38 = vector.load %arg4[%c4, %c0_30, %c0_31] : memref<9x4x16xf32, #tpu.memory_space<vmem>>, vector<1x4x16xf32>
    %39 = vector.shape_cast %38 : vector<1x4x16xf32> to vector<4x16xf32>
    %cst_32 = arith.constant dense<0.000000e+00> : vector<288x16xf32>
    %40 = tpu.matmul %37, %39, %cst_32 {dimension_numbers = #tpu.dot_dimension_numbers<[1], [0], [0], [1], [0, 0, 1, 1], [], []>} : vector<288x4xf32>, vector<4x16xf32>, vector<288x16xf32> -> vector<288x16xf32>
    %41 = arith.addf %33, %40 : vector<288x16xf32>
    %c1440 = arith.constant 1440 : index
    %c0_33 = arith.constant 0 : index
    %42 = vector.load %arg0[%c1440, %c0_33] : memref<2592x10xf32, #tpu.memory_space<vmem>>, vector<288x10xf32>
    %cst_34 = arith.constant dense<0.000000e+00> : vector<288x4xf32>
    %43 = tpu.matmul %42, %0, %cst_34 {dimension_numbers = #tpu.dot_dimension_numbers<[1], [0], [0], [1], [0, 0, 1, 1], [], []>} : vector<288x10xf32>, vector<10x4xf32>, vector<288x4xf32> -> vector<288x4xf32>
    %cst_35 = arith.constant 0.000000e+00 : f32
    %44 = vector.broadcast %cst_35 : f32 to vector<288x4xf32>
    %45 = arith.maximumf %43, %44 : vector<288x4xf32>
    %c5 = arith.constant 5 : index
    %c0_36 = arith.constant 0 : index
    %c0_37 = arith.constant 0 : index
    %46 = vector.load %arg4[%c5, %c0_36, %c0_37] : memref<9x4x16xf32, #tpu.memory_space<vmem>>, vector<1x4x16xf32>
    %47 = vector.shape_cast %46 : vector<1x4x16xf32> to vector<4x16xf32>
    %cst_38 = arith.constant dense<0.000000e+00> : vector<288x16xf32>
    %48 = tpu.matmul %45, %47, %cst_38 {dimension_numbers = #tpu.dot_dimension_numbers<[1], [0], [0], [1], [0, 0, 1, 1], [], []>} : vector<288x4xf32>, vector<4x16xf32>, vector<288x16xf32> -> vector<288x16xf32>
    %49 = arith.addf %41, %48 : vector<288x16xf32>
    %c1728 = arith.constant 1728 : index
    %c0_39 = arith.constant 0 : index
    %50 = vector.load %arg0[%c1728, %c0_39] : memref<2592x10xf32, #tpu.memory_space<vmem>>, vector<288x10xf32>
    %cst_40 = arith.constant dense<0.000000e+00> : vector<288x4xf32>
    %51 = tpu.matmul %50, %0, %cst_40 {dimension_numbers = #tpu.dot_dimension_numbers<[1], [0], [0], [1], [0, 0, 1, 1], [], []>} : vector<288x10xf32>, vector<10x4xf32>, vector<288x4xf32> -> vector<288x4xf32>
    %cst_41 = arith.constant 0.000000e+00 : f32
    %52 = vector.broadcast %cst_41 : f32 to vector<288x4xf32>
    %53 = arith.maximumf %51, %52 : vector<288x4xf32>
    %c6 = arith.constant 6 : index
    %c0_42 = arith.constant 0 : index
    %c0_43 = arith.constant 0 : index
    %54 = vector.load %arg4[%c6, %c0_42, %c0_43] : memref<9x4x16xf32, #tpu.memory_space<vmem>>, vector<1x4x16xf32>
    %55 = vector.shape_cast %54 : vector<1x4x16xf32> to vector<4x16xf32>
    %cst_44 = arith.constant dense<0.000000e+00> : vector<288x16xf32>
    %56 = tpu.matmul %53, %55, %cst_44 {dimension_numbers = #tpu.dot_dimension_numbers<[1], [0], [0], [1], [0, 0, 1, 1], [], []>} : vector<288x4xf32>, vector<4x16xf32>, vector<288x16xf32> -> vector<288x16xf32>
    %57 = arith.addf %49, %56 : vector<288x16xf32>
    %c2016 = arith.constant 2016 : index
    %c0_45 = arith.constant 0 : index
    %58 = vector.load %arg0[%c2016, %c0_45] : memref<2592x10xf32, #tpu.memory_space<vmem>>, vector<288x10xf32>
    %cst_46 = arith.constant dense<0.000000e+00> : vector<288x4xf32>
    %59 = tpu.matmul %58, %0, %cst_46 {dimension_numbers = #tpu.dot_dimension_numbers<[1], [0], [0], [1], [0, 0, 1, 1], [], []>} : vector<288x10xf32>, vector<10x4xf32>, vector<288x4xf32> -> vector<288x4xf32>
    %cst_47 = arith.constant 0.000000e+00 : f32
    %60 = vector.broadcast %cst_47 : f32 to vector<288x4xf32>
    %61 = arith.maximumf %59, %60 : vector<288x4xf32>
    %c7 = arith.constant 7 : index
    %c0_48 = arith.constant 0 : index
    %c0_49 = arith.constant 0 : index
    %62 = vector.load %arg4[%c7, %c0_48, %c0_49] : memref<9x4x16xf32, #tpu.memory_space<vmem>>, vector<1x4x16xf32>
    %63 = vector.shape_cast %62 : vector<1x4x16xf32> to vector<4x16xf32>
    %cst_50 = arith.constant dense<0.000000e+00> : vector<288x16xf32>
    %64 = tpu.matmul %61, %63, %cst_50 {dimension_numbers = #tpu.dot_dimension_numbers<[1], [0], [0], [1], [0, 0, 1, 1], [], []>} : vector<288x4xf32>, vector<4x16xf32>, vector<288x16xf32> -> vector<288x16xf32>
    %65 = arith.addf %57, %64 : vector<288x16xf32>
    %c2304 = arith.constant 2304 : index
    %c0_51 = arith.constant 0 : index
    %66 = vector.load %arg0[%c2304, %c0_51] : memref<2592x10xf32, #tpu.memory_space<vmem>>, vector<288x10xf32>
    %cst_52 = arith.constant dense<0.000000e+00> : vector<288x4xf32>
    %67 = tpu.matmul %66, %0, %cst_52 {dimension_numbers = #tpu.dot_dimension_numbers<[1], [0], [0], [1], [0, 0, 1, 1], [], []>} : vector<288x10xf32>, vector<10x4xf32>, vector<288x4xf32> -> vector<288x4xf32>
    %cst_53 = arith.constant 0.000000e+00 : f32
    %68 = vector.broadcast %cst_53 : f32 to vector<288x4xf32>
    %69 = arith.maximumf %67, %68 : vector<288x4xf32>
    %c8 = arith.constant 8 : index
    %c0_54 = arith.constant 0 : index
    %c0_55 = arith.constant 0 : index
    %70 = vector.load %arg4[%c8, %c0_54, %c0_55] : memref<9x4x16xf32, #tpu.memory_space<vmem>>, vector<1x4x16xf32>
    %71 = vector.shape_cast %70 : vector<1x4x16xf32> to vector<4x16xf32>
    %cst_56 = arith.constant dense<0.000000e+00> : vector<288x16xf32>
    %72 = tpu.matmul %69, %71, %cst_56 {dimension_numbers = #tpu.dot_dimension_numbers<[1], [0], [0], [1], [0, 0, 1, 1], [], []>} : vector<288x4xf32>, vector<4x16xf32>, vector<288x16xf32> -> vector<288x16xf32>
    %73 = arith.addf %65, %72 : vector<288x16xf32>
    %c0_57 = arith.constant 0 : index
    %c0_58 = arith.constant 0 : index
    %74 = vector.load %arg5[%c0_57, %c0_58] : memref<1x16xf32, #tpu.memory_space<vmem>>, vector<1x16xf32>
    %75 = vector.broadcast %74 : vector<1x16xf32> to vector<288x16xf32>
    %76 = arith.addf %73, %75 : vector<288x16xf32>
    %c0_59 = arith.constant 0 : index
    %c0_60 = arith.constant 0 : index
    %77 = vector.load %arg1[%c0_59, %c0_60] : memref<288x1xf32, #tpu.memory_space<vmem>>, vector<288x1xf32>
    %78 = vector.broadcast %77 : vector<288x1xf32> to vector<288x16xf32>
    %79 = arith.addf %76, %78 : vector<288x16xf32>
    %cst_61 = arith.constant 0.000000e+00 : f32
    %80 = vector.broadcast %cst_61 : f32 to vector<288x16xf32>
    %81 = arith.maximumf %79, %80 : vector<288x16xf32>
    %c0_62 = arith.constant 0 : index
    %c0_63 = arith.constant 0 : index
    %82 = vector.load %arg2[%c0_62, %c0_63] : memref<288x1xf32, #tpu.memory_space<vmem>>, vector<288x1xf32>
    %cst_64 = arith.constant 1.000000e+00 : f32
    %83 = vector.broadcast %cst_64 : f32 to vector<288x1xf32>
    %84 = arith.subf %82, %83 : vector<288x1xf32>
    %cst_65 = arith.constant 1.000000e+30 : f32
    %85 = vector.broadcast %cst_65 : f32 to vector<288x1xf32>
    %86 = arith.mulf %84, %85 : vector<288x1xf32>
    %87 = vector.broadcast %86 : vector<288x1xf32> to vector<288x16xf32>
    %88 = arith.addf %81, %87 : vector<288x16xf32>
    %89 = vector.extract_strided_slice %88 {offsets = [0, 0], sizes = [32, 16], strides = [1, 1]} : vector<288x16xf32> to vector<32x16xf32>
    %90 = vector.extract_strided_slice %88 {offsets = [32, 0], sizes = [32, 16], strides = [1, 1]} : vector<288x16xf32> to vector<32x16xf32>
    %91 = arith.maximumf %89, %90 : vector<32x16xf32>
    %92 = vector.extract_strided_slice %88 {offsets = [64, 0], sizes = [32, 16], strides = [1, 1]} : vector<288x16xf32> to vector<32x16xf32>
    %93 = arith.maximumf %91, %92 : vector<32x16xf32>
    %94 = vector.extract_strided_slice %88 {offsets = [96, 0], sizes = [32, 16], strides = [1, 1]} : vector<288x16xf32> to vector<32x16xf32>
    %95 = arith.maximumf %93, %94 : vector<32x16xf32>
    %96 = vector.extract_strided_slice %88 {offsets = [128, 0], sizes = [32, 16], strides = [1, 1]} : vector<288x16xf32> to vector<32x16xf32>
    %97 = arith.maximumf %95, %96 : vector<32x16xf32>
    %98 = vector.extract_strided_slice %88 {offsets = [160, 0], sizes = [32, 16], strides = [1, 1]} : vector<288x16xf32> to vector<32x16xf32>
    %99 = arith.maximumf %97, %98 : vector<32x16xf32>
    %100 = vector.extract_strided_slice %88 {offsets = [192, 0], sizes = [32, 16], strides = [1, 1]} : vector<288x16xf32> to vector<32x16xf32>
    %101 = arith.maximumf %99, %100 : vector<32x16xf32>
    %102 = vector.extract_strided_slice %88 {offsets = [224, 0], sizes = [32, 16], strides = [1, 1]} : vector<288x16xf32> to vector<32x16xf32>
    %103 = arith.maximumf %101, %102 : vector<32x16xf32>
    %104 = vector.extract_strided_slice %88 {offsets = [256, 0], sizes = [32, 16], strides = [1, 1]} : vector<288x16xf32> to vector<32x16xf32>
    %105 = arith.maximumf %103, %104 : vector<32x16xf32>
    %c0_66 = arith.constant 0 : index
    %c0_67 = arith.constant 0 : index
    %106 = vector.load %arg6[%c0_66, %c0_67] : memref<16x4xf32, #tpu.memory_space<vmem>>, vector<16x4xf32>
    %cst_68 = arith.constant dense<0.000000e+00> : vector<288x4xf32>
    %107 = tpu.matmul %81, %106, %cst_68 {dimension_numbers = #tpu.dot_dimension_numbers<[1], [0], [0], [1], [0, 0, 1, 1], [], []>} : vector<288x16xf32>, vector<16x4xf32>, vector<288x4xf32> -> vector<288x4xf32>
    %c0_69 = arith.constant 0 : index
    %c0_70 = arith.constant 0 : index
    %108 = vector.load %arg7[%c0_69, %c0_70] : memref<1x4xf32, #tpu.memory_space<vmem>>, vector<1x4xf32>
    %109 = vector.broadcast %108 : vector<1x4xf32> to vector<288x4xf32>
    %110 = arith.addf %107, %109 : vector<288x4xf32>
    %cst_71 = arith.constant 0.000000e+00 : f32
    %111 = vector.broadcast %cst_71 : f32 to vector<288x4xf32>
    %112 = arith.maximumf %110, %111 : vector<288x4xf32>
    %c0_72 = arith.constant 0 : index
    %c0_73 = arith.constant 0 : index
    %113 = vector.load %arg2[%c0_72, %c0_73] : memref<288x1xf32, #tpu.memory_space<vmem>>, vector<288x1xf32>
    %114 = vector.broadcast %113 : vector<288x1xf32> to vector<288x4xf32>
    %115 = arith.mulf %112, %114 : vector<288x4xf32>
    %cst_74 = arith.constant 0.000000e+00 : f32
    %116 = vector.broadcast %cst_74 : f32 to vector<32x4xf32>
    %117 = vector.extract_strided_slice %115 {offsets = [0, 0], sizes = [32, 4], strides = [1, 1]} : vector<288x4xf32> to vector<32x4xf32>
    %c0_75 = arith.constant 0 : index
    %c0_76 = arith.constant 0 : index
    %c0_77 = arith.constant 0 : index
    %118 = vector.load %arg8[%c0_75, %c0_76, %c0_77] : memref<9x4x4xf32, #tpu.memory_space<vmem>>, vector<1x4x4xf32>
    %119 = vector.shape_cast %118 : vector<1x4x4xf32> to vector<4x4xf32>
    %cst_78 = arith.constant dense<0.000000e+00> : vector<32x4xf32>
    %120 = tpu.matmul %117, %119, %cst_78 {dimension_numbers = #tpu.dot_dimension_numbers<[1], [0], [0], [1], [0, 0, 1, 1], [], []>} : vector<32x4xf32>, vector<4x4xf32>, vector<32x4xf32> -> vector<32x4xf32>
    %121 = arith.addf %116, %120 : vector<32x4xf32>
    %122 = vector.extract_strided_slice %115 {offsets = [32, 0], sizes = [32, 4], strides = [1, 1]} : vector<288x4xf32> to vector<32x4xf32>
    %c1_79 = arith.constant 1 : index
    %c0_80 = arith.constant 0 : index
    %c0_81 = arith.constant 0 : index
    %123 = vector.load %arg8[%c1_79, %c0_80, %c0_81] : memref<9x4x4xf32, #tpu.memory_space<vmem>>, vector<1x4x4xf32>
    %124 = vector.shape_cast %123 : vector<1x4x4xf32> to vector<4x4xf32>
    %cst_82 = arith.constant dense<0.000000e+00> : vector<32x4xf32>
    %125 = tpu.matmul %122, %124, %cst_82 {dimension_numbers = #tpu.dot_dimension_numbers<[1], [0], [0], [1], [0, 0, 1, 1], [], []>} : vector<32x4xf32>, vector<4x4xf32>, vector<32x4xf32> -> vector<32x4xf32>
    %126 = arith.addf %121, %125 : vector<32x4xf32>
    %127 = vector.extract_strided_slice %115 {offsets = [64, 0], sizes = [32, 4], strides = [1, 1]} : vector<288x4xf32> to vector<32x4xf32>
    %c2_83 = arith.constant 2 : index
    %c0_84 = arith.constant 0 : index
    %c0_85 = arith.constant 0 : index
    %128 = vector.load %arg8[%c2_83, %c0_84, %c0_85] : memref<9x4x4xf32, #tpu.memory_space<vmem>>, vector<1x4x4xf32>
    %129 = vector.shape_cast %128 : vector<1x4x4xf32> to vector<4x4xf32>
    %cst_86 = arith.constant dense<0.000000e+00> : vector<32x4xf32>
    %130 = tpu.matmul %127, %129, %cst_86 {dimension_numbers = #tpu.dot_dimension_numbers<[1], [0], [0], [1], [0, 0, 1, 1], [], []>} : vector<32x4xf32>, vector<4x4xf32>, vector<32x4xf32> -> vector<32x4xf32>
    %131 = arith.addf %126, %130 : vector<32x4xf32>
    %132 = vector.extract_strided_slice %115 {offsets = [96, 0], sizes = [32, 4], strides = [1, 1]} : vector<288x4xf32> to vector<32x4xf32>
    %c3_87 = arith.constant 3 : index
    %c0_88 = arith.constant 0 : index
    %c0_89 = arith.constant 0 : index
    %133 = vector.load %arg8[%c3_87, %c0_88, %c0_89] : memref<9x4x4xf32, #tpu.memory_space<vmem>>, vector<1x4x4xf32>
    %134 = vector.shape_cast %133 : vector<1x4x4xf32> to vector<4x4xf32>
    %cst_90 = arith.constant dense<0.000000e+00> : vector<32x4xf32>
    %135 = tpu.matmul %132, %134, %cst_90 {dimension_numbers = #tpu.dot_dimension_numbers<[1], [0], [0], [1], [0, 0, 1, 1], [], []>} : vector<32x4xf32>, vector<4x4xf32>, vector<32x4xf32> -> vector<32x4xf32>
    %136 = arith.addf %131, %135 : vector<32x4xf32>
    %137 = vector.extract_strided_slice %115 {offsets = [128, 0], sizes = [32, 4], strides = [1, 1]} : vector<288x4xf32> to vector<32x4xf32>
    %c4_91 = arith.constant 4 : index
    %c0_92 = arith.constant 0 : index
    %c0_93 = arith.constant 0 : index
    %138 = vector.load %arg8[%c4_91, %c0_92, %c0_93] : memref<9x4x4xf32, #tpu.memory_space<vmem>>, vector<1x4x4xf32>
    %139 = vector.shape_cast %138 : vector<1x4x4xf32> to vector<4x4xf32>
    %cst_94 = arith.constant dense<0.000000e+00> : vector<32x4xf32>
    %140 = tpu.matmul %137, %139, %cst_94 {dimension_numbers = #tpu.dot_dimension_numbers<[1], [0], [0], [1], [0, 0, 1, 1], [], []>} : vector<32x4xf32>, vector<4x4xf32>, vector<32x4xf32> -> vector<32x4xf32>
    %141 = arith.addf %136, %140 : vector<32x4xf32>
    %142 = vector.extract_strided_slice %115 {offsets = [160, 0], sizes = [32, 4], strides = [1, 1]} : vector<288x4xf32> to vector<32x4xf32>
    %c5_95 = arith.constant 5 : index
    %c0_96 = arith.constant 0 : index
    %c0_97 = arith.constant 0 : index
    %143 = vector.load %arg8[%c5_95, %c0_96, %c0_97] : memref<9x4x4xf32, #tpu.memory_space<vmem>>, vector<1x4x4xf32>
    %144 = vector.shape_cast %143 : vector<1x4x4xf32> to vector<4x4xf32>
    %cst_98 = arith.constant dense<0.000000e+00> : vector<32x4xf32>
    %145 = tpu.matmul %142, %144, %cst_98 {dimension_numbers = #tpu.dot_dimension_numbers<[1], [0], [0], [1], [0, 0, 1, 1], [], []>} : vector<32x4xf32>, vector<4x4xf32>, vector<32x4xf32> -> vector<32x4xf32>
    %146 = arith.addf %141, %145 : vector<32x4xf32>
    %147 = vector.extract_strided_slice %115 {offsets = [192, 0], sizes = [32, 4], strides = [1, 1]} : vector<288x4xf32> to vector<32x4xf32>
    %c6_99 = arith.constant 6 : index
    %c0_100 = arith.constant 0 : index
    %c0_101 = arith.constant 0 : index
    %148 = vector.load %arg8[%c6_99, %c0_100, %c0_101] : memref<9x4x4xf32, #tpu.memory_space<vmem>>, vector<1x4x4xf32>
    %149 = vector.shape_cast %148 : vector<1x4x4xf32> to vector<4x4xf32>
    %cst_102 = arith.constant dense<0.000000e+00> : vector<32x4xf32>
    %150 = tpu.matmul %147, %149, %cst_102 {dimension_numbers = #tpu.dot_dimension_numbers<[1], [0], [0], [1], [0, 0, 1, 1], [], []>} : vector<32x4xf32>, vector<4x4xf32>, vector<32x4xf32> -> vector<32x4xf32>
    %151 = arith.addf %146, %150 : vector<32x4xf32>
    %152 = vector.extract_strided_slice %115 {offsets = [224, 0], sizes = [32, 4], strides = [1, 1]} : vector<288x4xf32> to vector<32x4xf32>
    %c7_103 = arith.constant 7 : index
    %c0_104 = arith.constant 0 : index
    %c0_105 = arith.constant 0 : index
    %153 = vector.load %arg8[%c7_103, %c0_104, %c0_105] : memref<9x4x4xf32, #tpu.memory_space<vmem>>, vector<1x4x4xf32>
    %154 = vector.shape_cast %153 : vector<1x4x4xf32> to vector<4x4xf32>
    %cst_106 = arith.constant dense<0.000000e+00> : vector<32x4xf32>
    %155 = tpu.matmul %152, %154, %cst_106 {dimension_numbers = #tpu.dot_dimension_numbers<[1], [0], [0], [1], [0, 0, 1, 1], [], []>} : vector<32x4xf32>, vector<4x4xf32>, vector<32x4xf32> -> vector<32x4xf32>
    %156 = arith.addf %151, %155 : vector<32x4xf32>
    %157 = vector.extract_strided_slice %115 {offsets = [256, 0], sizes = [32, 4], strides = [1, 1]} : vector<288x4xf32> to vector<32x4xf32>
    %c8_107 = arith.constant 8 : index
    %c0_108 = arith.constant 0 : index
    %c0_109 = arith.constant 0 : index
    %158 = vector.load %arg8[%c8_107, %c0_108, %c0_109] : memref<9x4x4xf32, #tpu.memory_space<vmem>>, vector<1x4x4xf32>
    %159 = vector.shape_cast %158 : vector<1x4x4xf32> to vector<4x4xf32>
    %cst_110 = arith.constant dense<0.000000e+00> : vector<32x4xf32>
    %160 = tpu.matmul %157, %159, %cst_110 {dimension_numbers = #tpu.dot_dimension_numbers<[1], [0], [0], [1], [0, 0, 1, 1], [], []>} : vector<32x4xf32>, vector<4x4xf32>, vector<32x4xf32> -> vector<32x4xf32>
    %161 = arith.addf %156, %160 : vector<32x4xf32>
    %c0_111 = arith.constant 0 : index
    %c0_112 = arith.constant 0 : index
    %162 = vector.load %arg9[%c0_111, %c0_112] : memref<1x4xf32, #tpu.memory_space<vmem>>, vector<1x4xf32>
    %163 = vector.broadcast %162 : vector<1x4xf32> to vector<32x4xf32>
    %164 = arith.addf %161, %163 : vector<32x4xf32>
    %cst_113 = arith.constant 0.000000e+00 : f32
    %165 = vector.broadcast %cst_113 : f32 to vector<32x4xf32>
    %166 = arith.maximumf %164, %165 : vector<32x4xf32>
    %c0_114 = arith.constant 0 : index
    %c0_115 = arith.constant 0 : index
    %167 = vector.load %arg10[%c0_114, %c0_115] : memref<4x16xf32, #tpu.memory_space<vmem>>, vector<4x16xf32>
    %cst_116 = arith.constant dense<0.000000e+00> : vector<32x16xf32>
    %168 = tpu.matmul %166, %167, %cst_116 {dimension_numbers = #tpu.dot_dimension_numbers<[1], [0], [0], [1], [0, 0, 1, 1], [], []>} : vector<32x4xf32>, vector<4x16xf32>, vector<32x16xf32> -> vector<32x16xf32>
    %c0_117 = arith.constant 0 : index
    %c0_118 = arith.constant 0 : index
    %169 = vector.load %arg11[%c0_117, %c0_118] : memref<1x16xf32, #tpu.memory_space<vmem>>, vector<1x16xf32>
    %170 = vector.broadcast %169 : vector<1x16xf32> to vector<32x16xf32>
    %171 = arith.addf %168, %170 : vector<32x16xf32>
    %172 = arith.addf %171, %105 : vector<32x16xf32>
    %cst_119 = arith.constant 0.000000e+00 : f32
    %173 = vector.broadcast %cst_119 : f32 to vector<32x16xf32>
    %174 = arith.maximumf %172, %173 : vector<32x16xf32>
    %cst_120 = arith.constant 0.000000e+00 : f32
    %175 = vector.broadcast %cst_120 : f32 to vector<2x10xf32>
    %c0_121 = arith.constant 0 : index
    %c0_122 = arith.constant 0 : index
    %176 = vector.load %arg14[%c0_121, %c0_122] : memref<1x10xf32, #tpu.memory_space<vmem>>, vector<1x10xf32>
    %177 = vector.broadcast %176 : vector<1x10xf32> to vector<2x10xf32>
    %178 = arith.addf %175, %177 : vector<2x10xf32>
    %c0_123 = arith.constant 0 : index
    %c0_124 = arith.constant 0 : index
    %c0_125 = arith.constant 0 : index
    %179 = vector.load %arg12[%c0_123, %c0_124, %c0_125] : memref<4x2x32xf32, #tpu.memory_space<vmem>>, vector<1x2x32xf32>
    %180 = vector.shape_cast %179 : vector<1x2x32xf32> to vector<2x32xf32>
    %cst_126 = arith.constant dense<0.000000e+00> : vector<2x16xf32>
    %181 = tpu.matmul %180, %174, %cst_126 {dimension_numbers = #tpu.dot_dimension_numbers<[1], [0], [0], [1], [0, 0, 1, 1], [], []>} : vector<2x32xf32>, vector<32x16xf32>, vector<2x16xf32> -> vector<2x16xf32>
    %c0_127 = arith.constant 0 : index
    %c0_128 = arith.constant 0 : index
    %c0_129 = arith.constant 0 : index
    %182 = vector.load %arg13[%c0_127, %c0_128, %c0_129] : memref<4x16x10xf32, #tpu.memory_space<vmem>>, vector<1x16x10xf32>
    %183 = vector.shape_cast %182 : vector<1x16x10xf32> to vector<16x10xf32>
    %cst_130 = arith.constant dense<0.000000e+00> : vector<2x10xf32>
    %184 = tpu.matmul %181, %183, %cst_130 {dimension_numbers = #tpu.dot_dimension_numbers<[1], [0], [0], [1], [0, 0, 1, 1], [], []>} : vector<2x16xf32>, vector<16x10xf32>, vector<2x10xf32> -> vector<2x10xf32>
    %185 = arith.addf %178, %184 : vector<2x10xf32>
    %c1_131 = arith.constant 1 : index
    %c0_132 = arith.constant 0 : index
    %c0_133 = arith.constant 0 : index
    %186 = vector.load %arg12[%c1_131, %c0_132, %c0_133] : memref<4x2x32xf32, #tpu.memory_space<vmem>>, vector<1x2x32xf32>
    %187 = vector.shape_cast %186 : vector<1x2x32xf32> to vector<2x32xf32>
    %cst_134 = arith.constant dense<0.000000e+00> : vector<2x16xf32>
    %188 = tpu.matmul %187, %174, %cst_134 {dimension_numbers = #tpu.dot_dimension_numbers<[1], [0], [0], [1], [0, 0, 1, 1], [], []>} : vector<2x32xf32>, vector<32x16xf32>, vector<2x16xf32> -> vector<2x16xf32>
    %c1_135 = arith.constant 1 : index
    %c0_136 = arith.constant 0 : index
    %c0_137 = arith.constant 0 : index
    %189 = vector.load %arg13[%c1_135, %c0_136, %c0_137] : memref<4x16x10xf32, #tpu.memory_space<vmem>>, vector<1x16x10xf32>
    %190 = vector.shape_cast %189 : vector<1x16x10xf32> to vector<16x10xf32>
    %cst_138 = arith.constant dense<0.000000e+00> : vector<2x10xf32>
    %191 = tpu.matmul %188, %190, %cst_138 {dimension_numbers = #tpu.dot_dimension_numbers<[1], [0], [0], [1], [0, 0, 1, 1], [], []>} : vector<2x16xf32>, vector<16x10xf32>, vector<2x10xf32> -> vector<2x10xf32>
    %192 = arith.addf %185, %191 : vector<2x10xf32>
    %c2_139 = arith.constant 2 : index
    %c0_140 = arith.constant 0 : index
    %c0_141 = arith.constant 0 : index
    %193 = vector.load %arg12[%c2_139, %c0_140, %c0_141] : memref<4x2x32xf32, #tpu.memory_space<vmem>>, vector<1x2x32xf32>
    %194 = vector.shape_cast %193 : vector<1x2x32xf32> to vector<2x32xf32>
    %cst_142 = arith.constant dense<0.000000e+00> : vector<2x16xf32>
    %195 = tpu.matmul %194, %174, %cst_142 {dimension_numbers = #tpu.dot_dimension_numbers<[1], [0], [0], [1], [0, 0, 1, 1], [], []>} : vector<2x32xf32>, vector<32x16xf32>, vector<2x16xf32> -> vector<2x16xf32>
    %c2_143 = arith.constant 2 : index
    %c0_144 = arith.constant 0 : index
    %c0_145 = arith.constant 0 : index
    %196 = vector.load %arg13[%c2_143, %c0_144, %c0_145] : memref<4x16x10xf32, #tpu.memory_space<vmem>>, vector<1x16x10xf32>
    %197 = vector.shape_cast %196 : vector<1x16x10xf32> to vector<16x10xf32>
    %cst_146 = arith.constant dense<0.000000e+00> : vector<2x10xf32>
    %198 = tpu.matmul %195, %197, %cst_146 {dimension_numbers = #tpu.dot_dimension_numbers<[1], [0], [0], [1], [0, 0, 1, 1], [], []>} : vector<2x16xf32>, vector<16x10xf32>, vector<2x10xf32> -> vector<2x10xf32>
    %199 = arith.addf %192, %198 : vector<2x10xf32>
    %c3_147 = arith.constant 3 : index
    %c0_148 = arith.constant 0 : index
    %c0_149 = arith.constant 0 : index
    %200 = vector.load %arg12[%c3_147, %c0_148, %c0_149] : memref<4x2x32xf32, #tpu.memory_space<vmem>>, vector<1x2x32xf32>
    %201 = vector.shape_cast %200 : vector<1x2x32xf32> to vector<2x32xf32>
    %cst_150 = arith.constant dense<0.000000e+00> : vector<2x16xf32>
    %202 = tpu.matmul %201, %174, %cst_150 {dimension_numbers = #tpu.dot_dimension_numbers<[1], [0], [0], [1], [0, 0, 1, 1], [], []>} : vector<2x32xf32>, vector<32x16xf32>, vector<2x16xf32> -> vector<2x16xf32>
    %c3_151 = arith.constant 3 : index
    %c0_152 = arith.constant 0 : index
    %c0_153 = arith.constant 0 : index
    %203 = vector.load %arg13[%c3_151, %c0_152, %c0_153] : memref<4x16x10xf32, #tpu.memory_space<vmem>>, vector<1x16x10xf32>
    %204 = vector.shape_cast %203 : vector<1x16x10xf32> to vector<16x10xf32>
    %cst_154 = arith.constant dense<0.000000e+00> : vector<2x10xf32>
    %205 = tpu.matmul %202, %204, %cst_154 {dimension_numbers = #tpu.dot_dimension_numbers<[1], [0], [0], [1], [0, 0, 1, 1], [], []>} : vector<2x16xf32>, vector<16x10xf32>, vector<2x10xf32> -> vector<2x10xf32>
    %206 = arith.addf %199, %205 : vector<2x10xf32>
    %c0_155 = arith.constant 0 : index
    %c0_156 = arith.constant 0 : index
    %207 = vector.load %arg15[%c0_155, %c0_156] : memref<2x10xf32, #tpu.memory_space<vmem>>, vector<2x10xf32>
    tpu.vector_store %arg15[%c0_155, %c0_156], %206 {strides = array<i32>} : memref<2x10xf32, #tpu.memory_space<vmem>>, vector<2x10xf32>,
    return
  }
}

</mosaic_0001>

<llo_original>
// kernel: forward.1
$region0: #{forward.1}
  #allocation0 [shape = 'u32[]', space=smem, size = 0x4, offset = 0x4, fixed_abs, tag = 'smem constant byte address 0x4 - core index']
  #allocation1 [shape = 'u32[144,128]{1,0:T(1,128)}', space=vmem, size = 0x12000, scoped, tag = 'internal scratch']
  %s0 = inlined_call_operand.vmem [shape: f32[2592,10], index: 0, kind: input, shape index: {}]
  %s1 = inlined_call_operand.vmem [shape: f32[288,1], index: 1, kind: input, shape index: {}]
  %s2 = inlined_call_operand.vmem [shape: f32[288,1], index: 2, kind: input, shape index: {}]
  %s3 = inlined_call_operand.vmem [shape: f32[10,4], index: 3, kind: input, shape index: {}]
  %s4 = inlined_call_operand.vmem [shape: f32[9,4,16], index: 4, kind: input, shape index: {}]
  %s5 = inlined_call_operand.vmem [shape: f32[1,16], index: 5, kind: input, shape index: {}]
  %s6 = inlined_call_operand.vmem [shape: f32[16,4], index: 6, kind: input, shape index: {}]
  %s7 = inlined_call_operand.vmem [shape: f32[1,4], index: 7, kind: input, shape index: {}]
  %s8 = inlined_call_operand.vmem [shape: f32[9,4,4], index: 8, kind: input, shape index: {}]
  %s9 = inlined_call_operand.vmem [shape: f32[1,4], index: 9, kind: input, shape index: {}]
  %s10 = inlined_call_operand.vmem [shape: f32[4,16], index: 10, kind: input, shape index: {}]
  %s11 = inlined_call_operand.vmem [shape: f32[1,16], index: 11, kind: input, shape index: {}]
  %s12 = inlined_call_operand.vmem [shape: f32[4,2,32], index: 12, kind: input, shape index: {}]
  %s13 = inlined_call_operand.vmem [shape: f32[4,16,10], index: 13, kind: input, shape index: {}]
  %s14 = inlined_call_operand.vmem [shape: f32[1,10], index: 14, kind: input, shape index: {}]
  %s15 = inlined_call_operand.hbm [shape: f32[2,10], index: 15, kind: output, shape index: {}]
  %s16 = sld [smem:[#allocation0]]
  $region70: #{forward.1} parent=0
    _
  %s18 = ssub.s32 1, %s16
  %s19 = scalar_select 0, %s18, %s16
  $region1: #{forward.1} parent=0
    #allocation2 [shape = 'u8[1024]{0}', space=vmem, size = 0x400, scoped, tag = 'output window, operand 0, single buffered']
    #allocation3 [shape = 's32[1]{0}', space=sflag, size = 0x4, scoped, tag = 'scoped memory for forward.1']
    %20 = vsyncpa [#allocation3], 0
    // Predicated region
    $region2: #{forward.1} parent=1 // pred_check
      _
    $region3: #{forward.1} parent=1 // pred_check_branch
      %22 = sbr.rel (0) target = $region5
    $region4: #{forward.1} parent=1 // pred_region
      _
    $region5: #{forward.1} parent=1 // pred_fallthru
      _
    // Predicated region
    $region6: #{forward.1} parent=1 // pred_check
      _
    $region7: #{forward.1} parent=1 // pred_check_branch
      %24 = sbr.rel (0) target = $region9
    $region8: #{forward.1} parent=1 // pred_region
      _
    $region9: #{forward.1} parent=1 // pred_fallthru
      _
    // Predicated region
    $region10: #{forward.1} parent=1 // pred_check
      _
    $region11: #{forward.1} parent=1 // pred_check_branch
      %26 = sbr.rel (0) target = $region13
    $region12: #{forward.1} parent=1 // pred_region
      _
    $region13: #{forward.1} parent=1 // pred_fallthru
      _
    // Predicated region
    $region14: #{forward.1} parent=1 // pred_check
      _
    $region15: #{forward.1} parent=1 // pred_check_branch
      %28 = sbr.rel (0) target = $region17
    $region16: #{forward.1} parent=1 // pred_region
      _
    $region17: #{forward.1} parent=1 // pred_fallthru
      _
    // Predicated region
    $region18: #{forward.1} parent=1 // pred_check
      _
    $region19: #{forward.1} parent=1 // pred_check_branch
      %30 = sbr.rel (0) target = $region21
    $region20: #{forward.1} parent=1 // pred_region
      _
    $region21: #{forward.1} parent=1 // pred_fallthru
      _
    // Predicated region
    $region22: #{forward.1} parent=1 // pred_check
      _
    $region23: #{forward.1} parent=1 // pred_check_branch
      %32 = sbr.rel (0) target = $region25
    $region24: #{forward.1} parent=1 // pred_region
      _
    $region25: #{forward.1} parent=1 // pred_fallthru
      _
    // Predicated region
    $region26: #{forward.1} parent=1 // pred_check
      _
    $region27: #{forward.1} parent=1 // pred_check_branch
      %34 = sbr.rel (0) target = $region29
    $region28: #{forward.1} parent=1 // pred_region
      _
    $region29: #{forward.1} parent=1 // pred_fallthru
      _
    // Predicated region
    $region30: #{forward.1} parent=1 // pred_check
      _
    $region31: #{forward.1} parent=1 // pred_check_branch
      %36 = sbr.rel (0) target = $region33
    $region32: #{forward.1} parent=1 // pred_region
      _
    $region33: #{forward.1} parent=1 // pred_fallthru
      _
    // Predicated region
    $region34: #{forward.1} parent=1 // pred_check
      _
    $region35: #{forward.1} parent=1 // pred_check_branch
      %38 = sbr.rel (0) target = $region37
    $region36: #{forward.1} parent=1 // pred_region
      _
    $region37: #{forward.1} parent=1 // pred_fallthru
      _
    // Predicated region
    $region38: #{forward.1} parent=1 // pred_check
      _
    $region39: #{forward.1} parent=1 // pred_check_branch
      %40 = sbr.rel (0) target = $region41
    $region40: #{forward.1} parent=1 // pred_region
      _
    $region41: #{forward.1} parent=1 // pred_fallthru
      _
    // Predicated region
    $region42: #{forward.1} parent=1 // pred_check
      _
    $region43: #{forward.1} parent=1 // pred_check_branch
      %42 = sbr.rel (0) target = $region45
    $region44: #{forward.1} parent=1 // pred_region
      _
    $region45: #{forward.1} parent=1 // pred_fallthru
      _
    // Predicated region
    $region46: #{forward.1} parent=1 // pred_check
      _
    $region47: #{forward.1} parent=1 // pred_check_branch
      %44 = sbr.rel (0) target = $region49
    $region48: #{forward.1} parent=1 // pred_region
      _
    $region49: #{forward.1} parent=1 // pred_fallthru
      _
    // Predicated region
    $region50: #{forward.1} parent=1 // pred_check
      _
    $region51: #{forward.1} parent=1 // pred_check_branch
      %46 = sbr.rel (0) target = $region53
    $region52: #{forward.1} parent=1 // pred_region
      _
    $region53: #{forward.1} parent=1 // pred_fallthru
      _
    // Predicated region
    $region54: #{forward.1} parent=1 // pred_check
      _
    $region55: #{forward.1} parent=1 // pred_check_branch
      %48 = sbr.rel (0) target = $region57
    $region56: #{forward.1} parent=1 // pred_region
      _
    $region57: #{forward.1} parent=1 // pred_fallthru
      _
    // Predicated region
    $region58: #{forward.1} parent=1 // pred_check
      _
    $region59: #{forward.1} parent=1 // pred_check_branch
      %50 = sbr.rel (0) target = $region61
    $region60: #{forward.1} parent=1 // pred_region
      _
    $region61: #{forward.1} parent=1 // pred_fallthru
      _
    %v51 = vld [vmem:[%s3] sm:$0xff]
    %v52 = vld [vmem:[%s3 + $0x8] sm:$0x3]
    %v53 = vld [vmem:[%s0] sm:$0xff]
    %v54 = vld [vmem:[%s0 + $0x8] sm:$0xff]
    %v55 = vld [vmem:[%s0 + $0x10] sm:$0xff]
    %v56 = vld [vmem:[%s0 + $0x18] sm:$0xff]
    %v57 = vld [vmem:[%s0 + $0x20] sm:$0xff]
    %v58 = vld [vmem:[%s0 + $0x28] sm:$0xff]
    %v59 = vld [vmem:[%s0 + $0x30] sm:$0xff]
    %v60 = vld [vmem:[%s0 + $0x38] sm:$0xff]
    %v61 = vld [vmem:[%s0 + $0x40] sm:$0xff]
    %v62 = vld [vmem:[%s0 + $0x48] sm:$0xff]
    %v63 = vld [vmem:[%s0 + $0x50] sm:$0xff]
    %v64 = vld [vmem:[%s0 + $0x58] sm:$0xff]
    %v65 = vld [vmem:[%s0 + $0x60] sm:$0xff]
    %v66 = vld [vmem:[%s0 + $0x68] sm:$0xff]
    %v67 = vld [vmem:[%s0 + $0x70] sm:$0xff]
    %v68 = vld [vmem:[%s0 + $0x78] sm:$0xff]
    %v69 = vld [vmem:[%s0 + $0x80] sm:$0xff]
    %v70 = vld [vmem:[%s0 + $0x88] sm:$0xff]
    %v71 = vld [vmem:[%s0 + $0x90] sm:$0xff]
    %v72 = vld [vmem:[%s0 + $0x98] sm:$0xff]
    %v73 = vld [vmem:[%s0 + $0xa0] sm:$0xff]
    %v74 = vld [vmem:[%s0 + $0xa8] sm:$0xff]
    %v75 = vld [vmem:[%s0 + $0xb0] sm:$0xff]
    %v76 = vld [vmem:[%s0 + $0xb8] sm:$0xff]
    %v77 = vld [vmem:[%s0 + $0xc0] sm:$0xff]
    %v78 = vld [vmem:[%s0 + $0xc8] sm:$0xff]
    %v79 = vld [vmem:[%s0 + $0xd0] sm:$0xff]
    %v80 = vld [vmem:[%s0 + $0xd8] sm:$0xff]
    %v81 = vld [vmem:[%s0 + $0xe0] sm:$0xff]
    %v82 = vld [vmem:[%s0 + $0xe8] sm:$0xff]
    %v83 = vld [vmem:[%s0 + $0xf0] sm:$0xff]
    %v84 = vld [vmem:[%s0 + $0xf8] sm:$0xff]
    %v85 = vld [vmem:[%s0 + $0x100] sm:$0xff]
    %v86 = vld [vmem:[%s0 + $0x108] sm:$0xff]
    %v87 = vld [vmem:[%s0 + $0x110] sm:$0xff]
    %v88 = vld [vmem:[%s0 + $0x118] sm:$0xff]
    %vm89 = vcmask 80896
    %v91 = vsel %vm89, %v53, 0
    %v94 = vsel %vm89, %v54, 0
    %v97 = vsel %vm89, %v55, 0
    %v100 = vsel %vm89, %v56, 0
    %v103 = vsel %vm89, %v57, 0
    %v106 = vsel %vm89, %v58, 0
    %v109 = vsel %vm89, %v59, 0
    %v112 = vsel %vm89, %v60, 0
    %v115 = vsel %vm89, %v61, 0
    %v118 = vsel %vm89, %v62, 0
    %v121 = vsel %vm89, %v63, 0
    %v124 = vsel %vm89, %v64, 0
    %v127 = vsel %vm89, %v65, 0
    %v130 = vsel %vm89, %v66, 0
    %v133 = vsel %vm89, %v67, 0
    %v136 = vsel %vm89, %v68, 0
    %v139 = vsel %vm89, %v69, 0
    %v142 = vsel %vm89, %v70, 0
    %v145 = vsel %vm89, %v71, 0
    %v148 = vsel %vm89, %v72, 0
    %v151 = vsel %vm89, %v73, 0
    %v154 = vsel %vm89, %v74, 0
    %v157 = vsel %vm89, %v75, 0
    %v160 = vsel %vm89, %v76, 0
    %v163 = vsel %vm89, %v77, 0
    %v166 = vsel %vm89, %v78, 0
    %v169 = vsel %vm89, %v79, 0
    %v172 = vsel %vm89, %v80, 0
    %v175 = vsel %vm89, %v81, 0
    %v178 = vsel %vm89, %v82, 0
    %v181 = vsel %vm89, %v83, 0
    %v184 = vsel %vm89, %v84, 0
    %v187 = vsel %vm89, %v85, 0
    %v190 = vsel %vm89, %v86, 0
    %v193 = vsel %vm89, %v87, 0
    %v196 = vsel %vm89, %v88, 0
    %vm198 = vcmask 1041408
    %v200 = vsel %vm198, %v52, 0
    %202 = vmatprep.subr.mxu0 0.0
    %203 = vmatpush1.msra.mxu0 0.0
    %204 = vmatprep.subr.mxu0 0.0
    %205 = vmatpush1.msra.mxu0 0.0
    %206 = vmatprep.subr.mxu0 0.0
    %207 = vmatpush1.msra.mxu0 0.0
    %208 = vmatprep.subr.mxu0 0.0
    %209 = vmatpush1.msra.mxu0 0.0
    %210 = vmatprep.subr.mxu0 0.0
    %211 = vmatpush1.msra.mxu0 0.0
    %212 = vmatprep.subr.mxu0 0.0
    %213 = vmatpush1.msra.mxu0 0.0
    %214 = vmatprep.subr.mxu0 0.0
    %215 = vmatpush1.msra.mxu0 0.0
    %216 = vmatprep.subr.mxu0 0.0
    %217 = vmatpush1.msra.mxu0 0.0
    %218 = vmatprep.subr.mxu0 0.0
    %219 = vmatpush1.msra.mxu0 0.0
    %220 = vmatprep.subr.mxu0 0.0
    %221 = vmatpush1.msra.mxu0 0.0
    %222 = vmatprep.subr.mxu0 0.0
    %223 = vmatpush1.msra.mxu0 0.0
    %224 = vmatprep.subr.mxu0 0.0
    %225 = vmatpush1.msra.mxu0 0.0
    %226 = vmatprep.subr.mxu0 0.0
    %227 = vmatpush1.msra.mxu0 0.0
    %228 = vmatprep.subr.mxu0 0.0
    %229 = vmatpush1.msra.mxu0 0.0
    %230 = vmatprep.subr.mxu0 0.0
    %231 = vmatpush1.msra.mxu0 %v200
    %232 = vmatprep.subr.mxu0 0.0
    %233 = vmatpush1.msra.mxu0 %v51
    %234 = vmatprep.subr.mxu0 0.0
    %235 = vmatpush2.msra.mxu0 0.0
    %236 = vmatprep.subr.mxu0 0.0
    %237 = vmatpush2.msra.mxu0 0.0
    %238 = vmatprep.subr.mxu0 0.0
    %239 = vmatpush2.msra.mxu0 0.0
    %240 = vmatprep.subr.mxu0 0.0
    %241 = vmatpush2.msra.mxu0 0.0
    %242 = vmatprep.subr.mxu0 0.0
    %243 = vmatpush2.msra.mxu0 0.0
    %244 = vmatprep.subr.mxu0 0.0
    %245 = vmatpush2.msra.mxu0 0.0
    %246 = vmatprep.subr.mxu0 0.0
    %247 = vmatpush2.msra.mxu0 0.0
    %248 = vmatprep.subr.mxu0 0.0
    %249 = vmatpush2.msra.mxu0 0.0
    %250 = vmatprep.subr.mxu0 0.0
    %251 = vmatpush2.msra.mxu0 0.0
    %252 = vmatprep.subr.mxu0 0.0
    %253 = vmatpush2.msra.mxu0 0.0
    %254 = vmatprep.subr.mxu0 0.0
    %255 = vmatpush2.msra.mxu0 0.0
    %256 = vmatprep.subr.mxu0 0.0
    %257 = vmatpush2.msra.mxu0 0.0
    %258 = vmatprep.subr.mxu0 0.0
    %259 = vmatpush2.msra.mxu0 0.0
    %260 = vmatprep.subr.mxu0 0.0
    %261 = vmatpush2.msra.mxu0 0.0
    %262 = vmatprep.subr.mxu0 0.0
    %263 = vmatpush2.msra.mxu0 0.0
    %264 = vmatprep.subr.mxu0 0.0
    %265 = vmatpush2.msra.mxu0 0.0
    %266 = vmatprep.mubr.f32.mxu0 0.0
    %267 = vmatmul.mubr.f32.gmra.mxu0 %v91
    %v268 = vpop.f32.mrf.mxu0
    %v269 = vadd.f32 0.0, %v268
    %v270 = vpop.f32.mrf.mxu0
    %271 = vmatprep.mubr.f32.mxu0 0.0
    %272 = vmatmul.mubr.f32.gmra.mxu0 %v94
    %v273 = vpop.f32.mrf.mxu0
    %v274 = vadd.f32 0.0, %v273
    %v275 = vpop.f32.mrf.mxu0
    %276 = vmatprep.mubr.f32.mxu0 0.0
    %277 = vmatmul.mubr.f32.gmra.mxu0 %v97
    %v278 = vpop.f32.mrf.mxu0
    %v279 = vadd.f32 0.0, %v278
    %v280 = vpop.f32.mrf.mxu0
    %281 = vmatprep.mubr.f32.mxu0 0.0
    %282 = vmatmul.mubr.f32.gmra.mxu0 %v100
    %v283 = vpop.f32.mrf.mxu0
    %v284 = vadd.f32 0.0, %v283
    %v285 = vpop.f32.mrf.mxu0
    %286 = vmatprep.mubr.f32.mxu0 0.0
    %287 = vmatmul.mubr.f32.gmra.mxu0 %v103
    %v288 = vpop.f32.mrf.mxu0
    %v289 = vadd.f32 0.0, %v288
    %v290 = vpop.f32.mrf.mxu0
    %291 = vmatprep.mubr.f32.mxu0 0.0
    %292 = vmatmul.mubr.f32.gmra.mxu0 %v106
    %v293 = vpop.f32.mrf.mxu0
    %v294 = vadd.f32 0.0, %v293
    %v295 = vpop.f32.mrf.mxu0
    %296 = vmatprep.mubr.f32.mxu0 0.0
    %297 = vmatmul.mubr.f32.gmra.mxu0 %v109
    %v298 = vpop.f32.mrf.mxu0
    %v299 = vadd.f32 0.0, %v298
    %v300 = vpop.f32.mrf.mxu0
    %301 = vmatprep.mubr.f32.mxu0 0.0
    %302 = vmatmul.mubr.f32.gmra.mxu0 %v112
    %v303 = vpop.f32.mrf.mxu0
    %v304 = vadd.f32 0.0, %v303
    %v305 = vpop.f32.mrf.mxu0
    %306 = vmatprep.mubr.f32.mxu0 0.0
    %307 = vmatmul.mubr.f32.gmra.mxu0 %v115
    %v308 = vpop.f32.mrf.mxu0
    %v309 = vadd.f32 0.0, %v308
    %v310 = vpop.f32.mrf.mxu0
    %311 = vmatprep.mubr.f32.mxu0 0.0
    %312 = vmatmul.mubr.f32.gmra.mxu0 %v118
    %v313 = vpop.f32.mrf.mxu0
    %v314 = vadd.f32 0.0, %v313
    %v315 = vpop.f32.mrf.mxu0
    %316 = vmatprep.mubr.f32.mxu0 0.0
    %317 = vmatmul.mubr.f32.gmra.mxu0 %v121
    %v318 = vpop.f32.mrf.mxu0
    %v319 = vadd.f32 0.0, %v318
    %v320 = vpop.f32.mrf.mxu0
    %321 = vmatprep.mubr.f32.mxu0 0.0
    %322 = vmatmul.mubr.f32.gmra.mxu0 %v124
    %v323 = vpop.f32.mrf.mxu0
    %v324 = vadd.f32 0.0, %v323
    %v325 = vpop.f32.mrf.mxu0
    %326 = vmatprep.mubr.f32.mxu0 0.0
    %327 = vmatmul.mubr.f32.gmra.mxu0 %v127
    %v328 = vpop.f32.mrf.mxu0
    %v329 = vadd.f32 0.0, %v328
    %v330 = vpop.f32.mrf.mxu0
    %331 = vmatprep.mubr.f32.mxu0 0.0
    %332 = vmatmul.mubr.f32.gmra.mxu0 %v130
    %v333 = vpop.f32.mrf.mxu0
    %v334 = vadd.f32 0.0, %v333
    %v335 = vpop.f32.mrf.mxu0
    %336 = vmatprep.mubr.f32.mxu0 0.0
    %337 = vmatmul.mubr.f32.gmra.mxu0 %v133
    %v338 = vpop.f32.mrf.mxu0
    %v339 = vadd.f32 0.0, %v338
    %v340 = vpop.f32.mrf.mxu0
    %341 = vmatprep.mubr.f32.mxu0 0.0
    %342 = vmatmul.mubr.f32.gmra.mxu0 %v136
    %v343 = vpop.f32.mrf.mxu0
    %v344 = vadd.f32 0.0, %v343
    %v345 = vpop.f32.mrf.mxu0
    %346 = vmatprep.mubr.f32.mxu0 0.0
    %347 = vmatmul.mubr.f32.gmra.mxu0 %v139
    %v348 = vpop.f32.mrf.mxu0
    %v349 = vadd.f32 0.0, %v348
    %v350 = vpop.f32.mrf.mxu0
    %351 = vmatprep.mubr.f32.mxu0 0.0
    %352 = vmatmul.mubr.f32.gmra.mxu0 %v142
    %v353 = vpop.f32.mrf.mxu0
    %v354 = vadd.f32 0.0, %v353
    %v355 = vpop.f32.mrf.mxu0
    %356 = vmatprep.mubr.f32.mxu0 0.0
    %357 = vmatmul.mubr.f32.gmra.mxu0 %v145
    %v358 = vpop.f32.mrf.mxu0
    %v359 = vadd.f32 0.0, %v358
    %v360 = vpop.f32.mrf.mxu0
    %361 = vmatprep.mubr.f32.mxu0 0.0
    %362 = vmatmul.mubr.f32.gmra.mxu0 %v148
    %v363 = vpop.f32.mrf.mxu0
    %v364 = vadd.f32 0.0, %v363
    %v365 = vpop.f32.mrf.mxu0
    %366 = vmatprep.mubr.f32.mxu0 0.0
    %367 = vmatmul.mubr.f32.gmra.mxu0 %v151
    %v368 = vpop.f32.mrf.mxu0
    %v369 = vadd.f32 0.0, %v368
    %v370 = vpop.f32.mrf.mxu0
    %371 = vmatprep.mubr.f32.mxu0 0.0
    %372 = vmatmul.mubr.f32.gmra.mxu0 %v154
    %v373 = vpop.f32.mrf.mxu0
    %v374 = vadd.f32 0.0, %v373
    %v375 = vpop.f32.mrf.mxu0
    %376 = vmatprep.mubr.f32.mxu0 0.0
    %377 = vmatmul.mubr.f32.gmra.mxu0 %v157
    %v378 = vpop.f32.mrf.mxu0
    %v379 = vadd.f32 0.0, %v378
    %v380 = vpop.f32.mrf.mxu0
    %381 = vmatprep.mubr.f32.mxu0 0.0
    %382 = vmatmul.mubr.f32.gmra.mxu0 %v160
    %v383 = vpop.f32.mrf.mxu0
    %v384 = vadd.f32 0.0, %v383
    %v385 = vpop.f32.mrf.mxu0
    %386 = vmatprep.mubr.f32.mxu0 0.0
    %387 = vmatmul.mubr.f32.gmra.mxu0 %v163
    %v388 = vpop.f32.mrf.mxu0
    %v389 = vadd.f32 0.0, %v388
    %v390 = vpop.f32.mrf.mxu0
    %391 = vmatprep.mubr.f32.mxu0 0.0
    %392 = vmatmul.mubr.f32.gmra.mxu0 %v166
    %v393 = vpop.f32.mrf.mxu0
    %v394 = vadd.f32 0.0, %v393
    %v395 = vpop.f32.mrf.mxu0
    %396 = vmatprep.mubr.f32.mxu0 0.0
    %397 = vmatmul.mubr.f32.gmra.mxu0 %v169
    %v398 = vpop.f32.mrf.mxu0
    %v399 = vadd.f32 0.0, %v398
    %v400 = vpop.f32.mrf.mxu0
    %401 = vmatprep.mubr.f32.mxu0 0.0
    %402 = vmatmul.mubr.f32.gmra.mxu0 %v172
    %v403 = vpop.f32.mrf.mxu0
    %v404 = vadd.f32 0.0, %v403
    %v405 = vpop.f32.mrf.mxu0
    %406 = vmatprep.mubr.f32.mxu0 0.0
    %407 = vmatmul.mubr.f32.gmra.mxu0 %v175
    %v408 = vpop.f32.mrf.mxu0
    %v409 = vadd.f32 0.0, %v408
    %v410 = vpop.f32.mrf.mxu0
    %411 = vmatprep.mubr.f32.mxu0 0.0
    %412 = vmatmul.mubr.f32.gmra.mxu0 %v178
    %v413 = vpop.f32.mrf.mxu0
    %v414 = vadd.f32 0.0, %v413
    %v415 = vpop.f32.mrf.mxu0
    %416 = vmatprep.mubr.f32.mxu0 0.0
    %417 = vmatmul.mubr.f32.gmra.mxu0 %v181
    %v418 = vpop.f32.mrf.mxu0
    %v419 = vadd.f32 0.0, %v418
    %v420 = vpop.f32.mrf.mxu0
    %421 = vmatprep.mubr.f32.mxu0 0.0
    %422 = vmatmul.mubr.f32.gmra.mxu0 %v184
    %v423 = vpop.f32.mrf.mxu0
    %v424 = vadd.f32 0.0, %v423
    %v425 = vpop.f32.mrf.mxu0
    %426 = vmatprep.mubr.f32.mxu0 0.0
    %427 = vmatmul.mubr.f32.gmra.mxu0 %v187
    %v428 = vpop.f32.mrf.mxu0
    %v429 = vadd.f32 0.0, %v428
    %v430 = vpop.f32.mrf.mxu0
    %431 = vmatprep.mubr.f32.mxu0 0.0
    %432 = vmatmul.mubr.f32.gmra.mxu0 %v190
    %v433 = vpop.f32.mrf.mxu0
    %v434 = vadd.f32 0.0, %v433
    %v435 = vpop.f32.mrf.mxu0
    %436 = vmatprep.mubr.f32.mxu0 0.0
    %437 = vmatmul.mubr.f32.gmra.mxu0 %v193
    %v438 = vpop.f32.mrf.mxu0
    %v439 = vadd.f32 0.0, %v438
    %v440 = vpop.f32.mrf.mxu0
    %441 = vmatprep.mubr.f32.mxu0 0.0
    %442 = vmatmul.mubr.f32.gmra.mxu0 %v196
    %v443 = vpop.f32.mrf.mxu0
    %v444 = vadd.f32 0.0, %v443
    %v445 = vpop.f32.mrf.mxu0
    %446 = vdwg.mxu0
    %v447 = vmax.f32 %v269, 0.0
    %v448 = vmax.f32 %v274, 0.0
    %v449 = vmax.f32 %v279, 0.0
    %v450 = vmax.f32 %v284, 0.0
    %v451 = vmax.f32 %v289, 0.0
    %v452 = vmax.f32 %v294, 0.0
    %v453 = vmax.f32 %v299, 0.0
    %v454 = vmax.f32 %v304, 0.0
    %v455 = vmax.f32 %v309, 0.0
    %v456 = vmax.f32 %v314, 0.0
    %v457 = vmax.f32 %v319, 0.0
    %v458 = vmax.f32 %v324, 0.0
    %v459 = vmax.f32 %v329, 0.0
    %v460 = vmax.f32 %v334, 0.0
    %v461 = vmax.f32 %v339, 0.0
    %v462 = vmax.f32 %v344, 0.0
    %v463 = vmax.f32 %v349, 0.0
    %v464 = vmax.f32 %v354, 0.0
    %v465 = vmax.f32 %v359, 0.0
    %v466 = vmax.f32 %v364, 0.0
    %v467 = vmax.f32 %v369, 0.0
    %v468 = vmax.f32 %v374, 0.0
    %v469 = vmax.f32 %v379, 0.0
    %v470 = vmax.f32 %v384, 0.0
    %v471 = vmax.f32 %v389, 0.0
    %v472 = vmax.f32 %v394, 0.0
    %v473 = vmax.f32 %v399, 0.0
    %v474 = vmax.f32 %v404, 0.0
    %v475 = vmax.f32 %v409, 0.0
    %v476 = vmax.f32 %v414, 0.0
    %v477 = vmax.f32 %v419, 0.0
    %v478 = vmax.f32 %v424, 0.0
    %v479 = vmax.f32 %v429, 0.0
    %v480 = vmax.f32 %v434, 0.0
    %v481 = vmax.f32 %v439, 0.0
    %v482 = vmax.f32 %v444, 0.0
    %v483 = vld [vmem:[%s4] sm:$0xf]
    %v484 = vld [vmem:[%s0 + $0x120] sm:$0xff]
    %v485 = vld [vmem:[%s0 + $0x128] sm:$0xff]
    %v486 = vld [vmem:[%s0 + $0x130] sm:$0xff]
    %v487 = vld [vmem:[%s0 + $0x138] sm:$0xff]
    %v488 = vld [vmem:[%s0 + $0x140] sm:$0xff]
    %v489 = vld [vmem:[%s0 + $0x148] sm:$0xff]
    %v490 = vld [vmem:[%s0 + $0x150] sm:$0xff]
    %v491 = vld [vmem:[%s0 + $0x158] sm:$0xff]
    %v492 = vld [vmem:[%s0 + $0x160] sm:$0xff]
    %v493 = vld [vmem:[%s0 + $0x168] sm:$0xff]
    %v494 = vld [vmem:[%s0 + $0x170] sm:$0xff]
    %v495 = vld [vmem:[%s0 + $0x178] sm:$0xff]
    %v496 = vld [vmem:[%s0 + $0x180] sm:$0xff]
    %v497 = vld [vmem:[%s0 + $0x188] sm:$0xff]
    %v498 = vld [vmem:[%s0 + $0x190] sm:$0xff]
    %v499 = vld [vmem:[%s0 + $0x198] sm:$0xff]
    %v500 = vld [vmem:[%s0 + $0x1a0] sm:$0xff]
    %v501 = vld [vmem:[%s0 + $0x1a8] sm:$0xff]
    %v502 = vld [vmem:[%s0 + $0x1b0] sm:$0xff]
    %v503 = vld [vmem:[%s0 + $0x1b8] sm:$0xff]
    %v504 = vld [vmem:[%s0 + $0x1c0] sm:$0xff]
    %v505 = vld [vmem:[%s0 + $0x1c8] sm:$0xff]
    %v506 = vld [vmem:[%s0 + $0x1d0] sm:$0xff]
    %v507 = vld [vmem:[%s0 + $0x1d8] sm:$0xff]
    %v508 = vld [vmem:[%s0 + $0x1e0] sm:$0xff]
    %v509 = vld [vmem:[%s0 + $0x1e8] sm:$0xff]
    %v510 = vld [vmem:[%s0 + $0x1f0] sm:$0xff]
    %v511 = vld [vmem:[%s0 + $0x1f8] sm:$0xff]
    %v512 = vld [vmem:[%s0 + $0x200] sm:$0xff]
    %v513 = vld [vmem:[%s0 + $0x208] sm:$0xff]
    %v514 = vld [vmem:[%s0 + $0x210] sm:$0xff]
    %v515 = vld [vmem:[%s0 + $0x218] sm:$0xff]
    %v516 = vld [vmem:[%s0 + $0x220] sm:$0xff]
    %v517 = vld [vmem:[%s0 + $0x228] sm:$0xff]
    %v518 = vld [vmem:[%s0 + $0x230] sm:$0xff]
    %v519 = vld [vmem:[%s0 + $0x238] sm:$0xff]
    %v521 = vsel %vm89, %v484, 0
    %v524 = vsel %vm89, %v485, 0
    %v527 = vsel %vm89, %v486, 0
    %v530 = vsel %vm89, %v487, 0
    %v533 = vsel %vm89, %v488, 0
    %v536 = vsel %vm89, %v489, 0
    %v539 = vsel %vm89, %v490, 0
    %v542 = vsel %vm89, %v491, 0
    %v545 = vsel %vm89, %v492, 0
    %v548 = vsel %vm89, %v493, 0
    %v551 = vsel %vm89, %v494, 0
    %v554 = vsel %vm89, %v495, 0
    %v557 = vsel %vm89, %v496, 0
    %v560 = vsel %vm89, %v497, 0
    %v563 = vsel %vm89, %v498, 0
    %v566 = vsel %vm89, %v499, 0
    %v569 = vsel %vm89, %v500, 0
    %v572 = vsel %vm89, %v501, 0
    %v575 = vsel %vm89, %v502, 0
    %v578 = vsel %vm89, %v503, 0
    %v581 = vsel %vm89, %v504, 0
    %v584 = vsel %vm89, %v505, 0
    %v587 = vsel %vm89, %v506, 0
    %v590 = vsel %vm89, %v507, 0
    %v593 = vsel %vm89, %v508, 0
    %v596 = vsel %vm89, %v509, 0
    %v599 = vsel %vm89, %v510, 0
    %v602 = vsel %vm89, %v511, 0
    %v605 = vsel %vm89, %v512, 0
    %v608 = vsel %vm89, %v513, 0
    %v611 = vsel %vm89, %v514, 0
    %v614 = vsel %vm89, %v515, 0
    %v617 = vsel %vm89, %v516, 0
    %v620 = vsel %vm89, %v517, 0
    %v623 = vsel %vm89, %v518, 0
    %v626 = vsel %vm89, %v519, 0
    %628 = vmatprep.subr.mxu0 0.0
    %629 = vmatpush1.msra.mxu0 0.0
    %630 = vmatprep.subr.mxu0 0.0
    %631 = vmatpush1.msra.mxu0 0.0
    %632 = vmatprep.subr.mxu0 0.0
    %633 = vmatpush1.msra.mxu0 0.0
    %634 = vmatprep.subr.mxu0 0.0
    %635 = vmatpush1.msra.mxu0 0.0
    %636 = vmatprep.subr.mxu0 0.0
    %637 = vmatpush1.msra.mxu0 0.0
    %638 = vmatprep.subr.mxu0 0.0
    %639 = vmatpush1.msra.mxu0 0.0
    %640 = vmatprep.subr.mxu0 0.0
    %641 = vmatpush1.msra.mxu0 0.0
    %642 = vmatprep.subr.mxu0 0.0
    %643 = vmatpush1.msra.mxu0 0.0
    %644 = vmatprep.subr.mxu0 0.0
    %645 = vmatpush1.msra.mxu0 0.0
    %646 = vmatprep.subr.mxu0 0.0
    %647 = vmatpush1.msra.mxu0 0.0
    %648 = vmatprep.subr.mxu0 0.0
    %649 = vmatpush1.msra.mxu0 0.0
    %650 = vmatprep.subr.mxu0 0.0
    %651 = vmatpush1.msra.mxu0 0.0
    %652 = vmatprep.subr.mxu0 0.0
    %653 = vmatpush1.msra.mxu0 0.0
    %654 = vmatprep.subr.mxu0 0.0
    %655 = vmatpush1.msra.mxu0 0.0
    %656 = vmatprep.subr.mxu0 0.0
    %657 = vmatpush1.msra.mxu0 %v200
    %658 = vmatprep.subr.mxu0 0.0
    %659 = vmatpush1.msra.mxu0 %v51
    %660 = vmatprep.subr.mxu0 0.0
    %661 = vmatpush2.msra.mxu0 0.0
    %662 = vmatprep.subr.mxu0 0.0
    %663 = vmatpush2.msra.mxu0 0.0
    %664 = vmatprep.subr.mxu0 0.0
    %665 = vmatpush2.msra.mxu0 0.0
    %666 = vmatprep.subr.mxu0 0.0
    %667 = vmatpush2.msra.mxu0 0.0
    %668 = vmatprep.subr.mxu0 0.0
    %669 = vmatpush2.msra.mxu0 0.0
    %670 = vmatprep.subr.mxu0 0.0
    %671 = vmatpush2.msra.mxu0 0.0
    %672 = vmatprep.subr.mxu0 0.0
    %673 = vmatpush2.msra.mxu0 0.0
    %674 = vmatprep.subr.mxu0 0.0
    %675 = vmatpush2.msra.mxu0 0.0
    %676 = vmatprep.subr.mxu0 0.0
    %677 = vmatpush2.msra.mxu0 0.0
    %678 = vmatprep.subr.mxu0 0.0
    %679 = vmatpush2.msra.mxu0 0.0
    %680 = vmatprep.subr.mxu0 0.0
    %681 = vmatpush2.msra.mxu0 0.0
    %682 = vmatprep.subr.mxu0 0.0
    %683 = vmatpush2.msra.mxu0 0.0
    %684 = vmatprep.subr.mxu0 0.0
    %685 = vmatpush2.msra.mxu0 0.0
    %686 = vmatprep.subr.mxu0 0.0
    %687 = vmatpush2.msra.mxu0 0.0
    %688 = vmatprep.subr.mxu0 0.0
    %689 = vmatpush2.msra.mxu0 0.0
    %690 = vmatprep.subr.mxu0 0.0
    %691 = vmatpush2.msra.mxu0 0.0
    %692 = vmatprep.mubr.f32.mxu0 0.0
    %693 = vmatmul.mubr.f32.gmra.mxu0 %v521
    %v694 = vpop.f32.mrf.mxu0
    %v695 = vadd.f32 0.0, %v694
    %v696 = vpop.f32.mrf.mxu0
    %697 = vmatprep.mubr.f32.mxu0 0.0
    %698 = vmatmul.mubr.f32.gmra.mxu0 %v524
    %v699 = vpop.f32.mrf.mxu0
    %v700 = vadd.f32 0.0, %v699
    %v701 = vpop.f32.mrf.mxu0
    %702 = vmatprep.mubr.f32.mxu0 0.0
    %703 = vmatmul.mubr.f32.gmra.mxu0 %v527
    %v704 = vpop.f32.mrf.mxu0
    %v705 = vadd.f32 0.0, %v704
    %v706 = vpop.f32.mrf.mxu0
    %707 = vmatprep.mubr.f32.mxu0 0.0
    %708 = vmatmul.mubr.f32.gmra.mxu0 %v530
    %v709 = vpop.f32.mrf.mxu0
    %v710 = vadd.f32 0.0, %v709
    %v711 = vpop.f32.mrf.mxu0
    %712 = vmatprep.mubr.f32.mxu0 0.0
    %713 = vmatmul.mubr.f32.gmra.mxu0 %v533
    %v714 = vpop.f32.mrf.mxu0
    %v715 = vadd.f32 0.0, %v714
    %v716 = vpop.f32.mrf.mxu0
    %717 = vmatprep.mubr.f32.mxu0 0.0
    %718 = vmatmul.mubr.f32.gmra.mxu0 %v536
    %v719 = vpop.f32.mrf.mxu0
    %v720 = vadd.f32 0.0, %v719
    %v721 = vpop.f32.mrf.mxu0
    %722 = vmatprep.mubr.f32.mxu0 0.0
    %723 = vmatmul.mubr.f32.gmra.mxu0 %v539
    %v724 = vpop.f32.mrf.mxu0
    %v725 = vadd.f32 0.0, %v724
    %v726 = vpop.f32.mrf.mxu0
    %727 = vmatprep.mubr.f32.mxu0 0.0
    %728 = vmatmul.mubr.f32.gmra.mxu0 %v542
    %v729 = vpop.f32.mrf.mxu0
    %v730 = vadd.f32 0.0, %v729
    %v731 = vpop.f32.mrf.mxu0
    %732 = vmatprep.mubr.f32.mxu0 0.0
    %733 = vmatmul.mubr.f32.gmra.mxu0 %v545
    %v734 = vpop.f32.mrf.mxu0
    %v735 = vadd.f32 0.0, %v734
    %v736 = vpop.f32.mrf.mxu0
    %737 = vmatprep.mubr.f32.mxu0 0.0
    %738 = vmatmul.mubr.f32.gmra.mxu0 %v548
    %v739 = vpop.f32.mrf.mxu0
    %v740 = vadd.f32 0.0, %v739
    %v741 = vpop.f32.mrf.mxu0
    %742 = vmatprep.mubr.f32.mxu0 0.0
    %743 = vmatmul.mubr.f32.gmra.mxu0 %v551
    %v744 = vpop.f32.mrf.mxu0
    %v745 = vadd.f32 0.0, %v744
    %v746 = vpop.f32.mrf.mxu0
    %747 = vmatprep.mubr.f32.mxu0 0.0
    %748 = vmatmul.mubr.f32.gmra.mxu0 %v554
    %v749 = vpop.f32.mrf.mxu0
    %v750 = vadd.f32 0.0, %v749
    %v751 = vpop.f32.mrf.mxu0
    %752 = vmatprep.mubr.f32.mxu0 0.0
    %753 = vmatmul.mubr.f32.gmra.mxu0 %v557
    %v754 = vpop.f32.mrf.mxu0
    %v755 = vadd.f32 0.0, %v754
    %v756 = vpop.f32.mrf.mxu0
    %757 = vmatprep.mubr.f32.mxu0 0.0
    %758 = vmatmul.mubr.f32.gmra.mxu0 %v560
    %v759 = vpop.f32.mrf.mxu0
    %v760 = vadd.f32 0.0, %v759
    %v761 = vpop.f32.mrf.mxu0
    %762 = vmatprep.mubr.f32.mxu0 0.0
    %763 = vmatmul.mubr.f32.gmra.mxu0 %v563
    %v764 = vpop.f32.mrf.mxu0
    %v765 = vadd.f32 0.0, %v764
    %v766 = vpop.f32.mrf.mxu0
    %767 = vmatprep.mubr.f32.mxu0 0.0
    %768 = vmatmul.mubr.f32.gmra.mxu0 %v566
    %v769 = vpop.f32.mrf.mxu0
    %v770 = vadd.f32 0.0, %v769
    %v771 = vpop.f32.mrf.mxu0
    %772 = vmatprep.mubr.f32.mxu0 0.0
    %773 = vmatmul.mubr.f32.gmra.mxu0 %v569
    %v774 = vpop.f32.mrf.mxu0
    %v775 = vadd.f32 0.0, %v774
    %v776 = vpop.f32.mrf.mxu0
    %777 = vmatprep.mubr.f32.mxu0 0.0
    %778 = vmatmul.mubr.f32.gmra.mxu0 %v572
    %v779 = vpop.f32.mrf.mxu0
    %v780 = vadd.f32 0.0, %v779
    %v781 = vpop.f32.mrf.mxu0
    %782 = vmatprep.mubr.f32.mxu0 0.0
    %783 = vmatmul.mubr.f32.gmra.mxu0 %v575
    %v784 = vpop.f32.mrf.mxu0
    %v785 = vadd.f32 0.0, %v784
    %v786 = vpop.f32.mrf.mxu0
    %787 = vmatprep.mubr.f32.mxu0 0.0
    %788 = vmatmul.mubr.f32.gmra.mxu0 %v578
    %v789 = vpop.f32.mrf.mxu0
    %v790 = vadd.f32 0.0, %v789
    %v791 = vpop.f32.mrf.mxu0
    %792 = vmatprep.mubr.f32.mxu0 0.0
    %793 = vmatmul.mubr.f32.gmra.mxu0 %v581
    %v794 = vpop.f32.mrf.mxu0
    %v795 = vadd.f32 0.0, %v794
    %v796 = vpop.f32.mrf.mxu0
    %797 = vmatprep.mubr.f32.mxu0 0.0
    %798 = vmatmul.mubr.f32.gmra.mxu0 %v584
    %v799 = vpop.f32.mrf.mxu0
    %v800 = vadd.f32 0.0, %v799
    %v801 = vpop.f32.mrf.mxu0
    %802 = vmatprep.mubr.f32.mxu0 0.0
    %803 = vmatmul.mubr.f32.gmra.mxu0 %v587
    %v804 = vpop.f32.mrf.mxu0
    %v805 = vadd.f32 0.0, %v804
    %v806 = vpop.f32.mrf.mxu0
    %807 = vmatprep.mubr.f32.mxu0 0.0
    %808 = vmatmul.mubr.f32.gmra.mxu0 %v590
    %v809 = vpop.f32.mrf.mxu0
    %v810 = vadd.f32 0.0, %v809
    %v811 = vpop.f32.mrf.mxu0
    %812 = vmatprep.mubr.f32.mxu0 0.0
    %813 = vmatmul.mubr.f32.gmra.mxu0 %v593
    %v814 = vpop.f32.mrf.mxu0
    %v815 = vadd.f32 0.0, %v814
    %v816 = vpop.f32.mrf.mxu0
    %817 = vmatprep.mubr.f32.mxu0 0.0
    %818 = vmatmul.mubr.f32.gmra.mxu0 %v596
    %v819 = vpop.f32.mrf.mxu0
    %v820 = vadd.f32 0.0, %v819
    %v821 = vpop.f32.mrf.mxu0
    %822 = vmatprep.mubr.f32.mxu0 0.0
    %823 = vmatmul.mubr.f32.gmra.mxu0 %v599
    %v824 = vpop.f32.mrf.mxu0
    %v825 = vadd.f32 0.0, %v824
    %v826 = vpop.f32.mrf.mxu0
    %827 = vmatprep.mubr.f32.mxu0 0.0
    %828 = vmatmul.mubr.f32.gmra.mxu0 %v602
    %v829 = vpop.f32.mrf.mxu0
    %v830 = vadd.f32 0.0, %v829
    %v831 = vpop.f32.mrf.mxu0
    %832 = vmatprep.mubr.f32.mxu0 0.0
    %833 = vmatmul.mubr.f32.gmra.mxu0 %v605
    %v834 = vpop.f32.mrf.mxu0
    %v835 = vadd.f32 0.0, %v834
    %v836 = vpop.f32.mrf.mxu0
    %837 = vmatprep.mubr.f32.mxu0 0.0
    %838 = vmatmul.mubr.f32.gmra.mxu0 %v608
    %v839 = vpop.f32.mrf.mxu0
    %v840 = vadd.f32 0.0, %v839
    %v841 = vpop.f32.mrf.mxu0
    %842 = vmatprep.mubr.f32.mxu0 0.0
    %843 = vmatmul.mubr.f32.gmra.mxu0 %v611
    %v844 = vpop.f32.mrf.mxu0
    %v845 = vadd.f32 0.0, %v844
    %v846 = vpop.f32.mrf.mxu0
    %847 = vmatprep.mubr.f32.mxu0 0.0
    %848 = vmatmul.mubr.f32.gmra.mxu0 %v614
    %v849 = vpop.f32.mrf.mxu0
    %v850 = vadd.f32 0.0, %v849
    %v851 = vpop.f32.mrf.mxu0
    %852 = vmatprep.mubr.f32.mxu0 0.0
    %853 = vmatmul.mubr.f32.gmra.mxu0 %v617
    %v854 = vpop.f32.mrf.mxu0
    %v855 = vadd.f32 0.0, %v854
    %v856 = vpop.f32.mrf.mxu0
    %857 = vmatprep.mubr.f32.mxu0 0.0
    %858 = vmatmul.mubr.f32.gmra.mxu0 %v620
    %v859 = vpop.f32.mrf.mxu0
    %v860 = vadd.f32 0.0, %v859
    %v861 = vpop.f32.mrf.mxu0
    %862 = vmatprep.mubr.f32.mxu0 0.0
    %863 = vmatmul.mubr.f32.gmra.mxu0 %v623
    %v864 = vpop.f32.mrf.mxu0
    %v865 = vadd.f32 0.0, %v864
    %v866 = vpop.f32.mrf.mxu0
    %867 = vmatprep.mubr.f32.mxu0 0.0
    %868 = vmatmul.mubr.f32.gmra.mxu0 %v626
    %v869 = vpop.f32.mrf.mxu0
    %v870 = vadd.f32 0.0, %v869
    %v871 = vpop.f32.mrf.mxu0
    %872 = vdwg.mxu0
    %v873 = vmax.f32 %v695, 0.0
    %v874 = vmax.f32 %v700, 0.0
    %v875 = vmax.f32 %v705, 0.0
    %v876 = vmax.f32 %v710, 0.0
    %v877 = vmax.f32 %v715, 0.0
    %v878 = vmax.f32 %v720, 0.0
    %v879 = vmax.f32 %v725, 0.0
    %v880 = vmax.f32 %v730, 0.0
    %v881 = vmax.f32 %v735, 0.0
    %v882 = vmax.f32 %v740, 0.0
    %v883 = vmax.f32 %v745, 0.0
    %v884 = vmax.f32 %v750, 0.0
    %v885 = vmax.f32 %v755, 0.0
    %v886 = vmax.f32 %v760, 0.0
    %v887 = vmax.f32 %v765, 0.0
    %v888 = vmax.f32 %v770, 0.0
    %v889 = vmax.f32 %v775, 0.0
    %v890 = vmax.f32 %v780, 0.0
    %v891 = vmax.f32 %v785, 0.0
    %v892 = vmax.f32 %v790, 0.0
    %v893 = vmax.f32 %v795, 0.0
    %v894 = vmax.f32 %v800, 0.0
    %v895 = vmax.f32 %v805, 0.0
    %v896 = vmax.f32 %v810, 0.0
    %v897 = vmax.f32 %v815, 0.0
    %v898 = vmax.f32 %v820, 0.0
    %v899 = vmax.f32 %v825, 0.0
    %v900 = vmax.f32 %v830, 0.0
    %v901 = vmax.f32 %v835, 0.0
    %v902 = vmax.f32 %v840, 0.0
    %v903 = vmax.f32 %v845, 0.0
    %v904 = vmax.f32 %v850, 0.0
    %v905 = vmax.f32 %v855, 0.0
    %v906 = vmax.f32 %v860, 0.0
    %v907 = vmax.f32 %v865, 0.0
    %v908 = vmax.f32 %v870, 0.0
    %s909 = scalar_lea.vmem %s4, 4
    %v910 = vld [vmem:[%s909] sm:$0xf]
    %vm911 = vcmask 31744
    %v913 = vsel %vm911, %v873, 0
    %v916 = vsel %vm911, %v874, 0
    %v919 = vsel %vm911, %v875, 0
    %v922 = vsel %vm911, %v876, 0
    %v925 = vsel %vm911, %v877, 0
    %v928 = vsel %vm911, %v878, 0
    %v931 = vsel %vm911, %v879, 0
    %v934 = vsel %vm911, %v880, 0
    %v937 = vsel %vm911, %v881, 0
    %v940 = vsel %vm911, %v882, 0
    %v943 = vsel %vm911, %v883, 0
    %v946 = vsel %vm911, %v884, 0
    %v949 = vsel %vm911, %v885, 0
    %v952 = vsel %vm911, %v886, 0
    %v955 = vsel %vm911, %v887, 0
    %v958 = vsel %vm911, %v888, 0
    %v961 = vsel %vm911, %v889, 0
    %v964 = vsel %vm911, %v890, 0
    %v967 = vsel %vm911, %v891, 0
    %v970 = vsel %vm911, %v892, 0
    %v973 = vsel %vm911, %v893, 0
    %v976 = vsel %vm911, %v894, 0
    %v979 = vsel %vm911, %v895, 0
    %v982 = vsel %vm911, %v896, 0
    %v985 = vsel %vm911, %v897, 0
    %v988 = vsel %vm911, %v898, 0
    %v991 = vsel %vm911, %v899, 0
    %v994 = vsel %vm911, %v900, 0
    %v997 = vsel %vm911, %v901, 0
    %v1000 = vsel %vm911, %v902, 0
    %v1003 = vsel %vm911, %v903, 0
    %v1006 = vsel %vm911, %v904, 0
    %v1009 = vsel %vm911, %v905, 0
    %v1012 = vsel %vm911, %v906, 0
    %v1015 = vsel %vm911, %v907, 0
    %v1018 = vsel %vm911, %v908, 0
    %vm1020 = vcmask 1043456
    %v1022 = vsel %vm1020, %v910, 0
    %1024 = vmatprep.subr.mxu0 0.0
    %1025 = vmatpush1.msra.mxu0 0.0
    %1026 = vmatprep.subr.mxu0 0.0
    %1027 = vmatpush1.msra.mxu0 0.0
    %1028 = vmatprep.subr.mxu0 0.0
    %1029 = vmatpush1.msra.mxu0 0.0
    %1030 = vmatprep.subr.mxu0 0.0
    %1031 = vmatpush1.msra.mxu0 0.0
    %1032 = vmatprep.subr.mxu0 0.0
    %1033 = vmatpush1.msra.mxu0 0.0
    %1034 = vmatprep.subr.mxu0 0.0
    %1035 = vmatpush1.msra.mxu0 0.0
    %1036 = vmatprep.subr.mxu0 0.0
    %1037 = vmatpush1.msra.mxu0 0.0
    %1038 = vmatprep.subr.mxu0 0.0
    %1039 = vmatpush1.msra.mxu0 0.0
    %1040 = vmatprep.subr.mxu0 0.0
    %1041 = vmatpush1.msra.mxu0 0.0
    %1042 = vmatprep.subr.mxu0 0.0
    %1043 = vmatpush1.msra.mxu0 0.0
    %1044 = vmatprep.subr.mxu0 0.0
    %1045 = vmatpush1.msra.mxu0 0.0
    %1046 = vmatprep.subr.mxu0 0.0
    %1047 = vmatpush1.msra.mxu0 0.0
    %1048 = vmatprep.subr.mxu0 0.0
    %1049 = vmatpush1.msra.mxu0 0.0
    %1050 = vmatprep.subr.mxu0 0.0
    %1051 = vmatpush1.msra.mxu0 0.0
    %1052 = vmatprep.subr.mxu0 0.0
    %1053 = vmatpush1.msra.mxu0 0.0
    %1054 = vmatprep.subr.mxu0 0.0
    %1055 = vmatpush1.msra.mxu0 %v1022
    %1056 = vmatprep.subr.mxu0 0.0
    %1057 = vmatpush2.msra.mxu0 0.0
    %1058 = vmatprep.subr.mxu0 0.0
    %1059 = vmatpush2.msra.mxu0 0.0
    %1060 = vmatprep.subr.mxu0 0.0
    %1061 = vmatpush2.msra.mxu0 0.0
    %1062 = vmatprep.subr.mxu0 0.0
    %1063 = vmatpush2.msra.mxu0 0.0
    %1064 = vmatprep.subr.mxu0 0.0
    %1065 = vmatpush2.msra.mxu0 0.0
    %1066 = vmatprep.subr.mxu0 0.0
    %1067 = vmatpush2.msra.mxu0 0.0
    %1068 = vmatprep.subr.mxu0 0.0
    %1069 = vmatpush2.msra.mxu0 0.0
    %1070 = vmatprep.subr.mxu0 0.0
    %1071 = vmatpush2.msra.mxu0 0.0
    %1072 = vmatprep.subr.mxu0 0.0
    %1073 = vmatpush2.msra.mxu0 0.0
    %1074 = vmatprep.subr.mxu0 0.0
    %1075 = vmatpush2.msra.mxu0 0.0
    %1076 = vmatprep.subr.mxu0 0.0
    %1077 = vmatpush2.msra.mxu0 0.0
    %1078 = vmatprep.subr.mxu0 0.0
    %1079 = vmatpush2.msra.mxu0 0.0
    %1080 = vmatprep.subr.mxu0 0.0
    %1081 = vmatpush2.msra.mxu0 0.0
    %1082 = vmatprep.subr.mxu0 0.0
    %1083 = vmatpush2.msra.mxu0 0.0
    %1084 = vmatprep.subr.mxu0 0.0
    %1085 = vmatpush2.msra.mxu0 0.0
    %1086 = vmatprep.subr.mxu0 0.0
    %1087 = vmatpush2.msra.mxu0 0.0
    %1088 = vmatprep.mubr.f32.mxu0 0.0
    %1089 = vmatmul.mubr.f32.gmra.mxu0 %v913
    %v1090 = vpop.f32.mrf.mxu0
    %v1091 = vadd.f32 0.0, %v1090
    %v1092 = vpop.f32.mrf.mxu0
    %1093 = vmatprep.mubr.f32.mxu0 0.0
    %1094 = vmatmul.mubr.f32.gmra.mxu0 %v916
    %v1095 = vpop.f32.mrf.mxu0
    %v1096 = vadd.f32 0.0, %v1095
    %v1097 = vpop.f32.mrf.mxu0
    %1098 = vmatprep.mubr.f32.mxu0 0.0
    %1099 = vmatmul.mubr.f32.gmra.mxu0 %v919
    %v1100 = vpop.f32.mrf.mxu0
    %v1101 = vadd.f32 0.0, %v1100
    %v1102 = vpop.f32.mrf.mxu0
    %1103 = vmatprep.mubr.f32.mxu0 0.0
    %1104 = vmatmul.mubr.f32.gmra.mxu0 %v922
    %v1105 = vpop.f32.mrf.mxu0
    %v1106 = vadd.f32 0.0, %v1105
    %v1107 = vpop.f32.mrf.mxu0
    %1108 = vmatprep.mubr.f32.mxu0 0.0
    %1109 = vmatmul.mubr.f32.gmra.mxu0 %v925
    %v1110 = vpop.f32.mrf.mxu0
    %v1111 = vadd.f32 0.0, %v1110
    %v1112 = vpop.f32.mrf.mxu0
    %1113 = vmatprep.mubr.f32.mxu0 0.0
    %1114 = vmatmul.mubr.f32.gmra.mxu0 %v928
    %v1115 = vpop.f32.mrf.mxu0
    %v1116 = vadd.f32 0.0, %v1115
    %v1117 = vpop.f32.mrf.mxu0
    %1118 = vmatprep.mubr.f32.mxu0 0.0
    %1119 = vmatmul.mubr.f32.gmra.mxu0 %v931
    %v1120 = vpop.f32.mrf.mxu0
    %v1121 = vadd.f32 0.0, %v1120
    %v1122 = vpop.f32.mrf.mxu0
    %1123 = vmatprep.mubr.f32.mxu0 0.0
    %1124 = vmatmul.mubr.f32.gmra.mxu0 %v934
    %v1125 = vpop.f32.mrf.mxu0
    %v1126 = vadd.f32 0.0, %v1125
    %v1127 = vpop.f32.mrf.mxu0
    %1128 = vmatprep.mubr.f32.mxu0 0.0
    %1129 = vmatmul.mubr.f32.gmra.mxu0 %v937
    %v1130 = vpop.f32.mrf.mxu0
    %v1131 = vadd.f32 0.0, %v1130
    %v1132 = vpop.f32.mrf.mxu0
    %1133 = vmatprep.mubr.f32.mxu0 0.0
    %1134 = vmatmul.mubr.f32.gmra.mxu0 %v940
    %v1135 = vpop.f32.mrf.mxu0
    %v1136 = vadd.f32 0.0, %v1135
    %v1137 = vpop.f32.mrf.mxu0
    %1138 = vmatprep.mubr.f32.mxu0 0.0
    %1139 = vmatmul.mubr.f32.gmra.mxu0 %v943
    %v1140 = vpop.f32.mrf.mxu0
    %v1141 = vadd.f32 0.0, %v1140
    %v1142 = vpop.f32.mrf.mxu0
    %1143 = vmatprep.mubr.f32.mxu0 0.0
    %1144 = vmatmul.mubr.f32.gmra.mxu0 %v946
    %v1145 = vpop.f32.mrf.mxu0
    %v1146 = vadd.f32 0.0, %v1145
    %v1147 = vpop.f32.mrf.mxu0
    %1148 = vmatprep.mubr.f32.mxu0 0.0
    %1149 = vmatmul.mubr.f32.gmra.mxu0 %v949
    %v1150 = vpop.f32.mrf.mxu0
    %v1151 = vadd.f32 0.0, %v1150
    %v1152 = vpop.f32.mrf.mxu0
    %1153 = vmatprep.mubr.f32.mxu0 0.0
    %1154 = vmatmul.mubr.f32.gmra.mxu0 %v952
    %v1155 = vpop.f32.mrf.mxu0
    %v1156 = vadd.f32 0.0, %v1155
    %v1157 = vpop.f32.mrf.mxu0
    %1158 = vmatprep.mubr.f32.mxu0 0.0
    %1159 = vmatmul.mubr.f32.gmra.mxu0 %v955
    %v1160 = vpop.f32.mrf.mxu0
    %v1161 = vadd.f32 0.0, %v1160
    %v1162 = vpop.f32.mrf.mxu0
    %1163 = vmatprep.mubr.f32.mxu0 0.0
    %1164 = vmatmul.mubr.f32.gmra.mxu0 %v958
    %v1165 = vpop.f32.mrf.mxu0
    %v1166 = vadd.f32 0.0, %v1165
    %v1167 = vpop.f32.mrf.mxu0
    %1168 = vmatprep.mubr.f32.mxu0 0.0
    %1169 = vmatmul.mubr.f32.gmra.mxu0 %v961
    %v1170 = vpop.f32.mrf.mxu0
    %v1171 = vadd.f32 0.0, %v1170
    %v1172 = vpop.f32.mrf.mxu0
    %1173 = vmatprep.mubr.f32.mxu0 0.0
    %1174 = vmatmul.mubr.f32.gmra.mxu0 %v964
    %v1175 = vpop.f32.mrf.mxu0
    %v1176 = vadd.f32 0.0, %v1175
    %v1177 = vpop.f32.mrf.mxu0
    %1178 = vmatprep.mubr.f32.mxu0 0.0
    %1179 = vmatmul.mubr.f32.gmra.mxu0 %v967
    %v1180 = vpop.f32.mrf.mxu0
    %v1181 = vadd.f32 0.0, %v1180
    %v1182 = vpop.f32.mrf.mxu0
    %1183 = vmatprep.mubr.f32.mxu0 0.0
    %1184 = vmatmul.mubr.f32.gmra.mxu0 %v970
    %v1185 = vpop.f32.mrf.mxu0
    %v1186 = vadd.f32 0.0, %v1185
    %v1187 = vpop.f32.mrf.mxu0
    %1188 = vmatprep.mubr.f32.mxu0 0.0
    %1189 = vmatmul.mubr.f32.gmra.mxu0 %v973
    %v1190 = vpop.f32.mrf.mxu0
    %v1191 = vadd.f32 0.0, %v1190
    %v1192 = vpop.f32.mrf.mxu0
    %1193 = vmatprep.mubr.f32.mxu0 0.0
    %1194 = vmatmul.mubr.f32.gmra.mxu0 %v976
    %v1195 = vpop.f32.mrf.mxu0
    %v1196 = vadd.f32 0.0, %v1195
    %v1197 = vpop.f32.mrf.mxu0
    %1198 = vmatprep.mubr.f32.mxu0 0.0
    %1199 = vmatmul.mubr.f32.gmra.mxu0 %v979
    %v1200 = vpop.f32.mrf.mxu0
    %v1201 = vadd.f32 0.0, %v1200
    %v1202 = vpop.f32.mrf.mxu0
    %1203 = vmatprep.mubr.f32.mxu0 0.0
    %1204 = vmatmul.mubr.f32.gmra.mxu0 %v982
    %v1205 = vpop.f32.mrf.mxu0
    %v1206 = vadd.f32 0.0, %v1205
    %v1207 = vpop.f32.mrf.mxu0
    %1208 = vmatprep.mubr.f32.mxu0 0.0
    %1209 = vmatmul.mubr.f32.gmra.mxu0 %v985
    %v1210 = vpop.f32.mrf.mxu0
    %v1211 = vadd.f32 0.0, %v1210
    %v1212 = vpop.f32.mrf.mxu0
    %1213 = vmatprep.mubr.f32.mxu0 0.0
    %1214 = vmatmul.mubr.f32.gmra.mxu0 %v988
    %v1215 = vpop.f32.mrf.mxu0
    %v1216 = vadd.f32 0.0, %v1215
    %v1217 = vpop.f32.mrf.mxu0
    %1218 = vmatprep.mubr.f32.mxu0 0.0
    %1219 = vmatmul.mubr.f32.gmra.mxu0 %v991
    %v1220 = vpop.f32.mrf.mxu0
    %v1221 = vadd.f32 0.0, %v1220
    %v1222 = vpop.f32.mrf.mxu0
    %1223 = vmatprep.mubr.f32.mxu0 0.0
    %1224 = vmatmul.mubr.f32.gmra.mxu0 %v994
    %v1225 = vpop.f32.mrf.mxu0
    %v1226 = vadd.f32 0.0, %v1225
    %v1227 = vpop.f32.mrf.mxu0
    %1228 = vmatprep.mubr.f32.mxu0 0.0
    %1229 = vmatmul.mubr.f32.gmra.mxu0 %v997
    %v1230 = vpop.f32.mrf.mxu0
    %v1231 = vadd.f32 0.0, %v1230
    %v1232 = vpop.f32.mrf.mxu0
    %1233 = vmatprep.mubr.f32.mxu0 0.0
    %1234 = vmatmul.mubr.f32.gmra.mxu0 %v1000
    %v1235 = vpop.f32.mrf.mxu0
    %v1236 = vadd.f32 0.0, %v1235
    %v1237 = vpop.f32.mrf.mxu0
    %1238 = vmatprep.mubr.f32.mxu0 0.0
    %1239 = vmatmul.mubr.f32.gmra.mxu0 %v1003
    %v1240 = vpop.f32.mrf.mxu0
    %v1241 = vadd.f32 0.0, %v1240
    %v1242 = vpop.f32.mrf.mxu0
    %1243 = vmatprep.mubr.f32.mxu0 0.0
    %1244 = vmatmul.mubr.f32.gmra.mxu0 %v1006
    %v1245 = vpop.f32.mrf.mxu0
    %v1246 = vadd.f32 0.0, %v1245
    %v1247 = vpop.f32.mrf.mxu0
    %1248 = vmatprep.mubr.f32.mxu0 0.0
    %1249 = vmatmul.mubr.f32.gmra.mxu0 %v1009
    %v1250 = vpop.f32.mrf.mxu0
    %v1251 = vadd.f32 0.0, %v1250
    %v1252 = vpop.f32.mrf.mxu0
    %1253 = vmatprep.mubr.f32.mxu0 0.0
    %1254 = vmatmul.mubr.f32.gmra.mxu0 %v1012
    %v1255 = vpop.f32.mrf.mxu0
    %v1256 = vadd.f32 0.0, %v1255
    %v1257 = vpop.f32.mrf.mxu0
    %1258 = vmatprep.mubr.f32.mxu0 0.0
    %1259 = vmatmul.mubr.f32.gmra.mxu0 %v1015
    %v1260 = vpop.f32.mrf.mxu0
    %v1261 = vadd.f32 0.0, %v1260
    %v1262 = vpop.f32.mrf.mxu0
    %1263 = vmatprep.mubr.f32.mxu0 0.0
    %1264 = vmatmul.mubr.f32.gmra.mxu0 %v1018
    %v1265 = vpop.f32.mrf.mxu0
    %v1266 = vadd.f32 0.0, %v1265
    %v1267 = vpop.f32.mrf.mxu0
    %1268 = vdwg.mxu0
    %v1270 = vsel %vm911, %v447, 0
    %v1273 = vsel %vm911, %v448, 0
    %v1276 = vsel %vm911, %v449, 0
    %v1279 = vsel %vm911, %v450, 0
    %v1282 = vsel %vm911, %v451, 0
    %v1285 = vsel %vm911, %v452, 0
    %v1288 = vsel %vm911, %v453, 0
    %v1291 = vsel %vm911, %v454, 0
    %v1294 = vsel %vm911, %v455, 0
    %v1297 = vsel %vm911, %v456, 0
    %v1300 = vsel %vm911, %v457, 0
    %v1303 = vsel %vm911, %v458, 0
    %v1306 = vsel %vm911, %v459, 0
    %v1309 = vsel %vm911, %v460, 0
    %v1312 = vsel %vm911, %v461, 0
    %v1315 = vsel %vm911, %v462, 0
    %v1318 = vsel %vm911, %v463, 0
    %v1321 = vsel %vm911, %v464, 0
    %v1324 = vsel %vm911, %v465, 0
    %v1327 = vsel %vm911, %v466, 0
    %v1330 = vsel %vm911, %v467, 0
    %v1333 = vsel %vm911, %v468, 0
    %v1336 = vsel %vm911, %v469, 0
    %v1339 = vsel %vm911, %v470, 0
    %v1342 = vsel %vm911, %v471, 0
    %v1345 = vsel %vm911, %v472, 0
    %v1348 = vsel %vm911, %v473, 0
    %v1351 = vsel %vm911, %v474, 0
    %v1354 = vsel %vm911, %v475, 0
    %v1357 = vsel %vm911, %v476, 0
    %v1360 = vsel %vm911, %v477, 0
    %v1363 = vsel %vm911, %v478, 0
    %v1366 = vsel %vm911, %v479, 0
    %v1369 = vsel %vm911, %v480, 0
    %v1372 = vsel %vm911, %v481, 0
    %v1375 = vsel %vm911, %v482, 0
    %v1378 = vsel %vm1020, %v483, 0
    %1380 = vmatprep.subr.mxu0 0.0
    %1381 = vmatpush1.msra.mxu0 0.0
    %1382 = vmatprep.subr.mxu0 0.0
    %1383 = vmatpush1.msra.mxu0 0.0
    %1384 = vmatprep.subr.mxu0 0.0
    %1385 = vmatpush1.msra.mxu0 0.0
    %1386 = vmatprep.subr.mxu0 0.0
    %1387 = vmatpush1.msra.mxu0 0.0
    %1388 = vmatprep.subr.mxu0 0.0
    %1389 = vmatpush1.msra.mxu0 0.0
    %1390 = vmatprep.subr.mxu0 0.0
    %1391 = vmatpush1.msra.mxu0 0.0
    %1392 = vmatprep.subr.mxu0 0.0
    %1393 = vmatpush1.msra.mxu0 0.0
    %1394 = vmatprep.subr.mxu0 0.0
    %1395 = vmatpush1.msra.mxu0 0.0
    %1396 = vmatprep.subr.mxu0 0.0
    %1397 = vmatpush1.msra.mxu0 0.0
    %1398 = vmatprep.subr.mxu0 0.0
    %1399 = vmatpush1.msra.mxu0 0.0
    %1400 = vmatprep.subr.mxu0 0.0
    %1401 = vmatpush1.msra.mxu0 0.0
    %1402 = vmatprep.subr.mxu0 0.0
    %1403 = vmatpush1.msra.mxu0 0.0
    %1404 = vmatprep.subr.mxu0 0.0
    %1405 = vmatpush1.msra.mxu0 0.0
    %1406 = vmatprep.subr.mxu0 0.0
    %1407 = vmatpush1.msra.mxu0 0.0
    %1408 = vmatprep.subr.mxu0 0.0
    %1409 = vmatpush1.msra.mxu0 0.0
    %1410 = vmatprep.subr.mxu0 0.0
    %1411 = vmatpush1.msra.mxu0 %v1378
    %1412 = vmatprep.subr.mxu0 0.0
    %1413 = vmatpush2.msra.mxu0 0.0
    %1414 = vmatprep.subr.mxu0 0.0
    %1415 = vmatpush2.msra.mxu0 0.0
    %1416 = vmatprep.subr.mxu0 0.0
    %1417 = vmatpush2.msra.mxu0 0.0
    %1418 = vmatprep.subr.mxu0 0.0
    %1419 = vmatpush2.msra.mxu0 0.0
    %1420 = vmatprep.subr.mxu0 0.0
    %1421 = vmatpush2.msra.mxu0 0.0
    %1422 = vmatprep.subr.mxu0 0.0
    %1423 = vmatpush2.msra.mxu0 0.0
    %1424 = vmatprep.subr.mxu0 0.0
    %1425 = vmatpush2.msra.mxu0 0.0
    %1426 = vmatprep.subr.mxu0 0.0
    %1427 = vmatpush2.msra.mxu0 0.0
    %1428 = vmatprep.subr.mxu0 0.0
    %1429 = vmatpush2.msra.mxu0 0.0
    %1430 = vmatprep.subr.mxu0 0.0
    %1431 = vmatpush2.msra.mxu0 0.0
    %1432 = vmatprep.subr.mxu0 0.0
    %1433 = vmatpush2.msra.mxu0 0.0
    %1434 = vmatprep.subr.mxu0 0.0
    %1435 = vmatpush2.msra.mxu0 0.0
    %1436 = vmatprep.subr.mxu0 0.0
    %1437 = vmatpush2.msra.mxu0 0.0
    %1438 = vmatprep.subr.mxu0 0.0
    %1439 = vmatpush2.msra.mxu0 0.0
    %1440 = vmatprep.subr.mxu0 0.0
    %1441 = vmatpush2.msra.mxu0 0.0
    %1442 = vmatprep.subr.mxu0 0.0
    %1443 = vmatpush2.msra.mxu0 0.0
    %1444 = vmatprep.mubr.f32.mxu0 0.0
    %1445 = vmatmul.mubr.f32.gmra.mxu0 %v1270
    %v1446 = vpop.f32.mrf.mxu0
    %v1447 = vadd.f32 %v1091, %v1446
    %v1448 = vpop.f32.mrf.mxu0
    %1449 = vmatprep.mubr.f32.mxu0 0.0
    %1450 = vmatmul.mubr.f32.gmra.mxu0 %v1273
    %v1451 = vpop.f32.mrf.mxu0
    %v1452 = vadd.f32 %v1096, %v1451
    %v1453 = vpop.f32.mrf.mxu0
    %1454 = vmatprep.mubr.f32.mxu0 0.0
    %1455 = vmatmul.mubr.f32.gmra.mxu0 %v1276
    %v1456 = vpop.f32.mrf.mxu0
    %v1457 = vadd.f32 %v1101, %v1456
    %v1458 = vpop.f32.mrf.mxu0
    %1459 = vmatprep.mubr.f32.mxu0 0.0
    %1460 = vmatmul.mubr.f32.gmra.mxu0 %v1279
    %v1461 = vpop.f32.mrf.mxu0
    %v1462 = vadd.f32 %v1106, %v1461
    %v1463 = vpop.f32.mrf.mxu0
    %1464 = vmatprep.mubr.f32.mxu0 0.0
    %1465 = vmatmul.mubr.f32.gmra.mxu0 %v1282
    %v1466 = vpop.f32.mrf.mxu0
    %v1467 = vadd.f32 %v1111, %v1466
    %v1468 = vpop.f32.mrf.mxu0
    %1469 = vmatprep.mubr.f32.mxu0 0.0
    %1470 = vmatmul.mubr.f32.gmra.mxu0 %v1285
    %v1471 = vpop.f32.mrf.mxu0
    %v1472 = vadd.f32 %v1116, %v1471
    %v1473 = vpop.f32.mrf.mxu0
    %1474 = vmatprep.mubr.f32.mxu0 0.0
    %1475 = vmatmul.mubr.f32.gmra.mxu0 %v1288
    %v1476 = vpop.f32.mrf.mxu0
    %v1477 = vadd.f32 %v1121, %v1476
    %v1478 = vpop.f32.mrf.mxu0
    %1479 = vmatprep.mubr.f32.mxu0 0.0
    %1480 = vmatmul.mubr.f32.gmra.mxu0 %v1291
    %v1481 = vpop.f32.mrf.mxu0
    %v1482 = vadd.f32 %v1126, %v1481
    %v1483 = vpop.f32.mrf.mxu0
    %1484 = vmatprep.mubr.f32.mxu0 0.0
    %1485 = vmatmul.mubr.f32.gmra.mxu0 %v1294
    %v1486 = vpop.f32.mrf.mxu0
    %v1487 = vadd.f32 %v1131, %v1486
    %v1488 = vpop.f32.mrf.mxu0
    %1489 = vmatprep.mubr.f32.mxu0 0.0
    %1490 = vmatmul.mubr.f32.gmra.mxu0 %v1297
    %v1491 = vpop.f32.mrf.mxu0
    %v1492 = vadd.f32 %v1136, %v1491
    %v1493 = vpop.f32.mrf.mxu0
    %1494 = vmatprep.mubr.f32.mxu0 0.0
    %1495 = vmatmul.mubr.f32.gmra.mxu0 %v1300
    %v1496 = vpop.f32.mrf.mxu0
    %v1497 = vadd.f32 %v1141, %v1496
    %v1498 = vpop.f32.mrf.mxu0
    %1499 = vmatprep.mubr.f32.mxu0 0.0
    %1500 = vmatmul.mubr.f32.gmra.mxu0 %v1303
    %v1501 = vpop.f32.mrf.mxu0
    %v1502 = vadd.f32 %v1146, %v1501
    %v1503 = vpop.f32.mrf.mxu0
    %1504 = vmatprep.mubr.f32.mxu0 0.0
    %1505 = vmatmul.mubr.f32.gmra.mxu0 %v1306
    %v1506 = vpop.f32.mrf.mxu0
    %v1507 = vadd.f32 %v1151, %v1506
    %v1508 = vpop.f32.mrf.mxu0
    %1509 = vmatprep.mubr.f32.mxu0 0.0
    %1510 = vmatmul.mubr.f32.gmra.mxu0 %v1309
    %v1511 = vpop.f32.mrf.mxu0
    %v1512 = vadd.f32 %v1156, %v1511
    %v1513 = vpop.f32.mrf.mxu0
    %1514 = vmatprep.mubr.f32.mxu0 0.0
    %1515 = vmatmul.mubr.f32.gmra.mxu0 %v1312
    %v1516 = vpop.f32.mrf.mxu0
    %v1517 = vadd.f32 %v1161, %v1516
    %v1518 = vpop.f32.mrf.mxu0
    %1519 = vmatprep.mubr.f32.mxu0 0.0
    %1520 = vmatmul.mubr.f32.gmra.mxu0 %v1315
    %v1521 = vpop.f32.mrf.mxu0
    %v1522 = vadd.f32 %v1166, %v1521
    %v1523 = vpop.f32.mrf.mxu0
    %1524 = vmatprep.mubr.f32.mxu0 0.0
    %1525 = vmatmul.mubr.f32.gmra.mxu0 %v1318
    %v1526 = vpop.f32.mrf.mxu0
    %v1527 = vadd.f32 %v1171, %v1526
    %v1528 = vpop.f32.mrf.mxu0
    %1529 = vmatprep.mubr.f32.mxu0 0.0
    %1530 = vmatmul.mubr.f32.gmra.mxu0 %v1321
    %v1531 = vpop.f32.mrf.mxu0
    %v1532 = vadd.f32 %v1176, %v1531
    %v1533 = vpop.f32.mrf.mxu0
    %1534 = vmatprep.mubr.f32.mxu0 0.0
    %1535 = vmatmul.mubr.f32.gmra.mxu0 %v1324
    %v1536 = vpop.f32.mrf.mxu0
    %v1537 = vadd.f32 %v1181, %v1536
    %v1538 = vpop.f32.mrf.mxu0
    %1539 = vmatprep.mubr.f32.mxu0 0.0
    %1540 = vmatmul.mubr.f32.gmra.mxu0 %v1327
    %v1541 = vpop.f32.mrf.mxu0
    %v1542 = vadd.f32 %v1186, %v1541
    %v1543 = vpop.f32.mrf.mxu0
    %1544 = vmatprep.mubr.f32.mxu0 0.0
    %1545 = vmatmul.mubr.f32.gmra.mxu0 %v1330
    %v1546 = vpop.f32.mrf.mxu0
    %v1547 = vadd.f32 %v1191, %v1546
    %v1548 = vpop.f32.mrf.mxu0
    %1549 = vmatprep.mubr.f32.mxu0 0.0
    %1550 = vmatmul.mubr.f32.gmra.mxu0 %v1333
    %v1551 = vpop.f32.mrf.mxu0
    %v1552 = vadd.f32 %v1196, %v1551
    %v1553 = vpop.f32.mrf.mxu0
    %1554 = vmatprep.mubr.f32.mxu0 0.0
    %1555 = vmatmul.mubr.f32.gmra.mxu0 %v1336
    %v1556 = vpop.f32.mrf.mxu0
    %v1557 = vadd.f32 %v1201, %v1556
    %v1558 = vpop.f32.mrf.mxu0
    %1559 = vmatprep.mubr.f32.mxu0 0.0
    %1560 = vmatmul.mubr.f32.gmra.mxu0 %v1339
    %v1561 = vpop.f32.mrf.mxu0
    %v1562 = vadd.f32 %v1206, %v1561
    %v1563 = vpop.f32.mrf.mxu0
    %1564 = vmatprep.mubr.f32.mxu0 0.0
    %1565 = vmatmul.mubr.f32.gmra.mxu0 %v1342
    %v1566 = vpop.f32.mrf.mxu0
    %v1567 = vadd.f32 %v1211, %v1566
    %v1568 = vpop.f32.mrf.mxu0
    %1569 = vmatprep.mubr.f32.mxu0 0.0
    %1570 = vmatmul.mubr.f32.gmra.mxu0 %v1345
    %v1571 = vpop.f32.mrf.mxu0
    %v1572 = vadd.f32 %v1216, %v1571
    %v1573 = vpop.f32.mrf.mxu0
    %1574 = vmatprep.mubr.f32.mxu0 0.0
    %1575 = vmatmul.mubr.f32.gmra.mxu0 %v1348
    %v1576 = vpop.f32.mrf.mxu0
    %v1577 = vadd.f32 %v1221, %v1576
    %v1578 = vpop.f32.mrf.mxu0
    %1579 = vmatprep.mubr.f32.mxu0 0.0
    %1580 = vmatmul.mubr.f32.gmra.mxu0 %v1351
    %v1581 = vpop.f32.mrf.mxu0
    %v1582 = vadd.f32 %v1226, %v1581
    %v1583 = vpop.f32.mrf.mxu0
    %1584 = vmatprep.mubr.f32.mxu0 0.0
    %1585 = vmatmul.mubr.f32.gmra.mxu0 %v1354
    %v1586 = vpop.f32.mrf.mxu0
    %v1587 = vadd.f32 %v1231, %v1586
    %v1588 = vpop.f32.mrf.mxu0
    %1589 = vmatprep.mubr.f32.mxu0 0.0
    %1590 = vmatmul.mubr.f32.gmra.mxu0 %v1357
    %v1591 = vpop.f32.mrf.mxu0
    %v1592 = vadd.f32 %v1236, %v1591
    %v1593 = vpop.f32.mrf.mxu0
    %1594 = vmatprep.mubr.f32.mxu0 0.0
    %1595 = vmatmul.mubr.f32.gmra.mxu0 %v1360
    %v1596 = vpop.f32.mrf.mxu0
    %v1597 = vadd.f32 %v1241, %v1596
    %v1598 = vpop.f32.mrf.mxu0
    %1599 = vmatprep.mubr.f32.mxu0 0.0
    %1600 = vmatmul.mubr.f32.gmra.mxu0 %v1363
    %v1601 = vpop.f32.mrf.mxu0
    %v1602 = vadd.f32 %v1246, %v1601
    %v1603 = vpop.f32.mrf.mxu0
    %1604 = vmatprep.mubr.f32.mxu0 0.0
    %1605 = vmatmul.mubr.f32.gmra.mxu0 %v1366
    %v1606 = vpop.f32.mrf.mxu0
    %v1607 = vadd.f32 %v1251, %v1606
    %v1608 = vpop.f32.mrf.mxu0
    %1609 = vmatprep.mubr.f32.mxu0 0.0
    %1610 = vmatmul.mubr.f32.gmra.mxu0 %v1369
    %v1611 = vpop.f32.mrf.mxu0
    %v1612 = vadd.f32 %v1256, %v1611
    %v1613 = vpop.f32.mrf.mxu0
    %1614 = vmatprep.mubr.f32.mxu0 0.0
    %1615 = vmatmul.mubr.f32.gmra.mxu0 %v1372
    %v1616 = vpop.f32.mrf.mxu0
    %v1617 = vadd.f32 %v1261, %v1616
    %v1618 = vpop.f32.mrf.mxu0
    %1619 = vmatprep.mubr.f32.mxu0 0.0
    %1620 = vmatmul.mubr.f32.gmra.mxu0 %v1375
    %v1621 = vpop.f32.mrf.mxu0
    %v1622 = vadd.f32 %v1266, %v1621
    %v1623 = vpop.f32.mrf.mxu0
    %1624 = vdwg.mxu0
    %v1625 = vld [vmem:[%s0 + $0x240] sm:$0xff]
    %v1626 = vld [vmem:[%s0 + $0x248] sm:$0xff]
    %v1627 = vld [vmem:[%s0 + $0x250] sm:$0xff]
    %v1628 = vld [vmem:[%s0 + $0x258] sm:$0xff]
    %v1629 = vld [vmem:[%s0 + $0x260] sm:$0xff]
    %v1630 = vld [vmem:[%s0 + $0x268] sm:$0xff]
    %v1631 = vld [vmem:[%s0 + $0x270] sm:$0xff]
    %v1632 = vld [vmem:[%s0 + $0x278] sm:$0xff]
    %v1633 = vld [vmem:[%s0 + $0x280] sm:$0xff]
    %v1634 = vld [vmem:[%s0 + $0x288] sm:$0xff]
    %v1635 = vld [vmem:[%s0 + $0x290] sm:$0xff]
    %v1636 = vld [vmem:[%s0 + $0x298] sm:$0xff]
    %v1637 = vld [vmem:[%s0 + $0x2a0] sm:$0xff]
    %v1638 = vld [vmem:[%s0 + $0x2a8] sm:$0xff]
    %v1639 = vld [vmem:[%s0 + $0x2b0] sm:$0xff]
    %v1640 = vld [vmem:[%s0 + $0x2b8] sm:$0xff]
    %v1641 = vld [vmem:[%s0 + $0x2c0] sm:$0xff]
    %v1642 = vld [vmem:[%s0 + $0x2c8] sm:$0xff]
    %v1643 = vld [vmem:[%s0 + $0x2d0] sm:$0xff]
    %v1644 = vld [vmem:[%s0 + $0x2d8] sm:$0xff]
    %v1645 = vld [vmem:[%s0 + $0x2e0] sm:$0xff]
    %v1646 = vld [vmem:[%s0 + $0x2e8] sm:$0xff]
    %v1647 = vld [vmem:[%s0 + $0x2f0] sm:$0xff]
    %v1648 = vld [vmem:[%s0 + $0x2f8] sm:$0xff]
    %v1649 = vld [vmem:[%s0 + $0x300] sm:$0xff]
    %v1650 = vld [vmem:[%s0 + $0x308] sm:$0xff]
    %v1651 = vld [vmem:[%s0 + $0x310] sm:$0xff]
    %v1652 = vld [vmem:[%s0 + $0x318] sm:$0xff]
    %v1653 = vld [vmem:[%s0 + $0x320] sm:$0xff]
    %v1654 = vld [vmem:[%s0 + $0x328] sm:$0xff]
    %v1655 = vld [vmem:[%s0 + $0x330] sm:$0xff]
    %v1656 = vld [vmem:[%s0 + $0x338] sm:$0xff]
    %v1657 = vld [vmem:[%s0 + $0x340] sm:$0xff]
    %v1658 = vld [vmem:[%s0 + $0x348] sm:$0xff]
    %v1659 = vld [vmem:[%s0 + $0x350] sm:$0xff]
    %v1660 = vld [vmem:[%s0 + $0x358] sm:$0xff]
    %v1662 = vsel %vm89, %v1625, 0
    %v1665 = vsel %vm89, %v1626, 0
    %v1668 = vsel %vm89, %v1627, 0
    %v1671 = vsel %vm89, %v1628, 0
    %v1674 = vsel %vm89, %v1629, 0
    %v1677 = vsel %vm89, %v1630, 0
    %v1680 = vsel %vm89, %v1631, 0
    %v1683 = vsel %vm89, %v1632, 0
    %v1686 = vsel %vm89, %v1633, 0
    %v1689 = vsel %vm89, %v1634, 0
    %v1692 = vsel %vm89, %v1635, 0
    %v1695 = vsel %vm89, %v1636, 0
    %v1698 = vsel %vm89, %v1637, 0
    %v1701 = vsel %vm89, %v1638, 0
    %v1704 = vsel %vm89, %v1639, 0
    %v1707 = vsel %vm89, %v1640, 0
    %v1710 = vsel %vm89, %v1641, 0
    %v1713 = vsel %vm89, %v1642, 0
    %v1716 = vsel %vm89, %v1643, 0
    %v1719 = vsel %vm89, %v1644, 0
    %v1722 = vsel %vm89, %v1645, 0
    %v1725 = vsel %vm89, %v1646, 0
    %v1728 = vsel %vm89, %v1647, 0
    %v1731 = vsel %vm89, %v1648, 0
    %v1734 = vsel %vm89, %v1649, 0
    %v1737 = vsel %vm89, %v1650, 0
    %v1740 = vsel %vm89, %v1651, 0
    %v1743 = vsel %vm89, %v1652, 0
    %v1746 = vsel %vm89, %v1653, 0
    %v1749 = vsel %vm89, %v1654, 0
    %v1752 = vsel %vm89, %v1655, 0
    %v1755 = vsel %vm89, %v1656, 0
    %v1758 = vsel %vm89, %v1657, 0
    %v1761 = vsel %vm89, %v1658, 0
    %v1764 = vsel %vm89, %v1659, 0
    %v1767 = vsel %vm89, %v1660, 0
    %1769 = vmatprep.subr.mxu0 0.0
    %1770 = vmatpush1.msra.mxu0 0.0
    %1771 = vmatprep.subr.mxu0 0.0
    %1772 = vmatpush1.msra.mxu0 0.0
    %1773 = vmatprep.subr.mxu0 0.0
    %1774 = vmatpush1.msra.mxu0 0.0
    %1775 = vmatprep.subr.mxu0 0.0
    %1776 = vmatpush1.msra.mxu0 0.0
    %1777 = vmatprep.subr.mxu0 0.0
    %1778 = vmatpush1.msra.mxu0 0.0
    %1779 = vmatprep.subr.mxu0 0.0
    %1780 = vmatpush1.msra.mxu0 0.0
    %1781 = vmatprep.subr.mxu0 0.0
    %1782 = vmatpush1.msra.mxu0 0.0
    %1783 = vmatprep.subr.mxu0 0.0
    %1784 = vmatpush1.msra.mxu0 0.0
    %1785 = vmatprep.subr.mxu0 0.0
    %1786 = vmatpush1.msra.mxu0 0.0
    %1787 = vmatprep.subr.mxu0 0.0
    %1788 = vmatpush1.msra.mxu0 0.0
    %1789 = vmatprep.subr.mxu0 0.0
    %1790 = vmatpush1.msra.mxu0 0.0
    %1791 = vmatprep.subr.mxu0 0.0
    %1792 = vmatpush1.msra.mxu0 0.0
    %1793 = vmatprep.subr.mxu0 0.0
    %1794 = vmatpush1.msra.mxu0 0.0
    %1795 = vmatprep.subr.mxu0 0.0
    %1796 = vmatpush1.msra.mxu0 0.0
    %1797 = vmatprep.subr.mxu0 0.0
    %1798 = vmatpush1.msra.mxu0 %v200
    %1799 = vmatprep.subr.mxu0 0.0
    %1800 = vmatpush1.msra.mxu0 %v51
    %1801 = vmatprep.subr.mxu0 0.0
    %1802 = vmatpush2.msra.mxu0 0.0
    %1803 = vmatprep.subr.mxu0 0.0
    %1804 = vmatpush2.msra.mxu0 0.0
    %1805 = vmatprep.subr.mxu0 0.0
    %1806 = vmatpush2.msra.mxu0 0.0
    %1807 = vmatprep.subr.mxu0 0.0
    %1808 = vmatpush2.msra.mxu0 0.0
    %1809 = vmatprep.subr.mxu0 0.0
    %1810 = vmatpush2.msra.mxu0 0.0
    %1811 = vmatprep.subr.mxu0 0.0
    %1812 = vmatpush2.msra.mxu0 0.0
    %1813 = vmatprep.subr.mxu0 0.0
    %1814 = vmatpush2.msra.mxu0 0.0
    %1815 = vmatprep.subr.mxu0 0.0
    %1816 = vmatpush2.msra.mxu0 0.0
    %1817 = vmatprep.subr.mxu0 0.0
    %1818 = vmatpush2.msra.mxu0 0.0
    %1819 = vmatprep.subr.mxu0 0.0
    %1820 = vmatpush2.msra.mxu0 0.0
    %1821 = vmatprep.subr.mxu0 0.0
    %1822 = vmatpush2.msra.mxu0 0.0
    %1823 = vmatprep.subr.mxu0 0.0
    %1824 = vmatpush2.msra.mxu0 0.0
    %1825 = vmatprep.subr.mxu0 0.0
    %1826 = vmatpush2.msra.mxu0 0.0
    %1827 = vmatprep.subr.mxu0 0.0
    %1828 = vmatpush2.msra.mxu0 0.0
    %1829 = vmatprep.subr.mxu0 0.0
    %1830 = vmatpush2.msra.mxu0 0.0
    %1831 = vmatprep.subr.mxu0 0.0
    %1832 = vmatpush2.msra.mxu0 0.0
    %1833 = vmatprep.mubr.f32.mxu0 0.0
    %1834 = vmatmul.mubr.f32.gmra.mxu0 %v1662
    %v1835 = vpop.f32.mrf.mxu0
    %v1836 = vadd.f32 0.0, %v1835
    %v1837 = vpop.f32.mrf.mxu0
    %1838 = vmatprep.mubr.f32.mxu0 0.0
    %1839 = vmatmul.mubr.f32.gmra.mxu0 %v1665
    %v1840 = vpop.f32.mrf.mxu0
    %v1841 = vadd.f32 0.0, %v1840
    %v1842 = vpop.f32.mrf.mxu0
    %1843 = vmatprep.mubr.f32.mxu0 0.0
    %1844 = vmatmul.mubr.f32.gmra.mxu0 %v1668
    %v1845 = vpop.f32.mrf.mxu0
    %v1846 = vadd.f32 0.0, %v1845
    %v1847 = vpop.f32.mrf.mxu0
    %1848 = vmatprep.mubr.f32.mxu0 0.0
    %1849 = vmatmul.mubr.f32.gmra.mxu0 %v1671
    %v1850 = vpop.f32.mrf.mxu0
    %v1851 = vadd.f32 0.0, %v1850
    %v1852 = vpop.f32.mrf.mxu0
    %1853 = vmatprep.mubr.f32.mxu0 0.0
    %1854 = vmatmul.mubr.f32.gmra.mxu0 %v1674
    %v1855 = vpop.f32.mrf.mxu0
    %v1856 = vadd.f32 0.0, %v1855
    %v1857 = vpop.f32.mrf.mxu0
    %1858 = vmatprep.mubr.f32.mxu0 0.0
    %1859 = vmatmul.mubr.f32.gmra.mxu0 %v1677
    %v1860 = vpop.f32.mrf.mxu0
    %v1861 = vadd.f32 0.0, %v1860
    %v1862 = vpop.f32.mrf.mxu0
    %1863 = vmatprep.mubr.f32.mxu0 0.0
    %1864 = vmatmul.mubr.f32.gmra.mxu0 %v1680
    %v1865 = vpop.f32.mrf.mxu0
    %v1866 = vadd.f32 0.0, %v1865
    %v1867 = vpop.f32.mrf.mxu0
    %1868 = vmatprep.mubr.f32.mxu0 0.0
    %1869 = vmatmul.mubr.f32.gmra.mxu0 %v1683
    %v1870 = vpop.f32.mrf.mxu0
    %v1871 = vadd.f32 0.0, %v1870
    %v1872 = vpop.f32.mrf.mxu0
    %1873 = vmatprep.mubr.f32.mxu0 0.0
    %1874 = vmatmul.mubr.f32.gmra.mxu0 %v1686
    %v1875 = vpop.f32.mrf.mxu0
    %v1876 = vadd.f32 0.0, %v1875
    %v1877 = vpop.f32.mrf.mxu0
    %1878 = vmatprep.mubr.f32.mxu0 0.0
    %1879 = vmatmul.mubr.f32.gmra.mxu0 %v1689
    %v1880 = vpop.f32.mrf.mxu0
    %v1881 = vadd.f32 0.0, %v1880
    %v1882 = vpop.f32.mrf.mxu0
    %1883 = vmatprep.mubr.f32.mxu0 0.0
    %1884 = vmatmul.mubr.f32.gmra.mxu0 %v1692
    %v1885 = vpop.f32.mrf.mxu0
    %v1886 = vadd.f32 0.0, %v1885
    %v1887 = vpop.f32.mrf.mxu0
    %1888 = vmatprep.mubr.f32.mxu0 0.0
    %1889 = vmatmul.mubr.f32.gmra.mxu0 %v1695
    %v1890 = vpop.f32.mrf.mxu0
    %v1891 = vadd.f32 0.0, %v1890
    %v1892 = vpop.f32.mrf.mxu0
    %1893 = vmatprep.mubr.f32.mxu0 0.0
    %1894 = vmatmul.mubr.f32.gmra.mxu0 %v1698
    %v1895 = vpop.f32.mrf.mxu0
    %v1896 = vadd.f32 0.0, %v1895
    %v1897 = vpop.f32.mrf.mxu0
    %1898 = vmatprep.mubr.f32.mxu0 0.0
    %1899 = vmatmul.mubr.f32.gmra.mxu0 %v1701
    %v1900 = vpop.f32.mrf.mxu0
    %v1901 = vadd.f32 0.0, %v1900
    %v1902 = vpop.f32.mrf.mxu0
    %1903 = vmatprep.mubr.f32.mxu0 0.0
    %1904 = vmatmul.mubr.f32.gmra.mxu0 %v1704
    %v1905 = vpop.f32.mrf.mxu0
    %v1906 = vadd.f32 0.0, %v1905
    %v1907 = vpop.f32.mrf.mxu0
    %1908 = vmatprep.mubr.f32.mxu0 0.0
    %1909 = vmatmul.mubr.f32.gmra.mxu0 %v1707
    %v1910 = vpop.f32.mrf.mxu0
    %v1911 = vadd.f32 0.0, %v1910
    %v1912 = vpop.f32.mrf.mxu0
    %1913 = vmatprep.mubr.f32.mxu0 0.0
    %1914 = vmatmul.mubr.f32.gmra.mxu0 %v1710
    %v1915 = vpop.f32.mrf.mxu0
    %v1916 = vadd.f32 0.0, %v1915
    %v1917 = vpop.f32.mrf.mxu0
    %1918 = vmatprep.mubr.f32.mxu0 0.0
    %1919 = vmatmul.mubr.f32.gmra.mxu0 %v1713
    %v1920 = vpop.f32.mrf.mxu0
    %v1921 = vadd.f32 0.0, %v1920
    %v1922 = vpop.f32.mrf.mxu0
    %1923 = vmatprep.mubr.f32.mxu0 0.0
    %1924 = vmatmul.mubr.f32.gmra.mxu0 %v1716
    %v1925 = vpop.f32.mrf.mxu0
    %v1926 = vadd.f32 0.0, %v1925
    %v1927 = vpop.f32.mrf.mxu0
    %1928 = vmatprep.mubr.f32.mxu0 0.0
    %1929 = vmatmul.mubr.f32.gmra.mxu0 %v1719
    %v1930 = vpop.f32.mrf.mxu0
    %v1931 = vadd.f32 0.0, %v1930
    %v1932 = vpop.f32.mrf.mxu0
    %1933 = vmatprep.mubr.f32.mxu0 0.0
    %1934 = vmatmul.mubr.f32.gmra.mxu0 %v1722
    %v1935 = vpop.f32.mrf.mxu0
    %v1936 = vadd.f32 0.0, %v1935
    %v1937 = vpop.f32.mrf.mxu0
    %1938 = vmatprep.mubr.f32.mxu0 0.0
    %1939 = vmatmul.mubr.f32.gmra.mxu0 %v1725
    %v1940 = vpop.f32.mrf.mxu0
    %v1941 = vadd.f32 0.0, %v1940
    %v1942 = vpop.f32.mrf.mxu0
    %1943 = vmatprep.mubr.f32.mxu0 0.0
    %1944 = vmatmul.mubr.f32.gmra.mxu0 %v1728
    %v1945 = vpop.f32.mrf.mxu0
    %v1946 = vadd.f32 0.0, %v1945
    %v1947 = vpop.f32.mrf.mxu0
    %1948 = vmatprep.mubr.f32.mxu0 0.0
    %1949 = vmatmul.mubr.f32.gmra.mxu0 %v1731
    %v1950 = vpop.f32.mrf.mxu0
    %v1951 = vadd.f32 0.0, %v1950
    %v1952 = vpop.f32.mrf.mxu0
    %1953 = vmatprep.mubr.f32.mxu0 0.0
    %1954 = vmatmul.mubr.f32.gmra.mxu0 %v1734
    %v1955 = vpop.f32.mrf.mxu0
    %v1956 = vadd.f32 0.0, %v1955
    %v1957 = vpop.f32.mrf.mxu0
    %1958 = vmatprep.mubr.f32.mxu0 0.0
    %1959 = vmatmul.mubr.f32.gmra.mxu0 %v1737
    %v1960 = vpop.f32.mrf.mxu0
    %v1961 = vadd.f32 0.0, %v1960
    %v1962 = vpop.f32.mrf.mxu0
    %1963 = vmatprep.mubr.f32.mxu0 0.0
    %1964 = vmatmul.mubr.f32.gmra.mxu0 %v1740
    %v1965 = vpop.f32.mrf.mxu0
    %v1966 = vadd.f32 0.0, %v1965
    %v1967 = vpop.f32.mrf.mxu0
    %1968 = vmatprep.mubr.f32.mxu0 0.0
    %1969 = vmatmul.mubr.f32.gmra.mxu0 %v1743
    %v1970 = vpop.f32.mrf.mxu0
    %v1971 = vadd.f32 0.0, %v1970
    %v1972 = vpop.f32.mrf.mxu0
    %1973 = vmatprep.mubr.f32.mxu0 0.0
    %1974 = vmatmul.mubr.f32.gmra.mxu0 %v1746
    %v1975 = vpop.f32.mrf.mxu0
    %v1976 = vadd.f32 0.0, %v1975
    %v1977 = vpop.f32.mrf.mxu0
    %1978 = vmatprep.mubr.f32.mxu0 0.0
    %1979 = vmatmul.mubr.f32.gmra.mxu0 %v1749
    %v1980 = vpop.f32.mrf.mxu0
    %v1981 = vadd.f32 0.0, %v1980
    %v1982 = vpop.f32.mrf.mxu0
    %1983 = vmatprep.mubr.f32.mxu0 0.0
    %1984 = vmatmul.mubr.f32.gmra.mxu0 %v1752
    %v1985 = vpop.f32.mrf.mxu0
    %v1986 = vadd.f32 0.0, %v1985
    %v1987 = vpop.f32.mrf.mxu0
    %1988 = vmatprep.mubr.f32.mxu0 0.0
    %1989 = vmatmul.mubr.f32.gmra.mxu0 %v1755
    %v1990 = vpop.f32.mrf.mxu0
    %v1991 = vadd.f32 0.0, %v1990
    %v1992 = vpop.f32.mrf.mxu0
    %1993 = vmatprep.mubr.f32.mxu0 0.0
    %1994 = vmatmul.mubr.f32.gmra.mxu0 %v1758
    %v1995 = vpop.f32.mrf.mxu0
    %v1996 = vadd.f32 0.0, %v1995
    %v1997 = vpop.f32.mrf.mxu0
    %1998 = vmatprep.mubr.f32.mxu0 0.0
    %1999 = vmatmul.mubr.f32.gmra.mxu0 %v1761
    %v2000 = vpop.f32.mrf.mxu0
    %v2001 = vadd.f32 0.0, %v2000
    %v2002 = vpop.f32.mrf.mxu0
    %2003 = vmatprep.mubr.f32.mxu0 0.0
    %2004 = vmatmul.mubr.f32.gmra.mxu0 %v1764
    %v2005 = vpop.f32.mrf.mxu0
    %v2006 = vadd.f32 0.0, %v2005
    %v2007 = vpop.f32.mrf.mxu0
    %2008 = vmatprep.mubr.f32.mxu0 0.0
    %2009 = vmatmul.mubr.f32.gmra.mxu0 %v1767
    %v2010 = vpop.f32.mrf.mxu0
    %v2011 = vadd.f32 0.0, %v2010
    %v2012 = vpop.f32.mrf.mxu0
    %2013 = vdwg.mxu0
    %v2014 = vmax.f32 %v1836, 0.0
    %v2015 = vmax.f32 %v1841, 0.0
    %v2016 = vmax.f32 %v1846, 0.0
    %v2017 = vmax.f32 %v1851, 0.0
    %v2018 = vmax.f32 %v1856, 0.0
    %v2019 = vmax.f32 %v1861, 0.0
    %v2020 = vmax.f32 %v1866, 0.0
    %v2021 = vmax.f32 %v1871, 0.0
    %v2022 = vmax.f32 %v1876, 0.0
    %v2023 = vmax.f32 %v1881, 0.0
    %v2024 = vmax.f32 %v1886, 0.0
    %v2025 = vmax.f32 %v1891, 0.0
    %v2026 = vmax.f32 %v1896, 0.0
    %v2027 = vmax.f32 %v1901, 0.0
    %v2028 = vmax.f32 %v1906, 0.0
    %v2029 = vmax.f32 %v1911, 0.0
    %v2030 = vmax.f32 %v1916, 0.0
    %v2031 = vmax.f32 %v1921, 0.0
    %v2032 = vmax.f32 %v1926, 0.0
    %v2033 = vmax.f32 %v1931, 0.0
    %v2034 = vmax.f32 %v1936, 0.0
    %v2035 = vmax.f32 %v1941, 0.0
    %v2036 = vmax.f32 %v1946, 0.0
    %v2037 = vmax.f32 %v1951, 0.0
    %v2038 = vmax.f32 %v1956, 0.0
    %v2039 = vmax.f32 %v1961, 0.0
    %v2040 = vmax.f32 %v1966, 0.0
    %v2041 = vmax.f32 %v1971, 0.0
    %v2042 = vmax.f32 %v1976, 0.0
    %v2043 = vmax.f32 %v1981, 0.0
    %v2044 = vmax.f32 %v1986, 0.0
    %v2045 = vmax.f32 %v1991, 0.0
    %v2046 = vmax.f32 %v1996, 0.0
    %v2047 = vmax.f32 %v2001, 0.0
    %v2048 = vmax.f32 %v2006, 0.0
    %v2049 = vmax.f32 %v2011, 0.0
    %s2050 = scalar_lea.vmem %s4, 8
    %v2051 = vld [vmem:[%s2050] sm:$0xf]
    %v2053 = vsel %vm911, %v2014, 0
    %v2056 = vsel %vm911, %v2015, 0
    %v2059 = vsel %vm911, %v2016, 0
    %v2062 = vsel %vm911, %v2017, 0
    %v2065 = vsel %vm911, %v2018, 0
    %v2068 = vsel %vm911, %v2019, 0
    %v2071 = vsel %vm911, %v2020, 0
    %v2074 = vsel %vm911, %v2021, 0
    %v2077 = vsel %vm911, %v2022, 0
    %v2080 = vsel %vm911, %v2023, 0
    %v2083 = vsel %vm911, %v2024, 0
    %v2086 = vsel %vm911, %v2025, 0
    %v2089 = vsel %vm911, %v2026, 0
    %v2092 = vsel %vm911, %v2027, 0
    %v2095 = vsel %vm911, %v2028, 0
    %v2098 = vsel %vm911, %v2029, 0
    %v2101 = vsel %vm911, %v2030, 0
    %v2104 = vsel %vm911, %v2031, 0
    %v2107 = vsel %vm911, %v2032, 0
    %v2110 = vsel %vm911, %v2033, 0
    %v2113 = vsel %vm911, %v2034, 0
    %v2116 = vsel %vm911, %v2035, 0
    %v2119 = vsel %vm911, %v2036, 0
    %v2122 = vsel %vm911, %v2037, 0
    %v2125 = vsel %vm911, %v2038, 0
    %v2128 = vsel %vm911, %v2039, 0
    %v2131 = vsel %vm911, %v2040, 0
    %v2134 = vsel %vm911, %v2041, 0
    %v2137 = vsel %vm911, %v2042, 0
    %v2140 = vsel %vm911, %v2043, 0
    %v2143 = vsel %vm911, %v2044, 0
    %v2146 = vsel %vm911, %v2045, 0
    %v2149 = vsel %vm911, %v2046, 0
    %v2152 = vsel %vm911, %v2047, 0
    %v2155 = vsel %vm911, %v2048, 0
    %v2158 = vsel %vm911, %v2049, 0
    %v2161 = vsel %vm1020, %v2051, 0
    %2163 = vmatprep.subr.mxu0 0.0
    %2164 = vmatpush1.msra.mxu0 0.0
    %2165 = vmatprep.subr.mxu0 0.0
    %2166 = vmatpush1.msra.mxu0 0.0
    %2167 = vmatprep.subr.mxu0 0.0
    %2168 = vmatpush1.msra.mxu0 0.0
    %2169 = vmatprep.subr.mxu0 0.0
    %2170 = vmatpush1.msra.mxu0 0.0
    %2171 = vmatprep.subr.mxu0 0.0
    %2172 = vmatpush1.msra.mxu0 0.0
    %2173 = vmatprep.subr.mxu0 0.0
    %2174 = vmatpush1.msra.mxu0 0.0
    %2175 = vmatprep.subr.mxu0 0.0
    %2176 = vmatpush1.msra.mxu0 0.0
    %2177 = vmatprep.subr.mxu0 0.0
    %2178 = vmatpush1.msra.mxu0 0.0
    %2179 = vmatprep.subr.mxu0 0.0
    %2180 = vmatpush1.msra.mxu0 0.0
    %2181 = vmatprep.subr.mxu0 0.0
    %2182 = vmatpush1.msra.mxu0 0.0
    %2183 = vmatprep.subr.mxu0 0.0
    %2184 = vmatpush1.msra.mxu0 0.0
    %2185 = vmatprep.subr.mxu0 0.0
    %2186 = vmatpush1.msra.mxu0 0.0
    %2187 = vmatprep.subr.mxu0 0.0
    %2188 = vmatpush1.msra.mxu0 0.0
    %2189 = vmatprep.subr.mxu0 0.0
    %2190 = vmatpush1.msra.mxu0 0.0
    %2191 = vmatprep.subr.mxu0 0.0
    %2192 = vmatpush1.msra.mxu0 0.0
    %2193 = vmatprep.subr.mxu0 0.0
    %2194 = vmatpush1.msra.mxu0 %v2161
    %2195 = vmatprep.subr.mxu0 0.0
    %2196 = vmatpush2.msra.mxu0 0.0
    %2197 = vmatprep.subr.mxu0 0.0
    %2198 = vmatpush2.msra.mxu0 0.0
    %2199 = vmatprep.subr.mxu0 0.0
    %2200 = vmatpush2.msra.mxu0 0.0
    %2201 = vmatprep.subr.mxu0 0.0
    %2202 = vmatpush2.msra.mxu0 0.0
    %2203 = vmatprep.subr.mxu0 0.0
    %2204 = vmatpush2.msra.mxu0 0.0
    %2205 = vmatprep.subr.mxu0 0.0
    %2206 = vmatpush2.msra.mxu0 0.0
    %2207 = vmatprep.subr.mxu0 0.0
    %2208 = vmatpush2.msra.mxu0 0.0
    %2209 = vmatprep.subr.mxu0 0.0
    %2210 = vmatpush2.msra.mxu0 0.0
    %2211 = vmatprep.subr.mxu0 0.0
    %2212 = vmatpush2.msra.mxu0 0.0
    %2213 = vmatprep.subr.mxu0 0.0
    %2214 = vmatpush2.msra.mxu0 0.0
    %2215 = vmatprep.subr.mxu0 0.0
    %2216 = vmatpush2.msra.mxu0 0.0
    %2217 = vmatprep.subr.mxu0 0.0
    %2218 = vmatpush2.msra.mxu0 0.0
    %2219 = vmatprep.subr.mxu0 0.0
    %2220 = vmatpush2.msra.mxu0 0.0
    %2221 = vmatprep.subr.mxu0 0.0
    %2222 = vmatpush2.msra.mxu0 0.0
    %2223 = vmatprep.subr.mxu0 0.0
    %2224 = vmatpush2.msra.mxu0 0.0
    %2225 = vmatprep.subr.mxu0 0.0
    %2226 = vmatpush2.msra.mxu0 0.0
    %2227 = vmatprep.mubr.f32.mxu0 0.0
    %2228 = vmatmul.mubr.f32.gmra.mxu0 %v2053
    %v2229 = vpop.f32.mrf.mxu0
    %v2230 = vadd.f32 0.0, %v2229
    %v2231 = vpop.f32.mrf.mxu0
    %2232 = vmatprep.mubr.f32.mxu0 0.0
    %2233 = vmatmul.mubr.f32.gmra.mxu0 %v2056
    %v2234 = vpop.f32.mrf.mxu0
    %v2235 = vadd.f32 0.0, %v2234
    %v2236 = vpop.f32.mrf.mxu0
    %2237 = vmatprep.mubr.f32.mxu0 0.0
    %2238 = vmatmul.mubr.f32.gmra.mxu0 %v2059
    %v2239 = vpop.f32.mrf.mxu0
    %v2240 = vadd.f32 0.0, %v2239
    %v2241 = vpop.f32.mrf.mxu0
    %2242 = vmatprep.mubr.f32.mxu0 0.0
    %2243 = vmatmul.mubr.f32.gmra.mxu0 %v2062
    %v2244 = vpop.f32.mrf.mxu0
    %v2245 = vadd.f32 0.0, %v2244
    %v2246 = vpop.f32.mrf.mxu0
    %2247 = vmatprep.mubr.f32.mxu0 0.0
    %2248 = vmatmul.mubr.f32.gmra.mxu0 %v2065
    %v2249 = vpop.f32.mrf.mxu0
    %v2250 = vadd.f32 0.0, %v2249
    %v2251 = vpop.f32.mrf.mxu0
    %2252 = vmatprep.mubr.f32.mxu0 0.0
    %2253 = vmatmul.mubr.f32.gmra.mxu0 %v2068
    %v2254 = vpop.f32.mrf.mxu0
    %v2255 = vadd.f32 0.0, %v2254
    %v2256 = vpop.f32.mrf.mxu0
    %2257 = vmatprep.mubr.f32.mxu0 0.0
    %2258 = vmatmul.mubr.f32.gmra.mxu0 %v2071
    %v2259 = vpop.f32.mrf.mxu0
    %v2260 = vadd.f32 0.0, %v2259
    %v2261 = vpop.f32.mrf.mxu0
    %2262 = vmatprep.mubr.f32.mxu0 0.0
    %2263 = vmatmul.mubr.f32.gmra.mxu0 %v2074
    %v2264 = vpop.f32.mrf.mxu0
    %v2265 = vadd.f32 0.0, %v2264
    %v2266 = vpop.f32.mrf.mxu0
    %2267 = vmatprep.mubr.f32.mxu0 0.0
    %2268 = vmatmul.mubr.f32.gmra.mxu0 %v2077
    %v2269 = vpop.f32.mrf.mxu0
    %v2270 = vadd.f32 0.0, %v2269
    %v2271 = vpop.f32.mrf.mxu0
    %2272 = vmatprep.mubr.f32.mxu0 0.0
    %2273 = vmatmul.mubr.f32.gmra.mxu0 %v2080
    %v2274 = vpop.f32.mrf.mxu0
    %v2275 = vadd.f32 0.0, %v2274
    %v2276 = vpop.f32.mrf.mxu0
    %2277 = vmatprep.mubr.f32.mxu0 0.0
    %2278 = vmatmul.mubr.f32.gmra.mxu0 %v2083
    %v2279 = vpop.f32.mrf.mxu0
    %v2280 = vadd.f32 0.0, %v2279
    %v2281 = vpop.f32.mrf.mxu0
    %2282 = vmatprep.mubr.f32.mxu0 0.0
    %2283 = vmatmul.mubr.f32.gmra.mxu0 %v2086
    %v2284 = vpop.f32.mrf.mxu0
    %v2285 = vadd.f32 0.0, %v2284
    %v2286 = vpop.f32.mrf.mxu0
    %2287 = vmatprep.mubr.f32.mxu0 0.0
    %2288 = vmatmul.mubr.f32.gmra.mxu0 %v2089
    %v2289 = vpop.f32.mrf.mxu0
    %v2290 = vadd.f32 0.0, %v2289
    %v2291 = vpop.f32.mrf.mxu0
    %2292 = vmatprep.mubr.f32.mxu0 0.0
    %2293 = vmatmul.mubr.f32.gmra.mxu0 %v2092
    %v2294 = vpop.f32.mrf.mxu0
    %v2295 = vadd.f32 0.0, %v2294
    %v2296 = vpop.f32.mrf.mxu0
    %2297 = vmatprep.mubr.f32.mxu0 0.0
    %2298 = vmatmul.mubr.f32.gmra.mxu0 %v2095
    %v2299 = vpop.f32.mrf.mxu0
    %v2300 = vadd.f32 0.0, %v2299
    %v2301 = vpop.f32.mrf.mxu0
    %2302 = vmatprep.mubr.f32.mxu0 0.0
    %2303 = vmatmul.mubr.f32.gmra.mxu0 %v2098
    %v2304 = vpop.f32.mrf.mxu0
    %v2305 = vadd.f32 0.0, %v2304
    %v2306 = vpop.f32.mrf.mxu0
    %2307 = vmatprep.mubr.f32.mxu0 0.0
    %2308 = vmatmul.mubr.f32.gmra.mxu0 %v2101
    %v2309 = vpop.f32.mrf.mxu0
    %v2310 = vadd.f32 0.0, %v2309
    %v2311 = vpop.f32.mrf.mxu0
    %2312 = vmatprep.mubr.f32.mxu0 0.0
    %2313 = vmatmul.mubr.f32.gmra.mxu0 %v2104
    %v2314 = vpop.f32.mrf.mxu0
    %v2315 = vadd.f32 0.0, %v2314
    %v2316 = vpop.f32.mrf.mxu0
    %2317 = vmatprep.mubr.f32.mxu0 0.0
    %2318 = vmatmul.mubr.f32.gmra.mxu0 %v2107
    %v2319 = vpop.f32.mrf.mxu0
    %v2320 = vadd.f32 0.0, %v2319
    %v2321 = vpop.f32.mrf.mxu0
    %2322 = vmatprep.mubr.f32.mxu0 0.0
    %2323 = vmatmul.mubr.f32.gmra.mxu0 %v2110
    %v2324 = vpop.f32.mrf.mxu0
    %v2325 = vadd.f32 0.0, %v2324
    %v2326 = vpop.f32.mrf.mxu0
    %2327 = vmatprep.mubr.f32.mxu0 0.0
    %2328 = vmatmul.mubr.f32.gmra.mxu0 %v2113
    %v2329 = vpop.f32.mrf.mxu0
    %v2330 = vadd.f32 0.0, %v2329
    %v2331 = vpop.f32.mrf.mxu0
    %2332 = vmatprep.mubr.f32.mxu0 0.0
    %2333 = vmatmul.mubr.f32.gmra.mxu0 %v2116
    %v2334 = vpop.f32.mrf.mxu0
    %v2335 = vadd.f32 0.0, %v2334
    %v2336 = vpop.f32.mrf.mxu0
    %2337 = vmatprep.mubr.f32.mxu0 0.0
    %2338 = vmatmul.mubr.f32.gmra.mxu0 %v2119
    %v2339 = vpop.f32.mrf.mxu0
    %v2340 = vadd.f32 0.0, %v2339
    %v2341 = vpop.f32.mrf.mxu0
    %2342 = vmatprep.mubr.f32.mxu0 0.0
    %2343 = vmatmul.mubr.f32.gmra.mxu0 %v2122
    %v2344 = vpop.f32.mrf.mxu0
    %v2345 = vadd.f32 0.0, %v2344
    %v2346 = vpop.f32.mrf.mxu0
    %2347 = vmatprep.mubr.f32.mxu0 0.0
    %2348 = vmatmul.mubr.f32.gmra.mxu0 %v2125
    %v2349 = vpop.f32.mrf.mxu0
    %v2350 = vadd.f32 0.0, %v2349
    %v2351 = vpop.f32.mrf.mxu0
    %2352 = vmatprep.mubr.f32.mxu0 0.0
    %2353 = vmatmul.mubr.f32.gmra.mxu0 %v2128
    %v2354 = vpop.f32.mrf.mxu0
    %v2355 = vadd.f32 0.0, %v2354
    %v2356 = vpop.f32.mrf.mxu0
    %2357 = vmatprep.mubr.f32.mxu0 0.0
    %2358 = vmatmul.mubr.f32.gmra.mxu0 %v2131
    %v2359 = vpop.f32.mrf.mxu0
    %v2360 = vadd.f32 0.0, %v2359
    %v2361 = vpop.f32.mrf.mxu0
    %2362 = vmatprep.mubr.f32.mxu0 0.0
    %2363 = vmatmul.mubr.f32.gmra.mxu0 %v2134
    %v2364 = vpop.f32.mrf.mxu0
    %v2365 = vadd.f32 0.0, %v2364
    %v2366 = vpop.f32.mrf.mxu0
    %2367 = vmatprep.mubr.f32.mxu0 0.0
    %2368 = vmatmul.mubr.f32.gmra.mxu0 %v2137
    %v2369 = vpop.f32.mrf.mxu0
    %v2370 = vadd.f32 0.0, %v2369
    %v2371 = vpop.f32.mrf.mxu0
    %2372 = vmatprep.mubr.f32.mxu0 0.0
    %2373 = vmatmul.mubr.f32.gmra.mxu0 %v2140
    %v2374 = vpop.f32.mrf.mxu0
    %v2375 = vadd.f32 0.0, %v2374
    %v2376 = vpop.f32.mrf.mxu0
    %2377 = vmatprep.mubr.f32.mxu0 0.0
    %2378 = vmatmul.mubr.f32.gmra.mxu0 %v2143
    %v2379 = vpop.f32.mrf.mxu0
    %v2380 = vadd.f32 0.0, %v2379
    %v2381 = vpop.f32.mrf.mxu0
    %2382 = vmatprep.mubr.f32.mxu0 0.0
    %2383 = vmatmul.mubr.f32.gmra.mxu0 %v2146
    %v2384 = vpop.f32.mrf.mxu0
    %v2385 = vadd.f32 0.0, %v2384
    %v2386 = vpop.f32.mrf.mxu0
    %2387 = vmatprep.mubr.f32.mxu0 0.0
    %2388 = vmatmul.mubr.f32.gmra.mxu0 %v2149
    %v2389 = vpop.f32.mrf.mxu0
    %v2390 = vadd.f32 0.0, %v2389
    %v2391 = vpop.f32.mrf.mxu0
    %2392 = vmatprep.mubr.f32.mxu0 0.0
    %2393 = vmatmul.mubr.f32.gmra.mxu0 %v2152
    %v2394 = vpop.f32.mrf.mxu0
    %v2395 = vadd.f32 0.0, %v2394
    %v2396 = vpop.f32.mrf.mxu0
    %2397 = vmatprep.mubr.f32.mxu0 0.0
    %2398 = vmatmul.mubr.f32.gmra.mxu0 %v2155
    %v2399 = vpop.f32.mrf.mxu0
    %v2400 = vadd.f32 0.0, %v2399
    %v2401 = vpop.f32.mrf.mxu0
    %2402 = vmatprep.mubr.f32.mxu0 0.0
    %2403 = vmatmul.mubr.f32.gmra.mxu0 %v2158
    %v2404 = vpop.f32.mrf.mxu0
    %v2405 = vadd.f32 0.0, %v2404
    %v2406 = vpop.f32.mrf.mxu0
    %2407 = vdwg.mxu0
    %v2408 = vadd.f32 %v1447, %v2230
    %v2409 = vadd.f32 %v1452, %v2235
    %v2410 = vadd.f32 %v1457, %v2240
    %v2411 = vadd.f32 %v1462, %v2245
    %v2412 = vadd.f32 %v1467, %v2250
    %v2413 = vadd.f32 %v1472, %v2255
    %v2414 = vadd.f32 %v1477, %v2260
    %v2415 = vadd.f32 %v1482, %v2265
    %v2416 = vadd.f32 %v1487, %v2270
    %v2417 = vadd.f32 %v1492, %v2275
    %v2418 = vadd.f32 %v1497, %v2280
    %v2419 = vadd.f32 %v1502, %v2285
    %v2420 = vadd.f32 %v1507, %v2290
    %v2421 = vadd.f32 %v1512, %v2295
    %v2422 = vadd.f32 %v1517, %v2300
    %v2423 = vadd.f32 %v1522, %v2305
    %v2424 = vadd.f32 %v1527, %v2310
    %v2425 = vadd.f32 %v1532, %v2315
    %v2426 = vadd.f32 %v1537, %v2320
    %v2427 = vadd.f32 %v1542, %v2325
    %v2428 = vadd.f32 %v1547, %v2330
    %v2429 = vadd.f32 %v1552, %v2335
    %v2430 = vadd.f32 %v1557, %v2340
    %v2431 = vadd.f32 %v1562, %v2345
    %v2432 = vadd.f32 %v1567, %v2350
    %v2433 = vadd.f32 %v1572, %v2355
    %v2434 = vadd.f32 %v1577, %v2360
    %v2435 = vadd.f32 %v1582, %v2365
    %v2436 = vadd.f32 %v1587, %v2370
    %v2437 = vadd.f32 %v1592, %v2375
    %v2438 = vadd.f32 %v1597, %v2380
    %v2439 = vadd.f32 %v1602, %v2385
    %v2440 = vadd.f32 %v1607, %v2390
    %v2441 = vadd.f32 %v1612, %v2395
    %v2442 = vadd.f32 %v1617, %v2400
    %v2443 = vadd.f32 %v1622, %v2405
    %v2444 = vld [vmem:[%s0 + $0x360] sm:$0xff]
    %v2445 = vld [vmem:[%s0 + $0x368] sm:$0xff]
    %v2446 = vld [vmem:[%s0 + $0x370] sm:$0xff]
    %v2447 = vld [vmem:[%s0 + $0x378] sm:$0xff]
    %v2448 = vld [vmem:[%s0 + $0x380] sm:$0xff]
    %v2449 = vld [vmem:[%s0 + $0x388] sm:$0xff]
    %v2450 = vld [vmem:[%s0 + $0x390] sm:$0xff]
    %v2451 = vld [vmem:[%s0 + $0x398] sm:$0xff]
    %v2452 = vld [vmem:[%s0 + $0x3a0] sm:$0xff]
    %v2453 = vld [vmem:[%s0 + $0x3a8] sm:$0xff]
    %v2454 = vld [vmem:[%s0 + $0x3b0] sm:$0xff]
    %v2455 = vld [vmem:[%s0 + $0x3b8] sm:$0xff]
    %v2456 = vld [vmem:[%s0 + $0x3c0] sm:$0xff]
    %v2457 = vld [vmem:[%s0 + $0x3c8] sm:$0xff]
    %v2458 = vld [vmem:[%s0 + $0x3d0] sm:$0xff]
    %v2459 = vld [vmem:[%s0 + $0x3d8] sm:$0xff]
    %v2460 = vld [vmem:[%s0 + $0x3e0] sm:$0xff]
    %v2461 = vld [vmem:[%s0 + $0x3e8] sm:$0xff]
    %v2462 = vld [vmem:[%s0 + $0x3f0] sm:$0xff]
    %v2463 = vld [vmem:[%s0 + $0x3f8] sm:$0xff]
    %v2464 = vld [vmem:[%s0 + $0x400] sm:$0xff]
    %v2465 = vld [vmem:[%s0 + $0x408] sm:$0xff]
    %v2466 = vld [vmem:[%s0 + $0x410] sm:$0xff]
    %v2467 = vld [vmem:[%s0 + $0x418] sm:$0xff]
    %v2468 = vld [vmem:[%s0 + $0x420] sm:$0xff]
    %v2469 = vld [vmem:[%s0 + $0x428] sm:$0xff]
    %v2470 = vld [vmem:[%s0 + $0x430] sm:$0xff]
    %v2471 = vld [vmem:[%s0 + $0x438] sm:$0xff]
    %v2472 = vld [vmem:[%s0 + $0x440] sm:$0xff]
    %v2473 = vld [vmem:[%s0 + $0x448] sm:$0xff]
    %v2474 = vld [vmem:[%s0 + $0x450] sm:$0xff]
    %v2475 = vld [vmem:[%s0 + $0x458] sm:$0xff]
    %v2476 = vld [vmem:[%s0 + $0x460] sm:$0xff]
    %v2477 = vld [vmem:[%s0 + $0x468] sm:$0xff]
    %v2478 = vld [vmem:[%s0 + $0x470] sm:$0xff]
    %v2479 = vld [vmem:[%s0 + $0x478] sm:$0xff]
    %v2481 = vsel %vm89, %v2444, 0
    %v2484 = vsel %vm89, %v2445, 0
    %v2487 = vsel %vm89, %v2446, 0
    %v2490 = vsel %vm89, %v2447, 0
    %v2493 = vsel %vm89, %v2448, 0
    %v2496 = vsel %vm89, %v2449, 0
    %v2499 = vsel %vm89, %v2450, 0
    %v2502 = vsel %vm89, %v2451, 0
    %v2505 = vsel %vm89, %v2452, 0
    %v2508 = vsel %vm89, %v2453, 0
    %v2511 = vsel %vm89, %v2454, 0
    %v2514 = vsel %vm89, %v2455, 0
    %v2517 = vsel %vm89, %v2456, 0
    %v2520 = vsel %vm89, %v2457, 0
    %v2523 = vsel %vm89, %v2458, 0
    %v2526 = vsel %vm89, %v2459, 0
    %v2529 = vsel %vm89, %v2460, 0
    %v2532 = vsel %vm89, %v2461, 0
    %v2535 = vsel %vm89, %v2462, 0
    %v2538 = vsel %vm89, %v2463, 0
    %v2541 = vsel %vm89, %v2464, 0
    %v2544 = vsel %vm89, %v2465, 0
    %v2547 = vsel %vm89, %v2466, 0
    %v2550 = vsel %vm89, %v2467, 0
    %v2553 = vsel %vm89, %v2468, 0
    %v2556 = vsel %vm89, %v2469, 0
    %v2559 = vsel %vm89, %v2470, 0
    %v2562 = vsel %vm89, %v2471, 0
    %v2565 = vsel %vm89, %v2472, 0
    %v2568 = vsel %vm89, %v2473, 0
    %v2571 = vsel %vm89, %v2474, 0
    %v2574 = vsel %vm89, %v2475, 0
    %v2577 = vsel %vm89, %v2476, 0
    %v2580 = vsel %vm89, %v2477, 0
    %v2583 = vsel %vm89, %v2478, 0
    %v2586 = vsel %vm89, %v2479, 0
    %2588 = vmatprep.subr.mxu0 0.0
    %2589 = vmatpush1.msra.mxu0 0.0
    %2590 = vmatprep.subr.mxu0 0.0
    %2591 = vmatpush1.msra.mxu0 0.0
    %2592 = vmatprep.subr.mxu0 0.0
    %2593 = vmatpush1.msra.mxu0 0.0
    %2594 = vmatprep.subr.mxu0 0.0
    %2595 = vmatpush1.msra.mxu0 0.0
    %2596 = vmatprep.subr.mxu0 0.0
    %2597 = vmatpush1.msra.mxu0 0.0
    %2598 = vmatprep.subr.mxu0 0.0
    %2599 = vmatpush1.msra.mxu0 0.0
    %2600 = vmatprep.subr.mxu0 0.0
    %2601 = vmatpush1.msra.mxu0 0.0
    %2602 = vmatprep.subr.mxu0 0.0
    %2603 = vmatpush1.msra.mxu0 0.0
    %2604 = vmatprep.subr.mxu0 0.0
    %2605 = vmatpush1.msra.mxu0 0.0
    %2606 = vmatprep.subr.mxu0 0.0
    %2607 = vmatpush1.msra.mxu0 0.0
    %2608 = vmatprep.subr.mxu0 0.0
    %2609 = vmatpush1.msra.mxu0 0.0
    %2610 = vmatprep.subr.mxu0 0.0
    %2611 = vmatpush1.msra.mxu0 0.0
    %2612 = vmatprep.subr.mxu0 0.0
    %2613 = vmatpush1.msra.mxu0 0.0
    %2614 = vmatprep.subr.mxu0 0.0
    %2615 = vmatpush1.msra.mxu0 0.0
    %2616 = vmatprep.subr.mxu0 0.0
    %2617 = vmatpush1.msra.mxu0 %v200
    %2618 = vmatprep.subr.mxu0 0.0
    %2619 = vmatpush1.msra.mxu0 %v51
    %2620 = vmatprep.subr.mxu0 0.0
    %2621 = vmatpush2.msra.mxu0 0.0
    %2622 = vmatprep.subr.mxu0 0.0
    %2623 = vmatpush2.msra.mxu0 0.0
    %2624 = vmatprep.subr.mxu0 0.0
    %2625 = vmatpush2.msra.mxu0 0.0
    %2626 = vmatprep.subr.mxu0 0.0
    %2627 = vmatpush2.msra.mxu0 0.0
    %2628 = vmatprep.subr.mxu0 0.0
    %2629 = vmatpush2.msra.mxu0 0.0
    %2630 = vmatprep.subr.mxu0 0.0
    %2631 = vmatpush2.msra.mxu0 0.0
    %2632 = vmatprep.subr.mxu0 0.0
    %2633 = vmatpush2.msra.mxu0 0.0
    %2634 = vmatprep.subr.mxu0 0.0
    %2635 = vmatpush2.msra.mxu0 0.0
    %2636 = vmatprep.subr.mxu0 0.0
    %2637 = vmatpush2.msra.mxu0 0.0
    %2638 = vmatprep.subr.mxu0 0.0
    %2639 = vmatpush2.msra.mxu0 0.0
    %2640 = vmatprep.subr.mxu0 0.0
    %2641 = vmatpush2.msra.mxu0 0.0
    %2642 = vmatprep.subr.mxu0 0.0
    %2643 = vmatpush2.msra.mxu0 0.0
    %2644 = vmatprep.subr.mxu0 0.0
    %2645 = vmatpush2.msra.mxu0 0.0
    %2646 = vmatprep.subr.mxu0 0.0
    %2647 = vmatpush2.msra.mxu0 0.0
    %2648 = vmatprep.subr.mxu0 0.0
    %2649 = vmatpush2.msra.mxu0 0.0
    %2650 = vmatprep.subr.mxu0 0.0
    %2651 = vmatpush2.msra.mxu0 0.0
    %2652 = vmatprep.mubr.f32.mxu0 0.0
    %2653 = vmatmul.mubr.f32.gmra.mxu0 %v2481
    %v2654 = vpop.f32.mrf.mxu0
    %v2655 = vadd.f32 0.0, %v2654
    %v2656 = vpop.f32.mrf.mxu0
    %2657 = vmatprep.mubr.f32.mxu0 0.0
    %2658 = vmatmul.mubr.f32.gmra.mxu0 %v2484
    %v2659 = vpop.f32.mrf.mxu0
    %v2660 = vadd.f32 0.0, %v2659
    %v2661 = vpop.f32.mrf.mxu0
    %2662 = vmatprep.mubr.f32.mxu0 0.0
    %2663 = vmatmul.mubr.f32.gmra.mxu0 %v2487
    %v2664 = vpop.f32.mrf.mxu0
    %v2665 = vadd.f32 0.0, %v2664
    %v2666 = vpop.f32.mrf.mxu0
    %2667 = vmatprep.mubr.f32.mxu0 0.0
    %2668 = vmatmul.mubr.f32.gmra.mxu0 %v2490
    %v2669 = vpop.f32.mrf.mxu0
    %v2670 = vadd.f32 0.0, %v2669
    %v2671 = vpop.f32.mrf.mxu0
    %2672 = vmatprep.mubr.f32.mxu0 0.0
    %2673 = vmatmul.mubr.f32.gmra.mxu0 %v2493
    %v2674 = vpop.f32.mrf.mxu0
    %v2675 = vadd.f32 0.0, %v2674
    %v2676 = vpop.f32.mrf.mxu0
    %2677 = vmatprep.mubr.f32.mxu0 0.0
    %2678 = vmatmul.mubr.f32.gmra.mxu0 %v2496
    %v2679 = vpop.f32.mrf.mxu0
    %v2680 = vadd.f32 0.0, %v2679
    %v2681 = vpop.f32.mrf.mxu0
    %2682 = vmatprep.mubr.f32.mxu0 0.0
    %2683 = vmatmul.mubr.f32.gmra.mxu0 %v2499
    %v2684 = vpop.f32.mrf.mxu0
    %v2685 = vadd.f32 0.0, %v2684
    %v2686 = vpop.f32.mrf.mxu0
    %2687 = vmatprep.mubr.f32.mxu0 0.0
    %2688 = vmatmul.mubr.f32.gmra.mxu0 %v2502
    %v2689 = vpop.f32.mrf.mxu0
    %v2690 = vadd.f32 0.0, %v2689
    %v2691 = vpop.f32.mrf.mxu0
    %2692 = vmatprep.mubr.f32.mxu0 0.0
    %2693 = vmatmul.mubr.f32.gmra.mxu0 %v2505
    %v2694 = vpop.f32.mrf.mxu0
    %v2695 = vadd.f32 0.0, %v2694
    %v2696 = vpop.f32.mrf.mxu0
    %2697 = vmatprep.mubr.f32.mxu0 0.0
    %2698 = vmatmul.mubr.f32.gmra.mxu0 %v2508
    %v2699 = vpop.f32.mrf.mxu0
    %v2700 = vadd.f32 0.0, %v2699
    %v2701 = vpop.f32.mrf.mxu0
    %2702 = vmatprep.mubr.f32.mxu0 0.0
    %2703 = vmatmul.mubr.f32.gmra.mxu0 %v2511
    %v2704 = vpop.f32.mrf.mxu0
    %v2705 = vadd.f32 0.0, %v2704
    %v2706 = vpop.f32.mrf.mxu0
    %2707 = vmatprep.mubr.f32.mxu0 0.0
    %2708 = vmatmul.mubr.f32.gmra.mxu0 %v2514
    %v2709 = vpop.f32.mrf.mxu0
    %v2710 = vadd.f32 0.0, %v2709
    %v2711 = vpop.f32.mrf.mxu0
    %2712 = vmatprep.mubr.f32.mxu0 0.0
    %2713 = vmatmul.mubr.f32.gmra.mxu0 %v2517
    %v2714 = vpop.f32.mrf.mxu0
    %v2715 = vadd.f32 0.0, %v2714
    %v2716 = vpop.f32.mrf.mxu0
    %2717 = vmatprep.mubr.f32.mxu0 0.0
    %2718 = vmatmul.mubr.f32.gmra.mxu0 %v2520
    %v2719 = vpop.f32.mrf.mxu0
    %v2720 = vadd.f32 0.0, %v2719
    %v2721 = vpop.f32.mrf.mxu0
    %2722 = vmatprep.mubr.f32.mxu0 0.0
    %2723 = vmatmul.mubr.f32.gmra.mxu0 %v2523
    %v2724 = vpop.f32.mrf.mxu0
    %v2725 = vadd.f32 0.0, %v2724
    %v2726 = vpop.f32.mrf.mxu0
    %2727 = vmatprep.mubr.f32.mxu0 0.0
    %2728 = vmatmul.mubr.f32.gmra.mxu0 %v2526
    %v2729 = vpop.f32.mrf.mxu0
    %v2730 = vadd.f32 0.0, %v2729
    %v2731 = vpop.f32.mrf.mxu0
    %2732 = vmatprep.mubr.f32.mxu0 0.0
    %2733 = vmatmul.mubr.f32.gmra.mxu0 %v2529
    %v2734 = vpop.f32.mrf.mxu0
    %v2735 = vadd.f32 0.0, %v2734
    %v2736 = vpop.f32.mrf.mxu0
    %2737 = vmatprep.mubr.f32.mxu0 0.0
    %2738 = vmatmul.mubr.f32.gmra.mxu0 %v2532
    %v2739 = vpop.f32.mrf.mxu0
    %v2740 = vadd.f32 0.0, %v2739
    %v2741 = vpop.f32.mrf.mxu0
    %2742 = vmatprep.mubr.f32.mxu0 0.0
    %2743 = vmatmul.mubr.f32.gmra.mxu0 %v2535
    %v2744 = vpop.f32.mrf.mxu0
    %v2745 = vadd.f32 0.0, %v2744
    %v2746 = vpop.f32.mrf.mxu0
    %2747 = vmatprep.mubr.f32.mxu0 0.0
    %2748 = vmatmul.mubr.f32.gmra.mxu0 %v2538
    %v2749 = vpop.f32.mrf.mxu0
    %v2750 = vadd.f32 0.0, %v2749
    %v2751 = vpop.f32.mrf.mxu0
    %2752 = vmatprep.mubr.f32.mxu0 0.0
    %2753 = vmatmul.mubr.f32.gmra.mxu0 %v2541
    %v2754 = vpop.f32.mrf.mxu0
    %v2755 = vadd.f32 0.0, %v2754
    %v2756 = vpop.f32.mrf.mxu0
    %2757 = vmatprep.mubr.f32.mxu0 0.0
    %2758 = vmatmul.mubr.f32.gmra.mxu0 %v2544
    %v2759 = vpop.f32.mrf.mxu0
    %v2760 = vadd.f32 0.0, %v2759
    %v2761 = vpop.f32.mrf.mxu0
    %2762 = vmatprep.mubr.f32.mxu0 0.0
    %2763 = vmatmul.mubr.f32.gmra.mxu0 %v2547
    %v2764 = vpop.f32.mrf.mxu0
    %v2765 = vadd.f32 0.0, %v2764
    %v2766 = vpop.f32.mrf.mxu0
    %2767 = vmatprep.mubr.f32.mxu0 0.0
    %2768 = vmatmul.mubr.f32.gmra.mxu0 %v2550
    %v2769 = vpop.f32.mrf.mxu0
    %v2770 = vadd.f32 0.0, %v2769
    %v2771 = vpop.f32.mrf.mxu0
    %2772 = vmatprep.mubr.f32.mxu0 0.0
    %2773 = vmatmul.mubr.f32.gmra.mxu0 %v2553
    %v2774 = vpop.f32.mrf.mxu0
    %v2775 = vadd.f32 0.0, %v2774
    %v2776 = vpop.f32.mrf.mxu0
    %2777 = vmatprep.mubr.f32.mxu0 0.0
    %2778 = vmatmul.mubr.f32.gmra.mxu0 %v2556
    %v2779 = vpop.f32.mrf.mxu0
    %v2780 = vadd.f32 0.0, %v2779
    %v2781 = vpop.f32.mrf.mxu0
    %2782 = vmatprep.mubr.f32.mxu0 0.0
    %2783 = vmatmul.mubr.f32.gmra.mxu0 %v2559
    %v2784 = vpop.f32.mrf.mxu0
    %v2785 = vadd.f32 0.0, %v2784
    %v2786 = vpop.f32.mrf.mxu0
    %2787 = vmatprep.mubr.f32.mxu0 0.0
    %2788 = vmatmul.mubr.f32.gmra.mxu0 %v2562
    %v2789 = vpop.f32.mrf.mxu0
    %v2790 = vadd.f32 0.0, %v2789
    %v2791 = vpop.f32.mrf.mxu0
    %2792 = vmatprep.mubr.f32.mxu0 0.0
    %2793 = vmatmul.mubr.f32.gmra.mxu0 %v2565
    %v2794 = vpop.f32.mrf.mxu0
    %v2795 = vadd.f32 0.0, %v2794
    %v2796 = vpop.f32.mrf.mxu0
    %2797 = vmatprep.mubr.f32.mxu0 0.0
    %2798 = vmatmul.mubr.f32.gmra.mxu0 %v2568
    %v2799 = vpop.f32.mrf.mxu0
    %v2800 = vadd.f32 0.0, %v2799
    %v2801 = vpop.f32.mrf.mxu0
    %2802 = vmatprep.mubr.f32.mxu0 0.0
    %2803 = vmatmul.mubr.f32.gmra.mxu0 %v2571
    %v2804 = vpop.f32.mrf.mxu0
    %v2805 = vadd.f32 0.0, %v2804
    %v2806 = vpop.f32.mrf.mxu0
    %2807 = vmatprep.mubr.f32.mxu0 0.0
    %2808 = vmatmul.mubr.f32.gmra.mxu0 %v2574
    %v2809 = vpop.f32.mrf.mxu0
    %v2810 = vadd.f32 0.0, %v2809
    %v2811 = vpop.f32.mrf.mxu0
    %2812 = vmatprep.mubr.f32.mxu0 0.0
    %2813 = vmatmul.mubr.f32.gmra.mxu0 %v2577
    %v2814 = vpop.f32.mrf.mxu0
    %v2815 = vadd.f32 0.0, %v2814
    %v2816 = vpop.f32.mrf.mxu0
    %2817 = vmatprep.mubr.f32.mxu0 0.0
    %2818 = vmatmul.mubr.f32.gmra.mxu0 %v2580
    %v2819 = vpop.f32.mrf.mxu0
    %v2820 = vadd.f32 0.0, %v2819
    %v2821 = vpop.f32.mrf.mxu0
    %2822 = vmatprep.mubr.f32.mxu0 0.0
    %2823 = vmatmul.mubr.f32.gmra.mxu0 %v2583
    %v2824 = vpop.f32.mrf.mxu0
    %v2825 = vadd.f32 0.0, %v2824
    %v2826 = vpop.f32.mrf.mxu0
    %2827 = vmatprep.mubr.f32.mxu0 0.0
    %2828 = vmatmul.mubr.f32.gmra.mxu0 %v2586
    %v2829 = vpop.f32.mrf.mxu0
    %v2830 = vadd.f32 0.0, %v2829
    %v2831 = vpop.f32.mrf.mxu0
    %2832 = vdwg.mxu0
    %v2833 = vmax.f32 %v2655, 0.0
    %v2834 = vmax.f32 %v2660, 0.0
    %v2835 = vmax.f32 %v2665, 0.0
    %v2836 = vmax.f32 %v2670, 0.0
    %v2837 = vmax.f32 %v2675, 0.0
    %v2838 = vmax.f32 %v2680, 0.0
    %v2839 = vmax.f32 %v2685, 0.0
    %v2840 = vmax.f32 %v2690, 0.0
    %v2841 = vmax.f32 %v2695, 0.0
    %v2842 = vmax.f32 %v2700, 0.0
    %v2843 = vmax.f32 %v2705, 0.0
    %v2844 = vmax.f32 %v2710, 0.0
    %v2845 = vmax.f32 %v2715, 0.0
    %v2846 = vmax.f32 %v2720, 0.0
    %v2847 = vmax.f32 %v2725, 0.0
    %v2848 = vmax.f32 %v2730, 0.0
    %v2849 = vmax.f32 %v2735, 0.0
    %v2850 = vmax.f32 %v2740, 0.0
    %v2851 = vmax.f32 %v2745, 0.0
    %v2852 = vmax.f32 %v2750, 0.0
    %v2853 = vmax.f32 %v2755, 0.0
    %v2854 = vmax.f32 %v2760, 0.0
    %v2855 = vmax.f32 %v2765, 0.0
    %v2856 = vmax.f32 %v2770, 0.0
    %v2857 = vmax.f32 %v2775, 0.0
    %v2858 = vmax.f32 %v2780, 0.0
    %v2859 = vmax.f32 %v2785, 0.0
    %v2860 = vmax.f32 %v2790, 0.0
    %v2861 = vmax.f32 %v2795, 0.0
    %v2862 = vmax.f32 %v2800, 0.0
    %v2863 = vmax.f32 %v2805, 0.0
    %v2864 = vmax.f32 %v2810, 0.0
    %v2865 = vmax.f32 %v2815, 0.0
    %v2866 = vmax.f32 %v2820, 0.0
    %v2867 = vmax.f32 %v2825, 0.0
    %v2868 = vmax.f32 %v2830, 0.0
    %s2869 = scalar_lea.vmem %s4, 12
    %v2870 = vld [vmem:[%s2869] sm:$0xf]
    %v2872 = vsel %vm911, %v2833, 0
    %v2875 = vsel %vm911, %v2834, 0
    %v2878 = vsel %vm911, %v2835, 0
    %v2881 = vsel %vm911, %v2836, 0
    %v2884 = vsel %vm911, %v2837, 0
    %v2887 = vsel %vm911, %v2838, 0
    %v2890 = vsel %vm911, %v2839, 0
    %v2893 = vsel %vm911, %v2840, 0
    %v2896 = vsel %vm911, %v2841, 0
    %v2899 = vsel %vm911, %v2842, 0
    %v2902 = vsel %vm911, %v2843, 0
    %v2905 = vsel %vm911, %v2844, 0
    %v2908 = vsel %vm911, %v2845, 0
    %v2911 = vsel %vm911, %v2846, 0
    %v2914 = vsel %vm911, %v2847, 0
    %v2917 = vsel %vm911, %v2848, 0
    %v2920 = vsel %vm911, %v2849, 0
    %v2923 = vsel %vm911, %v2850, 0
    %v2926 = vsel %vm911, %v2851, 0
    %v2929 = vsel %vm911, %v2852, 0
    %v2932 = vsel %vm911, %v2853, 0
    %v2935 = vsel %vm911, %v2854, 0
    %v2938 = vsel %vm911, %v2855, 0
    %v2941 = vsel %vm911, %v2856, 0
    %v2944 = vsel %vm911, %v2857, 0
    %v2947 = vsel %vm911, %v2858, 0
    %v2950 = vsel %vm911, %v2859, 0
    %v2953 = vsel %vm911, %v2860, 0
    %v2956 = vsel %vm911, %v2861, 0
    %v2959 = vsel %vm911, %v2862, 0
    %v2962 = vsel %vm911, %v2863, 0
    %v2965 = vsel %vm911, %v2864, 0
    %v2968 = vsel %vm911, %v2865, 0
    %v2971 = vsel %vm911, %v2866, 0
    %v2974 = vsel %vm911, %v2867, 0
    %v2977 = vsel %vm911, %v2868, 0
    %v2980 = vsel %vm1020, %v2870, 0
    %2982 = vmatprep.subr.mxu0 0.0
    %2983 = vmatpush1.msra.mxu0 0.0
    %2984 = vmatprep.subr.mxu0 0.0
    %2985 = vmatpush1.msra.mxu0 0.0
    %2986 = vmatprep.subr.mxu0 0.0
    %2987 = vmatpush1.msra.mxu0 0.0
    %2988 = vmatprep.subr.mxu0 0.0
    %2989 = vmatpush1.msra.mxu0 0.0
    %2990 = vmatprep.subr.mxu0 0.0
    %2991 = vmatpush1.msra.mxu0 0.0
    %2992 = vmatprep.subr.mxu0 0.0
    %2993 = vmatpush1.msra.mxu0 0.0
    %2994 = vmatprep.subr.mxu0 0.0
    %2995 = vmatpush1.msra.mxu0 0.0
    %2996 = vmatprep.subr.mxu0 0.0
    %2997 = vmatpush1.msra.mxu0 0.0
    %2998 = vmatprep.subr.mxu0 0.0
    %2999 = vmatpush1.msra.mxu0 0.0
    %3000 = vmatprep.subr.mxu0 0.0
    %3001 = vmatpush1.msra.mxu0 0.0
    %3002 = vmatprep.subr.mxu0 0.0
    %3003 = vmatpush1.msra.mxu0 0.0
    %3004 = vmatprep.subr.mxu0 0.0
    %3005 = vmatpush1.msra.mxu0 0.0
    %3006 = vmatprep.subr.mxu0 0.0
    %3007 = vmatpush1.msra.mxu0 0.0
    %3008 = vmatprep.subr.mxu0 0.0
    %3009 = vmatpush1.msra.mxu0 0.0
    %3010 = vmatprep.subr.mxu0 0.0
    %3011 = vmatpush1.msra.mxu0 0.0
    %3012 = vmatprep.subr.mxu0 0.0
    %3013 = vmatpush1.msra.mxu0 %v2980
    %3014 = vmatprep.subr.mxu0 0.0
    %3015 = vmatpush2.msra.mxu0 0.0
    %3016 = vmatprep.subr.mxu0 0.0
    %3017 = vmatpush2.msra.mxu0 0.0
    %3018 = vmatprep.subr.mxu0 0.0
    %3019 = vmatpush2.msra.mxu0 0.0
    %3020 = vmatprep.subr.mxu0 0.0
    %3021 = vmatpush2.msra.mxu0 0.0
    %3022 = vmatprep.subr.mxu0 0.0
    %3023 = vmatpush2.msra.mxu0 0.0
    %3024 = vmatprep.subr.mxu0 0.0
    %3025 = vmatpush2.msra.mxu0 0.0
    %3026 = vmatprep.subr.mxu0 0.0
    %3027 = vmatpush2.msra.mxu0 0.0
    %3028 = vmatprep.subr.mxu0 0.0
    %3029 = vmatpush2.msra.mxu0 0.0
    %3030 = vmatprep.subr.mxu0 0.0
    %3031 = vmatpush2.msra.mxu0 0.0
    %3032 = vmatprep.subr.mxu0 0.0
    %3033 = vmatpush2.msra.mxu0 0.0
    %3034 = vmatprep.subr.mxu0 0.0
    %3035 = vmatpush2.msra.mxu0 0.0
    %3036 = vmatprep.subr.mxu0 0.0
    %3037 = vmatpush2.msra.mxu0 0.0
    %3038 = vmatprep.subr.mxu0 0.0
    %3039 = vmatpush2.msra.mxu0 0.0
    %3040 = vmatprep.subr.mxu0 0.0
    %3041 = vmatpush2.msra.mxu0 0.0
    %3042 = vmatprep.subr.mxu0 0.0
    %3043 = vmatpush2.msra.mxu0 0.0
    %3044 = vmatprep.subr.mxu0 0.0
    %3045 = vmatpush2.msra.mxu0 0.0
    %3046 = vmatprep.mubr.f32.mxu0 0.0
    %3047 = vmatmul.mubr.f32.gmra.mxu0 %v2872
    %v3048 = vpop.f32.mrf.mxu0
    %v3049 = vadd.f32 0.0, %v3048
    %v3050 = vpop.f32.mrf.mxu0
    %3051 = vmatprep.mubr.f32.mxu0 0.0
    %3052 = vmatmul.mubr.f32.gmra.mxu0 %v2875
    %v3053 = vpop.f32.mrf.mxu0
    %v3054 = vadd.f32 0.0, %v3053
    %v3055 = vpop.f32.mrf.mxu0
    %3056 = vmatprep.mubr.f32.mxu0 0.0
    %3057 = vmatmul.mubr.f32.gmra.mxu0 %v2878
    %v3058 = vpop.f32.mrf.mxu0
    %v3059 = vadd.f32 0.0, %v3058
    %v3060 = vpop.f32.mrf.mxu0
    %3061 = vmatprep.mubr.f32.mxu0 0.0
    %3062 = vmatmul.mubr.f32.gmra.mxu0 %v2881
    %v3063 = vpop.f32.mrf.mxu0
    %v3064 = vadd.f32 0.0, %v3063
    %v3065 = vpop.f32.mrf.mxu0
    %3066 = vmatprep.mubr.f32.mxu0 0.0
    %3067 = vmatmul.mubr.f32.gmra.mxu0 %v2884
    %v3068 = vpop.f32.mrf.mxu0
    %v3069 = vadd.f32 0.0, %v3068
    %v3070 = vpop.f32.mrf.mxu0
    %3071 = vmatprep.mubr.f32.mxu0 0.0
    %3072 = vmatmul.mubr.f32.gmra.mxu0 %v2887
    %v3073 = vpop.f32.mrf.mxu0
    %v3074 = vadd.f32 0.0, %v3073
    %v3075 = vpop.f32.mrf.mxu0
    %3076 = vmatprep.mubr.f32.mxu0 0.0
    %3077 = vmatmul.mubr.f32.gmra.mxu0 %v2890
    %v3078 = vpop.f32.mrf.mxu0
    %v3079 = vadd.f32 0.0, %v3078
    %v3080 = vpop.f32.mrf.mxu0
    %3081 = vmatprep.mubr.f32.mxu0 0.0
    %3082 = vmatmul.mubr.f32.gmra.mxu0 %v2893
    %v3083 = vpop.f32.mrf.mxu0
    %v3084 = vadd.f32 0.0, %v3083
    %v3085 = vpop.f32.mrf.mxu0
    %3086 = vmatprep.mubr.f32.mxu0 0.0
    %3087 = vmatmul.mubr.f32.gmra.mxu0 %v2896
    %v3088 = vpop.f32.mrf.mxu0
    %v3089 = vadd.f32 0.0, %v3088
    %v3090 = vpop.f32.mrf.mxu0
    %3091 = vmatprep.mubr.f32.mxu0 0.0
    %3092 = vmatmul.mubr.f32.gmra.mxu0 %v2899
    %v3093 = vpop.f32.mrf.mxu0
    %v3094 = vadd.f32 0.0, %v3093
    %v3095 = vpop.f32.mrf.mxu0
    %3096 = vmatprep.mubr.f32.mxu0 0.0
    %3097 = vmatmul.mubr.f32.gmra.mxu0 %v2902
    %v3098 = vpop.f32.mrf.mxu0
    %v3099 = vadd.f32 0.0, %v3098
    %v3100 = vpop.f32.mrf.mxu0
    %3101 = vmatprep.mubr.f32.mxu0 0.0
    %3102 = vmatmul.mubr.f32.gmra.mxu0 %v2905
    %v3103 = vpop.f32.mrf.mxu0
    %v3104 = vadd.f32 0.0, %v3103
    %v3105 = vpop.f32.mrf.mxu0
    %3106 = vmatprep.mubr.f32.mxu0 0.0
    %3107 = vmatmul.mubr.f32.gmra.mxu0 %v2908
    %v3108 = vpop.f32.mrf.mxu0
    %v3109 = vadd.f32 0.0, %v3108
    %v3110 = vpop.f32.mrf.mxu0
    %3111 = vmatprep.mubr.f32.mxu0 0.0
    %3112 = vmatmul.mubr.f32.gmra.mxu0 %v2911
    %v3113 = vpop.f32.mrf.mxu0
    %v3114 = vadd.f32 0.0, %v3113
    %v3115 = vpop.f32.mrf.mxu0
    %3116 = vmatprep.mubr.f32.mxu0 0.0
    %3117 = vmatmul.mubr.f32.gmra.mxu0 %v2914
    %v3118 = vpop.f32.mrf.mxu0
    %v3119 = vadd.f32 0.0, %v3118
    %v3120 = vpop.f32.mrf.mxu0
    %3121 = vmatprep.mubr.f32.mxu0 0.0
    %3122 = vmatmul.mubr.f32.gmra.mxu0 %v2917
    %v3123 = vpop.f32.mrf.mxu0
    %v3124 = vadd.f32 0.0, %v3123
    %v3125 = vpop.f32.mrf.mxu0
    %3126 = vmatprep.mubr.f32.mxu0 0.0
    %3127 = vmatmul.mubr.f32.gmra.mxu0 %v2920
    %v3128 = vpop.f32.mrf.mxu0
    %v3129 = vadd.f32 0.0, %v3128
    %v3130 = vpop.f32.mrf.mxu0
    %3131 = vmatprep.mubr.f32.mxu0 0.0
    %3132 = vmatmul.mubr.f32.gmra.mxu0 %v2923
    %v3133 = vpop.f32.mrf.mxu0
    %v3134 = vadd.f32 0.0, %v3133
    %v3135 = vpop.f32.mrf.mxu0
    %3136 = vmatprep.mubr.f32.mxu0 0.0
    %3137 = vmatmul.mubr.f32.gmra.mxu0 %v2926
    %v3138 = vpop.f32.mrf.mxu0
    %v3139 = vadd.f32 0.0, %v3138
    %v3140 = vpop.f32.mrf.mxu0
    %3141 = vmatprep.mubr.f32.mxu0 0.0
    %3142 = vmatmul.mubr.f32.gmra.mxu0 %v2929
    %v3143 = vpop.f32.mrf.mxu0
    %v3144 = vadd.f32 0.0, %v3143
    %v3145 = vpop.f32.mrf.mxu0
    %3146 = vmatprep.mubr.f32.mxu0 0.0
    %3147 = vmatmul.mubr.f32.gmra.mxu0 %v2932
    %v3148 = vpop.f32.mrf.mxu0
    %v3149 = vadd.f32 0.0, %v3148
    %v3150 = vpop.f32.mrf.mxu0
    %3151 = vmatprep.mubr.f32.mxu0 0.0
    %3152 = vmatmul.mubr.f32.gmra.mxu0 %v2935
    %v3153 = vpop.f32.mrf.mxu0
    %v3154 = vadd.f32 0.0, %v3153
    %v3155 = vpop.f32.mrf.mxu0
    %3156 = vmatprep.mubr.f32.mxu0 0.0
    %3157 = vmatmul.mubr.f32.gmra.mxu0 %v2938
    %v3158 = vpop.f32.mrf.mxu0
    %v3159 = vadd.f32 0.0, %v3158
    %v3160 = vpop.f32.mrf.mxu0
    %3161 = vmatprep.mubr.f32.mxu0 0.0
    %3162 = vmatmul.mubr.f32.gmra.mxu0 %v2941
    %v3163 = vpop.f32.mrf.mxu0
    %v3164 = vadd.f32 0.0, %v3163
    %v3165 = vpop.f32.mrf.mxu0
    %3166 = vmatprep.mubr.f32.mxu0 0.0
    %3167 = vmatmul.mubr.f32.gmra.mxu0 %v2944
    %v3168 = vpop.f32.mrf.mxu0
    %v3169 = vadd.f32 0.0, %v3168
    %v3170 = vpop.f32.mrf.mxu0
    %3171 = vmatprep.mubr.f32.mxu0 0.0
    %3172 = vmatmul.mubr.f32.gmra.mxu0 %v2947
    %v3173 = vpop.f32.mrf.mxu0
    %v3174 = vadd.f32 0.0, %v3173
    %v3175 = vpop.f32.mrf.mxu0
    %3176 = vmatprep.mubr.f32.mxu0 0.0
    %3177 = vmatmul.mubr.f32.gmra.mxu0 %v2950
    %v3178 = vpop.f32.mrf.mxu0
    %v3179 = vadd.f32 0.0, %v3178
    %v3180 = vpop.f32.mrf.mxu0
    %3181 = vmatprep.mubr.f32.mxu0 0.0
    %3182 = vmatmul.mubr.f32.gmra.mxu0 %v2953
    %v3183 = vpop.f32.mrf.mxu0
    %v3184 = vadd.f32 0.0, %v3183
    %v3185 = vpop.f32.mrf.mxu0
    %3186 = vmatprep.mubr.f32.mxu0 0.0
    %3187 = vmatmul.mubr.f32.gmra.mxu0 %v2956
    %v3188 = vpop.f32.mrf.mxu0
    %v3189 = vadd.f32 0.0, %v3188
    %v3190 = vpop.f32.mrf.mxu0
    %3191 = vmatprep.mubr.f32.mxu0 0.0
    %3192 = vmatmul.mubr.f32.gmra.mxu0 %v2959
    %v3193 = vpop.f32.mrf.mxu0
    %v3194 = vadd.f32 0.0, %v3193
    %v3195 = vpop.f32.mrf.mxu0
    %3196 = vmatprep.mubr.f32.mxu0 0.0
    %3197 = vmatmul.mubr.f32.gmra.mxu0 %v2962
    %v3198 = vpop.f32.mrf.mxu0
    %v3199 = vadd.f32 0.0, %v3198
    %v3200 = vpop.f32.mrf.mxu0
    %3201 = vmatprep.mubr.f32.mxu0 0.0
    %3202 = vmatmul.mubr.f32.gmra.mxu0 %v2965
    %v3203 = vpop.f32.mrf.mxu0
    %v3204 = vadd.f32 0.0, %v3203
    %v3205 = vpop.f32.mrf.mxu0
    %3206 = vmatprep.mubr.f32.mxu0 0.0
    %3207 = vmatmul.mubr.f32.gmra.mxu0 %v2968
    %v3208 = vpop.f32.mrf.mxu0
    %v3209 = vadd.f32 0.0, %v3208
    %v3210 = vpop.f32.mrf.mxu0
    %3211 = vmatprep.mubr.f32.mxu0 0.0
    %3212 = vmatmul.mubr.f32.gmra.mxu0 %v2971
    %v3213 = vpop.f32.mrf.mxu0
    %v3214 = vadd.f32 0.0, %v3213
    %v3215 = vpop.f32.mrf.mxu0
    %3216 = vmatprep.mubr.f32.mxu0 0.0
    %3217 = vmatmul.mubr.f32.gmra.mxu0 %v2974
    %v3218 = vpop.f32.mrf.mxu0
    %v3219 = vadd.f32 0.0, %v3218
    %v3220 = vpop.f32.mrf.mxu0
    %3221 = vmatprep.mubr.f32.mxu0 0.0
    %3222 = vmatmul.mubr.f32.gmra.mxu0 %v2977
    %v3223 = vpop.f32.mrf.mxu0
    %v3224 = vadd.f32 0.0, %v3223
    %v3225 = vpop.f32.mrf.mxu0
    %3226 = vdwg.mxu0
    %v3227 = vadd.f32 %v2408, %v3049
    %v3228 = vadd.f32 %v2409, %v3054
    %v3229 = vadd.f32 %v2410, %v3059
    %v3230 = vadd.f32 %v2411, %v3064
    %v3231 = vadd.f32 %v2412, %v3069
    %v3232 = vadd.f32 %v2413, %v3074
    %v3233 = vadd.f32 %v2414, %v3079
    %v3234 = vadd.f32 %v2415, %v3084
    %v3235 = vadd.f32 %v2416, %v3089
    %v3236 = vadd.f32 %v2417, %v3094
    %v3237 = vadd.f32 %v2418, %v3099
    %v3238 = vadd.f32 %v2419, %v3104
    %v3239 = vadd.f32 %v2420, %v3109
    %v3240 = vadd.f32 %v2421, %v3114
    %v3241 = vadd.f32 %v2422, %v3119
    %v3242 = vadd.f32 %v2423, %v3124
    %v3243 = vadd.f32 %v2424, %v3129
    %v3244 = vadd.f32 %v2425, %v3134
    %v3245 = vadd.f32 %v2426, %v3139
    %v3246 = vadd.f32 %v2427, %v3144
    %v3247 = vadd.f32 %v2428, %v3149
    %v3248 = vadd.f32 %v2429, %v3154
    %v3249 = vadd.f32 %v2430, %v3159
    %v3250 = vadd.f32 %v2431, %v3164
    %v3251 = vadd.f32 %v2432, %v3169
    %v3252 = vadd.f32 %v2433, %v3174
    %v3253 = vadd.f32 %v2434, %v3179
    %v3254 = vadd.f32 %v2435, %v3184
    %v3255 = vadd.f32 %v2436, %v3189
    %v3256 = vadd.f32 %v2437, %v3194
    %v3257 = vadd.f32 %v2438, %v3199
    %v3258 = vadd.f32 %v2439, %v3204
    %v3259 = vadd.f32 %v2440, %v3209
    %v3260 = vadd.f32 %v2441, %v3214
    %v3261 = vadd.f32 %v2442, %v3219
    %v3262 = vadd.f32 %v2443, %v3224
    %v3263 = vld [vmem:[%s0 + $0x480] sm:$0xff]
    %v3264 = vld [vmem:[%s0 + $0x488] sm:$0xff]
    %v3265 = vld [vmem:[%s0 + $0x490] sm:$0xff]
    %v3266 = vld [vmem:[%s0 + $0x498] sm:$0xff]
    %v3267 = vld [vmem:[%s0 + $0x4a0] sm:$0xff]
    %v3268 = vld [vmem:[%s0 + $0x4a8] sm:$0xff]
    %v3269 = vld [vmem:[%s0 + $0x4b0] sm:$0xff]
    %v3270 = vld [vmem:[%s0 + $0x4b8] sm:$0xff]
    %v3271 = vld [vmem:[%s0 + $0x4c0] sm:$0xff]
    %v3272 = vld [vmem:[%s0 + $0x4c8] sm:$0xff]
    %v3273 = vld [vmem:[%s0 + $0x4d0] sm:$0xff]
    %v3274 = vld [vmem:[%s0 + $0x4d8] sm:$0xff]
    %v3275 = vld [vmem:[%s0 + $0x4e0] sm:$0xff]
    %v3276 = vld [vmem:[%s0 + $0x4e8] sm:$0xff]
    %v3277 = vld [vmem:[%s0 + $0x4f0] sm:$0xff]
    %v3278 = vld [vmem:[%s0 + $0x4f8] sm:$0xff]
    %v3279 = vld [vmem:[%s0 + $0x500] sm:$0xff]
    %v3280 = vld [vmem:[%s0 + $0x508] sm:$0xff]
    %v3281 = vld [vmem:[%s0 + $0x510] sm:$0xff]
    %v3282 = vld [vmem:[%s0 + $0x518] sm:$0xff]
    %v3283 = vld [vmem:[%s0 + $0x520] sm:$0xff]
    %v3284 = vld [vmem:[%s0 + $0x528] sm:$0xff]
    %v3285 = vld [vmem:[%s0 + $0x530] sm:$0xff]
    %v3286 = vld [vmem:[%s0 + $0x538] sm:$0xff]
    %v3287 = vld [vmem:[%s0 + $0x540] sm:$0xff]
    %v3288 = vld [vmem:[%s0 + $0x548] sm:$0xff]
    %v3289 = vld [vmem:[%s0 + $0x550] sm:$0xff]
    %v3290 = vld [vmem:[%s0 + $0x558] sm:$0xff]
    %v3291 = vld [vmem:[%s0 + $0x560] sm:$0xff]
    %v3292 = vld [vmem:[%s0 + $0x568] sm:$0xff]
    %v3293 = vld [vmem:[%s0 + $0x570] sm:$0xff]
    %v3294 = vld [vmem:[%s0 + $0x578] sm:$0xff]
    %v3295 = vld [vmem:[%s0 + $0x580] sm:$0xff]
    %v3296 = vld [vmem:[%s0 + $0x588] sm:$0xff]
    %v3297 = vld [vmem:[%s0 + $0x590] sm:$0xff]
    %v3298 = vld [vmem:[%s0 + $0x598] sm:$0xff]
    %v3300 = vsel %vm89, %v3263, 0
    %v3303 = vsel %vm89, %v3264, 0
    %v3306 = vsel %vm89, %v3265, 0
    %v3309 = vsel %vm89, %v3266, 0
    %v3312 = vsel %vm89, %v3267, 0
    %v3315 = vsel %vm89, %v3268, 0
    %v3318 = vsel %vm89, %v3269, 0
    %v3321 = vsel %vm89, %v3270, 0
    %v3324 = vsel %vm89, %v3271, 0
    %v3327 = vsel %vm89, %v3272, 0
    %v3330 = vsel %vm89, %v3273, 0
    %v3333 = vsel %vm89, %v3274, 0
    %v3336 = vsel %vm89, %v3275, 0
    %v3339 = vsel %vm89, %v3276, 0
    %v3342 = vsel %vm89, %v3277, 0
    %v3345 = vsel %vm89, %v3278, 0
    %v3348 = vsel %vm89, %v3279, 0
    %v3351 = vsel %vm89, %v3280, 0
    %v3354 = vsel %vm89, %v3281, 0
    %v3357 = vsel %vm89, %v3282, 0
    %v3360 = vsel %vm89, %v3283, 0
    %v3363 = vsel %vm89, %v3284, 0
    %v3366 = vsel %vm89, %v3285, 0
    %v3369 = vsel %vm89, %v3286, 0
    %v3372 = vsel %vm89, %v3287, 0
    %v3375 = vsel %vm89, %v3288, 0
    %v3378 = vsel %vm89, %v3289, 0
    %v3381 = vsel %vm89, %v3290, 0
    %v3384 = vsel %vm89, %v3291, 0
    %v3387 = vsel %vm89, %v3292, 0
    %v3390 = vsel %vm89, %v3293, 0
    %v3393 = vsel %vm89, %v3294, 0
    %v3396 = vsel %vm89, %v3295, 0
    %v3399 = vsel %vm89, %v3296, 0
    %v3402 = vsel %vm89, %v3297, 0
    %v3405 = vsel %vm89, %v3298, 0
    %3407 = vmatprep.subr.mxu0 0.0
    %3408 = vmatpush1.msra.mxu0 0.0
    %3409 = vmatprep.subr.mxu0 0.0
    %3410 = vmatpush1.msra.mxu0 0.0
    %3411 = vmatprep.subr.mxu0 0.0
    %3412 = vmatpush1.msra.mxu0 0.0
    %3413 = vmatprep.subr.mxu0 0.0
    %3414 = vmatpush1.msra.mxu0 0.0
    %3415 = vmatprep.subr.mxu0 0.0
    %3416 = vmatpush1.msra.mxu0 0.0
    %3417 = vmatprep.subr.mxu0 0.0
    %3418 = vmatpush1.msra.mxu0 0.0
    %3419 = vmatprep.subr.mxu0 0.0
    %3420 = vmatpush1.msra.mxu0 0.0
    %3421 = vmatprep.subr.mxu0 0.0
    %3422 = vmatpush1.msra.mxu0 0.0
    %3423 = vmatprep.subr.mxu0 0.0
    %3424 = vmatpush1.msra.mxu0 0.0
    %3425 = vmatprep.subr.mxu0 0.0
    %3426 = vmatpush1.msra.mxu0 0.0
    %3427 = vmatprep.subr.mxu0 0.0
    %3428 = vmatpush1.msra.mxu0 0.0
    %3429 = vmatprep.subr.mxu0 0.0
    %3430 = vmatpush1.msra.mxu0 0.0
    %3431 = vmatprep.subr.mxu0 0.0
    %3432 = vmatpush1.msra.mxu0 0.0
    %3433 = vmatprep.subr.mxu0 0.0
    %3434 = vmatpush1.msra.mxu0 0.0
    %3435 = vmatprep.subr.mxu0 0.0
    %3436 = vmatpush1.msra.mxu0 %v200
    %3437 = vmatprep.subr.mxu0 0.0
    %3438 = vmatpush1.msra.mxu0 %v51
    %3439 = vmatprep.subr.mxu0 0.0
    %3440 = vmatpush2.msra.mxu0 0.0
    %3441 = vmatprep.subr.mxu0 0.0
    %3442 = vmatpush2.msra.mxu0 0.0
    %3443 = vmatprep.subr.mxu0 0.0
    %3444 = vmatpush2.msra.mxu0 0.0
    %3445 = vmatprep.subr.mxu0 0.0
    %3446 = vmatpush2.msra.mxu0 0.0
    %3447 = vmatprep.subr.mxu0 0.0
    %3448 = vmatpush2.msra.mxu0 0.0
    %3449 = vmatprep.subr.mxu0 0.0
    %3450 = vmatpush2.msra.mxu0 0.0
    %3451 = vmatprep.subr.mxu0 0.0
    %3452 = vmatpush2.msra.mxu0 0.0
    %3453 = vmatprep.subr.mxu0 0.0
    %3454 = vmatpush2.msra.mxu0 0.0
    %3455 = vmatprep.subr.mxu0 0.0
    %3456 = vmatpush2.msra.mxu0 0.0
    %3457 = vmatprep.subr.mxu0 0.0
    %3458 = vmatpush2.msra.mxu0 0.0
    %3459 = vmatprep.subr.mxu0 0.0
    %3460 = vmatpush2.msra.mxu0 0.0
    %3461 = vmatprep.subr.mxu0 0.0
    %3462 = vmatpush2.msra.mxu0 0.0
    %3463 = vmatprep.subr.mxu0 0.0
    %3464 = vmatpush2.msra.mxu0 0.0
    %3465 = vmatprep.subr.mxu0 0.0
    %3466 = vmatpush2.msra.mxu0 0.0
    %3467 = vmatprep.subr.mxu0 0.0
    %3468 = vmatpush2.msra.mxu0 0.0
    %3469 = vmatprep.subr.mxu0 0.0
    %3470 = vmatpush2.msra.mxu0 0.0
    %3471 = vmatprep.mubr.f32.mxu0 0.0
    %3472 = vmatmul.mubr.f32.gmra.mxu0 %v3300
    %v3473 = vpop.f32.mrf.mxu0
    %v3474 = vadd.f32 0.0, %v3473
    %v3475 = vpop.f32.mrf.mxu0
    %3476 = vmatprep.mubr.f32.mxu0 0.0
    %3477 = vmatmul.mubr.f32.gmra.mxu0 %v3303
    %v3478 = vpop.f32.mrf.mxu0
    %v3479 = vadd.f32 0.0, %v3478
    %v3480 = vpop.f32.mrf.mxu0
    %3481 = vmatprep.mubr.f32.mxu0 0.0
    %3482 = vmatmul.mubr.f32.gmra.mxu0 %v3306
    %v3483 = vpop.f32.mrf.mxu0
    %v3484 = vadd.f32 0.0, %v3483
    %v3485 = vpop.f32.mrf.mxu0
    %3486 = vmatprep.mubr.f32.mxu0 0.0
    %3487 = vmatmul.mubr.f32.gmra.mxu0 %v3309
    %v3488 = vpop.f32.mrf.mxu0
    %v3489 = vadd.f32 0.0, %v3488
    %v3490 = vpop.f32.mrf.mxu0
    %3491 = vmatprep.mubr.f32.mxu0 0.0
    %3492 = vmatmul.mubr.f32.gmra.mxu0 %v3312
    %v3493 = vpop.f32.mrf.mxu0
    %v3494 = vadd.f32 0.0, %v3493
    %v3495 = vpop.f32.mrf.mxu0
    %3496 = vmatprep.mubr.f32.mxu0 0.0
    %3497 = vmatmul.mubr.f32.gmra.mxu0 %v3315
    %v3498 = vpop.f32.mrf.mxu0
    %v3499 = vadd.f32 0.0, %v3498
    %v3500 = vpop.f32.mrf.mxu0
    %3501 = vmatprep.mubr.f32.mxu0 0.0
    %3502 = vmatmul.mubr.f32.gmra.mxu0 %v3318
    %v3503 = vpop.f32.mrf.mxu0
    %v3504 = vadd.f32 0.0, %v3503
    %v3505 = vpop.f32.mrf.mxu0
    %3506 = vmatprep.mubr.f32.mxu0 0.0
    %3507 = vmatmul.mubr.f32.gmra.mxu0 %v3321
    %v3508 = vpop.f32.mrf.mxu0
    %v3509 = vadd.f32 0.0, %v3508
    %v3510 = vpop.f32.mrf.mxu0
    %3511 = vmatprep.mubr.f32.mxu0 0.0
    %3512 = vmatmul.mubr.f32.gmra.mxu0 %v3324
    %v3513 = vpop.f32.mrf.mxu0
    %v3514 = vadd.f32 0.0, %v3513
    %v3515 = vpop.f32.mrf.mxu0
    %3516 = vmatprep.mubr.f32.mxu0 0.0
    %3517 = vmatmul.mubr.f32.gmra.mxu0 %v3327
    %v3518 = vpop.f32.mrf.mxu0
    %v3519 = vadd.f32 0.0, %v3518
    %v3520 = vpop.f32.mrf.mxu0
    %3521 = vmatprep.mubr.f32.mxu0 0.0
    %3522 = vmatmul.mubr.f32.gmra.mxu0 %v3330
    %v3523 = vpop.f32.mrf.mxu0
    %v3524 = vadd.f32 0.0, %v3523
    %v3525 = vpop.f32.mrf.mxu0
    %3526 = vmatprep.mubr.f32.mxu0 0.0
    %3527 = vmatmul.mubr.f32.gmra.mxu0 %v3333
    %v3528 = vpop.f32.mrf.mxu0
    %v3529 = vadd.f32 0.0, %v3528
    %v3530 = vpop.f32.mrf.mxu0
    %3531 = vmatprep.mubr.f32.mxu0 0.0
    %3532 = vmatmul.mubr.f32.gmra.mxu0 %v3336
    %v3533 = vpop.f32.mrf.mxu0
    %v3534 = vadd.f32 0.0, %v3533
    %v3535 = vpop.f32.mrf.mxu0
    %3536 = vmatprep.mubr.f32.mxu0 0.0
    %3537 = vmatmul.mubr.f32.gmra.mxu0 %v3339
    %v3538 = vpop.f32.mrf.mxu0
    %v3539 = vadd.f32 0.0, %v3538
    %v3540 = vpop.f32.mrf.mxu0
    %3541 = vmatprep.mubr.f32.mxu0 0.0
    %3542 = vmatmul.mubr.f32.gmra.mxu0 %v3342
    %v3543 = vpop.f32.mrf.mxu0
    %v3544 = vadd.f32 0.0, %v3543
    %v3545 = vpop.f32.mrf.mxu0
    %3546 = vmatprep.mubr.f32.mxu0 0.0
    %3547 = vmatmul.mubr.f32.gmra.mxu0 %v3345
    %v3548 = vpop.f32.mrf.mxu0
    %v3549 = vadd.f32 0.0, %v3548
    %v3550 = vpop.f32.mrf.mxu0
    %3551 = vmatprep.mubr.f32.mxu0 0.0
    %3552 = vmatmul.mubr.f32.gmra.mxu0 %v3348
    %v3553 = vpop.f32.mrf.mxu0
    %v3554 = vadd.f32 0.0, %v3553
    %v3555 = vpop.f32.mrf.mxu0
    %3556 = vmatprep.mubr.f32.mxu0 0.0
    %3557 = vmatmul.mubr.f32.gmra.mxu0 %v3351
    %v3558 = vpop.f32.mrf.mxu0
    %v3559 = vadd.f32 0.0, %v3558
    %v3560 = vpop.f32.mrf.mxu0
    %3561 = vmatprep.mubr.f32.mxu0 0.0
    %3562 = vmatmul.mubr.f32.gmra.mxu0 %v3354
    %v3563 = vpop.f32.mrf.mxu0
    %v3564 = vadd.f32 0.0, %v3563
    %v3565 = vpop.f32.mrf.mxu0
    %3566 = vmatprep.mubr.f32.mxu0 0.0
    %3567 = vmatmul.mubr.f32.gmra.mxu0 %v3357
    %v3568 = vpop.f32.mrf.mxu0
    %v3569 = vadd.f32 0.0, %v3568
    %v3570 = vpop.f32.mrf.mxu0
    %3571 = vmatprep.mubr.f32.mxu0 0.0
    %3572 = vmatmul.mubr.f32.gmra.mxu0 %v3360
    %v3573 = vpop.f32.mrf.mxu0
    %v3574 = vadd.f32 0.0, %v3573
    %v3575 = vpop.f32.mrf.mxu0
    %3576 = vmatprep.mubr.f32.mxu0 0.0
    %3577 = vmatmul.mubr.f32.gmra.mxu0 %v3363
    %v3578 = vpop.f32.mrf.mxu0
    %v3579 = vadd.f32 0.0, %v3578
    %v3580 = vpop.f32.mrf.mxu0
    %3581 = vmatprep.mubr.f32.mxu0 0.0
    %3582 = vmatmul.mubr.f32.gmra.mxu0 %v3366
    %v3583 = vpop.f32.mrf.mxu0
    %v3584 = vadd.f32 0.0, %v3583
    %v3585 = vpop.f32.mrf.mxu0
    %3586 = vmatprep.mubr.f32.mxu0 0.0
    %3587 = vmatmul.mubr.f32.gmra.mxu0 %v3369
    %v3588 = vpop.f32.mrf.mxu0
    %v3589 = vadd.f32 0.0, %v3588
    %v3590 = vpop.f32.mrf.mxu0
    %3591 = vmatprep.mubr.f32.mxu0 0.0
    %3592 = vmatmul.mubr.f32.gmra.mxu0 %v3372
    %v3593 = vpop.f32.mrf.mxu0
    %v3594 = vadd.f32 0.0, %v3593
    %v3595 = vpop.f32.mrf.mxu0
    %3596 = vmatprep.mubr.f32.mxu0 0.0
    %3597 = vmatmul.mubr.f32.gmra.mxu0 %v3375
    %v3598 = vpop.f32.mrf.mxu0
    %v3599 = vadd.f32 0.0, %v3598
    %v3600 = vpop.f32.mrf.mxu0
    %3601 = vmatprep.mubr.f32.mxu0 0.0
    %3602 = vmatmul.mubr.f32.gmra.mxu0 %v3378
    %v3603 = vpop.f32.mrf.mxu0
    %v3604 = vadd.f32 0.0, %v3603
    %v3605 = vpop.f32.mrf.mxu0
    %3606 = vmatprep.mubr.f32.mxu0 0.0
    %3607 = vmatmul.mubr.f32.gmra.mxu0 %v3381
    %v3608 = vpop.f32.mrf.mxu0
    %v3609 = vadd.f32 0.0, %v3608
    %v3610 = vpop.f32.mrf.mxu0
    %3611 = vmatprep.mubr.f32.mxu0 0.0
    %3612 = vmatmul.mubr.f32.gmra.mxu0 %v3384
    %v3613 = vpop.f32.mrf.mxu0
    %v3614 = vadd.f32 0.0, %v3613
    %v3615 = vpop.f32.mrf.mxu0
    %3616 = vmatprep.mubr.f32.mxu0 0.0
    %3617 = vmatmul.mubr.f32.gmra.mxu0 %v3387
    %v3618 = vpop.f32.mrf.mxu0
    %v3619 = vadd.f32 0.0, %v3618
    %v3620 = vpop.f32.mrf.mxu0
    %3621 = vmatprep.mubr.f32.mxu0 0.0
    %3622 = vmatmul.mubr.f32.gmra.mxu0 %v3390
    %v3623 = vpop.f32.mrf.mxu0
    %v3624 = vadd.f32 0.0, %v3623
    %v3625 = vpop.f32.mrf.mxu0
    %3626 = vmatprep.mubr.f32.mxu0 0.0
    %3627 = vmatmul.mubr.f32.gmra.mxu0 %v3393
    %v3628 = vpop.f32.mrf.mxu0
    %v3629 = vadd.f32 0.0, %v3628
    %v3630 = vpop.f32.mrf.mxu0
    %3631 = vmatprep.mubr.f32.mxu0 0.0
    %3632 = vmatmul.mubr.f32.gmra.mxu0 %v3396
    %v3633 = vpop.f32.mrf.mxu0
    %v3634 = vadd.f32 0.0, %v3633
    %v3635 = vpop.f32.mrf.mxu0
    %3636 = vmatprep.mubr.f32.mxu0 0.0
    %3637 = vmatmul.mubr.f32.gmra.mxu0 %v3399
    %v3638 = vpop.f32.mrf.mxu0
    %v3639 = vadd.f32 0.0, %v3638
    %v3640 = vpop.f32.mrf.mxu0
    %3641 = vmatprep.mubr.f32.mxu0 0.0
    %3642 = vmatmul.mubr.f32.gmra.mxu0 %v3402
    %v3643 = vpop.f32.mrf.mxu0
    %v3644 = vadd.f32 0.0, %v3643
    %v3645 = vpop.f32.mrf.mxu0
    %3646 = vmatprep.mubr.f32.mxu0 0.0
    %3647 = vmatmul.mubr.f32.gmra.mxu0 %v3405
    %v3648 = vpop.f32.mrf.mxu0
    %v3649 = vadd.f32 0.0, %v3648
    %v3650 = vpop.f32.mrf.mxu0
    %3651 = vdwg.mxu0
    %v3652 = vmax.f32 %v3474, 0.0
    %v3653 = vmax.f32 %v3479, 0.0
    %v3654 = vmax.f32 %v3484, 0.0
    %v3655 = vmax.f32 %v3489, 0.0
    %v3656 = vmax.f32 %v3494, 0.0
    %v3657 = vmax.f32 %v3499, 0.0
    %v3658 = vmax.f32 %v3504, 0.0
    %v3659 = vmax.f32 %v3509, 0.0
    %v3660 = vmax.f32 %v3514, 0.0
    %v3661 = vmax.f32 %v3519, 0.0
    %v3662 = vmax.f32 %v3524, 0.0
    %v3663 = vmax.f32 %v3529, 0.0
    %v3664 = vmax.f32 %v3534, 0.0
    %v3665 = vmax.f32 %v3539, 0.0
    %v3666 = vmax.f32 %v3544, 0.0
    %v3667 = vmax.f32 %v3549, 0.0
    %v3668 = vmax.f32 %v3554, 0.0
    %v3669 = vmax.f32 %v3559, 0.0
    %v3670 = vmax.f32 %v3564, 0.0
    %v3671 = vmax.f32 %v3569, 0.0
    %v3672 = vmax.f32 %v3574, 0.0
    %v3673 = vmax.f32 %v3579, 0.0
    %v3674 = vmax.f32 %v3584, 0.0
    %v3675 = vmax.f32 %v3589, 0.0
    %v3676 = vmax.f32 %v3594, 0.0
    %v3677 = vmax.f32 %v3599, 0.0
    %v3678 = vmax.f32 %v3604, 0.0
    %v3679 = vmax.f32 %v3609, 0.0
    %v3680 = vmax.f32 %v3614, 0.0
    %v3681 = vmax.f32 %v3619, 0.0
    %v3682 = vmax.f32 %v3624, 0.0
    %v3683 = vmax.f32 %v3629, 0.0
    %v3684 = vmax.f32 %v3634, 0.0
    %v3685 = vmax.f32 %v3639, 0.0
    %v3686 = vmax.f32 %v3644, 0.0
    %v3687 = vmax.f32 %v3649, 0.0
    %s3688 = scalar_lea.vmem %s4, 16
    %v3689 = vld [vmem:[%s3688] sm:$0xf]
    %v3691 = vsel %vm911, %v3652, 0
    %v3694 = vsel %vm911, %v3653, 0
    %v3697 = vsel %vm911, %v3654, 0
    %v3700 = vsel %vm911, %v3655, 0
    %v3703 = vsel %vm911, %v3656, 0
    %v3706 = vsel %vm911, %v3657, 0
    %v3709 = vsel %vm911, %v3658, 0
    %v3712 = vsel %vm911, %v3659, 0
    %v3715 = vsel %vm911, %v3660, 0
    %v3718 = vsel %vm911, %v3661, 0
    %v3721 = vsel %vm911, %v3662, 0
    %v3724 = vsel %vm911, %v3663, 0
    %v3727 = vsel %vm911, %v3664, 0
    %v3730 = vsel %vm911, %v3665, 0
    %v3733 = vsel %vm911, %v3666, 0
    %v3736 = vsel %vm911, %v3667, 0
    %v3739 = vsel %vm911, %v3668, 0
    %v3742 = vsel %vm911, %v3669, 0
    %v3745 = vsel %vm911, %v3670, 0
    %v3748 = vsel %vm911, %v3671, 0
    %v3751 = vsel %vm911, %v3672, 0
    %v3754 = vsel %vm911, %v3673, 0
    %v3757 = vsel %vm911, %v3674, 0
    %v3760 = vsel %vm911, %v3675, 0
    %v3763 = vsel %vm911, %v3676, 0
    %v3766 = vsel %vm911, %v3677, 0
    %v3769 = vsel %vm911, %v3678, 0
    %v3772 = vsel %vm911, %v3679, 0
    %v3775 = vsel %vm911, %v3680, 0
    %v3778 = vsel %vm911, %v3681, 0
    %v3781 = vsel %vm911, %v3682, 0
    %v3784 = vsel %vm911, %v3683, 0
    %v3787 = vsel %vm911, %v3684, 0
    %v3790 = vsel %vm911, %v3685, 0
    %v3793 = vsel %vm911, %v3686, 0
    %v3796 = vsel %vm911, %v3687, 0
    %v3799 = vsel %vm1020, %v3689, 0
    %3801 = vmatprep.subr.mxu0 0.0
    %3802 = vmatpush1.msra.mxu0 0.0
    %3803 = vmatprep.subr.mxu0 0.0
    %3804 = vmatpush1.msra.mxu0 0.0
    %3805 = vmatprep.subr.mxu0 0.0
    %3806 = vmatpush1.msra.mxu0 0.0
    %3807 = vmatprep.subr.mxu0 0.0
    %3808 = vmatpush1.msra.mxu0 0.0
    %3809 = vmatprep.subr.mxu0 0.0
    %3810 = vmatpush1.msra.mxu0 0.0
    %3811 = vmatprep.subr.mxu0 0.0
    %3812 = vmatpush1.msra.mxu0 0.0
    %3813 = vmatprep.subr.mxu0 0.0
    %3814 = vmatpush1.msra.mxu0 0.0
    %3815 = vmatprep.subr.mxu0 0.0
    %3816 = vmatpush1.msra.mxu0 0.0
    %3817 = vmatprep.subr.mxu0 0.0
    %3818 = vmatpush1.msra.mxu0 0.0
    %3819 = vmatprep.subr.mxu0 0.0
    %3820 = vmatpush1.msra.mxu0 0.0
    %3821 = vmatprep.subr.mxu0 0.0
    %3822 = vmatpush1.msra.mxu0 0.0
    %3823 = vmatprep.subr.mxu0 0.0
    %3824 = vmatpush1.msra.mxu0 0.0
    %3825 = vmatprep.subr.mxu0 0.0
    %3826 = vmatpush1.msra.mxu0 0.0
    %3827 = vmatprep.subr.mxu0 0.0
    %3828 = vmatpush1.msra.mxu0 0.0
    %3829 = vmatprep.subr.mxu0 0.0
    %3830 = vmatpush1.msra.mxu0 0.0
    %3831 = vmatprep.subr.mxu0 0.0
    %3832 = vmatpush1.msra.mxu0 %v3799
    %3833 = vmatprep.subr.mxu0 0.0
    %3834 = vmatpush2.msra.mxu0 0.0
    %3835 = vmatprep.subr.mxu0 0.0
    %3836 = vmatpush2.msra.mxu0 0.0
    %3837 = vmatprep.subr.mxu0 0.0
    %3838 = vmatpush2.msra.mxu0 0.0
    %3839 = vmatprep.subr.mxu0 0.0
    %3840 = vmatpush2.msra.mxu0 0.0
    %3841 = vmatprep.subr.mxu0 0.0
    %3842 = vmatpush2.msra.mxu0 0.0
    %3843 = vmatprep.subr.mxu0 0.0
    %3844 = vmatpush2.msra.mxu0 0.0
    %3845 = vmatprep.subr.mxu0 0.0
    %3846 = vmatpush2.msra.mxu0 0.0
    %3847 = vmatprep.subr.mxu0 0.0
    %3848 = vmatpush2.msra.mxu0 0.0
    %3849 = vmatprep.subr.mxu0 0.0
    %3850 = vmatpush2.msra.mxu0 0.0
    %3851 = vmatprep.subr.mxu0 0.0
    %3852 = vmatpush2.msra.mxu0 0.0
    %3853 = vmatprep.subr.mxu0 0.0
    %3854 = vmatpush2.msra.mxu0 0.0
    %3855 = vmatprep.subr.mxu0 0.0
    %3856 = vmatpush2.msra.mxu0 0.0
    %3857 = vmatprep.subr.mxu0 0.0
    %3858 = vmatpush2.msra.mxu0 0.0
    %3859 = vmatprep.subr.mxu0 0.0
    %3860 = vmatpush2.msra.mxu0 0.0
    %3861 = vmatprep.subr.mxu0 0.0
    %3862 = vmatpush2.msra.mxu0 0.0
    %3863 = vmatprep.subr.mxu0 0.0
    %3864 = vmatpush2.msra.mxu0 0.0
    %3865 = vmatprep.mubr.f32.mxu0 0.0
    %3866 = vmatmul.mubr.f32.gmra.mxu0 %v3691
    %v3867 = vpop.f32.mrf.mxu0
    %v3868 = vadd.f32 0.0, %v3867
    %v3869 = vpop.f32.mrf.mxu0
    %3870 = vmatprep.mubr.f32.mxu0 0.0
    %3871 = vmatmul.mubr.f32.gmra.mxu0 %v3694
    %v3872 = vpop.f32.mrf.mxu0
    %v3873 = vadd.f32 0.0, %v3872
    %v3874 = vpop.f32.mrf.mxu0
    %3875 = vmatprep.mubr.f32.mxu0 0.0
    %3876 = vmatmul.mubr.f32.gmra.mxu0 %v3697
    %v3877 = vpop.f32.mrf.mxu0
    %v3878 = vadd.f32 0.0, %v3877
    %v3879 = vpop.f32.mrf.mxu0
    %3880 = vmatprep.mubr.f32.mxu0 0.0
    %3881 = vmatmul.mubr.f32.gmra.mxu0 %v3700
    %v3882 = vpop.f32.mrf.mxu0
    %v3883 = vadd.f32 0.0, %v3882
    %v3884 = vpop.f32.mrf.mxu0
    %3885 = vmatprep.mubr.f32.mxu0 0.0
    %3886 = vmatmul.mubr.f32.gmra.mxu0 %v3703
    %v3887 = vpop.f32.mrf.mxu0
    %v3888 = vadd.f32 0.0, %v3887
    %v3889 = vpop.f32.mrf.mxu0
    %3890 = vmatprep.mubr.f32.mxu0 0.0
    %3891 = vmatmul.mubr.f32.gmra.mxu0 %v3706
    %v3892 = vpop.f32.mrf.mxu0
    %v3893 = vadd.f32 0.0, %v3892
    %v3894 = vpop.f32.mrf.mxu0
    %3895 = vmatprep.mubr.f32.mxu0 0.0
    %3896 = vmatmul.mubr.f32.gmra.mxu0 %v3709
    %v3897 = vpop.f32.mrf.mxu0
    %v3898 = vadd.f32 0.0, %v3897
    %v3899 = vpop.f32.mrf.mxu0
    %3900 = vmatprep.mubr.f32.mxu0 0.0
    %3901 = vmatmul.mubr.f32.gmra.mxu0 %v3712
    %v3902 = vpop.f32.mrf.mxu0
    %v3903 = vadd.f32 0.0, %v3902
    %v3904 = vpop.f32.mrf.mxu0
    %3905 = vmatprep.mubr.f32.mxu0 0.0
    %3906 = vmatmul.mubr.f32.gmra.mxu0 %v3715
    %v3907 = vpop.f32.mrf.mxu0
    %v3908 = vadd.f32 0.0, %v3907
    %v3909 = vpop.f32.mrf.mxu0
    %3910 = vmatprep.mubr.f32.mxu0 0.0
    %3911 = vmatmul.mubr.f32.gmra.mxu0 %v3718
    %v3912 = vpop.f32.mrf.mxu0
    %v3913 = vadd.f32 0.0, %v3912
    %v3914 = vpop.f32.mrf.mxu0
    %3915 = vmatprep.mubr.f32.mxu0 0.0
    %3916 = vmatmul.mubr.f32.gmra.mxu0 %v3721
    %v3917 = vpop.f32.mrf.mxu0
    %v3918 = vadd.f32 0.0, %v3917
    %v3919 = vpop.f32.mrf.mxu0
    %3920 = vmatprep.mubr.f32.mxu0 0.0
    %3921 = vmatmul.mubr.f32.gmra.mxu0 %v3724
    %v3922 = vpop.f32.mrf.mxu0
    %v3923 = vadd.f32 0.0, %v3922
    %v3924 = vpop.f32.mrf.mxu0
    %3925 = vmatprep.mubr.f32.mxu0 0.0
    %3926 = vmatmul.mubr.f32.gmra.mxu0 %v3727
    %v3927 = vpop.f32.mrf.mxu0
    %v3928 = vadd.f32 0.0, %v3927
    %v3929 = vpop.f32.mrf.mxu0
    %3930 = vmatprep.mubr.f32.mxu0 0.0
    %3931 = vmatmul.mubr.f32.gmra.mxu0 %v3730
    %v3932 = vpop.f32.mrf.mxu0
    %v3933 = vadd.f32 0.0, %v3932
    %v3934 = vpop.f32.mrf.mxu0
    %3935 = vmatprep.mubr.f32.mxu0 0.0
    %3936 = vmatmul.mubr.f32.gmra.mxu0 %v3733
    %v3937 = vpop.f32.mrf.mxu0
    %v3938 = vadd.f32 0.0, %v3937
    %v3939 = vpop.f32.mrf.mxu0
    %3940 = vmatprep.mubr.f32.mxu0 0.0
    %3941 = vmatmul.mubr.f32.gmra.mxu0 %v3736
    %v3942 = vpop.f32.mrf.mxu0
    %v3943 = vadd.f32 0.0, %v3942
    %v3944 = vpop.f32.mrf.mxu0
    %3945 = vmatprep.mubr.f32.mxu0 0.0
    %3946 = vmatmul.mubr.f32.gmra.mxu0 %v3739
    %v3947 = vpop.f32.mrf.mxu0
    %v3948 = vadd.f32 0.0, %v3947
    %v3949 = vpop.f32.mrf.mxu0
    %3950 = vmatprep.mubr.f32.mxu0 0.0
    %3951 = vmatmul.mubr.f32.gmra.mxu0 %v3742
    %v3952 = vpop.f32.mrf.mxu0
    %v3953 = vadd.f32 0.0, %v3952
    %v3954 = vpop.f32.mrf.mxu0
    %3955 = vmatprep.mubr.f32.mxu0 0.0
    %3956 = vmatmul.mubr.f32.gmra.mxu0 %v3745
    %v3957 = vpop.f32.mrf.mxu0
    %v3958 = vadd.f32 0.0, %v3957
    %v3959 = vpop.f32.mrf.mxu0
    %3960 = vmatprep.mubr.f32.mxu0 0.0
    %3961 = vmatmul.mubr.f32.gmra.mxu0 %v3748
    %v3962 = vpop.f32.mrf.mxu0
    %v3963 = vadd.f32 0.0, %v3962
    %v3964 = vpop.f32.mrf.mxu0
    %3965 = vmatprep.mubr.f32.mxu0 0.0
    %3966 = vmatmul.mubr.f32.gmra.mxu0 %v3751
    %v3967 = vpop.f32.mrf.mxu0
    %v3968 = vadd.f32 0.0, %v3967
    %v3969 = vpop.f32.mrf.mxu0
    %3970 = vmatprep.mubr.f32.mxu0 0.0
    %3971 = vmatmul.mubr.f32.gmra.mxu0 %v3754
    %v3972 = vpop.f32.mrf.mxu0
    %v3973 = vadd.f32 0.0, %v3972
    %v3974 = vpop.f32.mrf.mxu0
    %3975 = vmatprep.mubr.f32.mxu0 0.0
    %3976 = vmatmul.mubr.f32.gmra.mxu0 %v3757
    %v3977 = vpop.f32.mrf.mxu0
    %v3978 = vadd.f32 0.0, %v3977
    %v3979 = vpop.f32.mrf.mxu0
    %3980 = vmatprep.mubr.f32.mxu0 0.0
    %3981 = vmatmul.mubr.f32.gmra.mxu0 %v3760
    %v3982 = vpop.f32.mrf.mxu0
    %v3983 = vadd.f32 0.0, %v3982
    %v3984 = vpop.f32.mrf.mxu0
    %3985 = vmatprep.mubr.f32.mxu0 0.0
    %3986 = vmatmul.mubr.f32.gmra.mxu0 %v3763
    %v3987 = vpop.f32.mrf.mxu0
    %v3988 = vadd.f32 0.0, %v3987
    %v3989 = vpop.f32.mrf.mxu0
    %3990 = vmatprep.mubr.f32.mxu0 0.0
    %3991 = vmatmul.mubr.f32.gmra.mxu0 %v3766
    %v3992 = vpop.f32.mrf.mxu0
    %v3993 = vadd.f32 0.0, %v3992
    %v3994 = vpop.f32.mrf.mxu0
    %3995 = vmatprep.mubr.f32.mxu0 0.0
    %3996 = vmatmul.mubr.f32.gmra.mxu0 %v3769
    %v3997 = vpop.f32.mrf.mxu0
    %v3998 = vadd.f32 0.0, %v3997
    %v3999 = vpop.f32.mrf.mxu0
    %4000 = vmatprep.mubr.f32.mxu0 0.0
    %4001 = vmatmul.mubr.f32.gmra.mxu0 %v3772
    %v4002 = vpop.f32.mrf.mxu0
    %v4003 = vadd.f32 0.0, %v4002
    %v4004 = vpop.f32.mrf.mxu0
    %4005 = vmatprep.mubr.f32.mxu0 0.0
    %4006 = vmatmul.mubr.f32.gmra.mxu0 %v3775
    %v4007 = vpop.f32.mrf.mxu0
    %v4008 = vadd.f32 0.0, %v4007
    %v4009 = vpop.f32.mrf.mxu0
    %4010 = vmatprep.mubr.f32.mxu0 0.0
    %4011 = vmatmul.mubr.f32.gmra.mxu0 %v3778
    %v4012 = vpop.f32.mrf.mxu0
    %v4013 = vadd.f32 0.0, %v4012
    %v4014 = vpop.f32.mrf.mxu0
    %4015 = vmatprep.mubr.f32.mxu0 0.0
    %4016 = vmatmul.mubr.f32.gmra.mxu0 %v3781
    %v4017 = vpop.f32.mrf.mxu0
    %v4018 = vadd.f32 0.0, %v4017
    %v4019 = vpop.f32.mrf.mxu0
    %4020 = vmatprep.mubr.f32.mxu0 0.0
    %4021 = vmatmul.mubr.f32.gmra.mxu0 %v3784
    %v4022 = vpop.f32.mrf.mxu0
    %v4023 = vadd.f32 0.0, %v4022
    %v4024 = vpop.f32.mrf.mxu0
    %4025 = vmatprep.mubr.f32.mxu0 0.0
    %4026 = vmatmul.mubr.f32.gmra.mxu0 %v3787
    %v4027 = vpop.f32.mrf.mxu0
    %v4028 = vadd.f32 0.0, %v4027
    %v4029 = vpop.f32.mrf.mxu0
    %4030 = vmatprep.mubr.f32.mxu0 0.0
    %4031 = vmatmul.mubr.f32.gmra.mxu0 %v3790
    %v4032 = vpop.f32.mrf.mxu0
    %v4033 = vadd.f32 0.0, %v4032
    %v4034 = vpop.f32.mrf.mxu0
    %4035 = vmatprep.mubr.f32.mxu0 0.0
    %4036 = vmatmul.mubr.f32.gmra.mxu0 %v3793
    %v4037 = vpop.f32.mrf.mxu0
    %v4038 = vadd.f32 0.0, %v4037
    %v4039 = vpop.f32.mrf.mxu0
    %4040 = vmatprep.mubr.f32.mxu0 0.0
    %4041 = vmatmul.mubr.f32.gmra.mxu0 %v3796
    %v4042 = vpop.f32.mrf.mxu0
    %v4043 = vadd.f32 0.0, %v4042
    %v4044 = vpop.f32.mrf.mxu0
    %4045 = vdwg.mxu0
    %v4046 = vadd.f32 %v3227, %v3868
    %v4047 = vadd.f32 %v3228, %v3873
    %v4048 = vadd.f32 %v3229, %v3878
    %v4049 = vadd.f32 %v3230, %v3883
    %v4050 = vadd.f32 %v3231, %v3888
    %v4051 = vadd.f32 %v3232, %v3893
    %v4052 = vadd.f32 %v3233, %v3898
    %v4053 = vadd.f32 %v3234, %v3903
    %v4054 = vadd.f32 %v3235, %v3908
    %v4055 = vadd.f32 %v3236, %v3913
    %v4056 = vadd.f32 %v3237, %v3918
    %v4057 = vadd.f32 %v3238, %v3923
    %v4058 = vadd.f32 %v3239, %v3928
    %v4059 = vadd.f32 %v3240, %v3933
    %v4060 = vadd.f32 %v3241, %v3938
    %v4061 = vadd.f32 %v3242, %v3943
    %v4062 = vadd.f32 %v3243, %v3948
    %v4063 = vadd.f32 %v3244, %v3953
    %v4064 = vadd.f32 %v3245, %v3958
    %v4065 = vadd.f32 %v3246, %v3963
    %v4066 = vadd.f32 %v3247, %v3968
    %v4067 = vadd.f32 %v3248, %v3973
    %v4068 = vadd.f32 %v3249, %v3978
    %v4069 = vadd.f32 %v3250, %v3983
    %v4070 = vadd.f32 %v3251, %v3988
    %v4071 = vadd.f32 %v3252, %v3993
    %v4072 = vadd.f32 %v3253, %v3998
    %v4073 = vadd.f32 %v3254, %v4003
    %v4074 = vadd.f32 %v3255, %v4008
    %v4075 = vadd.f32 %v3256, %v4013
    %v4076 = vadd.f32 %v3257, %v4018
    %v4077 = vadd.f32 %v3258, %v4023
    %v4078 = vadd.f32 %v3259, %v4028
    %v4079 = vadd.f32 %v3260, %v4033
    %v4080 = vadd.f32 %v3261, %v4038
    %v4081 = vadd.f32 %v3262, %v4043
    %v4082 = vld [vmem:[%s0 + $0x5a0] sm:$0xff]
    %v4083 = vld [vmem:[%s0 + $0x5a8] sm:$0xff]
    %v4084 = vld [vmem:[%s0 + $0x5b0] sm:$0xff]
    %v4085 = vld [vmem:[%s0 + $0x5b8] sm:$0xff]
    %v4086 = vld [vmem:[%s0 + $0x5c0] sm:$0xff]
    %v4087 = vld [vmem:[%s0 + $0x5c8] sm:$0xff]
    %v4088 = vld [vmem:[%s0 + $0x5d0] sm:$0xff]
    %v4089 = vld [vmem:[%s0 + $0x5d8] sm:$0xff]
    %v4090 = vld [vmem:[%s0 + $0x5e0] sm:$0xff]
    %v4091 = vld [vmem:[%s0 + $0x5e8] sm:$0xff]
    %v4092 = vld [vmem:[%s0 + $0x5f0] sm:$0xff]
    %v4093 = vld [vmem:[%s0 + $0x5f8] sm:$0xff]
    %v4094 = vld [vmem:[%s0 + $0x600] sm:$0xff]
    %v4095 = vld [vmem:[%s0 + $0x608] sm:$0xff]
    %v4096 = vld [vmem:[%s0 + $0x610] sm:$0xff]
    %v4097 = vld [vmem:[%s0 + $0x618] sm:$0xff]
    %v4098 = vld [vmem:[%s0 + $0x620] sm:$0xff]
    %v4099 = vld [vmem:[%s0 + $0x628] sm:$0xff]
    %v4100 = vld [vmem:[%s0 + $0x630] sm:$0xff]
    %v4101 = vld [vmem:[%s0 + $0x638] sm:$0xff]
    %v4102 = vld [vmem:[%s0 + $0x640] sm:$0xff]
    %v4103 = vld [vmem:[%s0 + $0x648] sm:$0xff]
    %v4104 = vld [vmem:[%s0 + $0x650] sm:$0xff]
    %v4105 = vld [vmem:[%s0 + $0x658] sm:$0xff]
    %v4106 = vld [vmem:[%s0 + $0x660] sm:$0xff]
    %v4107 = vld [vmem:[%s0 + $0x668] sm:$0xff]
    %v4108 = vld [vmem:[%s0 + $0x670] sm:$0xff]
    %v4109 = vld [vmem:[%s0 + $0x678] sm:$0xff]
    %v4110 = vld [vmem:[%s0 + $0x680] sm:$0xff]
    %v4111 = vld [vmem:[%s0 + $0x688] sm:$0xff]
    %v4112 = vld [vmem:[%s0 + $0x690] sm:$0xff]
    %v4113 = vld [vmem:[%s0 + $0x698] sm:$0xff]
    %v4114 = vld [vmem:[%s0 + $0x6a0] sm:$0xff]
    %v4115 = vld [vmem:[%s0 + $0x6a8] sm:$0xff]
    %v4116 = vld [vmem:[%s0 + $0x6b0] sm:$0xff]
    %v4117 = vld [vmem:[%s0 + $0x6b8] sm:$0xff]
    %v4119 = vsel %vm89, %v4082, 0
    %v4122 = vsel %vm89, %v4083, 0
    %v4125 = vsel %vm89, %v4084, 0
    %v4128 = vsel %vm89, %v4085, 0
    %v4131 = vsel %vm89, %v4086, 0
    %v4134 = vsel %vm89, %v4087, 0
    %v4137 = vsel %vm89, %v4088, 0
    %v4140 = vsel %vm89, %v4089, 0
    %v4143 = vsel %vm89, %v4090, 0
    %v4146 = vsel %vm89, %v4091, 0
    %v4149 = vsel %vm89, %v4092, 0
    %v4152 = vsel %vm89, %v4093, 0
    %v4155 = vsel %vm89, %v4094, 0
    %v4158 = vsel %vm89, %v4095, 0
    %v4161 = vsel %vm89, %v4096, 0
    %v4164 = vsel %vm89, %v4097, 0
    %v4167 = vsel %vm89, %v4098, 0
    %v4170 = vsel %vm89, %v4099, 0
    %v4173 = vsel %vm89, %v4100, 0
    %v4176 = vsel %vm89, %v4101, 0
    %v4179 = vsel %vm89, %v4102, 0
    %v4182 = vsel %vm89, %v4103, 0
    %v4185 = vsel %vm89, %v4104, 0
    %v4188 = vsel %vm89, %v4105, 0
    %v4191 = vsel %vm89, %v4106, 0
    %v4194 = vsel %vm89, %v4107, 0
    %v4197 = vsel %vm89, %v4108, 0
    %v4200 = vsel %vm89, %v4109, 0
    %v4203 = vsel %vm89, %v4110, 0
    %v4206 = vsel %vm89, %v4111, 0
    %v4209 = vsel %vm89, %v4112, 0
    %v4212 = vsel %vm89, %v4113, 0
    %v4215 = vsel %vm89, %v4114, 0
    %v4218 = vsel %vm89, %v4115, 0
    %v4221 = vsel %vm89, %v4116, 0
    %v4224 = vsel %vm89, %v4117, 0
    %4226 = vmatprep.subr.mxu0 0.0
    %4227 = vmatpush1.msra.mxu0 0.0
    %4228 = vmatprep.subr.mxu0 0.0
    %4229 = vmatpush1.msra.mxu0 0.0
    %4230 = vmatprep.subr.mxu0 0.0
    %4231 = vmatpush1.msra.mxu0 0.0
    %4232 = vmatprep.subr.mxu0 0.0
    %4233 = vmatpush1.msra.mxu0 0.0
    %4234 = vmatprep.subr.mxu0 0.0
    %4235 = vmatpush1.msra.mxu0 0.0
    %4236 = vmatprep.subr.mxu0 0.0
    %4237 = vmatpush1.msra.mxu0 0.0
    %4238 = vmatprep.subr.mxu0 0.0
    %4239 = vmatpush1.msra.mxu0 0.0
    %4240 = vmatprep.subr.mxu0 0.0
    %4241 = vmatpush1.msra.mxu0 0.0
    %4242 = vmatprep.subr.mxu0 0.0
    %4243 = vmatpush1.msra.mxu0 0.0
    %4244 = vmatprep.subr.mxu0 0.0
    %4245 = vmatpush1.msra.mxu0 0.0
    %4246 = vmatprep.subr.mxu0 0.0
    %4247 = vmatpush1.msra.mxu0 0.0
    %4248 = vmatprep.subr.mxu0 0.0
    %4249 = vmatpush1.msra.mxu0 0.0
    %4250 = vmatprep.subr.mxu0 0.0
    %4251 = vmatpush1.msra.mxu0 0.0
    %4252 = vmatprep.subr.mxu0 0.0
    %4253 = vmatpush1.msra.mxu0 0.0
    %4254 = vmatprep.subr.mxu0 0.0
    %4255 = vmatpush1.msra.mxu0 %v200
    %4256 = vmatprep.subr.mxu0 0.0
    %4257 = vmatpush1.msra.mxu0 %v51
    %4258 = vmatprep.subr.mxu0 0.0
    %4259 = vmatpush2.msra.mxu0 0.0
    %4260 = vmatprep.subr.mxu0 0.0
    %4261 = vmatpush2.msra.mxu0 0.0
    %4262 = vmatprep.subr.mxu0 0.0
    %4263 = vmatpush2.msra.mxu0 0.0
    %4264 = vmatprep.subr.mxu0 0.0
    %4265 = vmatpush2.msra.mxu0 0.0
    %4266 = vmatprep.subr.mxu0 0.0
    %4267 = vmatpush2.msra.mxu0 0.0
    %4268 = vmatprep.subr.mxu0 0.0
    %4269 = vmatpush2.msra.mxu0 0.0
    %4270 = vmatprep.subr.mxu0 0.0
    %4271 = vmatpush2.msra.mxu0 0.0
    %4272 = vmatprep.subr.mxu0 0.0
    %4273 = vmatpush2.msra.mxu0 0.0
    %4274 = vmatprep.subr.mxu0 0.0
    %4275 = vmatpush2.msra.mxu0 0.0
    %4276 = vmatprep.subr.mxu0 0.0
    %4277 = vmatpush2.msra.mxu0 0.0
    %4278 = vmatprep.subr.mxu0 0.0
    %4279 = vmatpush2.msra.mxu0 0.0
    %4280 = vmatprep.subr.mxu0 0.0
    %4281 = vmatpush2.msra.mxu0 0.0
    %4282 = vmatprep.subr.mxu0 0.0
    %4283 = vmatpush2.msra.mxu0 0.0
    %4284 = vmatprep.subr.mxu0 0.0
    %4285 = vmatpush2.msra.mxu0 0.0
    %4286 = vmatprep.subr.mxu0 0.0
    %4287 = vmatpush2.msra.mxu0 0.0
    %4288 = vmatprep.subr.mxu0 0.0
    %4289 = vmatpush2.msra.mxu0 0.0
    %4290 = vmatprep.mubr.f32.mxu0 0.0
    %4291 = vmatmul.mubr.f32.gmra.mxu0 %v4119
    %v4292 = vpop.f32.mrf.mxu0
    %v4293 = vadd.f32 0.0, %v4292
    %v4294 = vpop.f32.mrf.mxu0
    %4295 = vmatprep.mubr.f32.mxu0 0.0
    %4296 = vmatmul.mubr.f32.gmra.mxu0 %v4122
    %v4297 = vpop.f32.mrf.mxu0
    %v4298 = vadd.f32 0.0, %v4297
    %v4299 = vpop.f32.mrf.mxu0
    %4300 = vmatprep.mubr.f32.mxu0 0.0
    %4301 = vmatmul.mubr.f32.gmra.mxu0 %v4125
    %v4302 = vpop.f32.mrf.mxu0
    %v4303 = vadd.f32 0.0, %v4302
    %v4304 = vpop.f32.mrf.mxu0
    %4305 = vmatprep.mubr.f32.mxu0 0.0
    %4306 = vmatmul.mubr.f32.gmra.mxu0 %v4128
    %v4307 = vpop.f32.mrf.mxu0
    %v4308 = vadd.f32 0.0, %v4307
    %v4309 = vpop.f32.mrf.mxu0
    %4310 = vmatprep.mubr.f32.mxu0 0.0
    %4311 = vmatmul.mubr.f32.gmra.mxu0 %v4131
    %v4312 = vpop.f32.mrf.mxu0
    %v4313 = vadd.f32 0.0, %v4312
    %v4314 = vpop.f32.mrf.mxu0
    %4315 = vmatprep.mubr.f32.mxu0 0.0
    %4316 = vmatmul.mubr.f32.gmra.mxu0 %v4134
    %v4317 = vpop.f32.mrf.mxu0
    %v4318 = vadd.f32 0.0, %v4317
    %v4319 = vpop.f32.mrf.mxu0
    %4320 = vmatprep.mubr.f32.mxu0 0.0
    %4321 = vmatmul.mubr.f32.gmra.mxu0 %v4137
    %v4322 = vpop.f32.mrf.mxu0
    %v4323 = vadd.f32 0.0, %v4322
    %v4324 = vpop.f32.mrf.mxu0
    %4325 = vmatprep.mubr.f32.mxu0 0.0
    %4326 = vmatmul.mubr.f32.gmra.mxu0 %v4140
    %v4327 = vpop.f32.mrf.mxu0
    %v4328 = vadd.f32 0.0, %v4327
    %v4329 = vpop.f32.mrf.mxu0
    %4330 = vmatprep.mubr.f32.mxu0 0.0
    %4331 = vmatmul.mubr.f32.gmra.mxu0 %v4143
    %v4332 = vpop.f32.mrf.mxu0
    %v4333 = vadd.f32 0.0, %v4332
    %v4334 = vpop.f32.mrf.mxu0
    %4335 = vmatprep.mubr.f32.mxu0 0.0
    %4336 = vmatmul.mubr.f32.gmra.mxu0 %v4146
    %v4337 = vpop.f32.mrf.mxu0
    %v4338 = vadd.f32 0.0, %v4337
    %v4339 = vpop.f32.mrf.mxu0
    %4340 = vmatprep.mubr.f32.mxu0 0.0
    %4341 = vmatmul.mubr.f32.gmra.mxu0 %v4149
    %v4342 = vpop.f32.mrf.mxu0
    %v4343 = vadd.f32 0.0, %v4342
    %v4344 = vpop.f32.mrf.mxu0
    %4345 = vmatprep.mubr.f32.mxu0 0.0
    %4346 = vmatmul.mubr.f32.gmra.mxu0 %v4152
    %v4347 = vpop.f32.mrf.mxu0
    %v4348 = vadd.f32 0.0, %v4347
    %v4349 = vpop.f32.mrf.mxu0
    %4350 = vmatprep.mubr.f32.mxu0 0.0
    %4351 = vmatmul.mubr.f32.gmra.mxu0 %v4155
    %v4352 = vpop.f32.mrf.mxu0
    %v4353 = vadd.f32 0.0, %v4352
    %v4354 = vpop.f32.mrf.mxu0
    %4355 = vmatprep.mubr.f32.mxu0 0.0
    %4356 = vmatmul.mubr.f32.gmra.mxu0 %v4158
    %v4357 = vpop.f32.mrf.mxu0
    %v4358 = vadd.f32 0.0, %v4357
    %v4359 = vpop.f32.mrf.mxu0
    %4360 = vmatprep.mubr.f32.mxu0 0.0
    %4361 = vmatmul.mubr.f32.gmra.mxu0 %v4161
    %v4362 = vpop.f32.mrf.mxu0
    %v4363 = vadd.f32 0.0, %v4362
    %v4364 = vpop.f32.mrf.mxu0
    %4365 = vmatprep.mubr.f32.mxu0 0.0
    %4366 = vmatmul.mubr.f32.gmra.mxu0 %v4164
    %v4367 = vpop.f32.mrf.mxu0
    %v4368 = vadd.f32 0.0, %v4367
    %v4369 = vpop.f32.mrf.mxu0
    %4370 = vmatprep.mubr.f32.mxu0 0.0
    %4371 = vmatmul.mubr.f32.gmra.mxu0 %v4167
    %v4372 = vpop.f32.mrf.mxu0
    %v4373 = vadd.f32 0.0, %v4372
    %v4374 = vpop.f32.mrf.mxu0
    %4375 = vmatprep.mubr.f32.mxu0 0.0
    %4376 = vmatmul.mubr.f32.gmra.mxu0 %v4170
    %v4377 = vpop.f32.mrf.mxu0
    %v4378 = vadd.f32 0.0, %v4377
    %v4379 = vpop.f32.mrf.mxu0
    %4380 = vmatprep.mubr.f32.mxu0 0.0
    %4381 = vmatmul.mubr.f32.gmra.mxu0 %v4173
    %v4382 = vpop.f32.mrf.mxu0
    %v4383 = vadd.f32 0.0, %v4382
    %v4384 = vpop.f32.mrf.mxu0
    %4385 = vmatprep.mubr.f32.mxu0 0.0
    %4386 = vmatmul.mubr.f32.gmra.mxu0 %v4176
    %v4387 = vpop.f32.mrf.mxu0
    %v4388 = vadd.f32 0.0, %v4387
    %v4389 = vpop.f32.mrf.mxu0
    %4390 = vmatprep.mubr.f32.mxu0 0.0
    %4391 = vmatmul.mubr.f32.gmra.mxu0 %v4179
    %v4392 = vpop.f32.mrf.mxu0
    %v4393 = vadd.f32 0.0, %v4392
    %v4394 = vpop.f32.mrf.mxu0
    %4395 = vmatprep.mubr.f32.mxu0 0.0
    %4396 = vmatmul.mubr.f32.gmra.mxu0 %v4182
    %v4397 = vpop.f32.mrf.mxu0
    %v4398 = vadd.f32 0.0, %v4397
    %v4399 = vpop.f32.mrf.mxu0
    %4400 = vmatprep.mubr.f32.mxu0 0.0
    %4401 = vmatmul.mubr.f32.gmra.mxu0 %v4185
    %v4402 = vpop.f32.mrf.mxu0
    %v4403 = vadd.f32 0.0, %v4402
    %v4404 = vpop.f32.mrf.mxu0
    %4405 = vmatprep.mubr.f32.mxu0 0.0
    %4406 = vmatmul.mubr.f32.gmra.mxu0 %v4188
    %v4407 = vpop.f32.mrf.mxu0
    %v4408 = vadd.f32 0.0, %v4407
    %v4409 = vpop.f32.mrf.mxu0
    %4410 = vmatprep.mubr.f32.mxu0 0.0
    %4411 = vmatmul.mubr.f32.gmra.mxu0 %v4191
    %v4412 = vpop.f32.mrf.mxu0
    %v4413 = vadd.f32 0.0, %v4412
    %v4414 = vpop.f32.mrf.mxu0
    %4415 = vmatprep.mubr.f32.mxu0 0.0
    %4416 = vmatmul.mubr.f32.gmra.mxu0 %v4194
    %v4417 = vpop.f32.mrf.mxu0
    %v4418 = vadd.f32 0.0, %v4417
    %v4419 = vpop.f32.mrf.mxu0
    %4420 = vmatprep.mubr.f32.mxu0 0.0
    %4421 = vmatmul.mubr.f32.gmra.mxu0 %v4197
    %v4422 = vpop.f32.mrf.mxu0
    %v4423 = vadd.f32 0.0, %v4422
    %v4424 = vpop.f32.mrf.mxu0
    %4425 = vmatprep.mubr.f32.mxu0 0.0
    %4426 = vmatmul.mubr.f32.gmra.mxu0 %v4200
    %v4427 = vpop.f32.mrf.mxu0
    %v4428 = vadd.f32 0.0, %v4427
    %v4429 = vpop.f32.mrf.mxu0
    %4430 = vmatprep.mubr.f32.mxu0 0.0
    %4431 = vmatmul.mubr.f32.gmra.mxu0 %v4203
    %v4432 = vpop.f32.mrf.mxu0
    %v4433 = vadd.f32 0.0, %v4432
    %v4434 = vpop.f32.mrf.mxu0
    %4435 = vmatprep.mubr.f32.mxu0 0.0
    %4436 = vmatmul.mubr.f32.gmra.mxu0 %v4206
    %v4437 = vpop.f32.mrf.mxu0
    %v4438 = vadd.f32 0.0, %v4437
    %v4439 = vpop.f32.mrf.mxu0
    %4440 = vmatprep.mubr.f32.mxu0 0.0
    %4441 = vmatmul.mubr.f32.gmra.mxu0 %v4209
    %v4442 = vpop.f32.mrf.mxu0
    %v4443 = vadd.f32 0.0, %v4442
    %v4444 = vpop.f32.mrf.mxu0
    %4445 = vmatprep.mubr.f32.mxu0 0.0
    %4446 = vmatmul.mubr.f32.gmra.mxu0 %v4212
    %v4447 = vpop.f32.mrf.mxu0
    %v4448 = vadd.f32 0.0, %v4447
    %v4449 = vpop.f32.mrf.mxu0
    %4450 = vmatprep.mubr.f32.mxu0 0.0
    %4451 = vmatmul.mubr.f32.gmra.mxu0 %v4215
    %v4452 = vpop.f32.mrf.mxu0
    %v4453 = vadd.f32 0.0, %v4452
    %v4454 = vpop.f32.mrf.mxu0
    %4455 = vmatprep.mubr.f32.mxu0 0.0
    %4456 = vmatmul.mubr.f32.gmra.mxu0 %v4218
    %v4457 = vpop.f32.mrf.mxu0
    %v4458 = vadd.f32 0.0, %v4457
    %v4459 = vpop.f32.mrf.mxu0
    %4460 = vmatprep.mubr.f32.mxu0 0.0
    %4461 = vmatmul.mubr.f32.gmra.mxu0 %v4221
    %v4462 = vpop.f32.mrf.mxu0
    %v4463 = vadd.f32 0.0, %v4462
    %v4464 = vpop.f32.mrf.mxu0
    %4465 = vmatprep.mubr.f32.mxu0 0.0
    %4466 = vmatmul.mubr.f32.gmra.mxu0 %v4224
    %v4467 = vpop.f32.mrf.mxu0
    %v4468 = vadd.f32 0.0, %v4467
    %v4469 = vpop.f32.mrf.mxu0
    %4470 = vdwg.mxu0
    %v4471 = vmax.f32 %v4293, 0.0
    %v4472 = vmax.f32 %v4298, 0.0
    %v4473 = vmax.f32 %v4303, 0.0
    %v4474 = vmax.f32 %v4308, 0.0
    %v4475 = vmax.f32 %v4313, 0.0
    %v4476 = vmax.f32 %v4318, 0.0
    %v4477 = vmax.f32 %v4323, 0.0
    %v4478 = vmax.f32 %v4328, 0.0
    %v4479 = vmax.f32 %v4333, 0.0
    %v4480 = vmax.f32 %v4338, 0.0
    %v4481 = vmax.f32 %v4343, 0.0
    %v4482 = vmax.f32 %v4348, 0.0
    %v4483 = vmax.f32 %v4353, 0.0
    %v4484 = vmax.f32 %v4358, 0.0
    %v4485 = vmax.f32 %v4363, 0.0
    %v4486 = vmax.f32 %v4368, 0.0
    %v4487 = vmax.f32 %v4373, 0.0
    %v4488 = vmax.f32 %v4378, 0.0
    %v4489 = vmax.f32 %v4383, 0.0
    %v4490 = vmax.f32 %v4388, 0.0
    %v4491 = vmax.f32 %v4393, 0.0
    %v4492 = vmax.f32 %v4398, 0.0
    %v4493 = vmax.f32 %v4403, 0.0
    %v4494 = vmax.f32 %v4408, 0.0
    %v4495 = vmax.f32 %v4413, 0.0
    %v4496 = vmax.f32 %v4418, 0.0
    %v4497 = vmax.f32 %v4423, 0.0
    %v4498 = vmax.f32 %v4428, 0.0
    %v4499 = vmax.f32 %v4433, 0.0
    %v4500 = vmax.f32 %v4438, 0.0
    %v4501 = vmax.f32 %v4443, 0.0
    %v4502 = vmax.f32 %v4448, 0.0
    %v4503 = vmax.f32 %v4453, 0.0
    %v4504 = vmax.f32 %v4458, 0.0
    %v4505 = vmax.f32 %v4463, 0.0
    %v4506 = vmax.f32 %v4468, 0.0
    %s4507 = scalar_lea.vmem %s4, 20
    %v4508 = vld [vmem:[%s4507] sm:$0xf]
    %v4510 = vsel %vm911, %v4471, 0
    %v4513 = vsel %vm911, %v4472, 0
    %v4516 = vsel %vm911, %v4473, 0
    %v4519 = vsel %vm911, %v4474, 0
    %v4522 = vsel %vm911, %v4475, 0
    %v4525 = vsel %vm911, %v4476, 0
    %v4528 = vsel %vm911, %v4477, 0
    %v4531 = vsel %vm911, %v4478, 0
    %v4534 = vsel %vm911, %v4479, 0
    %v4537 = vsel %vm911, %v4480, 0
    %v4540 = vsel %vm911, %v4481, 0
    %v4543 = vsel %vm911, %v4482, 0
    %v4546 = vsel %vm911, %v4483, 0
    %v4549 = vsel %vm911, %v4484, 0
    %v4552 = vsel %vm911, %v4485, 0
    %v4555 = vsel %vm911, %v4486, 0
    %v4558 = vsel %vm911, %v4487, 0
    %v4561 = vsel %vm911, %v4488, 0
    %v4564 = vsel %vm911, %v4489, 0
    %v4567 = vsel %vm911, %v4490, 0
    %v4570 = vsel %vm911, %v4491, 0
    %v4573 = vsel %vm911, %v4492, 0
    %v4576 = vsel %vm911, %v4493, 0
    %v4579 = vsel %vm911, %v4494, 0
    %v4582 = vsel %vm911, %v4495, 0
    %v4585 = vsel %vm911, %v4496, 0
    %v4588 = vsel %vm911, %v4497, 0
    %v4591 = vsel %vm911, %v4498, 0
    %v4594 = vsel %vm911, %v4499, 0
    %v4597 = vsel %vm911, %v4500, 0
    %v4600 = vsel %vm911, %v4501, 0
    %v4603 = vsel %vm911, %v4502, 0
    %v4606 = vsel %vm911, %v4503, 0
    %v4609 = vsel %vm911, %v4504, 0
    %v4612 = vsel %vm911, %v4505, 0
    %v4615 = vsel %vm911, %v4506, 0
    %v4618 = vsel %vm1020, %v4508, 0
    %4620 = vmatprep.subr.mxu0 0.0
    %4621 = vmatpush1.msra.mxu0 0.0
    %4622 = vmatprep.subr.mxu0 0.0
    %4623 = vmatpush1.msra.mxu0 0.0
    %4624 = vmatprep.subr.mxu0 0.0
    %4625 = vmatpush1.msra.mxu0 0.0
    %4626 = vmatprep.subr.mxu0 0.0
    %4627 = vmatpush1.msra.mxu0 0.0
    %4628 = vmatprep.subr.mxu0 0.0
    %4629 = vmatpush1.msra.mxu0 0.0
    %4630 = vmatprep.subr.mxu0 0.0
    %4631 = vmatpush1.msra.mxu0 0.0
    %4632 = vmatprep.subr.mxu0 0.0
    %4633 = vmatpush1.msra.mxu0 0.0
    %4634 = vmatprep.subr.mxu0 0.0
    %4635 = vmatpush1.msra.mxu0 0.0
    %4636 = vmatprep.subr.mxu0 0.0
    %4637 = vmatpush1.msra.mxu0 0.0
    %4638 = vmatprep.subr.mxu0 0.0
    %4639 = vmatpush1.msra.mxu0 0.0
    %4640 = vmatprep.subr.mxu0 0.0
    %4641 = vmatpush1.msra.mxu0 0.0
    %4642 = vmatprep.subr.mxu0 0.0
    %4643 = vmatpush1.msra.mxu0 0.0
    %4644 = vmatprep.subr.mxu0 0.0
    %4645 = vmatpush1.msra.mxu0 0.0
    %4646 = vmatprep.subr.mxu0 0.0
    %4647 = vmatpush1.msra.mxu0 0.0
    %4648 = vmatprep.subr.mxu0 0.0
    %4649 = vmatpush1.msra.mxu0 0.0
    %4650 = vmatprep.subr.mxu0 0.0
    %4651 = vmatpush1.msra.mxu0 %v4618
    %4652 = vmatprep.subr.mxu0 0.0
    %4653 = vmatpush2.msra.mxu0 0.0
    %4654 = vmatprep.subr.mxu0 0.0
    %4655 = vmatpush2.msra.mxu0 0.0
    %4656 = vmatprep.subr.mxu0 0.0
    %4657 = vmatpush2.msra.mxu0 0.0
    %4658 = vmatprep.subr.mxu0 0.0
    %4659 = vmatpush2.msra.mxu0 0.0
    %4660 = vmatprep.subr.mxu0 0.0
    %4661 = vmatpush2.msra.mxu0 0.0
    %4662 = vmatprep.subr.mxu0 0.0
    %4663 = vmatpush2.msra.mxu0 0.0
    %4664 = vmatprep.subr.mxu0 0.0
    %4665 = vmatpush2.msra.mxu0 0.0
    %4666 = vmatprep.subr.mxu0 0.0
    %4667 = vmatpush2.msra.mxu0 0.0
    %4668 = vmatprep.subr.mxu0 0.0
    %4669 = vmatpush2.msra.mxu0 0.0
    %4670 = vmatprep.subr.mxu0 0.0
    %4671 = vmatpush2.msra.mxu0 0.0
    %4672 = vmatprep.subr.mxu0 0.0
    %4673 = vmatpush2.msra.mxu0 0.0
    %4674 = vmatprep.subr.mxu0 0.0
    %4675 = vmatpush2.msra.mxu0 0.0
    %4676 = vmatprep.subr.mxu0 0.0
    %4677 = vmatpush2.msra.mxu0 0.0
    %4678 = vmatprep.subr.mxu0 0.0
    %4679 = vmatpush2.msra.mxu0 0.0
    %4680 = vmatprep.subr.mxu0 0.0
    %4681 = vmatpush2.msra.mxu0 0.0
    %4682 = vmatprep.subr.mxu0 0.0
    %4683 = vmatpush2.msra.mxu0 0.0
    %4684 = vmatprep.mubr.f32.mxu0 0.0
    %4685 = vmatmul.mubr.f32.gmra.mxu0 %v4510
    %v4686 = vpop.f32.mrf.mxu0
    %v4687 = vadd.f32 0.0, %v4686
    %v4688 = vpop.f32.mrf.mxu0
    %4689 = vmatprep.mubr.f32.mxu0 0.0
    %4690 = vmatmul.mubr.f32.gmra.mxu0 %v4513
    %v4691 = vpop.f32.mrf.mxu0
    %v4692 = vadd.f32 0.0, %v4691
    %v4693 = vpop.f32.mrf.mxu0
    %4694 = vmatprep.mubr.f32.mxu0 0.0
    %4695 = vmatmul.mubr.f32.gmra.mxu0 %v4516
    %v4696 = vpop.f32.mrf.mxu0
    %v4697 = vadd.f32 0.0, %v4696
    %v4698 = vpop.f32.mrf.mxu0
    %4699 = vmatprep.mubr.f32.mxu0 0.0
    %4700 = vmatmul.mubr.f32.gmra.mxu0 %v4519
    %v4701 = vpop.f32.mrf.mxu0
    %v4702 = vadd.f32 0.0, %v4701
    %v4703 = vpop.f32.mrf.mxu0
    %4704 = vmatprep.mubr.f32.mxu0 0.0
    %4705 = vmatmul.mubr.f32.gmra.mxu0 %v4522
    %v4706 = vpop.f32.mrf.mxu0
    %v4707 = vadd.f32 0.0, %v4706
    %v4708 = vpop.f32.mrf.mxu0
    %4709 = vmatprep.mubr.f32.mxu0 0.0
    %4710 = vmatmul.mubr.f32.gmra.mxu0 %v4525
    %v4711 = vpop.f32.mrf.mxu0
    %v4712 = vadd.f32 0.0, %v4711
    %v4713 = vpop.f32.mrf.mxu0
    %4714 = vmatprep.mubr.f32.mxu0 0.0
    %4715 = vmatmul.mubr.f32.gmra.mxu0 %v4528
    %v4716 = vpop.f32.mrf.mxu0
    %v4717 = vadd.f32 0.0, %v4716
    %v4718 = vpop.f32.mrf.mxu0
    %4719 = vmatprep.mubr.f32.mxu0 0.0
    %4720 = vmatmul.mubr.f32.gmra.mxu0 %v4531
    %v4721 = vpop.f32.mrf.mxu0
    %v4722 = vadd.f32 0.0, %v4721
    %v4723 = vpop.f32.mrf.mxu0
    %4724 = vmatprep.mubr.f32.mxu0 0.0
    %4725 = vmatmul.mubr.f32.gmra.mxu0 %v4534
    %v4726 = vpop.f32.mrf.mxu0
    %v4727 = vadd.f32 0.0, %v4726
    %v4728 = vpop.f32.mrf.mxu0
    %4729 = vmatprep.mubr.f32.mxu0 0.0
    %4730 = vmatmul.mubr.f32.gmra.mxu0 %v4537
    %v4731 = vpop.f32.mrf.mxu0
    %v4732 = vadd.f32 0.0, %v4731
    %v4733 = vpop.f32.mrf.mxu0
    %4734 = vmatprep.mubr.f32.mxu0 0.0
    %4735 = vmatmul.mubr.f32.gmra.mxu0 %v4540
    %v4736 = vpop.f32.mrf.mxu0
    %v4737 = vadd.f32 0.0, %v4736
    %v4738 = vpop.f32.mrf.mxu0
    %4739 = vmatprep.mubr.f32.mxu0 0.0
    %4740 = vmatmul.mubr.f32.gmra.mxu0 %v4543
    %v4741 = vpop.f32.mrf.mxu0
    %v4742 = vadd.f32 0.0, %v4741
    %v4743 = vpop.f32.mrf.mxu0
    %4744 = vmatprep.mubr.f32.mxu0 0.0
    %4745 = vmatmul.mubr.f32.gmra.mxu0 %v4546
    %v4746 = vpop.f32.mrf.mxu0
    %v4747 = vadd.f32 0.0, %v4746
    %v4748 = vpop.f32.mrf.mxu0
    %4749 = vmatprep.mubr.f32.mxu0 0.0
    %4750 = vmatmul.mubr.f32.gmra.mxu0 %v4549
    %v4751 = vpop.f32.mrf.mxu0
    %v4752 = vadd.f32 0.0, %v4751
    %v4753 = vpop.f32.mrf.mxu0
    %4754 = vmatprep.mubr.f32.mxu0 0.0
    %4755 = vmatmul.mubr.f32.gmra.mxu0 %v4552
    %v4756 = vpop.f32.mrf.mxu0
    %v4757 = vadd.f32 0.0, %v4756
    %v4758 = vpop.f32.mrf.mxu0
    %4759 = vmatprep.mubr.f32.mxu0 0.0
    %4760 = vmatmul.mubr.f32.gmra.mxu0 %v4555
    %v4761 = vpop.f32.mrf.mxu0
    %v4762 = vadd.f32 0.0, %v4761
    %v4763 = vpop.f32.mrf.mxu0
    %4764 = vmatprep.mubr.f32.mxu0 0.0
    %4765 = vmatmul.mubr.f32.gmra.mxu0 %v4558
    %v4766 = vpop.f32.mrf.mxu0
    %v4767 = vadd.f32 0.0, %v4766
    %v4768 = vpop.f32.mrf.mxu0
    %4769 = vmatprep.mubr.f32.mxu0 0.0
    %4770 = vmatmul.mubr.f32.gmra.mxu0 %v4561
    %v4771 = vpop.f32.mrf.mxu0
    %v4772 = vadd.f32 0.0, %v4771
    %v4773 = vpop.f32.mrf.mxu0
    %4774 = vmatprep.mubr.f32.mxu0 0.0
    %4775 = vmatmul.mubr.f32.gmra.mxu0 %v4564
    %v4776 = vpop.f32.mrf.mxu0
    %v4777 = vadd.f32 0.0, %v4776
    %v4778 = vpop.f32.mrf.mxu0
    %4779 = vmatprep.mubr.f32.mxu0 0.0
    %4780 = vmatmul.mubr.f32.gmra.mxu0 %v4567
    %v4781 = vpop.f32.mrf.mxu0
    %v4782 = vadd.f32 0.0, %v4781
    %v4783 = vpop.f32.mrf.mxu0
    %4784 = vmatprep.mubr.f32.mxu0 0.0
    %4785 = vmatmul.mubr.f32.gmra.mxu0 %v4570
    %v4786 = vpop.f32.mrf.mxu0
    %v4787 = vadd.f32 0.0, %v4786
    %v4788 = vpop.f32.mrf.mxu0
    %4789 = vmatprep.mubr.f32.mxu0 0.0
    %4790 = vmatmul.mubr.f32.gmra.mxu0 %v4573
    %v4791 = vpop.f32.mrf.mxu0
    %v4792 = vadd.f32 0.0, %v4791
    %v4793 = vpop.f32.mrf.mxu0
    %4794 = vmatprep.mubr.f32.mxu0 0.0
    %4795 = vmatmul.mubr.f32.gmra.mxu0 %v4576
    %v4796 = vpop.f32.mrf.mxu0
    %v4797 = vadd.f32 0.0, %v4796
    %v4798 = vpop.f32.mrf.mxu0
    %4799 = vmatprep.mubr.f32.mxu0 0.0
    %4800 = vmatmul.mubr.f32.gmra.mxu0 %v4579
    %v4801 = vpop.f32.mrf.mxu0
    %v4802 = vadd.f32 0.0, %v4801
    %v4803 = vpop.f32.mrf.mxu0
    %4804 = vmatprep.mubr.f32.mxu0 0.0
    %4805 = vmatmul.mubr.f32.gmra.mxu0 %v4582
    %v4806 = vpop.f32.mrf.mxu0
    %v4807 = vadd.f32 0.0, %v4806
    %v4808 = vpop.f32.mrf.mxu0
    %4809 = vmatprep.mubr.f32.mxu0 0.0
    %4810 = vmatmul.mubr.f32.gmra.mxu0 %v4585
    %v4811 = vpop.f32.mrf.mxu0
    %v4812 = vadd.f32 0.0, %v4811
    %v4813 = vpop.f32.mrf.mxu0
    %4814 = vmatprep.mubr.f32.mxu0 0.0
    %4815 = vmatmul.mubr.f32.gmra.mxu0 %v4588
    %v4816 = vpop.f32.mrf.mxu0
    %v4817 = vadd.f32 0.0, %v4816
    %v4818 = vpop.f32.mrf.mxu0
    %4819 = vmatprep.mubr.f32.mxu0 0.0
    %4820 = vmatmul.mubr.f32.gmra.mxu0 %v4591
    %v4821 = vpop.f32.mrf.mxu0
    %v4822 = vadd.f32 0.0, %v4821
    %v4823 = vpop.f32.mrf.mxu0
    %4824 = vmatprep.mubr.f32.mxu0 0.0
    %4825 = vmatmul.mubr.f32.gmra.mxu0 %v4594
    %v4826 = vpop.f32.mrf.mxu0
    %v4827 = vadd.f32 0.0, %v4826
    %v4828 = vpop.f32.mrf.mxu0
    %4829 = vmatprep.mubr.f32.mxu0 0.0
    %4830 = vmatmul.mubr.f32.gmra.mxu0 %v4597
    %v4831 = vpop.f32.mrf.mxu0
    %v4832 = vadd.f32 0.0, %v4831
    %v4833 = vpop.f32.mrf.mxu0
    %4834 = vmatprep.mubr.f32.mxu0 0.0
    %4835 = vmatmul.mubr.f32.gmra.mxu0 %v4600
    %v4836 = vpop.f32.mrf.mxu0
    %v4837 = vadd.f32 0.0, %v4836
    %v4838 = vpop.f32.mrf.mxu0
    %4839 = vmatprep.mubr.f32.mxu0 0.0
    %4840 = vmatmul.mubr.f32.gmra.mxu0 %v4603
    %v4841 = vpop.f32.mrf.mxu0
    %v4842 = vadd.f32 0.0, %v4841
    %v4843 = vpop.f32.mrf.mxu0
    %4844 = vmatprep.mubr.f32.mxu0 0.0
    %4845 = vmatmul.mubr.f32.gmra.mxu0 %v4606
    %v4846 = vpop.f32.mrf.mxu0
    %v4847 = vadd.f32 0.0, %v4846
    %v4848 = vpop.f32.mrf.mxu0
    %4849 = vmatprep.mubr.f32.mxu0 0.0
    %4850 = vmatmul.mubr.f32.gmra.mxu0 %v4609
    %v4851 = vpop.f32.mrf.mxu0
    %v4852 = vadd.f32 0.0, %v4851
    %v4853 = vpop.f32.mrf.mxu0
    %4854 = vmatprep.mubr.f32.mxu0 0.0
    %4855 = vmatmul.mubr.f32.gmra.mxu0 %v4612
    %v4856 = vpop.f32.mrf.mxu0
    %v4857 = vadd.f32 0.0, %v4856
    %v4858 = vpop.f32.mrf.mxu0
    %4859 = vmatprep.mubr.f32.mxu0 0.0
    %4860 = vmatmul.mubr.f32.gmra.mxu0 %v4615
    %v4861 = vpop.f32.mrf.mxu0
    %v4862 = vadd.f32 0.0, %v4861
    %v4863 = vpop.f32.mrf.mxu0
    %4864 = vdwg.mxu0
    %v4865 = vadd.f32 %v4046, %v4687
    %v4866 = vadd.f32 %v4047, %v4692
    %v4867 = vadd.f32 %v4048, %v4697
    %v4868 = vadd.f32 %v4049, %v4702
    %v4869 = vadd.f32 %v4050, %v4707
    %v4870 = vadd.f32 %v4051, %v4712
    %v4871 = vadd.f32 %v4052, %v4717
    %v4872 = vadd.f32 %v4053, %v4722
    %v4873 = vadd.f32 %v4054, %v4727
    %v4874 = vadd.f32 %v4055, %v4732
    %v4875 = vadd.f32 %v4056, %v4737
    %v4876 = vadd.f32 %v4057, %v4742
    %v4877 = vadd.f32 %v4058, %v4747
    %v4878 = vadd.f32 %v4059, %v4752
    %v4879 = vadd.f32 %v4060, %v4757
    %v4880 = vadd.f32 %v4061, %v4762
    %v4881 = vadd.f32 %v4062, %v4767
    %v4882 = vadd.f32 %v4063, %v4772
    %v4883 = vadd.f32 %v4064, %v4777
    %v4884 = vadd.f32 %v4065, %v4782
    %v4885 = vadd.f32 %v4066, %v4787
    %v4886 = vadd.f32 %v4067, %v4792
    %v4887 = vadd.f32 %v4068, %v4797
    %v4888 = vadd.f32 %v4069, %v4802
    %v4889 = vadd.f32 %v4070, %v4807
    %v4890 = vadd.f32 %v4071, %v4812
    %v4891 = vadd.f32 %v4072, %v4817
    %v4892 = vadd.f32 %v4073, %v4822
    %v4893 = vadd.f32 %v4074, %v4827
    %v4894 = vadd.f32 %v4075, %v4832
    %v4895 = vadd.f32 %v4076, %v4837
    %v4896 = vadd.f32 %v4077, %v4842
    %v4897 = vadd.f32 %v4078, %v4847
    %v4898 = vadd.f32 %v4079, %v4852
    %v4899 = vadd.f32 %v4080, %v4857
    %v4900 = vadd.f32 %v4081, %v4862
    %v4901 = vld [vmem:[%s0 + $0x6c0] sm:$0xff]
    %v4902 = vld [vmem:[%s0 + $0x6c8] sm:$0xff]
    %v4903 = vld [vmem:[%s0 + $0x6d0] sm:$0xff]
    %v4904 = vld [vmem:[%s0 + $0x6d8] sm:$0xff]
    %v4905 = vld [vmem:[%s0 + $0x6e0] sm:$0xff]
    %v4906 = vld [vmem:[%s0 + $0x6e8] sm:$0xff]
    %v4907 = vld [vmem:[%s0 + $0x6f0] sm:$0xff]
    %v4908 = vld [vmem:[%s0 + $0x6f8] sm:$0xff]
    %v4909 = vld [vmem:[%s0 + $0x700] sm:$0xff]
    %v4910 = vld [vmem:[%s0 + $0x708] sm:$0xff]
    %v4911 = vld [vmem:[%s0 + $0x710] sm:$0xff]
    %v4912 = vld [vmem:[%s0 + $0x718] sm:$0xff]
    %v4913 = vld [vmem:[%s0 + $0x720] sm:$0xff]
    %v4914 = vld [vmem:[%s0 + $0x728] sm:$0xff]
    %v4915 = vld [vmem:[%s0 + $0x730] sm:$0xff]
    %v4916 = vld [vmem:[%s0 + $0x738] sm:$0xff]
    %v4917 = vld [vmem:[%s0 + $0x740] sm:$0xff]
    %v4918 = vld [vmem:[%s0 + $0x748] sm:$0xff]
    %v4919 = vld [vmem:[%s0 + $0x750] sm:$0xff]
    %v4920 = vld [vmem:[%s0 + $0x758] sm:$0xff]
    %v4921 = vld [vmem:[%s0 + $0x760] sm:$0xff]
    %v4922 = vld [vmem:[%s0 + $0x768] sm:$0xff]
    %v4923 = vld [vmem:[%s0 + $0x770] sm:$0xff]
    %v4924 = vld [vmem:[%s0 + $0x778] sm:$0xff]
    %v4925 = vld [vmem:[%s0 + $0x780] sm:$0xff]
    %v4926 = vld [vmem:[%s0 + $0x788] sm:$0xff]
    %v4927 = vld [vmem:[%s0 + $0x790] sm:$0xff]
    %v4928 = vld [vmem:[%s0 + $0x798] sm:$0xff]
    %v4929 = vld [vmem:[%s0 + $0x7a0] sm:$0xff]
    %v4930 = vld [vmem:[%s0 + $0x7a8] sm:$0xff]
    %v4931 = vld [vmem:[%s0 + $0x7b0] sm:$0xff]
    %v4932 = vld [vmem:[%s0 + $0x7b8] sm:$0xff]
    %v4933 = vld [vmem:[%s0 + $0x7c0] sm:$0xff]
    %v4934 = vld [vmem:[%s0 + $0x7c8] sm:$0xff]
    %v4935 = vld [vmem:[%s0 + $0x7d0] sm:$0xff]
    %v4936 = vld [vmem:[%s0 + $0x7d8] sm:$0xff]
    %v4938 = vsel %vm89, %v4901, 0
    %v4941 = vsel %vm89, %v4902, 0
    %v4944 = vsel %vm89, %v4903, 0
    %v4947 = vsel %vm89, %v4904, 0
    %v4950 = vsel %vm89, %v4905, 0
    %v4953 = vsel %vm89, %v4906, 0
    %v4956 = vsel %vm89, %v4907, 0
    %v4959 = vsel %vm89, %v4908, 0
    %v4962 = vsel %vm89, %v4909, 0
    %v4965 = vsel %vm89, %v4910, 0
    %v4968 = vsel %vm89, %v4911, 0
    %v4971 = vsel %vm89, %v4912, 0
    %v4974 = vsel %vm89, %v4913, 0
    %v4977 = vsel %vm89, %v4914, 0
    %v4980 = vsel %vm89, %v4915, 0
    %v4983 = vsel %vm89, %v4916, 0
    %v4986 = vsel %vm89, %v4917, 0
    %v4989 = vsel %vm89, %v4918, 0
    %v4992 = vsel %vm89, %v4919, 0
    %v4995 = vsel %vm89, %v4920, 0
    %v4998 = vsel %vm89, %v4921, 0
    %v5001 = vsel %vm89, %v4922, 0
    %v5004 = vsel %vm89, %v4923, 0
    %v5007 = vsel %vm89, %v4924, 0
    %v5010 = vsel %vm89, %v4925, 0
    %v5013 = vsel %vm89, %v4926, 0
    %v5016 = vsel %vm89, %v4927, 0
    %v5019 = vsel %vm89, %v4928, 0
    %v5022 = vsel %vm89, %v4929, 0
    %v5025 = vsel %vm89, %v4930, 0
    %v5028 = vsel %vm89, %v4931, 0
    %v5031 = vsel %vm89, %v4932, 0
    %v5034 = vsel %vm89, %v4933, 0
    %v5037 = vsel %vm89, %v4934, 0
    %v5040 = vsel %vm89, %v4935, 0
    %v5043 = vsel %vm89, %v4936, 0
    %5045 = vmatprep.subr.mxu0 0.0
    %5046 = vmatpush1.msra.mxu0 0.0
    %5047 = vmatprep.subr.mxu0 0.0
    %5048 = vmatpush1.msra.mxu0 0.0
    %5049 = vmatprep.subr.mxu0 0.0
    %5050 = vmatpush1.msra.mxu0 0.0
    %5051 = vmatprep.subr.mxu0 0.0
    %5052 = vmatpush1.msra.mxu0 0.0
    %5053 = vmatprep.subr.mxu0 0.0
    %5054 = vmatpush1.msra.mxu0 0.0
    %5055 = vmatprep.subr.mxu0 0.0
    %5056 = vmatpush1.msra.mxu0 0.0
    %5057 = vmatprep.subr.mxu0 0.0
    %5058 = vmatpush1.msra.mxu0 0.0
    %5059 = vmatprep.subr.mxu0 0.0
    %5060 = vmatpush1.msra.mxu0 0.0
    %5061 = vmatprep.subr.mxu0 0.0
    %5062 = vmatpush1.msra.mxu0 0.0
    %5063 = vmatprep.subr.mxu0 0.0
    %5064 = vmatpush1.msra.mxu0 0.0
    %5065 = vmatprep.subr.mxu0 0.0
    %5066 = vmatpush1.msra.mxu0 0.0
    %5067 = vmatprep.subr.mxu0 0.0
    %5068 = vmatpush1.msra.mxu0 0.0
    %5069 = vmatprep.subr.mxu0 0.0
    %5070 = vmatpush1.msra.mxu0 0.0
    %5071 = vmatprep.subr.mxu0 0.0
    %5072 = vmatpush1.msra.mxu0 0.0
    %5073 = vmatprep.subr.mxu0 0.0
    %5074 = vmatpush1.msra.mxu0 %v200
    %5075 = vmatprep.subr.mxu0 0.0
    %5076 = vmatpush1.msra.mxu0 %v51
    %5077 = vmatprep.subr.mxu0 0.0
    %5078 = vmatpush2.msra.mxu0 0.0
    %5079 = vmatprep.subr.mxu0 0.0
    %5080 = vmatpush2.msra.mxu0 0.0
    %5081 = vmatprep.subr.mxu0 0.0
    %5082 = vmatpush2.msra.mxu0 0.0
    %5083 = vmatprep.subr.mxu0 0.0
    %5084 = vmatpush2.msra.mxu0 0.0
    %5085 = vmatprep.subr.mxu0 0.0
    %5086 = vmatpush2.msra.mxu0 0.0
    %5087 = vmatprep.subr.mxu0 0.0
    %5088 = vmatpush2.msra.mxu0 0.0
    %5089 = vmatprep.subr.mxu0 0.0
    %5090 = vmatpush2.msra.mxu0 0.0
    %5091 = vmatprep.subr.mxu0 0.0
    %5092 = vmatpush2.msra.mxu0 0.0
    %5093 = vmatprep.subr.mxu0 0.0
    %5094 = vmatpush2.msra.mxu0 0.0
    %5095 = vmatprep.subr.mxu0 0.0
    %5096 = vmatpush2.msra.mxu0 0.0
    %5097 = vmatprep.subr.mxu0 0.0
    %5098 = vmatpush2.msra.mxu0 0.0
    %5099 = vmatprep.subr.mxu0 0.0
    %5100 = vmatpush2.msra.mxu0 0.0
    %5101 = vmatprep.subr.mxu0 0.0
    %5102 = vmatpush2.msra.mxu0 0.0
    %5103 = vmatprep.subr.mxu0 0.0
    %5104 = vmatpush2.msra.mxu0 0.0
    %5105 = vmatprep.subr.mxu0 0.0
    %5106 = vmatpush2.msra.mxu0 0.0
    %5107 = vmatprep.subr.mxu0 0.0
    %5108 = vmatpush2.msra.mxu0 0.0
    %5109 = vmatprep.mubr.f32.mxu0 0.0
    %5110 = vmatmul.mubr.f32.gmra.mxu0 %v4938
    %v5111 = vpop.f32.mrf.mxu0
    %v5112 = vadd.f32 0.0, %v5111
    %v5113 = vpop.f32.mrf.mxu0
    %5114 = vmatprep.mubr.f32.mxu0 0.0
    %5115 = vmatmul.mubr.f32.gmra.mxu0 %v4941
    %v5116 = vpop.f32.mrf.mxu0
    %v5117 = vadd.f32 0.0, %v5116
    %v5118 = vpop.f32.mrf.mxu0
    %5119 = vmatprep.mubr.f32.mxu0 0.0
    %5120 = vmatmul.mubr.f32.gmra.mxu0 %v4944
    %v5121 = vpop.f32.mrf.mxu0
    %v5122 = vadd.f32 0.0, %v5121
    %v5123 = vpop.f32.mrf.mxu0
    %5124 = vmatprep.mubr.f32.mxu0 0.0
    %5125 = vmatmul.mubr.f32.gmra.mxu0 %v4947
    %v5126 = vpop.f32.mrf.mxu0
    %v5127 = vadd.f32 0.0, %v5126
    %v5128 = vpop.f32.mrf.mxu0
    %5129 = vmatprep.mubr.f32.mxu0 0.0
    %5130 = vmatmul.mubr.f32.gmra.mxu0 %v4950
    %v5131 = vpop.f32.mrf.mxu0
    %v5132 = vadd.f32 0.0, %v5131
    %v5133 = vpop.f32.mrf.mxu0
    %5134 = vmatprep.mubr.f32.mxu0 0.0
    %5135 = vmatmul.mubr.f32.gmra.mxu0 %v4953
    %v5136 = vpop.f32.mrf.mxu0
    %v5137 = vadd.f32 0.0, %v5136
    %v5138 = vpop.f32.mrf.mxu0
    %5139 = vmatprep.mubr.f32.mxu0 0.0
    %5140 = vmatmul.mubr.f32.gmra.mxu0 %v4956
    %v5141 = vpop.f32.mrf.mxu0
    %v5142 = vadd.f32 0.0, %v5141
    %v5143 = vpop.f32.mrf.mxu0
    %5144 = vmatprep.mubr.f32.mxu0 0.0
    %5145 = vmatmul.mubr.f32.gmra.mxu0 %v4959
    %v5146 = vpop.f32.mrf.mxu0
    %v5147 = vadd.f32 0.0, %v5146
    %v5148 = vpop.f32.mrf.mxu0
    %5149 = vmatprep.mubr.f32.mxu0 0.0
    %5150 = vmatmul.mubr.f32.gmra.mxu0 %v4962
    %v5151 = vpop.f32.mrf.mxu0
    %v5152 = vadd.f32 0.0, %v5151
    %v5153 = vpop.f32.mrf.mxu0
    %5154 = vmatprep.mubr.f32.mxu0 0.0
    %5155 = vmatmul.mubr.f32.gmra.mxu0 %v4965
    %v5156 = vpop.f32.mrf.mxu0
    %v5157 = vadd.f32 0.0, %v5156
    %v5158 = vpop.f32.mrf.mxu0
    %5159 = vmatprep.mubr.f32.mxu0 0.0
    %5160 = vmatmul.mubr.f32.gmra.mxu0 %v4968
    %v5161 = vpop.f32.mrf.mxu0
    %v5162 = vadd.f32 0.0, %v5161
    %v5163 = vpop.f32.mrf.mxu0
    %5164 = vmatprep.mubr.f32.mxu0 0.0
    %5165 = vmatmul.mubr.f32.gmra.mxu0 %v4971
    %v5166 = vpop.f32.mrf.mxu0
    %v5167 = vadd.f32 0.0, %v5166
    %v5168 = vpop.f32.mrf.mxu0
    %5169 = vmatprep.mubr.f32.mxu0 0.0
    %5170 = vmatmul.mubr.f32.gmra.mxu0 %v4974
    %v5171 = vpop.f32.mrf.mxu0
    %v5172 = vadd.f32 0.0, %v5171
    %v5173 = vpop.f32.mrf.mxu0
    %5174 = vmatprep.mubr.f32.mxu0 0.0
    %5175 = vmatmul.mubr.f32.gmra.mxu0 %v4977
    %v5176 = vpop.f32.mrf.mxu0
    %v5177 = vadd.f32 0.0, %v5176
    %v5178 = vpop.f32.mrf.mxu0
    %5179 = vmatprep.mubr.f32.mxu0 0.0
    %5180 = vmatmul.mubr.f32.gmra.mxu0 %v4980
    %v5181 = vpop.f32.mrf.mxu0
    %v5182 = vadd.f32 0.0, %v5181
    %v5183 = vpop.f32.mrf.mxu0
    %5184 = vmatprep.mubr.f32.mxu0 0.0
    %5185 = vmatmul.mubr.f32.gmra.mxu0 %v4983
    %v5186 = vpop.f32.mrf.mxu0
    %v5187 = vadd.f32 0.0, %v5186
    %v5188 = vpop.f32.mrf.mxu0
    %5189 = vmatprep.mubr.f32.mxu0 0.0
    %5190 = vmatmul.mubr.f32.gmra.mxu0 %v4986
    %v5191 = vpop.f32.mrf.mxu0
    %v5192 = vadd.f32 0.0, %v5191
    %v5193 = vpop.f32.mrf.mxu0
    %5194 = vmatprep.mubr.f32.mxu0 0.0
    %5195 = vmatmul.mubr.f32.gmra.mxu0 %v4989
    %v5196 = vpop.f32.mrf.mxu0
    %v5197 = vadd.f32 0.0, %v5196
    %v5198 = vpop.f32.mrf.mxu0
    %5199 = vmatprep.mubr.f32.mxu0 0.0
    %5200 = vmatmul.mubr.f32.gmra.mxu0 %v4992
    %v5201 = vpop.f32.mrf.mxu0
    %v5202 = vadd.f32 0.0, %v5201
    %v5203 = vpop.f32.mrf.mxu0
    %5204 = vmatprep.mubr.f32.mxu0 0.0
    %5205 = vmatmul.mubr.f32.gmra.mxu0 %v4995
    %v5206 = vpop.f32.mrf.mxu0
    %v5207 = vadd.f32 0.0, %v5206
    %v5208 = vpop.f32.mrf.mxu0
    %5209 = vmatprep.mubr.f32.mxu0 0.0
    %5210 = vmatmul.mubr.f32.gmra.mxu0 %v4998
    %v5211 = vpop.f32.mrf.mxu0
    %v5212 = vadd.f32 0.0, %v5211
    %v5213 = vpop.f32.mrf.mxu0
    %5214 = vmatprep.mubr.f32.mxu0 0.0
    %5215 = vmatmul.mubr.f32.gmra.mxu0 %v5001
    %v5216 = vpop.f32.mrf.mxu0
    %v5217 = vadd.f32 0.0, %v5216
    %v5218 = vpop.f32.mrf.mxu0
    %5219 = vmatprep.mubr.f32.mxu0 0.0
    %5220 = vmatmul.mubr.f32.gmra.mxu0 %v5004
    %v5221 = vpop.f32.mrf.mxu0
    %v5222 = vadd.f32 0.0, %v5221
    %v5223 = vpop.f32.mrf.mxu0
    %5224 = vmatprep.mubr.f32.mxu0 0.0
    %5225 = vmatmul.mubr.f32.gmra.mxu0 %v5007
    %v5226 = vpop.f32.mrf.mxu0
    %v5227 = vadd.f32 0.0, %v5226
    %v5228 = vpop.f32.mrf.mxu0
    %5229 = vmatprep.mubr.f32.mxu0 0.0
    %5230 = vmatmul.mubr.f32.gmra.mxu0 %v5010
    %v5231 = vpop.f32.mrf.mxu0
    %v5232 = vadd.f32 0.0, %v5231
    %v5233 = vpop.f32.mrf.mxu0
    %5234 = vmatprep.mubr.f32.mxu0 0.0
    %5235 = vmatmul.mubr.f32.gmra.mxu0 %v5013
    %v5236 = vpop.f32.mrf.mxu0
    %v5237 = vadd.f32 0.0, %v5236
    %v5238 = vpop.f32.mrf.mxu0
    %5239 = vmatprep.mubr.f32.mxu0 0.0
    %5240 = vmatmul.mubr.f32.gmra.mxu0 %v5016
    %v5241 = vpop.f32.mrf.mxu0
    %v5242 = vadd.f32 0.0, %v5241
    %v5243 = vpop.f32.mrf.mxu0
    %5244 = vmatprep.mubr.f32.mxu0 0.0
    %5245 = vmatmul.mubr.f32.gmra.mxu0 %v5019
    %v5246 = vpop.f32.mrf.mxu0
    %v5247 = vadd.f32 0.0, %v5246
    %v5248 = vpop.f32.mrf.mxu0
    %5249 = vmatprep.mubr.f32.mxu0 0.0
    %5250 = vmatmul.mubr.f32.gmra.mxu0 %v5022
    %v5251 = vpop.f32.mrf.mxu0
    %v5252 = vadd.f32 0.0, %v5251
    %v5253 = vpop.f32.mrf.mxu0
    %5254 = vmatprep.mubr.f32.mxu0 0.0
    %5255 = vmatmul.mubr.f32.gmra.mxu0 %v5025
    %v5256 = vpop.f32.mrf.mxu0
    %v5257 = vadd.f32 0.0, %v5256
    %v5258 = vpop.f32.mrf.mxu0
    %5259 = vmatprep.mubr.f32.mxu0 0.0
    %5260 = vmatmul.mubr.f32.gmra.mxu0 %v5028
    %v5261 = vpop.f32.mrf.mxu0
    %v5262 = vadd.f32 0.0, %v5261
    %v5263 = vpop.f32.mrf.mxu0
    %5264 = vmatprep.mubr.f32.mxu0 0.0
    %5265 = vmatmul.mubr.f32.gmra.mxu0 %v5031
    %v5266 = vpop.f32.mrf.mxu0
    %v5267 = vadd.f32 0.0, %v5266
    %v5268 = vpop.f32.mrf.mxu0
    %5269 = vmatprep.mubr.f32.mxu0 0.0
    %5270 = vmatmul.mubr.f32.gmra.mxu0 %v5034
    %v5271 = vpop.f32.mrf.mxu0
    %v5272 = vadd.f32 0.0, %v5271
    %v5273 = vpop.f32.mrf.mxu0
    %5274 = vmatprep.mubr.f32.mxu0 0.0
    %5275 = vmatmul.mubr.f32.gmra.mxu0 %v5037
    %v5276 = vpop.f32.mrf.mxu0
    %v5277 = vadd.f32 0.0, %v5276
    %v5278 = vpop.f32.mrf.mxu0
    %5279 = vmatprep.mubr.f32.mxu0 0.0
    %5280 = vmatmul.mubr.f32.gmra.mxu0 %v5040
    %v5281 = vpop.f32.mrf.mxu0
    %v5282 = vadd.f32 0.0, %v5281
    %v5283 = vpop.f32.mrf.mxu0
    %5284 = vmatprep.mubr.f32.mxu0 0.0
    %5285 = vmatmul.mubr.f32.gmra.mxu0 %v5043
    %v5286 = vpop.f32.mrf.mxu0
    %v5287 = vadd.f32 0.0, %v5286
    %v5288 = vpop.f32.mrf.mxu0
    %5289 = vdwg.mxu0
    %v5290 = vmax.f32 %v5112, 0.0
    %v5291 = vmax.f32 %v5117, 0.0
    %v5292 = vmax.f32 %v5122, 0.0
    %v5293 = vmax.f32 %v5127, 0.0
    %v5294 = vmax.f32 %v5132, 0.0
    %v5295 = vmax.f32 %v5137, 0.0
    %v5296 = vmax.f32 %v5142, 0.0
    %v5297 = vmax.f32 %v5147, 0.0
    %v5298 = vmax.f32 %v5152, 0.0
    %v5299 = vmax.f32 %v5157, 0.0
    %v5300 = vmax.f32 %v5162, 0.0
    %v5301 = vmax.f32 %v5167, 0.0
    %v5302 = vmax.f32 %v5172, 0.0
    %v5303 = vmax.f32 %v5177, 0.0
    %v5304 = vmax.f32 %v5182, 0.0
    %v5305 = vmax.f32 %v5187, 0.0
    %v5306 = vmax.f32 %v5192, 0.0
    %v5307 = vmax.f32 %v5197, 0.0
    %v5308 = vmax.f32 %v5202, 0.0
    %v5309 = vmax.f32 %v5207, 0.0
    %v5310 = vmax.f32 %v5212, 0.0
    %v5311 = vmax.f32 %v5217, 0.0
    %v5312 = vmax.f32 %v5222, 0.0
    %v5313 = vmax.f32 %v5227, 0.0
    %v5314 = vmax.f32 %v5232, 0.0
    %v5315 = vmax.f32 %v5237, 0.0
    %v5316 = vmax.f32 %v5242, 0.0
    %v5317 = vmax.f32 %v5247, 0.0
    %v5318 = vmax.f32 %v5252, 0.0
    %v5319 = vmax.f32 %v5257, 0.0
    %v5320 = vmax.f32 %v5262, 0.0
    %v5321 = vmax.f32 %v5267, 0.0
    %v5322 = vmax.f32 %v5272, 0.0
    %v5323 = vmax.f32 %v5277, 0.0
    %v5324 = vmax.f32 %v5282, 0.0
    %v5325 = vmax.f32 %v5287, 0.0
    %s5326 = scalar_lea.vmem %s4, 24
    %v5327 = vld [vmem:[%s5326] sm:$0xf]
    %v5329 = vsel %vm911, %v5290, 0
    %v5332 = vsel %vm911, %v5291, 0
    %v5335 = vsel %vm911, %v5292, 0
    %v5338 = vsel %vm911, %v5293, 0
    %v5341 = vsel %vm911, %v5294, 0
    %v5344 = vsel %vm911, %v5295, 0
    %v5347 = vsel %vm911, %v5296, 0
    %v5350 = vsel %vm911, %v5297, 0
    %v5353 = vsel %vm911, %v5298, 0
    %v5356 = vsel %vm911, %v5299, 0
    %v5359 = vsel %vm911, %v5300, 0
    %v5362 = vsel %vm911, %v5301, 0
    %v5365 = vsel %vm911, %v5302, 0
    %v5368 = vsel %vm911, %v5303, 0
    %v5371 = vsel %vm911, %v5304, 0
    %v5374 = vsel %vm911, %v5305, 0
    %v5377 = vsel %vm911, %v5306, 0
    %v5380 = vsel %vm911, %v5307, 0
    %v5383 = vsel %vm911, %v5308, 0
    %v5386 = vsel %vm911, %v5309, 0
    %v5389 = vsel %vm911, %v5310, 0
    %v5392 = vsel %vm911, %v5311, 0
    %v5395 = vsel %vm911, %v5312, 0
    %v5398 = vsel %vm911, %v5313, 0
    %v5401 = vsel %vm911, %v5314, 0
    %v5404 = vsel %vm911, %v5315, 0
    %v5407 = vsel %vm911, %v5316, 0
    %v5410 = vsel %vm911, %v5317, 0
    %v5413 = vsel %vm911, %v5318, 0
    %v5416 = vsel %vm911, %v5319, 0
    %v5419 = vsel %vm911, %v5320, 0
    %v5422 = vsel %vm911, %v5321, 0
    %v5425 = vsel %vm911, %v5322, 0
    %v5428 = vsel %vm911, %v5323, 0
    %v5431 = vsel %vm911, %v5324, 0
    %v5434 = vsel %vm911, %v5325, 0
    %v5437 = vsel %vm1020, %v5327, 0
    %5439 = vmatprep.subr.mxu0 0.0
    %5440 = vmatpush1.msra.mxu0 0.0
    %5441 = vmatprep.subr.mxu0 0.0
    %5442 = vmatpush1.msra.mxu0 0.0
    %5443 = vmatprep.subr.mxu0 0.0
    %5444 = vmatpush1.msra.mxu0 0.0
    %5445 = vmatprep.subr.mxu0 0.0
    %5446 = vmatpush1.msra.mxu0 0.0
    %5447 = vmatprep.subr.mxu0 0.0
    %5448 = vmatpush1.msra.mxu0 0.0
    %5449 = vmatprep.subr.mxu0 0.0
    %5450 = vmatpush1.msra.mxu0 0.0
    %5451 = vmatprep.subr.mxu0 0.0
    %5452 = vmatpush1.msra.mxu0 0.0
    %5453 = vmatprep.subr.mxu0 0.0
    %5454 = vmatpush1.msra.mxu0 0.0
    %5455 = vmatprep.subr.mxu0 0.0
    %5456 = vmatpush1.msra.mxu0 0.0
    %5457 = vmatprep.subr.mxu0 0.0
    %5458 = vmatpush1.msra.mxu0 0.0
    %5459 = vmatprep.subr.mxu0 0.0
    %5460 = vmatpush1.msra.mxu0 0.0
    %5461 = vmatprep.subr.mxu0 0.0
    %5462 = vmatpush1.msra.mxu0 0.0
    %5463 = vmatprep.subr.mxu0 0.0
    %5464 = vmatpush1.msra.mxu0 0.0
    %5465 = vmatprep.subr.mxu0 0.0
    %5466 = vmatpush1.msra.mxu0 0.0
    %5467 = vmatprep.subr.mxu0 0.0
    %5468 = vmatpush1.msra.mxu0 0.0
    %5469 = vmatprep.subr.mxu0 0.0
    %5470 = vmatpush1.msra.mxu0 %v5437
    %5471 = vmatprep.subr.mxu0 0.0
    %5472 = vmatpush2.msra.mxu0 0.0
    %5473 = vmatprep.subr.mxu0 0.0
    %5474 = vmatpush2.msra.mxu0 0.0
    %5475 = vmatprep.subr.mxu0 0.0
    %5476 = vmatpush2.msra.mxu0 0.0
    %5477 = vmatprep.subr.mxu0 0.0
    %5478 = vmatpush2.msra.mxu0 0.0
    %5479 = vmatprep.subr.mxu0 0.0
    %5480 = vmatpush2.msra.mxu0 0.0
    %5481 = vmatprep.subr.mxu0 0.0
    %5482 = vmatpush2.msra.mxu0 0.0
    %5483 = vmatprep.subr.mxu0 0.0
    %5484 = vmatpush2.msra.mxu0 0.0
    %5485 = vmatprep.subr.mxu0 0.0
    %5486 = vmatpush2.msra.mxu0 0.0
    %5487 = vmatprep.subr.mxu0 0.0
    %5488 = vmatpush2.msra.mxu0 0.0
    %5489 = vmatprep.subr.mxu0 0.0
    %5490 = vmatpush2.msra.mxu0 0.0
    %5491 = vmatprep.subr.mxu0 0.0
    %5492 = vmatpush2.msra.mxu0 0.0
    %5493 = vmatprep.subr.mxu0 0.0
    %5494 = vmatpush2.msra.mxu0 0.0
    %5495 = vmatprep.subr.mxu0 0.0
    %5496 = vmatpush2.msra.mxu0 0.0
    %5497 = vmatprep.subr.mxu0 0.0
    %5498 = vmatpush2.msra.mxu0 0.0
    %5499 = vmatprep.subr.mxu0 0.0
    %5500 = vmatpush2.msra.mxu0 0.0
    %5501 = vmatprep.subr.mxu0 0.0
    %5502 = vmatpush2.msra.mxu0 0.0
    %5503 = vmatprep.mubr.f32.mxu0 0.0
    %5504 = vmatmul.mubr.f32.gmra.mxu0 %v5329
    %v5505 = vpop.f32.mrf.mxu0
    %v5506 = vadd.f32 0.0, %v5505
    %v5507 = vpop.f32.mrf.mxu0
    %5508 = vmatprep.mubr.f32.mxu0 0.0
    %5509 = vmatmul.mubr.f32.gmra.mxu0 %v5332
    %v5510 = vpop.f32.mrf.mxu0
    %v5511 = vadd.f32 0.0, %v5510
    %v5512 = vpop.f32.mrf.mxu0
    %5513 = vmatprep.mubr.f32.mxu0 0.0
    %5514 = vmatmul.mubr.f32.gmra.mxu0 %v5335
    %v5515 = vpop.f32.mrf.mxu0
    %v5516 = vadd.f32 0.0, %v5515
    %v5517 = vpop.f32.mrf.mxu0
    %5518 = vmatprep.mubr.f32.mxu0 0.0
    %5519 = vmatmul.mubr.f32.gmra.mxu0 %v5338
    %v5520 = vpop.f32.mrf.mxu0
    %v5521 = vadd.f32 0.0, %v5520
    %v5522 = vpop.f32.mrf.mxu0
    %5523 = vmatprep.mubr.f32.mxu0 0.0
    %5524 = vmatmul.mubr.f32.gmra.mxu0 %v5341
    %v5525 = vpop.f32.mrf.mxu0
    %v5526 = vadd.f32 0.0, %v5525
    %v5527 = vpop.f32.mrf.mxu0
    %5528 = vmatprep.mubr.f32.mxu0 0.0
    %5529 = vmatmul.mubr.f32.gmra.mxu0 %v5344
    %v5530 = vpop.f32.mrf.mxu0
    %v5531 = vadd.f32 0.0, %v5530
    %v5532 = vpop.f32.mrf.mxu0
    %5533 = vmatprep.mubr.f32.mxu0 0.0
    %5534 = vmatmul.mubr.f32.gmra.mxu0 %v5347
    %v5535 = vpop.f32.mrf.mxu0
    %v5536 = vadd.f32 0.0, %v5535
    %v5537 = vpop.f32.mrf.mxu0
    %5538 = vmatprep.mubr.f32.mxu0 0.0
    %5539 = vmatmul.mubr.f32.gmra.mxu0 %v5350
    %v5540 = vpop.f32.mrf.mxu0
    %v5541 = vadd.f32 0.0, %v5540
    %v5542 = vpop.f32.mrf.mxu0
    %5543 = vmatprep.mubr.f32.mxu0 0.0
    %5544 = vmatmul.mubr.f32.gmra.mxu0 %v5353
    %v5545 = vpop.f32.mrf.mxu0
    %v5546 = vadd.f32 0.0, %v5545
    %v5547 = vpop.f32.mrf.mxu0
    %5548 = vmatprep.mubr.f32.mxu0 0.0
    %5549 = vmatmul.mubr.f32.gmra.mxu0 %v5356
    %v5550 = vpop.f32.mrf.mxu0
    %v5551 = vadd.f32 0.0, %v5550
    %v5552 = vpop.f32.mrf.mxu0
    %5553 = vmatprep.mubr.f32.mxu0 0.0
    %5554 = vmatmul.mubr.f32.gmra.mxu0 %v5359
    %v5555 = vpop.f32.mrf.mxu0
    %v5556 = vadd.f32 0.0, %v5555
    %v5557 = vpop.f32.mrf.mxu0
    %5558 = vmatprep.mubr.f32.mxu0 0.0
    %5559 = vmatmul.mubr.f32.gmra.mxu0 %v5362
    %v5560 = vpop.f32.mrf.mxu0
    %v5561 = vadd.f32 0.0, %v5560
    %v5562 = vpop.f32.mrf.mxu0
    %5563 = vmatprep.mubr.f32.mxu0 0.0
    %5564 = vmatmul.mubr.f32.gmra.mxu0 %v5365
    %v5565 = vpop.f32.mrf.mxu0
    %v5566 = vadd.f32 0.0, %v5565
    %v5567 = vpop.f32.mrf.mxu0
    %5568 = vmatprep.mubr.f32.mxu0 0.0
    %5569 = vmatmul.mubr.f32.gmra.mxu0 %v5368
    %v5570 = vpop.f32.mrf.mxu0
    %v5571 = vadd.f32 0.0, %v5570
    %v5572 = vpop.f32.mrf.mxu0
    %5573 = vmatprep.mubr.f32.mxu0 0.0
    %5574 = vmatmul.mubr.f32.gmra.mxu0 %v5371
    %v5575 = vpop.f32.mrf.mxu0
    %v5576 = vadd.f32 0.0, %v5575
    %v5577 = vpop.f32.mrf.mxu0
    %5578 = vmatprep.mubr.f32.mxu0 0.0
    %5579 = vmatmul.mubr.f32.gmra.mxu0 %v5374
    %v5580 = vpop.f32.mrf.mxu0
    %v5581 = vadd.f32 0.0, %v5580
    %v5582 = vpop.f32.mrf.mxu0
    %5583 = vmatprep.mubr.f32.mxu0 0.0
    %5584 = vmatmul.mubr.f32.gmra.mxu0 %v5377
    %v5585 = vpop.f32.mrf.mxu0
    %v5586 = vadd.f32 0.0, %v5585
    %v5587 = vpop.f32.mrf.mxu0
    %5588 = vmatprep.mubr.f32.mxu0 0.0
    %5589 = vmatmul.mubr.f32.gmra.mxu0 %v5380
    %v5590 = vpop.f32.mrf.mxu0
    %v5591 = vadd.f32 0.0, %v5590
    %v5592 = vpop.f32.mrf.mxu0
    %5593 = vmatprep.mubr.f32.mxu0 0.0
    %5594 = vmatmul.mubr.f32.gmra.mxu0 %v5383
    %v5595 = vpop.f32.mrf.mxu0
    %v5596 = vadd.f32 0.0, %v5595
    %v5597 = vpop.f32.mrf.mxu0
    %5598 = vmatprep.mubr.f32.mxu0 0.0
    %5599 = vmatmul.mubr.f32.gmra.mxu0 %v5386
    %v5600 = vpop.f32.mrf.mxu0
    %v5601 = vadd.f32 0.0, %v5600
    %v5602 = vpop.f32.mrf.mxu0
    %5603 = vmatprep.mubr.f32.mxu0 0.0
    %5604 = vmatmul.mubr.f32.gmra.mxu0 %v5389
    %v5605 = vpop.f32.mrf.mxu0
    %v5606 = vadd.f32 0.0, %v5605
    %v5607 = vpop.f32.mrf.mxu0
    %5608 = vmatprep.mubr.f32.mxu0 0.0
    %5609 = vmatmul.mubr.f32.gmra.mxu0 %v5392
    %v5610 = vpop.f32.mrf.mxu0
    %v5611 = vadd.f32 0.0, %v5610
    %v5612 = vpop.f32.mrf.mxu0
    %5613 = vmatprep.mubr.f32.mxu0 0.0
    %5614 = vmatmul.mubr.f32.gmra.mxu0 %v5395
    %v5615 = vpop.f32.mrf.mxu0
    %v5616 = vadd.f32 0.0, %v5615
    %v5617 = vpop.f32.mrf.mxu0
    %5618 = vmatprep.mubr.f32.mxu0 0.0
    %5619 = vmatmul.mubr.f32.gmra.mxu0 %v5398
    %v5620 = vpop.f32.mrf.mxu0
    %v5621 = vadd.f32 0.0, %v5620
    %v5622 = vpop.f32.mrf.mxu0
    %5623 = vmatprep.mubr.f32.mxu0 0.0
    %5624 = vmatmul.mubr.f32.gmra.mxu0 %v5401
    %v5625 = vpop.f32.mrf.mxu0
    %v5626 = vadd.f32 0.0, %v5625
    %v5627 = vpop.f32.mrf.mxu0
    %5628 = vmatprep.mubr.f32.mxu0 0.0
    %5629 = vmatmul.mubr.f32.gmra.mxu0 %v5404
    %v5630 = vpop.f32.mrf.mxu0
    %v5631 = vadd.f32 0.0, %v5630
    %v5632 = vpop.f32.mrf.mxu0
    %5633 = vmatprep.mubr.f32.mxu0 0.0
    %5634 = vmatmul.mubr.f32.gmra.mxu0 %v5407
    %v5635 = vpop.f32.mrf.mxu0
    %v5636 = vadd.f32 0.0, %v5635
    %v5637 = vpop.f32.mrf.mxu0
    %5638 = vmatprep.mubr.f32.mxu0 0.0
    %5639 = vmatmul.mubr.f32.gmra.mxu0 %v5410
    %v5640 = vpop.f32.mrf.mxu0
    %v5641 = vadd.f32 0.0, %v5640
    %v5642 = vpop.f32.mrf.mxu0
    %5643 = vmatprep.mubr.f32.mxu0 0.0
    %5644 = vmatmul.mubr.f32.gmra.mxu0 %v5413
    %v5645 = vpop.f32.mrf.mxu0
    %v5646 = vadd.f32 0.0, %v5645
    %v5647 = vpop.f32.mrf.mxu0
    %5648 = vmatprep.mubr.f32.mxu0 0.0
    %5649 = vmatmul.mubr.f32.gmra.mxu0 %v5416
    %v5650 = vpop.f32.mrf.mxu0
    %v5651 = vadd.f32 0.0, %v5650
    %v5652 = vpop.f32.mrf.mxu0
    %5653 = vmatprep.mubr.f32.mxu0 0.0
    %5654 = vmatmul.mubr.f32.gmra.mxu0 %v5419
    %v5655 = vpop.f32.mrf.mxu0
    %v5656 = vadd.f32 0.0, %v5655
    %v5657 = vpop.f32.mrf.mxu0
    %5658 = vmatprep.mubr.f32.mxu0 0.0
    %5659 = vmatmul.mubr.f32.gmra.mxu0 %v5422
    %v5660 = vpop.f32.mrf.mxu0
    %v5661 = vadd.f32 0.0, %v5660
    %v5662 = vpop.f32.mrf.mxu0
    %5663 = vmatprep.mubr.f32.mxu0 0.0
    %5664 = vmatmul.mubr.f32.gmra.mxu0 %v5425
    %v5665 = vpop.f32.mrf.mxu0
    %v5666 = vadd.f32 0.0, %v5665
    %v5667 = vpop.f32.mrf.mxu0
    %5668 = vmatprep.mubr.f32.mxu0 0.0
    %5669 = vmatmul.mubr.f32.gmra.mxu0 %v5428
    %v5670 = vpop.f32.mrf.mxu0
    %v5671 = vadd.f32 0.0, %v5670
    %v5672 = vpop.f32.mrf.mxu0
    %5673 = vmatprep.mubr.f32.mxu0 0.0
    %5674 = vmatmul.mubr.f32.gmra.mxu0 %v5431
    %v5675 = vpop.f32.mrf.mxu0
    %v5676 = vadd.f32 0.0, %v5675
    %v5677 = vpop.f32.mrf.mxu0
    %5678 = vmatprep.mubr.f32.mxu0 0.0
    %5679 = vmatmul.mubr.f32.gmra.mxu0 %v5434
    %v5680 = vpop.f32.mrf.mxu0
    %v5681 = vadd.f32 0.0, %v5680
    %v5682 = vpop.f32.mrf.mxu0
    %5683 = vdwg.mxu0
    %v5684 = vadd.f32 %v4865, %v5506
    %v5685 = vadd.f32 %v4866, %v5511
    %v5686 = vadd.f32 %v4867, %v5516
    %v5687 = vadd.f32 %v4868, %v5521
    %v5688 = vadd.f32 %v4869, %v5526
    %v5689 = vadd.f32 %v4870, %v5531
    %v5690 = vadd.f32 %v4871, %v5536
    %v5691 = vadd.f32 %v4872, %v5541
    %v5692 = vadd.f32 %v4873, %v5546
    %v5693 = vadd.f32 %v4874, %v5551
    %v5694 = vadd.f32 %v4875, %v5556
    %v5695 = vadd.f32 %v4876, %v5561
    %v5696 = vadd.f32 %v4877, %v5566
    %v5697 = vadd.f32 %v4878, %v5571
    %v5698 = vadd.f32 %v4879, %v5576
    %v5699 = vadd.f32 %v4880, %v5581
    %v5700 = vadd.f32 %v4881, %v5586
    %v5701 = vadd.f32 %v4882, %v5591
    %v5702 = vadd.f32 %v4883, %v5596
    %v5703 = vadd.f32 %v4884, %v5601
    %v5704 = vadd.f32 %v4885, %v5606
    %v5705 = vadd.f32 %v4886, %v5611
    %v5706 = vadd.f32 %v4887, %v5616
    %v5707 = vadd.f32 %v4888, %v5621
    %v5708 = vadd.f32 %v4889, %v5626
    %v5709 = vadd.f32 %v4890, %v5631
    %v5710 = vadd.f32 %v4891, %v5636
    %v5711 = vadd.f32 %v4892, %v5641
    %v5712 = vadd.f32 %v4893, %v5646
    %v5713 = vadd.f32 %v4894, %v5651
    %v5714 = vadd.f32 %v4895, %v5656
    %v5715 = vadd.f32 %v4896, %v5661
    %v5716 = vadd.f32 %v4897, %v5666
    %v5717 = vadd.f32 %v4898, %v5671
    %v5718 = vadd.f32 %v4899, %v5676
    %v5719 = vadd.f32 %v4900, %v5681
    %v5720 = vld [vmem:[%s0 + $0x7e0] sm:$0xff]
    %v5721 = vld [vmem:[%s0 + $0x7e8] sm:$0xff]
    %v5722 = vld [vmem:[%s0 + $0x7f0] sm:$0xff]
    %v5723 = vld [vmem:[%s0 + $0x7f8] sm:$0xff]
    %v5724 = vld [vmem:[%s0 + $0x800] sm:$0xff]
    %v5725 = vld [vmem:[%s0 + $0x808] sm:$0xff]
    %v5726 = vld [vmem:[%s0 + $0x810] sm:$0xff]
    %v5727 = vld [vmem:[%s0 + $0x818] sm:$0xff]
    %v5728 = vld [vmem:[%s0 + $0x820] sm:$0xff]
    %v5729 = vld [vmem:[%s0 + $0x828] sm:$0xff]
    %v5730 = vld [vmem:[%s0 + $0x830] sm:$0xff]
    %v5731 = vld [vmem:[%s0 + $0x838] sm:$0xff]
    %v5732 = vld [vmem:[%s0 + $0x840] sm:$0xff]
    %v5733 = vld [vmem:[%s0 + $0x848] sm:$0xff]
    %v5734 = vld [vmem:[%s0 + $0x850] sm:$0xff]
    %v5735 = vld [vmem:[%s0 + $0x858] sm:$0xff]
    %v5736 = vld [vmem:[%s0 + $0x860] sm:$0xff]
    %v5737 = vld [vmem:[%s0 + $0x868] sm:$0xff]
    %v5738 = vld [vmem:[%s0 + $0x870] sm:$0xff]
    %v5739 = vld [vmem:[%s0 + $0x878] sm:$0xff]
    %v5740 = vld [vmem:[%s0 + $0x880] sm:$0xff]
    %v5741 = vld [vmem:[%s0 + $0x888] sm:$0xff]
    %v5742 = vld [vmem:[%s0 + $0x890] sm:$0xff]
    %v5743 = vld [vmem:[%s0 + $0x898] sm:$0xff]
    %v5744 = vld [vmem:[%s0 + $0x8a0] sm:$0xff]
    %v5745 = vld [vmem:[%s0 + $0x8a8] sm:$0xff]
    %v5746 = vld [vmem:[%s0 + $0x8b0] sm:$0xff]
    %v5747 = vld [vmem:[%s0 + $0x8b8] sm:$0xff]
    %v5748 = vld [vmem:[%s0 + $0x8c0] sm:$0xff]
    %v5749 = vld [vmem:[%s0 + $0x8c8] sm:$0xff]
    %v5750 = vld [vmem:[%s0 + $0x8d0] sm:$0xff]
    %v5751 = vld [vmem:[%s0 + $0x8d8] sm:$0xff]
    %v5752 = vld [vmem:[%s0 + $0x8e0] sm:$0xff]
    %v5753 = vld [vmem:[%s0 + $0x8e8] sm:$0xff]
    %v5754 = vld [vmem:[%s0 + $0x8f0] sm:$0xff]
    %v5755 = vld [vmem:[%s0 + $0x8f8] sm:$0xff]
    %v5757 = vsel %vm89, %v5720, 0
    %v5760 = vsel %vm89, %v5721, 0
    %v5763 = vsel %vm89, %v5722, 0
    %v5766 = vsel %vm89, %v5723, 0
    %v5769 = vsel %vm89, %v5724, 0
    %v5772 = vsel %vm89, %v5725, 0
    %v5775 = vsel %vm89, %v5726, 0
    %v5778 = vsel %vm89, %v5727, 0
    %v5781 = vsel %vm89, %v5728, 0
    %v5784 = vsel %vm89, %v5729, 0
    %v5787 = vsel %vm89, %v5730, 0
    %v5790 = vsel %vm89, %v5731, 0
    %v5793 = vsel %vm89, %v5732, 0
    %v5796 = vsel %vm89, %v5733, 0
    %v5799 = vsel %vm89, %v5734, 0
    %v5802 = vsel %vm89, %v5735, 0
    %v5805 = vsel %vm89, %v5736, 0
    %v5808 = vsel %vm89, %v5737, 0
    %v5811 = vsel %vm89, %v5738, 0
    %v5814 = vsel %vm89, %v5739, 0
    %v5817 = vsel %vm89, %v5740, 0
    %v5820 = vsel %vm89, %v5741, 0
    %v5823 = vsel %vm89, %v5742, 0
    %v5826 = vsel %vm89, %v5743, 0
    %v5829 = vsel %vm89, %v5744, 0
    %v5832 = vsel %vm89, %v5745, 0
    %v5835 = vsel %vm89, %v5746, 0
    %v5838 = vsel %vm89, %v5747, 0
    %v5841 = vsel %vm89, %v5748, 0
    %v5844 = vsel %vm89, %v5749, 0
    %v5847 = vsel %vm89, %v5750, 0
    %v5850 = vsel %vm89, %v5751, 0
    %v5853 = vsel %vm89, %v5752, 0
    %v5856 = vsel %vm89, %v5753, 0
    %v5859 = vsel %vm89, %v5754, 0
    %v5862 = vsel %vm89, %v5755, 0
    %5864 = vmatprep.subr.mxu0 0.0
    %5865 = vmatpush1.msra.mxu0 0.0
    %5866 = vmatprep.subr.mxu0 0.0
    %5867 = vmatpush1.msra.mxu0 0.0
    %5868 = vmatprep.subr.mxu0 0.0
    %5869 = vmatpush1.msra.mxu0 0.0
    %5870 = vmatprep.subr.mxu0 0.0
    %5871 = vmatpush1.msra.mxu0 0.0
    %5872 = vmatprep.subr.mxu0 0.0
    %5873 = vmatpush1.msra.mxu0 0.0
    %5874 = vmatprep.subr.mxu0 0.0
    %5875 = vmatpush1.msra.mxu0 0.0
    %5876 = vmatprep.subr.mxu0 0.0
    %5877 = vmatpush1.msra.mxu0 0.0
    %5878 = vmatprep.subr.mxu0 0.0
    %5879 = vmatpush1.msra.mxu0 0.0
    %5880 = vmatprep.subr.mxu0 0.0
    %5881 = vmatpush1.msra.mxu0 0.0
    %5882 = vmatprep.subr.mxu0 0.0
    %5883 = vmatpush1.msra.mxu0 0.0
    %5884 = vmatprep.subr.mxu0 0.0
    %5885 = vmatpush1.msra.mxu0 0.0
    %5886 = vmatprep.subr.mxu0 0.0
    %5887 = vmatpush1.msra.mxu0 0.0
    %5888 = vmatprep.subr.mxu0 0.0
    %5889 = vmatpush1.msra.mxu0 0.0
    %5890 = vmatprep.subr.mxu0 0.0
    %5891 = vmatpush1.msra.mxu0 0.0
    %5892 = vmatprep.subr.mxu0 0.0
    %5893 = vmatpush1.msra.mxu0 %v200
    %5894 = vmatprep.subr.mxu0 0.0
    %5895 = vmatpush1.msra.mxu0 %v51
    %5896 = vmatprep.subr.mxu0 0.0
    %5897 = vmatpush2.msra.mxu0 0.0
    %5898 = vmatprep.subr.mxu0 0.0
    %5899 = vmatpush2.msra.mxu0 0.0
    %5900 = vmatprep.subr.mxu0 0.0
    %5901 = vmatpush2.msra.mxu0 0.0
    %5902 = vmatprep.subr.mxu0 0.0
    %5903 = vmatpush2.msra.mxu0 0.0
    %5904 = vmatprep.subr.mxu0 0.0
    %5905 = vmatpush2.msra.mxu0 0.0
    %5906 = vmatprep.subr.mxu0 0.0
    %5907 = vmatpush2.msra.mxu0 0.0
    %5908 = vmatprep.subr.mxu0 0.0
    %5909 = vmatpush2.msra.mxu0 0.0
    %5910 = vmatprep.subr.mxu0 0.0
    %5911 = vmatpush2.msra.mxu0 0.0
    %5912 = vmatprep.subr.mxu0 0.0
    %5913 = vmatpush2.msra.mxu0 0.0
    %5914 = vmatprep.subr.mxu0 0.0
    %5915 = vmatpush2.msra.mxu0 0.0
    %5916 = vmatprep.subr.mxu0 0.0
    %5917 = vmatpush2.msra.mxu0 0.0
    %5918 = vmatprep.subr.mxu0 0.0
    %5919 = vmatpush2.msra.mxu0 0.0
    %5920 = vmatprep.subr.mxu0 0.0
    %5921 = vmatpush2.msra.mxu0 0.0
    %5922 = vmatprep.subr.mxu0 0.0
    %5923 = vmatpush2.msra.mxu0 0.0
    %5924 = vmatprep.subr.mxu0 0.0
    %5925 = vmatpush2.msra.mxu0 0.0
    %5926 = vmatprep.subr.mxu0 0.0
    %5927 = vmatpush2.msra.mxu0 0.0
    %5928 = vmatprep.mubr.f32.mxu0 0.0
    %5929 = vmatmul.mubr.f32.gmra.mxu0 %v5757
    %v5930 = vpop.f32.mrf.mxu0
    %v5931 = vadd.f32 0.0, %v5930
    %v5932 = vpop.f32.mrf.mxu0
    %5933 = vmatprep.mubr.f32.mxu0 0.0
    %5934 = vmatmul.mubr.f32.gmra.mxu0 %v5760
    %v5935 = vpop.f32.mrf.mxu0
    %v5936 = vadd.f32 0.0, %v5935
    %v5937 = vpop.f32.mrf.mxu0
    %5938 = vmatprep.mubr.f32.mxu0 0.0
    %5939 = vmatmul.mubr.f32.gmra.mxu0 %v5763
    %v5940 = vpop.f32.mrf.mxu0
    %v5941 = vadd.f32 0.0, %v5940
    %v5942 = vpop.f32.mrf.mxu0
    %5943 = vmatprep.mubr.f32.mxu0 0.0
    %5944 = vmatmul.mubr.f32.gmra.mxu0 %v5766
    %v5945 = vpop.f32.mrf.mxu0
    %v5946 = vadd.f32 0.0, %v5945
    %v5947 = vpop.f32.mrf.mxu0
    %5948 = vmatprep.mubr.f32.mxu0 0.0
    %5949 = vmatmul.mubr.f32.gmra.mxu0 %v5769
    %v5950 = vpop.f32.mrf.mxu0
    %v5951 = vadd.f32 0.0, %v5950
    %v5952 = vpop.f32.mrf.mxu0
    %5953 = vmatprep.mubr.f32.mxu0 0.0
    %5954 = vmatmul.mubr.f32.gmra.mxu0 %v5772
    %v5955 = vpop.f32.mrf.mxu0
    %v5956 = vadd.f32 0.0, %v5955
    %v5957 = vpop.f32.mrf.mxu0
    %5958 = vmatprep.mubr.f32.mxu0 0.0
    %5959 = vmatmul.mubr.f32.gmra.mxu0 %v5775
    %v5960 = vpop.f32.mrf.mxu0
    %v5961 = vadd.f32 0.0, %v5960
    %v5962 = vpop.f32.mrf.mxu0
    %5963 = vmatprep.mubr.f32.mxu0 0.0
    %5964 = vmatmul.mubr.f32.gmra.mxu0 %v5778
    %v5965 = vpop.f32.mrf.mxu0
    %v5966 = vadd.f32 0.0, %v5965
    %v5967 = vpop.f32.mrf.mxu0
    %5968 = vmatprep.mubr.f32.mxu0 0.0
    %5969 = vmatmul.mubr.f32.gmra.mxu0 %v5781
    %v5970 = vpop.f32.mrf.mxu0
    %v5971 = vadd.f32 0.0, %v5970
    %v5972 = vpop.f32.mrf.mxu0
    %5973 = vmatprep.mubr.f32.mxu0 0.0
    %5974 = vmatmul.mubr.f32.gmra.mxu0 %v5784
    %v5975 = vpop.f32.mrf.mxu0
    %v5976 = vadd.f32 0.0, %v5975
    %v5977 = vpop.f32.mrf.mxu0
    %5978 = vmatprep.mubr.f32.mxu0 0.0
    %5979 = vmatmul.mubr.f32.gmra.mxu0 %v5787
    %v5980 = vpop.f32.mrf.mxu0
    %v5981 = vadd.f32 0.0, %v5980
    %v5982 = vpop.f32.mrf.mxu0
    %5983 = vmatprep.mubr.f32.mxu0 0.0
    %5984 = vmatmul.mubr.f32.gmra.mxu0 %v5790
    %v5985 = vpop.f32.mrf.mxu0
    %v5986 = vadd.f32 0.0, %v5985
    %v5987 = vpop.f32.mrf.mxu0
    %5988 = vmatprep.mubr.f32.mxu0 0.0
    %5989 = vmatmul.mubr.f32.gmra.mxu0 %v5793
    %v5990 = vpop.f32.mrf.mxu0
    %v5991 = vadd.f32 0.0, %v5990
    %v5992 = vpop.f32.mrf.mxu0
    %5993 = vmatprep.mubr.f32.mxu0 0.0
    %5994 = vmatmul.mubr.f32.gmra.mxu0 %v5796
    %v5995 = vpop.f32.mrf.mxu0
    %v5996 = vadd.f32 0.0, %v5995
    %v5997 = vpop.f32.mrf.mxu0
    %5998 = vmatprep.mubr.f32.mxu0 0.0
    %5999 = vmatmul.mubr.f32.gmra.mxu0 %v5799
    %v6000 = vpop.f32.mrf.mxu0
    %v6001 = vadd.f32 0.0, %v6000
    %v6002 = vpop.f32.mrf.mxu0
    %6003 = vmatprep.mubr.f32.mxu0 0.0
    %6004 = vmatmul.mubr.f32.gmra.mxu0 %v5802
    %v6005 = vpop.f32.mrf.mxu0
    %v6006 = vadd.f32 0.0, %v6005
    %v6007 = vpop.f32.mrf.mxu0
    %6008 = vmatprep.mubr.f32.mxu0 0.0
    %6009 = vmatmul.mubr.f32.gmra.mxu0 %v5805
    %v6010 = vpop.f32.mrf.mxu0
    %v6011 = vadd.f32 0.0, %v6010
    %v6012 = vpop.f32.mrf.mxu0
    %6013 = vmatprep.mubr.f32.mxu0 0.0
    %6014 = vmatmul.mubr.f32.gmra.mxu0 %v5808
    %v6015 = vpop.f32.mrf.mxu0
    %v6016 = vadd.f32 0.0, %v6015
    %v6017 = vpop.f32.mrf.mxu0
    %6018 = vmatprep.mubr.f32.mxu0 0.0
    %6019 = vmatmul.mubr.f32.gmra.mxu0 %v5811
    %v6020 = vpop.f32.mrf.mxu0
    %v6021 = vadd.f32 0.0, %v6020
    %v6022 = vpop.f32.mrf.mxu0
    %6023 = vmatprep.mubr.f32.mxu0 0.0
    %6024 = vmatmul.mubr.f32.gmra.mxu0 %v5814
    %v6025 = vpop.f32.mrf.mxu0
    %v6026 = vadd.f32 0.0, %v6025
    %v6027 = vpop.f32.mrf.mxu0
    %6028 = vmatprep.mubr.f32.mxu0 0.0
    %6029 = vmatmul.mubr.f32.gmra.mxu0 %v5817
    %v6030 = vpop.f32.mrf.mxu0
    %v6031 = vadd.f32 0.0, %v6030
    %v6032 = vpop.f32.mrf.mxu0
    %6033 = vmatprep.mubr.f32.mxu0 0.0
    %6034 = vmatmul.mubr.f32.gmra.mxu0 %v5820
    %v6035 = vpop.f32.mrf.mxu0
    %v6036 = vadd.f32 0.0, %v6035
    %v6037 = vpop.f32.mrf.mxu0
    %6038 = vmatprep.mubr.f32.mxu0 0.0
    %6039 = vmatmul.mubr.f32.gmra.mxu0 %v5823
    %v6040 = vpop.f32.mrf.mxu0
    %v6041 = vadd.f32 0.0, %v6040
    %v6042 = vpop.f32.mrf.mxu0
    %6043 = vmatprep.mubr.f32.mxu0 0.0
    %6044 = vmatmul.mubr.f32.gmra.mxu0 %v5826
    %v6045 = vpop.f32.mrf.mxu0
    %v6046 = vadd.f32 0.0, %v6045
    %v6047 = vpop.f32.mrf.mxu0
    %6048 = vmatprep.mubr.f32.mxu0 0.0
    %6049 = vmatmul.mubr.f32.gmra.mxu0 %v5829
    %v6050 = vpop.f32.mrf.mxu0
    %v6051 = vadd.f32 0.0, %v6050
    %v6052 = vpop.f32.mrf.mxu0
    %6053 = vmatprep.mubr.f32.mxu0 0.0
    %6054 = vmatmul.mubr.f32.gmra.mxu0 %v5832
    %v6055 = vpop.f32.mrf.mxu0
    %v6056 = vadd.f32 0.0, %v6055
    %v6057 = vpop.f32.mrf.mxu0
    %6058 = vmatprep.mubr.f32.mxu0 0.0
    %6059 = vmatmul.mubr.f32.gmra.mxu0 %v5835
    %v6060 = vpop.f32.mrf.mxu0
    %v6061 = vadd.f32 0.0, %v6060
    %v6062 = vpop.f32.mrf.mxu0
    %6063 = vmatprep.mubr.f32.mxu0 0.0
    %6064 = vmatmul.mubr.f32.gmra.mxu0 %v5838
    %v6065 = vpop.f32.mrf.mxu0
    %v6066 = vadd.f32 0.0, %v6065
    %v6067 = vpop.f32.mrf.mxu0
    %6068 = vmatprep.mubr.f32.mxu0 0.0
    %6069 = vmatmul.mubr.f32.gmra.mxu0 %v5841
    %v6070 = vpop.f32.mrf.mxu0
    %v6071 = vadd.f32 0.0, %v6070
    %v6072 = vpop.f32.mrf.mxu0
    %6073 = vmatprep.mubr.f32.mxu0 0.0
    %6074 = vmatmul.mubr.f32.gmra.mxu0 %v5844
    %v6075 = vpop.f32.mrf.mxu0
    %v6076 = vadd.f32 0.0, %v6075
    %v6077 = vpop.f32.mrf.mxu0
    %6078 = vmatprep.mubr.f32.mxu0 0.0
    %6079 = vmatmul.mubr.f32.gmra.mxu0 %v5847
    %v6080 = vpop.f32.mrf.mxu0
    %v6081 = vadd.f32 0.0, %v6080
    %v6082 = vpop.f32.mrf.mxu0
    %6083 = vmatprep.mubr.f32.mxu0 0.0
    %6084 = vmatmul.mubr.f32.gmra.mxu0 %v5850
    %v6085 = vpop.f32.mrf.mxu0
    %v6086 = vadd.f32 0.0, %v6085
    %v6087 = vpop.f32.mrf.mxu0
    %6088 = vmatprep.mubr.f32.mxu0 0.0
    %6089 = vmatmul.mubr.f32.gmra.mxu0 %v5853
    %v6090 = vpop.f32.mrf.mxu0
    %v6091 = vadd.f32 0.0, %v6090
    %v6092 = vpop.f32.mrf.mxu0
    %6093 = vmatprep.mubr.f32.mxu0 0.0
    %6094 = vmatmul.mubr.f32.gmra.mxu0 %v5856
    %v6095 = vpop.f32.mrf.mxu0
    %v6096 = vadd.f32 0.0, %v6095
    %v6097 = vpop.f32.mrf.mxu0
    %6098 = vmatprep.mubr.f32.mxu0 0.0
    %6099 = vmatmul.mubr.f32.gmra.mxu0 %v5859
    %v6100 = vpop.f32.mrf.mxu0
    %v6101 = vadd.f32 0.0, %v6100
    %v6102 = vpop.f32.mrf.mxu0
    %6103 = vmatprep.mubr.f32.mxu0 0.0
    %6104 = vmatmul.mubr.f32.gmra.mxu0 %v5862
    %v6105 = vpop.f32.mrf.mxu0
    %v6106 = vadd.f32 0.0, %v6105
    %v6107 = vpop.f32.mrf.mxu0
    %6108 = vdwg.mxu0
    %v6109 = vmax.f32 %v5931, 0.0
    %v6110 = vmax.f32 %v5936, 0.0
    %v6111 = vmax.f32 %v5941, 0.0
    %v6112 = vmax.f32 %v5946, 0.0
    %v6113 = vmax.f32 %v5951, 0.0
    %v6114 = vmax.f32 %v5956, 0.0
    %v6115 = vmax.f32 %v5961, 0.0
    %v6116 = vmax.f32 %v5966, 0.0
    %v6117 = vmax.f32 %v5971, 0.0
    %v6118 = vmax.f32 %v5976, 0.0
    %v6119 = vmax.f32 %v5981, 0.0
    %v6120 = vmax.f32 %v5986, 0.0
    %v6121 = vmax.f32 %v5991, 0.0
    %v6122 = vmax.f32 %v5996, 0.0
    %v6123 = vmax.f32 %v6001, 0.0
    %v6124 = vmax.f32 %v6006, 0.0
    %v6125 = vmax.f32 %v6011, 0.0
    %v6126 = vmax.f32 %v6016, 0.0
    %v6127 = vmax.f32 %v6021, 0.0
    %v6128 = vmax.f32 %v6026, 0.0
    %v6129 = vmax.f32 %v6031, 0.0
    %v6130 = vmax.f32 %v6036, 0.0
    %v6131 = vmax.f32 %v6041, 0.0
    %v6132 = vmax.f32 %v6046, 0.0
    %v6133 = vmax.f32 %v6051, 0.0
    %v6134 = vmax.f32 %v6056, 0.0
    %v6135 = vmax.f32 %v6061, 0.0
    %v6136 = vmax.f32 %v6066, 0.0
    %v6137 = vmax.f32 %v6071, 0.0
    %v6138 = vmax.f32 %v6076, 0.0
    %v6139 = vmax.f32 %v6081, 0.0
    %v6140 = vmax.f32 %v6086, 0.0
    %v6141 = vmax.f32 %v6091, 0.0
    %v6142 = vmax.f32 %v6096, 0.0
    %v6143 = vmax.f32 %v6101, 0.0
    %v6144 = vmax.f32 %v6106, 0.0
    %s6145 = scalar_lea.vmem %s4, 28
    %v6146 = vld [vmem:[%s6145] sm:$0xf]
    %v6148 = vsel %vm911, %v6109, 0
    %v6151 = vsel %vm911, %v6110, 0
    %v6154 = vsel %vm911, %v6111, 0
    %v6157 = vsel %vm911, %v6112, 0
    %v6160 = vsel %vm911, %v6113, 0
    %v6163 = vsel %vm911, %v6114, 0
    %v6166 = vsel %vm911, %v6115, 0
    %v6169 = vsel %vm911, %v6116, 0
    %v6172 = vsel %vm911, %v6117, 0
    %v6175 = vsel %vm911, %v6118, 0
    %v6178 = vsel %vm911, %v6119, 0
    %v6181 = vsel %vm911, %v6120, 0
    %v6184 = vsel %vm911, %v6121, 0
    %v6187 = vsel %vm911, %v6122, 0
    %v6190 = vsel %vm911, %v6123, 0
    %v6193 = vsel %vm911, %v6124, 0
    %v6196 = vsel %vm911, %v6125, 0
    %v6199 = vsel %vm911, %v6126, 0
    %v6202 = vsel %vm911, %v6127, 0
    %v6205 = vsel %vm911, %v6128, 0
    %v6208 = vsel %vm911, %v6129, 0
    %v6211 = vsel %vm911, %v6130, 0
    %v6214 = vsel %vm911, %v6131, 0
    %v6217 = vsel %vm911, %v6132, 0
    %v6220 = vsel %vm911, %v6133, 0
    %v6223 = vsel %vm911, %v6134, 0
    %v6226 = vsel %vm911, %v6135, 0
    %v6229 = vsel %vm911, %v6136, 0
    %v6232 = vsel %vm911, %v6137, 0
    %v6235 = vsel %vm911, %v6138, 0
    %v6238 = vsel %vm911, %v6139, 0
    %v6241 = vsel %vm911, %v6140, 0
    %v6244 = vsel %vm911, %v6141, 0
    %v6247 = vsel %vm911, %v6142, 0
    %v6250 = vsel %vm911, %v6143, 0
    %v6253 = vsel %vm911, %v6144, 0
    %v6256 = vsel %vm1020, %v6146, 0
    %6258 = vmatprep.subr.mxu0 0.0
    %6259 = vmatpush1.msra.mxu0 0.0
    %6260 = vmatprep.subr.mxu0 0.0
    %6261 = vmatpush1.msra.mxu0 0.0
    %6262 = vmatprep.subr.mxu0 0.0
    %6263 = vmatpush1.msra.mxu0 0.0
    %6264 = vmatprep.subr.mxu0 0.0
    %6265 = vmatpush1.msra.mxu0 0.0
    %6266 = vmatprep.subr.mxu0 0.0
    %6267 = vmatpush1.msra.mxu0 0.0
    %6268 = vmatprep.subr.mxu0 0.0
    %6269 = vmatpush1.msra.mxu0 0.0
    %6270 = vmatprep.subr.mxu0 0.0
    %6271 = vmatpush1.msra.mxu0 0.0
    %6272 = vmatprep.subr.mxu0 0.0
    %6273 = vmatpush1.msra.mxu0 0.0
    %6274 = vmatprep.subr.mxu0 0.0
    %6275 = vmatpush1.msra.mxu0 0.0
    %6276 = vmatprep.subr.mxu0 0.0
    %6277 = vmatpush1.msra.mxu0 0.0
    %6278 = vmatprep.subr.mxu0 0.0
    %6279 = vmatpush1.msra.mxu0 0.0
    %6280 = vmatprep.subr.mxu0 0.0
    %6281 = vmatpush1.msra.mxu0 0.0
    %6282 = vmatprep.subr.mxu0 0.0
    %6283 = vmatpush1.msra.mxu0 0.0
    %6284 = vmatprep.subr.mxu0 0.0
    %6285 = vmatpush1.msra.mxu0 0.0
    %6286 = vmatprep.subr.mxu0 0.0
    %6287 = vmatpush1.msra.mxu0 0.0
    %6288 = vmatprep.subr.mxu0 0.0
    %6289 = vmatpush1.msra.mxu0 %v6256
    %6290 = vmatprep.subr.mxu0 0.0
    %6291 = vmatpush2.msra.mxu0 0.0
    %6292 = vmatprep.subr.mxu0 0.0
    %6293 = vmatpush2.msra.mxu0 0.0
    %6294 = vmatprep.subr.mxu0 0.0
    %6295 = vmatpush2.msra.mxu0 0.0
    %6296 = vmatprep.subr.mxu0 0.0
    %6297 = vmatpush2.msra.mxu0 0.0
    %6298 = vmatprep.subr.mxu0 0.0
    %6299 = vmatpush2.msra.mxu0 0.0
    %6300 = vmatprep.subr.mxu0 0.0
    %6301 = vmatpush2.msra.mxu0 0.0
    %6302 = vmatprep.subr.mxu0 0.0
    %6303 = vmatpush2.msra.mxu0 0.0
    %6304 = vmatprep.subr.mxu0 0.0
    %6305 = vmatpush2.msra.mxu0 0.0
    %6306 = vmatprep.subr.mxu0 0.0
    %6307 = vmatpush2.msra.mxu0 0.0
    %6308 = vmatprep.subr.mxu0 0.0
    %6309 = vmatpush2.msra.mxu0 0.0
    %6310 = vmatprep.subr.mxu0 0.0
    %6311 = vmatpush2.msra.mxu0 0.0
    %6312 = vmatprep.subr.mxu0 0.0
    %6313 = vmatpush2.msra.mxu0 0.0
    %6314 = vmatprep.subr.mxu0 0.0
    %6315 = vmatpush2.msra.mxu0 0.0
    %6316 = vmatprep.subr.mxu0 0.0
    %6317 = vmatpush2.msra.mxu0 0.0
    %6318 = vmatprep.subr.mxu0 0.0
    %6319 = vmatpush2.msra.mxu0 0.0
    %6320 = vmatprep.subr.mxu0 0.0
    %6321 = vmatpush2.msra.mxu0 0.0
    %6322 = vmatprep.mubr.f32.mxu0 0.0
    %6323 = vmatmul.mubr.f32.gmra.mxu0 %v6148
    %v6324 = vpop.f32.mrf.mxu0
    %v6325 = vadd.f32 0.0, %v6324
    %v6326 = vpop.f32.mrf.mxu0
    %6327 = vmatprep.mubr.f32.mxu0 0.0
    %6328 = vmatmul.mubr.f32.gmra.mxu0 %v6151
    %v6329 = vpop.f32.mrf.mxu0
    %v6330 = vadd.f32 0.0, %v6329
    %v6331 = vpop.f32.mrf.mxu0
    %6332 = vmatprep.mubr.f32.mxu0 0.0
    %6333 = vmatmul.mubr.f32.gmra.mxu0 %v6154
    %v6334 = vpop.f32.mrf.mxu0
    %v6335 = vadd.f32 0.0, %v6334
    %v6336 = vpop.f32.mrf.mxu0
    %6337 = vmatprep.mubr.f32.mxu0 0.0
    %6338 = vmatmul.mubr.f32.gmra.mxu0 %v6157
    %v6339 = vpop.f32.mrf.mxu0
    %v6340 = vadd.f32 0.0, %v6339
    %v6341 = vpop.f32.mrf.mxu0
    %6342 = vmatprep.mubr.f32.mxu0 0.0
    %6343 = vmatmul.mubr.f32.gmra.mxu0 %v6160
    %v6344 = vpop.f32.mrf.mxu0
    %v6345 = vadd.f32 0.0, %v6344
    %v6346 = vpop.f32.mrf.mxu0
    %6347 = vmatprep.mubr.f32.mxu0 0.0
    %6348 = vmatmul.mubr.f32.gmra.mxu0 %v6163
    %v6349 = vpop.f32.mrf.mxu0
    %v6350 = vadd.f32 0.0, %v6349
    %v6351 = vpop.f32.mrf.mxu0
    %6352 = vmatprep.mubr.f32.mxu0 0.0
    %6353 = vmatmul.mubr.f32.gmra.mxu0 %v6166
    %v6354 = vpop.f32.mrf.mxu0
    %v6355 = vadd.f32 0.0, %v6354
    %v6356 = vpop.f32.mrf.mxu0
    %6357 = vmatprep.mubr.f32.mxu0 0.0
    %6358 = vmatmul.mubr.f32.gmra.mxu0 %v6169
    %v6359 = vpop.f32.mrf.mxu0
    %v6360 = vadd.f32 0.0, %v6359
    %v6361 = vpop.f32.mrf.mxu0
    %6362 = vmatprep.mubr.f32.mxu0 0.0
    %6363 = vmatmul.mubr.f32.gmra.mxu0 %v6172
    %v6364 = vpop.f32.mrf.mxu0
    %v6365 = vadd.f32 0.0, %v6364
    %v6366 = vpop.f32.mrf.mxu0
    %6367 = vmatprep.mubr.f32.mxu0 0.0
    %6368 = vmatmul.mubr.f32.gmra.mxu0 %v6175
    %v6369 = vpop.f32.mrf.mxu0
    %v6370 = vadd.f32 0.0, %v6369
    %v6371 = vpop.f32.mrf.mxu0
    %6372 = vmatprep.mubr.f32.mxu0 0.0
    %6373 = vmatmul.mubr.f32.gmra.mxu0 %v6178
    %v6374 = vpop.f32.mrf.mxu0
    %v6375 = vadd.f32 0.0, %v6374
    %v6376 = vpop.f32.mrf.mxu0
    %6377 = vmatprep.mubr.f32.mxu0 0.0
    %6378 = vmatmul.mubr.f32.gmra.mxu0 %v6181
    %v6379 = vpop.f32.mrf.mxu0
    %v6380 = vadd.f32 0.0, %v6379
    %v6381 = vpop.f32.mrf.mxu0
    %6382 = vmatprep.mubr.f32.mxu0 0.0
    %6383 = vmatmul.mubr.f32.gmra.mxu0 %v6184
    %v6384 = vpop.f32.mrf.mxu0
    %v6385 = vadd.f32 0.0, %v6384
    %v6386 = vpop.f32.mrf.mxu0
    %6387 = vmatprep.mubr.f32.mxu0 0.0
    %6388 = vmatmul.mubr.f32.gmra.mxu0 %v6187
    %v6389 = vpop.f32.mrf.mxu0
    %v6390 = vadd.f32 0.0, %v6389
    %v6391 = vpop.f32.mrf.mxu0
    %6392 = vmatprep.mubr.f32.mxu0 0.0
    %6393 = vmatmul.mubr.f32.gmra.mxu0 %v6190
    %v6394 = vpop.f32.mrf.mxu0
    %v6395 = vadd.f32 0.0, %v6394
    %v6396 = vpop.f32.mrf.mxu0
    %6397 = vmatprep.mubr.f32.mxu0 0.0
    %6398 = vmatmul.mubr.f32.gmra.mxu0 %v6193
    %v6399 = vpop.f32.mrf.mxu0
    %v6400 = vadd.f32 0.0, %v6399
    %v6401 = vpop.f32.mrf.mxu0
    %6402 = vmatprep.mubr.f32.mxu0 0.0
    %6403 = vmatmul.mubr.f32.gmra.mxu0 %v6196
    %v6404 = vpop.f32.mrf.mxu0
    %v6405 = vadd.f32 0.0, %v6404
    %v6406 = vpop.f32.mrf.mxu0
    %6407 = vmatprep.mubr.f32.mxu0 0.0
    %6408 = vmatmul.mubr.f32.gmra.mxu0 %v6199
    %v6409 = vpop.f32.mrf.mxu0
    %v6410 = vadd.f32 0.0, %v6409
    %v6411 = vpop.f32.mrf.mxu0
    %6412 = vmatprep.mubr.f32.mxu0 0.0
    %6413 = vmatmul.mubr.f32.gmra.mxu0 %v6202
    %v6414 = vpop.f32.mrf.mxu0
    %v6415 = vadd.f32 0.0, %v6414
    %v6416 = vpop.f32.mrf.mxu0
    %6417 = vmatprep.mubr.f32.mxu0 0.0
    %6418 = vmatmul.mubr.f32.gmra.mxu0 %v6205
    %v6419 = vpop.f32.mrf.mxu0
    %v6420 = vadd.f32 0.0, %v6419
    %v6421 = vpop.f32.mrf.mxu0
    %6422 = vmatprep.mubr.f32.mxu0 0.0
    %6423 = vmatmul.mubr.f32.gmra.mxu0 %v6208
    %v6424 = vpop.f32.mrf.mxu0
    %v6425 = vadd.f32 0.0, %v6424
    %v6426 = vpop.f32.mrf.mxu0
    %6427 = vmatprep.mubr.f32.mxu0 0.0
    %6428 = vmatmul.mubr.f32.gmra.mxu0 %v6211
    %v6429 = vpop.f32.mrf.mxu0
    %v6430 = vadd.f32 0.0, %v6429
    %v6431 = vpop.f32.mrf.mxu0
    %6432 = vmatprep.mubr.f32.mxu0 0.0
    %6433 = vmatmul.mubr.f32.gmra.mxu0 %v6214
    %v6434 = vpop.f32.mrf.mxu0
    %v6435 = vadd.f32 0.0, %v6434
    %v6436 = vpop.f32.mrf.mxu0
    %6437 = vmatprep.mubr.f32.mxu0 0.0
    %6438 = vmatmul.mubr.f32.gmra.mxu0 %v6217
    %v6439 = vpop.f32.mrf.mxu0
    %v6440 = vadd.f32 0.0, %v6439
    %v6441 = vpop.f32.mrf.mxu0
    %6442 = vmatprep.mubr.f32.mxu0 0.0
    %6443 = vmatmul.mubr.f32.gmra.mxu0 %v6220
    %v6444 = vpop.f32.mrf.mxu0
    %v6445 = vadd.f32 0.0, %v6444
    %v6446 = vpop.f32.mrf.mxu0
    %6447 = vmatprep.mubr.f32.mxu0 0.0
    %6448 = vmatmul.mubr.f32.gmra.mxu0 %v6223
    %v6449 = vpop.f32.mrf.mxu0
    %v6450 = vadd.f32 0.0, %v6449
    %v6451 = vpop.f32.mrf.mxu0
    %6452 = vmatprep.mubr.f32.mxu0 0.0
    %6453 = vmatmul.mubr.f32.gmra.mxu0 %v6226
    %v6454 = vpop.f32.mrf.mxu0
    %v6455 = vadd.f32 0.0, %v6454
    %v6456 = vpop.f32.mrf.mxu0
    %6457 = vmatprep.mubr.f32.mxu0 0.0
    %6458 = vmatmul.mubr.f32.gmra.mxu0 %v6229
    %v6459 = vpop.f32.mrf.mxu0
    %v6460 = vadd.f32 0.0, %v6459
    %v6461 = vpop.f32.mrf.mxu0
    %6462 = vmatprep.mubr.f32.mxu0 0.0
    %6463 = vmatmul.mubr.f32.gmra.mxu0 %v6232
    %v6464 = vpop.f32.mrf.mxu0
    %v6465 = vadd.f32 0.0, %v6464
    %v6466 = vpop.f32.mrf.mxu0
    %6467 = vmatprep.mubr.f32.mxu0 0.0
    %6468 = vmatmul.mubr.f32.gmra.mxu0 %v6235
    %v6469 = vpop.f32.mrf.mxu0
    %v6470 = vadd.f32 0.0, %v6469
    %v6471 = vpop.f32.mrf.mxu0
    %6472 = vmatprep.mubr.f32.mxu0 0.0
    %6473 = vmatmul.mubr.f32.gmra.mxu0 %v6238
    %v6474 = vpop.f32.mrf.mxu0
    %v6475 = vadd.f32 0.0, %v6474
    %v6476 = vpop.f32.mrf.mxu0
    %6477 = vmatprep.mubr.f32.mxu0 0.0
    %6478 = vmatmul.mubr.f32.gmra.mxu0 %v6241
    %v6479 = vpop.f32.mrf.mxu0
    %v6480 = vadd.f32 0.0, %v6479
    %v6481 = vpop.f32.mrf.mxu0
    %6482 = vmatprep.mubr.f32.mxu0 0.0
    %6483 = vmatmul.mubr.f32.gmra.mxu0 %v6244
    %v6484 = vpop.f32.mrf.mxu0
    %v6485 = vadd.f32 0.0, %v6484
    %v6486 = vpop.f32.mrf.mxu0
    %6487 = vmatprep.mubr.f32.mxu0 0.0
    %6488 = vmatmul.mubr.f32.gmra.mxu0 %v6247
    %v6489 = vpop.f32.mrf.mxu0
    %v6490 = vadd.f32 0.0, %v6489
    %v6491 = vpop.f32.mrf.mxu0
    %6492 = vmatprep.mubr.f32.mxu0 0.0
    %6493 = vmatmul.mubr.f32.gmra.mxu0 %v6250
    %v6494 = vpop.f32.mrf.mxu0
    %v6495 = vadd.f32 0.0, %v6494
    %v6496 = vpop.f32.mrf.mxu0
    %6497 = vmatprep.mubr.f32.mxu0 0.0
    %6498 = vmatmul.mubr.f32.gmra.mxu0 %v6253
    %v6499 = vpop.f32.mrf.mxu0
    %v6500 = vadd.f32 0.0, %v6499
    %v6501 = vpop.f32.mrf.mxu0
    %6502 = vdwg.mxu0
    %v6503 = vadd.f32 %v5684, %v6325
    %v6504 = vadd.f32 %v5685, %v6330
    %v6505 = vadd.f32 %v5686, %v6335
    %v6506 = vadd.f32 %v5687, %v6340
    %v6507 = vadd.f32 %v5688, %v6345
    %v6508 = vadd.f32 %v5689, %v6350
    %v6509 = vadd.f32 %v5690, %v6355
    %v6510 = vadd.f32 %v5691, %v6360
    %v6511 = vadd.f32 %v5692, %v6365
    %v6512 = vadd.f32 %v5693, %v6370
    %v6513 = vadd.f32 %v5694, %v6375
    %v6514 = vadd.f32 %v5695, %v6380
    %v6515 = vadd.f32 %v5696, %v6385
    %v6516 = vadd.f32 %v5697, %v6390
    %v6517 = vadd.f32 %v5698, %v6395
    %v6518 = vadd.f32 %v5699, %v6400
    %v6519 = vadd.f32 %v5700, %v6405
    %v6520 = vadd.f32 %v5701, %v6410
    %v6521 = vadd.f32 %v5702, %v6415
    %v6522 = vadd.f32 %v5703, %v6420
    %v6523 = vadd.f32 %v5704, %v6425
    %v6524 = vadd.f32 %v5705, %v6430
    %v6525 = vadd.f32 %v5706, %v6435
    %v6526 = vadd.f32 %v5707, %v6440
    %v6527 = vadd.f32 %v5708, %v6445
    %v6528 = vadd.f32 %v5709, %v6450
    %v6529 = vadd.f32 %v5710, %v6455
    %v6530 = vadd.f32 %v5711, %v6460
    %v6531 = vadd.f32 %v5712, %v6465
    %v6532 = vadd.f32 %v5713, %v6470
    %v6533 = vadd.f32 %v5714, %v6475
    %v6534 = vadd.f32 %v5715, %v6480
    %v6535 = vadd.f32 %v5716, %v6485
    %v6536 = vadd.f32 %v5717, %v6490
    %v6537 = vadd.f32 %v5718, %v6495
    %v6538 = vadd.f32 %v5719, %v6500
    %v6539 = vld [vmem:[%s0 + $0x900] sm:$0xff]
    %v6540 = vld [vmem:[%s0 + $0x908] sm:$0xff]
    %v6541 = vld [vmem:[%s0 + $0x910] sm:$0xff]
    %v6542 = vld [vmem:[%s0 + $0x918] sm:$0xff]
    %v6543 = vld [vmem:[%s0 + $0x920] sm:$0xff]
    %v6544 = vld [vmem:[%s0 + $0x928] sm:$0xff]
    %v6545 = vld [vmem:[%s0 + $0x930] sm:$0xff]
    %v6546 = vld [vmem:[%s0 + $0x938] sm:$0xff]
    %v6547 = vld [vmem:[%s0 + $0x940] sm:$0xff]
    %v6548 = vld [vmem:[%s0 + $0x948] sm:$0xff]
    %v6549 = vld [vmem:[%s0 + $0x950] sm:$0xff]
    %v6550 = vld [vmem:[%s0 + $0x958] sm:$0xff]
    %v6551 = vld [vmem:[%s0 + $0x960] sm:$0xff]
    %v6552 = vld [vmem:[%s0 + $0x968] sm:$0xff]
    %v6553 = vld [vmem:[%s0 + $0x970] sm:$0xff]
    %v6554 = vld [vmem:[%s0 + $0x978] sm:$0xff]
    %v6555 = vld [vmem:[%s0 + $0x980] sm:$0xff]
    %v6556 = vld [vmem:[%s0 + $0x988] sm:$0xff]
    %v6557 = vld [vmem:[%s0 + $0x990] sm:$0xff]
    %v6558 = vld [vmem:[%s0 + $0x998] sm:$0xff]
    %v6559 = vld [vmem:[%s0 + $0x9a0] sm:$0xff]
    %v6560 = vld [vmem:[%s0 + $0x9a8] sm:$0xff]
    %v6561 = vld [vmem:[%s0 + $0x9b0] sm:$0xff]
    %v6562 = vld [vmem:[%s0 + $0x9b8] sm:$0xff]
    %v6563 = vld [vmem:[%s0 + $0x9c0] sm:$0xff]
    %v6564 = vld [vmem:[%s0 + $0x9c8] sm:$0xff]
    %v6565 = vld [vmem:[%s0 + $0x9d0] sm:$0xff]
    %v6566 = vld [vmem:[%s0 + $0x9d8] sm:$0xff]
    %v6567 = vld [vmem:[%s0 + $0x9e0] sm:$0xff]
    %v6568 = vld [vmem:[%s0 + $0x9e8] sm:$0xff]
    %v6569 = vld [vmem:[%s0 + $0x9f0] sm:$0xff]
    %v6570 = vld [vmem:[%s0 + $0x9f8] sm:$0xff]
    %v6571 = vld [vmem:[%s0 + $0xa00] sm:$0xff]
    %v6572 = vld [vmem:[%s0 + $0xa08] sm:$0xff]
    %v6573 = vld [vmem:[%s0 + $0xa10] sm:$0xff]
    %v6574 = vld [vmem:[%s0 + $0xa18] sm:$0xff]
    %v6576 = vsel %vm89, %v6539, 0
    %v6579 = vsel %vm89, %v6540, 0
    %v6582 = vsel %vm89, %v6541, 0
    %v6585 = vsel %vm89, %v6542, 0
    %v6588 = vsel %vm89, %v6543, 0
    %v6591 = vsel %vm89, %v6544, 0
    %v6594 = vsel %vm89, %v6545, 0
    %v6597 = vsel %vm89, %v6546, 0
    %v6600 = vsel %vm89, %v6547, 0
    %v6603 = vsel %vm89, %v6548, 0
    %v6606 = vsel %vm89, %v6549, 0
    %v6609 = vsel %vm89, %v6550, 0
    %v6612 = vsel %vm89, %v6551, 0
    %v6615 = vsel %vm89, %v6552, 0
    %v6618 = vsel %vm89, %v6553, 0
    %v6621 = vsel %vm89, %v6554, 0
    %v6624 = vsel %vm89, %v6555, 0
    %v6627 = vsel %vm89, %v6556, 0
    %v6630 = vsel %vm89, %v6557, 0
    %v6633 = vsel %vm89, %v6558, 0
    %v6636 = vsel %vm89, %v6559, 0
    %v6639 = vsel %vm89, %v6560, 0
    %v6642 = vsel %vm89, %v6561, 0
    %v6645 = vsel %vm89, %v6562, 0
    %v6648 = vsel %vm89, %v6563, 0
    %v6651 = vsel %vm89, %v6564, 0
    %v6654 = vsel %vm89, %v6565, 0
    %v6657 = vsel %vm89, %v6566, 0
    %v6660 = vsel %vm89, %v6567, 0
    %v6663 = vsel %vm89, %v6568, 0
    %v6666 = vsel %vm89, %v6569, 0
    %v6669 = vsel %vm89, %v6570, 0
    %v6672 = vsel %vm89, %v6571, 0
    %v6675 = vsel %vm89, %v6572, 0
    %v6678 = vsel %vm89, %v6573, 0
    %v6681 = vsel %vm89, %v6574, 0
    %6683 = vmatprep.subr.mxu0 0.0
    %6684 = vmatpush1.msra.mxu0 0.0
    %6685 = vmatprep.subr.mxu0 0.0
    %6686 = vmatpush1.msra.mxu0 0.0
    %6687 = vmatprep.subr.mxu0 0.0
    %6688 = vmatpush1.msra.mxu0 0.0
    %6689 = vmatprep.subr.mxu0 0.0
    %6690 = vmatpush1.msra.mxu0 0.0
    %6691 = vmatprep.subr.mxu0 0.0
    %6692 = vmatpush1.msra.mxu0 0.0
    %6693 = vmatprep.subr.mxu0 0.0
    %6694 = vmatpush1.msra.mxu0 0.0
    %6695 = vmatprep.subr.mxu0 0.0
    %6696 = vmatpush1.msra.mxu0 0.0
    %6697 = vmatprep.subr.mxu0 0.0
    %6698 = vmatpush1.msra.mxu0 0.0
    %6699 = vmatprep.subr.mxu0 0.0
    %6700 = vmatpush1.msra.mxu0 0.0
    %6701 = vmatprep.subr.mxu0 0.0
    %6702 = vmatpush1.msra.mxu0 0.0
    %6703 = vmatprep.subr.mxu0 0.0
    %6704 = vmatpush1.msra.mxu0 0.0
    %6705 = vmatprep.subr.mxu0 0.0
    %6706 = vmatpush1.msra.mxu0 0.0
    %6707 = vmatprep.subr.mxu0 0.0
    %6708 = vmatpush1.msra.mxu0 0.0
    %6709 = vmatprep.subr.mxu0 0.0
    %6710 = vmatpush1.msra.mxu0 0.0
    %6711 = vmatprep.subr.mxu0 0.0
    %6712 = vmatpush1.msra.mxu0 %v200
    %6713 = vmatprep.subr.mxu0 0.0
    %6714 = vmatpush1.msra.mxu0 %v51
    %6715 = vmatprep.subr.mxu0 0.0
    %6716 = vmatpush2.msra.mxu0 0.0
    %6717 = vmatprep.subr.mxu0 0.0
    %6718 = vmatpush2.msra.mxu0 0.0
    %6719 = vmatprep.subr.mxu0 0.0
    %6720 = vmatpush2.msra.mxu0 0.0
    %6721 = vmatprep.subr.mxu0 0.0
    %6722 = vmatpush2.msra.mxu0 0.0
    %6723 = vmatprep.subr.mxu0 0.0
    %6724 = vmatpush2.msra.mxu0 0.0
    %6725 = vmatprep.subr.mxu0 0.0
    %6726 = vmatpush2.msra.mxu0 0.0
    %6727 = vmatprep.subr.mxu0 0.0
    %6728 = vmatpush2.msra.mxu0 0.0
    %6729 = vmatprep.subr.mxu0 0.0
    %6730 = vmatpush2.msra.mxu0 0.0
    %6731 = vmatprep.subr.mxu0 0.0
    %6732 = vmatpush2.msra.mxu0 0.0
    %6733 = vmatprep.subr.mxu0 0.0
    %6734 = vmatpush2.msra.mxu0 0.0
    %6735 = vmatprep.subr.mxu0 0.0
    %6736 = vmatpush2.msra.mxu0 0.0
    %6737 = vmatprep.subr.mxu0 0.0
    %6738 = vmatpush2.msra.mxu0 0.0
    %6739 = vmatprep.subr.mxu0 0.0
    %6740 = vmatpush2.msra.mxu0 0.0
    %6741 = vmatprep.subr.mxu0 0.0
    %6742 = vmatpush2.msra.mxu0 0.0
    %6743 = vmatprep.subr.mxu0 0.0
    %6744 = vmatpush2.msra.mxu0 0.0
    %6745 = vmatprep.subr.mxu0 0.0
    %6746 = vmatpush2.msra.mxu0 0.0
    %6747 = vmatprep.mubr.f32.mxu0 0.0
    %6748 = vmatmul.mubr.f32.gmra.mxu0 %v6576
    %v6749 = vpop.f32.mrf.mxu0
    %v6750 = vadd.f32 0.0, %v6749
    %v6751 = vpop.f32.mrf.mxu0
    %6752 = vmatprep.mubr.f32.mxu0 0.0
    %6753 = vmatmul.mubr.f32.gmra.mxu0 %v6579
    %v6754 = vpop.f32.mrf.mxu0
    %v6755 = vadd.f32 0.0, %v6754
    %v6756 = vpop.f32.mrf.mxu0
    %6757 = vmatprep.mubr.f32.mxu0 0.0
    %6758 = vmatmul.mubr.f32.gmra.mxu0 %v6582
    %v6759 = vpop.f32.mrf.mxu0
    %v6760 = vadd.f32 0.0, %v6759
    %v6761 = vpop.f32.mrf.mxu0
    %6762 = vmatprep.mubr.f32.mxu0 0.0
    %6763 = vmatmul.mubr.f32.gmra.mxu0 %v6585
    %v6764 = vpop.f32.mrf.mxu0
    %v6765 = vadd.f32 0.0, %v6764
    %v6766 = vpop.f32.mrf.mxu0
    %6767 = vmatprep.mubr.f32.mxu0 0.0
    %6768 = vmatmul.mubr.f32.gmra.mxu0 %v6588
    %v6769 = vpop.f32.mrf.mxu0
    %v6770 = vadd.f32 0.0, %v6769
    %v6771 = vpop.f32.mrf.mxu0
    %6772 = vmatprep.mubr.f32.mxu0 0.0
    %6773 = vmatmul.mubr.f32.gmra.mxu0 %v6591
    %v6774 = vpop.f32.mrf.mxu0
    %v6775 = vadd.f32 0.0, %v6774
    %v6776 = vpop.f32.mrf.mxu0
    %6777 = vmatprep.mubr.f32.mxu0 0.0
    %6778 = vmatmul.mubr.f32.gmra.mxu0 %v6594
    %v6779 = vpop.f32.mrf.mxu0
    %v6780 = vadd.f32 0.0, %v6779
    %v6781 = vpop.f32.mrf.mxu0
    %6782 = vmatprep.mubr.f32.mxu0 0.0
    %6783 = vmatmul.mubr.f32.gmra.mxu0 %v6597
    %v6784 = vpop.f32.mrf.mxu0
    %v6785 = vadd.f32 0.0, %v6784
    %v6786 = vpop.f32.mrf.mxu0
    %6787 = vmatprep.mubr.f32.mxu0 0.0
    %6788 = vmatmul.mubr.f32.gmra.mxu0 %v6600
    %v6789 = vpop.f32.mrf.mxu0
    %v6790 = vadd.f32 0.0, %v6789
    %v6791 = vpop.f32.mrf.mxu0
    %6792 = vmatprep.mubr.f32.mxu0 0.0
    %6793 = vmatmul.mubr.f32.gmra.mxu0 %v6603
    %v6794 = vpop.f32.mrf.mxu0
    %v6795 = vadd.f32 0.0, %v6794
    %v6796 = vpop.f32.mrf.mxu0
    %6797 = vmatprep.mubr.f32.mxu0 0.0
    %6798 = vmatmul.mubr.f32.gmra.mxu0 %v6606
    %v6799 = vpop.f32.mrf.mxu0
    %v6800 = vadd.f32 0.0, %v6799
    %v6801 = vpop.f32.mrf.mxu0
    %6802 = vmatprep.mubr.f32.mxu0 0.0
    %6803 = vmatmul.mubr.f32.gmra.mxu0 %v6609
    %v6804 = vpop.f32.mrf.mxu0
    %v6805 = vadd.f32 0.0, %v6804
    %v6806 = vpop.f32.mrf.mxu0
    %6807 = vmatprep.mubr.f32.mxu0 0.0
    %6808 = vmatmul.mubr.f32.gmra.mxu0 %v6612
    %v6809 = vpop.f32.mrf.mxu0
    %v6810 = vadd.f32 0.0, %v6809
    %v6811 = vpop.f32.mrf.mxu0
    %6812 = vmatprep.mubr.f32.mxu0 0.0
    %6813 = vmatmul.mubr.f32.gmra.mxu0 %v6615
    %v6814 = vpop.f32.mrf.mxu0
    %v6815 = vadd.f32 0.0, %v6814
    %v6816 = vpop.f32.mrf.mxu0
    %6817 = vmatprep.mubr.f32.mxu0 0.0
    %6818 = vmatmul.mubr.f32.gmra.mxu0 %v6618
    %v6819 = vpop.f32.mrf.mxu0
    %v6820 = vadd.f32 0.0, %v6819
    %v6821 = vpop.f32.mrf.mxu0
    %6822 = vmatprep.mubr.f32.mxu0 0.0
    %6823 = vmatmul.mubr.f32.gmra.mxu0 %v6621
    %v6824 = vpop.f32.mrf.mxu0
    %v6825 = vadd.f32 0.0, %v6824
    %v6826 = vpop.f32.mrf.mxu0
    %6827 = vmatprep.mubr.f32.mxu0 0.0
    %6828 = vmatmul.mubr.f32.gmra.mxu0 %v6624
    %v6829 = vpop.f32.mrf.mxu0
    %v6830 = vadd.f32 0.0, %v6829
    %v6831 = vpop.f32.mrf.mxu0
    %6832 = vmatprep.mubr.f32.mxu0 0.0
    %6833 = vmatmul.mubr.f32.gmra.mxu0 %v6627
    %v6834 = vpop.f32.mrf.mxu0
    %v6835 = vadd.f32 0.0, %v6834
    %v6836 = vpop.f32.mrf.mxu0
    %6837 = vmatprep.mubr.f32.mxu0 0.0
    %6838 = vmatmul.mubr.f32.gmra.mxu0 %v6630
    %v6839 = vpop.f32.mrf.mxu0
    %v6840 = vadd.f32 0.0, %v6839
    %v6841 = vpop.f32.mrf.mxu0
    %6842 = vmatprep.mubr.f32.mxu0 0.0
    %6843 = vmatmul.mubr.f32.gmra.mxu0 %v6633
    %v6844 = vpop.f32.mrf.mxu0
    %v6845 = vadd.f32 0.0, %v6844
    %v6846 = vpop.f32.mrf.mxu0
    %6847 = vmatprep.mubr.f32.mxu0 0.0
    %6848 = vmatmul.mubr.f32.gmra.mxu0 %v6636
    %v6849 = vpop.f32.mrf.mxu0
    %v6850 = vadd.f32 0.0, %v6849
    %v6851 = vpop.f32.mrf.mxu0
    %6852 = vmatprep.mubr.f32.mxu0 0.0
    %6853 = vmatmul.mubr.f32.gmra.mxu0 %v6639
    %v6854 = vpop.f32.mrf.mxu0
    %v6855 = vadd.f32 0.0, %v6854
    %v6856 = vpop.f32.mrf.mxu0
    %6857 = vmatprep.mubr.f32.mxu0 0.0
    %6858 = vmatmul.mubr.f32.gmra.mxu0 %v6642
    %v6859 = vpop.f32.mrf.mxu0
    %v6860 = vadd.f32 0.0, %v6859
    %v6861 = vpop.f32.mrf.mxu0
    %6862 = vmatprep.mubr.f32.mxu0 0.0
    %6863 = vmatmul.mubr.f32.gmra.mxu0 %v6645
    %v6864 = vpop.f32.mrf.mxu0
    %v6865 = vadd.f32 0.0, %v6864
    %v6866 = vpop.f32.mrf.mxu0
    %6867 = vmatprep.mubr.f32.mxu0 0.0
    %6868 = vmatmul.mubr.f32.gmra.mxu0 %v6648
    %v6869 = vpop.f32.mrf.mxu0
    %v6870 = vadd.f32 0.0, %v6869
    %v6871 = vpop.f32.mrf.mxu0
    %6872 = vmatprep.mubr.f32.mxu0 0.0
    %6873 = vmatmul.mubr.f32.gmra.mxu0 %v6651
    %v6874 = vpop.f32.mrf.mxu0
    %v6875 = vadd.f32 0.0, %v6874
    %v6876 = vpop.f32.mrf.mxu0
    %6877 = vmatprep.mubr.f32.mxu0 0.0
    %6878 = vmatmul.mubr.f32.gmra.mxu0 %v6654
    %v6879 = vpop.f32.mrf.mxu0
    %v6880 = vadd.f32 0.0, %v6879
    %v6881 = vpop.f32.mrf.mxu0
    %6882 = vmatprep.mubr.f32.mxu0 0.0
    %6883 = vmatmul.mubr.f32.gmra.mxu0 %v6657
    %v6884 = vpop.f32.mrf.mxu0
    %v6885 = vadd.f32 0.0, %v6884
    %v6886 = vpop.f32.mrf.mxu0
    %6887 = vmatprep.mubr.f32.mxu0 0.0
    %6888 = vmatmul.mubr.f32.gmra.mxu0 %v6660
    %v6889 = vpop.f32.mrf.mxu0
    %v6890 = vadd.f32 0.0, %v6889
    %v6891 = vpop.f32.mrf.mxu0
    %6892 = vmatprep.mubr.f32.mxu0 0.0
    %6893 = vmatmul.mubr.f32.gmra.mxu0 %v6663
    %v6894 = vpop.f32.mrf.mxu0
    %v6895 = vadd.f32 0.0, %v6894
    %v6896 = vpop.f32.mrf.mxu0
    %6897 = vmatprep.mubr.f32.mxu0 0.0
    %6898 = vmatmul.mubr.f32.gmra.mxu0 %v6666
    %v6899 = vpop.f32.mrf.mxu0
    %v6900 = vadd.f32 0.0, %v6899
    %v6901 = vpop.f32.mrf.mxu0
    %6902 = vmatprep.mubr.f32.mxu0 0.0
    %6903 = vmatmul.mubr.f32.gmra.mxu0 %v6669
    %v6904 = vpop.f32.mrf.mxu0
    %v6905 = vadd.f32 0.0, %v6904
    %v6906 = vpop.f32.mrf.mxu0
    %6907 = vmatprep.mubr.f32.mxu0 0.0
    %6908 = vmatmul.mubr.f32.gmra.mxu0 %v6672
    %v6909 = vpop.f32.mrf.mxu0
    %v6910 = vadd.f32 0.0, %v6909
    %v6911 = vpop.f32.mrf.mxu0
    %6912 = vmatprep.mubr.f32.mxu0 0.0
    %6913 = vmatmul.mubr.f32.gmra.mxu0 %v6675
    %v6914 = vpop.f32.mrf.mxu0
    %v6915 = vadd.f32 0.0, %v6914
    %v6916 = vpop.f32.mrf.mxu0
    %6917 = vmatprep.mubr.f32.mxu0 0.0
    %6918 = vmatmul.mubr.f32.gmra.mxu0 %v6678
    %v6919 = vpop.f32.mrf.mxu0
    %v6920 = vadd.f32 0.0, %v6919
    %v6921 = vpop.f32.mrf.mxu0
    %6922 = vmatprep.mubr.f32.mxu0 0.0
    %6923 = vmatmul.mubr.f32.gmra.mxu0 %v6681
    %v6924 = vpop.f32.mrf.mxu0
    %v6925 = vadd.f32 0.0, %v6924
    %v6926 = vpop.f32.mrf.mxu0
    %6927 = vdwg.mxu0
    %v6928 = vmax.f32 %v6750, 0.0
    %v6929 = vmax.f32 %v6755, 0.0
    %v6930 = vmax.f32 %v6760, 0.0
    %v6931 = vmax.f32 %v6765, 0.0
    %v6932 = vmax.f32 %v6770, 0.0
    %v6933 = vmax.f32 %v6775, 0.0
    %v6934 = vmax.f32 %v6780, 0.0
    %v6935 = vmax.f32 %v6785, 0.0
    %v6936 = vmax.f32 %v6790, 0.0
    %v6937 = vmax.f32 %v6795, 0.0
    %v6938 = vmax.f32 %v6800, 0.0
    %v6939 = vmax.f32 %v6805, 0.0
    %v6940 = vmax.f32 %v6810, 0.0
    %v6941 = vmax.f32 %v6815, 0.0
    %v6942 = vmax.f32 %v6820, 0.0
    %v6943 = vmax.f32 %v6825, 0.0
    %v6944 = vmax.f32 %v6830, 0.0
    %v6945 = vmax.f32 %v6835, 0.0
    %v6946 = vmax.f32 %v6840, 0.0
    %v6947 = vmax.f32 %v6845, 0.0
    %v6948 = vmax.f32 %v6850, 0.0
    %v6949 = vmax.f32 %v6855, 0.0
    %v6950 = vmax.f32 %v6860, 0.0
    %v6951 = vmax.f32 %v6865, 0.0
    %v6952 = vmax.f32 %v6870, 0.0
    %v6953 = vmax.f32 %v6875, 0.0
    %v6954 = vmax.f32 %v6880, 0.0
    %v6955 = vmax.f32 %v6885, 0.0
    %v6956 = vmax.f32 %v6890, 0.0
    %v6957 = vmax.f32 %v6895, 0.0
    %v6958 = vmax.f32 %v6900, 0.0
    %v6959 = vmax.f32 %v6905, 0.0
    %v6960 = vmax.f32 %v6910, 0.0
    %v6961 = vmax.f32 %v6915, 0.0
    %v6962 = vmax.f32 %v6920, 0.0
    %v6963 = vmax.f32 %v6925, 0.0
    %s6964 = scalar_lea.vmem %s4, 32
    %v6965 = vld [vmem:[%s6964] sm:$0xf]
    %v6967 = vsel %vm911, %v6928, 0
    %v6970 = vsel %vm911, %v6929, 0
    %v6973 = vsel %vm911, %v6930, 0
    %v6976 = vsel %vm911, %v6931, 0
    %v6979 = vsel %vm911, %v6932, 0
    %v6982 = vsel %vm911, %v6933, 0
    %v6985 = vsel %vm911, %v6934, 0
    %v6988 = vsel %vm911, %v6935, 0
    %v6991 = vsel %vm911, %v6936, 0
    %v6994 = vsel %vm911, %v6937, 0
    %v6997 = vsel %vm911, %v6938, 0
    %v7000 = vsel %vm911, %v6939, 0
    %v7003 = vsel %vm911, %v6940, 0
    %v7006 = vsel %vm911, %v6941, 0
    %v7009 = vsel %vm911, %v6942, 0
    %v7012 = vsel %vm911, %v6943, 0
    %v7015 = vsel %vm911, %v6944, 0
    %v7018 = vsel %vm911, %v6945, 0
    %v7021 = vsel %vm911, %v6946, 0
    %v7024 = vsel %vm911, %v6947, 0
    %v7027 = vsel %vm911, %v6948, 0
    %v7030 = vsel %vm911, %v6949, 0
    %v7033 = vsel %vm911, %v6950, 0
    %v7036 = vsel %vm911, %v6951, 0
    %v7039 = vsel %vm911, %v6952, 0
    %v7042 = vsel %vm911, %v6953, 0
    %v7045 = vsel %vm911, %v6954, 0
    %v7048 = vsel %vm911, %v6955, 0
    %v7051 = vsel %vm911, %v6956, 0
    %v7054 = vsel %vm911, %v6957, 0
    %v7057 = vsel %vm911, %v6958, 0
    %v7060 = vsel %vm911, %v6959, 0
    %v7063 = vsel %vm911, %v6960, 0
    %v7066 = vsel %vm911, %v6961, 0
    %v7069 = vsel %vm911, %v6962, 0
    %v7072 = vsel %vm911, %v6963, 0
    %v7075 = vsel %vm1020, %v6965, 0
    %7077 = vmatprep.subr.mxu0 0.0
    %7078 = vmatpush1.msra.mxu0 0.0
    %7079 = vmatprep.subr.mxu0 0.0
    %7080 = vmatpush1.msra.mxu0 0.0
    %7081 = vmatprep.subr.mxu0 0.0
    %7082 = vmatpush1.msra.mxu0 0.0
    %7083 = vmatprep.subr.mxu0 0.0
    %7084 = vmatpush1.msra.mxu0 0.0
    %7085 = vmatprep.subr.mxu0 0.0
    %7086 = vmatpush1.msra.mxu0 0.0
    %7087 = vmatprep.subr.mxu0 0.0
    %7088 = vmatpush1.msra.mxu0 0.0
    %7089 = vmatprep.subr.mxu0 0.0
    %7090 = vmatpush1.msra.mxu0 0.0
    %7091 = vmatprep.subr.mxu0 0.0
    %7092 = vmatpush1.msra.mxu0 0.0
    %7093 = vmatprep.subr.mxu0 0.0
    %7094 = vmatpush1.msra.mxu0 0.0
    %7095 = vmatprep.subr.mxu0 0.0
    %7096 = vmatpush1.msra.mxu0 0.0
    %7097 = vmatprep.subr.mxu0 0.0
    %7098 = vmatpush1.msra.mxu0 0.0
    %7099 = vmatprep.subr.mxu0 0.0
    %7100 = vmatpush1.msra.mxu0 0.0
    %7101 = vmatprep.subr.mxu0 0.0
    %7102 = vmatpush1.msra.mxu0 0.0
    %7103 = vmatprep.subr.mxu0 0.0
    %7104 = vmatpush1.msra.mxu0 0.0
    %7105 = vmatprep.subr.mxu0 0.0
    %7106 = vmatpush1.msra.mxu0 0.0
    %7107 = vmatprep.subr.mxu0 0.0
    %7108 = vmatpush1.msra.mxu0 %v7075
    %7109 = vmatprep.subr.mxu0 0.0
    %7110 = vmatpush2.msra.mxu0 0.0
    %7111 = vmatprep.subr.mxu0 0.0
    %7112 = vmatpush2.msra.mxu0 0.0
    %7113 = vmatprep.subr.mxu0 0.0
    %7114 = vmatpush2.msra.mxu0 0.0
    %7115 = vmatprep.subr.mxu0 0.0
    %7116 = vmatpush2.msra.mxu0 0.0
    %7117 = vmatprep.subr.mxu0 0.0
    %7118 = vmatpush2.msra.mxu0 0.0
    %7119 = vmatprep.subr.mxu0 0.0
    %7120 = vmatpush2.msra.mxu0 0.0
    %7121 = vmatprep.subr.mxu0 0.0
    %7122 = vmatpush2.msra.mxu0 0.0
    %7123 = vmatprep.subr.mxu0 0.0
    %7124 = vmatpush2.msra.mxu0 0.0
    %7125 = vmatprep.subr.mxu0 0.0
    %7126 = vmatpush2.msra.mxu0 0.0
    %7127 = vmatprep.subr.mxu0 0.0
    %7128 = vmatpush2.msra.mxu0 0.0
    %7129 = vmatprep.subr.mxu0 0.0
    %7130 = vmatpush2.msra.mxu0 0.0
    %7131 = vmatprep.subr.mxu0 0.0
    %7132 = vmatpush2.msra.mxu0 0.0
    %7133 = vmatprep.subr.mxu0 0.0
    %7134 = vmatpush2.msra.mxu0 0.0
    %7135 = vmatprep.subr.mxu0 0.0
    %7136 = vmatpush2.msra.mxu0 0.0
    %7137 = vmatprep.subr.mxu0 0.0
    %7138 = vmatpush2.msra.mxu0 0.0
    %7139 = vmatprep.subr.mxu0 0.0
    %7140 = vmatpush2.msra.mxu0 0.0
    %7141 = vmatprep.mubr.f32.mxu0 0.0
    %7142 = vmatmul.mubr.f32.gmra.mxu0 %v6967
    %v7143 = vpop.f32.mrf.mxu0
    %v7144 = vadd.f32 0.0, %v7143
    %v7145 = vpop.f32.mrf.mxu0
    %7146 = vmatprep.mubr.f32.mxu0 0.0
    %7147 = vmatmul.mubr.f32.gmra.mxu0 %v6970
    %v7148 = vpop.f32.mrf.mxu0
    %v7149 = vadd.f32 0.0, %v7148
    %v7150 = vpop.f32.mrf.mxu0
    %7151 = vmatprep.mubr.f32.mxu0 0.0
    %7152 = vmatmul.mubr.f32.gmra.mxu0 %v6973
    %v7153 = vpop.f32.mrf.mxu0
    %v7154 = vadd.f32 0.0, %v7153
    %v7155 = vpop.f32.mrf.mxu0
    %7156 = vmatprep.mubr.f32.mxu0 0.0
    %7157 = vmatmul.mubr.f32.gmra.mxu0 %v6976
    %v7158 = vpop.f32.mrf.mxu0
    %v7159 = vadd.f32 0.0, %v7158
    %v7160 = vpop.f32.mrf.mxu0
    %7161 = vmatprep.mubr.f32.mxu0 0.0
    %7162 = vmatmul.mubr.f32.gmra.mxu0 %v6979
    %v7163 = vpop.f32.mrf.mxu0
    %v7164 = vadd.f32 0.0, %v7163
    %v7165 = vpop.f32.mrf.mxu0
    %7166 = vmatprep.mubr.f32.mxu0 0.0
    %7167 = vmatmul.mubr.f32.gmra.mxu0 %v6982
    %v7168 = vpop.f32.mrf.mxu0
    %v7169 = vadd.f32 0.0, %v7168
    %v7170 = vpop.f32.mrf.mxu0
    %7171 = vmatprep.mubr.f32.mxu0 0.0
    %7172 = vmatmul.mubr.f32.gmra.mxu0 %v6985
    %v7173 = vpop.f32.mrf.mxu0
    %v7174 = vadd.f32 0.0, %v7173
    %v7175 = vpop.f32.mrf.mxu0
    %7176 = vmatprep.mubr.f32.mxu0 0.0
    %7177 = vmatmul.mubr.f32.gmra.mxu0 %v6988
    %v7178 = vpop.f32.mrf.mxu0
    %v7179 = vadd.f32 0.0, %v7178
    %v7180 = vpop.f32.mrf.mxu0
    %7181 = vmatprep.mubr.f32.mxu0 0.0
    %7182 = vmatmul.mubr.f32.gmra.mxu0 %v6991
    %v7183 = vpop.f32.mrf.mxu0
    %v7184 = vadd.f32 0.0, %v7183
    %v7185 = vpop.f32.mrf.mxu0
    %7186 = vmatprep.mubr.f32.mxu0 0.0
    %7187 = vmatmul.mubr.f32.gmra.mxu0 %v6994
    %v7188 = vpop.f32.mrf.mxu0
    %v7189 = vadd.f32 0.0, %v7188
    %v7190 = vpop.f32.mrf.mxu0
    %7191 = vmatprep.mubr.f32.mxu0 0.0
    %7192 = vmatmul.mubr.f32.gmra.mxu0 %v6997
    %v7193 = vpop.f32.mrf.mxu0
    %v7194 = vadd.f32 0.0, %v7193
    %v7195 = vpop.f32.mrf.mxu0
    %7196 = vmatprep.mubr.f32.mxu0 0.0
    %7197 = vmatmul.mubr.f32.gmra.mxu0 %v7000
    %v7198 = vpop.f32.mrf.mxu0
    %v7199 = vadd.f32 0.0, %v7198
    %v7200 = vpop.f32.mrf.mxu0
    %7201 = vmatprep.mubr.f32.mxu0 0.0
    %7202 = vmatmul.mubr.f32.gmra.mxu0 %v7003
    %v7203 = vpop.f32.mrf.mxu0
    %v7204 = vadd.f32 0.0, %v7203
    %v7205 = vpop.f32.mrf.mxu0
    %7206 = vmatprep.mubr.f32.mxu0 0.0
    %7207 = vmatmul.mubr.f32.gmra.mxu0 %v7006
    %v7208 = vpop.f32.mrf.mxu0
    %v7209 = vadd.f32 0.0, %v7208
    %v7210 = vpop.f32.mrf.mxu0
    %7211 = vmatprep.mubr.f32.mxu0 0.0
    %7212 = vmatmul.mubr.f32.gmra.mxu0 %v7009
    %v7213 = vpop.f32.mrf.mxu0
    %v7214 = vadd.f32 0.0, %v7213
    %v7215 = vpop.f32.mrf.mxu0
    %7216 = vmatprep.mubr.f32.mxu0 0.0
    %7217 = vmatmul.mubr.f32.gmra.mxu0 %v7012
    %v7218 = vpop.f32.mrf.mxu0
    %v7219 = vadd.f32 0.0, %v7218
    %v7220 = vpop.f32.mrf.mxu0
    %7221 = vmatprep.mubr.f32.mxu0 0.0
    %7222 = vmatmul.mubr.f32.gmra.mxu0 %v7015
    %v7223 = vpop.f32.mrf.mxu0
    %v7224 = vadd.f32 0.0, %v7223
    %v7225 = vpop.f32.mrf.mxu0
    %7226 = vmatprep.mubr.f32.mxu0 0.0
    %7227 = vmatmul.mubr.f32.gmra.mxu0 %v7018
    %v7228 = vpop.f32.mrf.mxu0
    %v7229 = vadd.f32 0.0, %v7228
    %v7230 = vpop.f32.mrf.mxu0
    %7231 = vmatprep.mubr.f32.mxu0 0.0
    %7232 = vmatmul.mubr.f32.gmra.mxu0 %v7021
    %v7233 = vpop.f32.mrf.mxu0
    %v7234 = vadd.f32 0.0, %v7233
    %v7235 = vpop.f32.mrf.mxu0
    %7236 = vmatprep.mubr.f32.mxu0 0.0
    %7237 = vmatmul.mubr.f32.gmra.mxu0 %v7024
    %v7238 = vpop.f32.mrf.mxu0
    %v7239 = vadd.f32 0.0, %v7238
    %v7240 = vpop.f32.mrf.mxu0
    %7241 = vmatprep.mubr.f32.mxu0 0.0
    %7242 = vmatmul.mubr.f32.gmra.mxu0 %v7027
    %v7243 = vpop.f32.mrf.mxu0
    %v7244 = vadd.f32 0.0, %v7243
    %v7245 = vpop.f32.mrf.mxu0
    %7246 = vmatprep.mubr.f32.mxu0 0.0
    %7247 = vmatmul.mubr.f32.gmra.mxu0 %v7030
    %v7248 = vpop.f32.mrf.mxu0
    %v7249 = vadd.f32 0.0, %v7248
    %v7250 = vpop.f32.mrf.mxu0
    %7251 = vmatprep.mubr.f32.mxu0 0.0
    %7252 = vmatmul.mubr.f32.gmra.mxu0 %v7033
    %v7253 = vpop.f32.mrf.mxu0
    %v7254 = vadd.f32 0.0, %v7253
    %v7255 = vpop.f32.mrf.mxu0
    %7256 = vmatprep.mubr.f32.mxu0 0.0
    %7257 = vmatmul.mubr.f32.gmra.mxu0 %v7036
    %v7258 = vpop.f32.mrf.mxu0
    %v7259 = vadd.f32 0.0, %v7258
    %v7260 = vpop.f32.mrf.mxu0
    %7261 = vmatprep.mubr.f32.mxu0 0.0
    %7262 = vmatmul.mubr.f32.gmra.mxu0 %v7039
    %v7263 = vpop.f32.mrf.mxu0
    %v7264 = vadd.f32 0.0, %v7263
    %v7265 = vpop.f32.mrf.mxu0
    %7266 = vmatprep.mubr.f32.mxu0 0.0
    %7267 = vmatmul.mubr.f32.gmra.mxu0 %v7042
    %v7268 = vpop.f32.mrf.mxu0
    %v7269 = vadd.f32 0.0, %v7268
    %v7270 = vpop.f32.mrf.mxu0
    %7271 = vmatprep.mubr.f32.mxu0 0.0
    %7272 = vmatmul.mubr.f32.gmra.mxu0 %v7045
    %v7273 = vpop.f32.mrf.mxu0
    %v7274 = vadd.f32 0.0, %v7273
    %v7275 = vpop.f32.mrf.mxu0
    %7276 = vmatprep.mubr.f32.mxu0 0.0
    %7277 = vmatmul.mubr.f32.gmra.mxu0 %v7048
    %v7278 = vpop.f32.mrf.mxu0
    %v7279 = vadd.f32 0.0, %v7278
    %v7280 = vpop.f32.mrf.mxu0
    %7281 = vmatprep.mubr.f32.mxu0 0.0
    %7282 = vmatmul.mubr.f32.gmra.mxu0 %v7051
    %v7283 = vpop.f32.mrf.mxu0
    %v7284 = vadd.f32 0.0, %v7283
    %v7285 = vpop.f32.mrf.mxu0
    %7286 = vmatprep.mubr.f32.mxu0 0.0
    %7287 = vmatmul.mubr.f32.gmra.mxu0 %v7054
    %v7288 = vpop.f32.mrf.mxu0
    %v7289 = vadd.f32 0.0, %v7288
    %v7290 = vpop.f32.mrf.mxu0
    %7291 = vmatprep.mubr.f32.mxu0 0.0
    %7292 = vmatmul.mubr.f32.gmra.mxu0 %v7057
    %v7293 = vpop.f32.mrf.mxu0
    %v7294 = vadd.f32 0.0, %v7293
    %v7295 = vpop.f32.mrf.mxu0
    %7296 = vmatprep.mubr.f32.mxu0 0.0
    %7297 = vmatmul.mubr.f32.gmra.mxu0 %v7060
    %v7298 = vpop.f32.mrf.mxu0
    %v7299 = vadd.f32 0.0, %v7298
    %v7300 = vpop.f32.mrf.mxu0
    %7301 = vmatprep.mubr.f32.mxu0 0.0
    %7302 = vmatmul.mubr.f32.gmra.mxu0 %v7063
    %v7303 = vpop.f32.mrf.mxu0
    %v7304 = vadd.f32 0.0, %v7303
    %v7305 = vpop.f32.mrf.mxu0
    %7306 = vmatprep.mubr.f32.mxu0 0.0
    %7307 = vmatmul.mubr.f32.gmra.mxu0 %v7066
    %v7308 = vpop.f32.mrf.mxu0
    %v7309 = vadd.f32 0.0, %v7308
    %v7310 = vpop.f32.mrf.mxu0
    %7311 = vmatprep.mubr.f32.mxu0 0.0
    %7312 = vmatmul.mubr.f32.gmra.mxu0 %v7069
    %v7313 = vpop.f32.mrf.mxu0
    %v7314 = vadd.f32 0.0, %v7313
    %v7315 = vpop.f32.mrf.mxu0
    %7316 = vmatprep.mubr.f32.mxu0 0.0
    %7317 = vmatmul.mubr.f32.gmra.mxu0 %v7072
    %v7318 = vpop.f32.mrf.mxu0
    %v7319 = vadd.f32 0.0, %v7318
    %v7320 = vpop.f32.mrf.mxu0
    %7321 = vdwg.mxu0
    %v7322 = vadd.f32 %v6503, %v7144
    %v7323 = vadd.f32 %v6504, %v7149
    %v7324 = vadd.f32 %v6505, %v7154
    %v7325 = vadd.f32 %v6506, %v7159
    %v7326 = vadd.f32 %v6507, %v7164
    %v7327 = vadd.f32 %v6508, %v7169
    %v7328 = vadd.f32 %v6509, %v7174
    %v7329 = vadd.f32 %v6510, %v7179
    %v7330 = vadd.f32 %v6511, %v7184
    %v7331 = vadd.f32 %v6512, %v7189
    %v7332 = vadd.f32 %v6513, %v7194
    %v7333 = vadd.f32 %v6514, %v7199
    %v7334 = vadd.f32 %v6515, %v7204
    %v7335 = vadd.f32 %v6516, %v7209
    %v7336 = vadd.f32 %v6517, %v7214
    %v7337 = vadd.f32 %v6518, %v7219
    %v7338 = vadd.f32 %v6519, %v7224
    %v7339 = vadd.f32 %v6520, %v7229
    %v7340 = vadd.f32 %v6521, %v7234
    %v7341 = vadd.f32 %v6522, %v7239
    %v7342 = vadd.f32 %v6523, %v7244
    %v7343 = vadd.f32 %v6524, %v7249
    %v7344 = vadd.f32 %v6525, %v7254
    %v7345 = vadd.f32 %v6526, %v7259
    %v7346 = vadd.f32 %v6527, %v7264
    %v7347 = vadd.f32 %v6528, %v7269
    %v7348 = vadd.f32 %v6529, %v7274
    %v7349 = vadd.f32 %v6530, %v7279
    %v7350 = vadd.f32 %v6531, %v7284
    %v7351 = vadd.f32 %v6532, %v7289
    %v7352 = vadd.f32 %v6533, %v7294
    %v7353 = vadd.f32 %v6534, %v7299
    %v7354 = vadd.f32 %v6535, %v7304
    %v7355 = vadd.f32 %v6536, %v7309
    %v7356 = vadd.f32 %v6537, %v7314
    %v7357 = vadd.f32 %v6538, %v7319
    %v7358 = vld [vmem:[%s5] sm:$0x1]
    %v7360 = vlaneseq
    %v7361 = vshrl.u32 %v7360, 7
    %v7362 = vsub.s32 0, %v7361
    %v7363 = vrot.slane %v7358, %v7362
    %v7365 = vadd.f32 %v7322, %v7363
    %v7366 = vadd.f32 %v7323, %v7363
    %v7367 = vadd.f32 %v7324, %v7363
    %v7368 = vadd.f32 %v7325, %v7363
    %v7369 = vadd.f32 %v7326, %v7363
    %v7370 = vadd.f32 %v7327, %v7363
    %v7371 = vadd.f32 %v7328, %v7363
    %v7372 = vadd.f32 %v7329, %v7363
    %v7373 = vadd.f32 %v7330, %v7363
    %v7374 = vadd.f32 %v7331, %v7363
    %v7375 = vadd.f32 %v7332, %v7363
    %v7376 = vadd.f32 %v7333, %v7363
    %v7377 = vadd.f32 %v7334, %v7363
    %v7378 = vadd.f32 %v7335, %v7363
    %v7379 = vadd.f32 %v7336, %v7363
    %v7380 = vadd.f32 %v7337, %v7363
    %v7381 = vadd.f32 %v7338, %v7363
    %v7382 = vadd.f32 %v7339, %v7363
    %v7383 = vadd.f32 %v7340, %v7363
    %v7384 = vadd.f32 %v7341, %v7363
    %v7385 = vadd.f32 %v7342, %v7363
    %v7386 = vadd.f32 %v7343, %v7363
    %v7387 = vadd.f32 %v7344, %v7363
    %v7388 = vadd.f32 %v7345, %v7363
    %v7389 = vadd.f32 %v7346, %v7363
    %v7390 = vadd.f32 %v7347, %v7363
    %v7391 = vadd.f32 %v7348, %v7363
    %v7392 = vadd.f32 %v7349, %v7363
    %v7393 = vadd.f32 %v7350, %v7363
    %v7394 = vadd.f32 %v7351, %v7363
    %v7395 = vadd.f32 %v7352, %v7363
    %v7396 = vadd.f32 %v7353, %v7363
    %v7397 = vadd.f32 %v7354, %v7363
    %v7398 = vadd.f32 %v7355, %v7363
    %v7399 = vadd.f32 %v7356, %v7363
    %v7400 = vadd.f32 %v7357, %v7363
    %v7401 = vld [vmem:[%s1] sm:$0xff]
    %v7402 = vld [vmem:[%s1 + $0x8] sm:$0xff]
    %v7403 = vld [vmem:[%s1 + $0x10] sm:$0xff]
    %v7404 = vld [vmem:[%s1 + $0x18] sm:$0xff]
    %v7405 = vld [vmem:[%s1 + $0x20] sm:$0xff]
    %v7406 = vld [vmem:[%s1 + $0x28] sm:$0xff]
    %v7407 = vld [vmem:[%s1 + $0x30] sm:$0xff]
    %v7408 = vld [vmem:[%s1 + $0x38] sm:$0xff]
    %v7409 = vld [vmem:[%s1 + $0x40] sm:$0xff]
    %v7410 = vld [vmem:[%s1 + $0x48] sm:$0xff]
    %v7411 = vld [vmem:[%s1 + $0x50] sm:$0xff]
    %v7412 = vld [vmem:[%s1 + $0x58] sm:$0xff]
    %v7413 = vld [vmem:[%s1 + $0x60] sm:$0xff]
    %v7414 = vld [vmem:[%s1 + $0x68] sm:$0xff]
    %v7415 = vld [vmem:[%s1 + $0x70] sm:$0xff]
    %v7416 = vld [vmem:[%s1 + $0x78] sm:$0xff]
    %v7417 = vld [vmem:[%s1 + $0x80] sm:$0xff]
    %v7418 = vld [vmem:[%s1 + $0x88] sm:$0xff]
    %v7419 = vld [vmem:[%s1 + $0x90] sm:$0xff]
    %v7420 = vld [vmem:[%s1 + $0x98] sm:$0xff]
    %v7421 = vld [vmem:[%s1 + $0xa0] sm:$0xff]
    %v7422 = vld [vmem:[%s1 + $0xa8] sm:$0xff]
    %v7423 = vld [vmem:[%s1 + $0xb0] sm:$0xff]
    %v7424 = vld [vmem:[%s1 + $0xb8] sm:$0xff]
    %v7425 = vld [vmem:[%s1 + $0xc0] sm:$0xff]
    %v7426 = vld [vmem:[%s1 + $0xc8] sm:$0xff]
    %v7427 = vld [vmem:[%s1 + $0xd0] sm:$0xff]
    %v7428 = vld [vmem:[%s1 + $0xd8] sm:$0xff]
    %v7429 = vld [vmem:[%s1 + $0xe0] sm:$0xff]
    %v7430 = vld [vmem:[%s1 + $0xe8] sm:$0xff]
    %v7431 = vld [vmem:[%s1 + $0xf0] sm:$0xff]
    %v7432 = vld [vmem:[%s1 + $0xf8] sm:$0xff]
    %v7433 = vld [vmem:[%s1 + $0x100] sm:$0xff]
    %v7434 = vld [vmem:[%s1 + $0x108] sm:$0xff]
    %v7435 = vld [vmem:[%s1 + $0x110] sm:$0xff]
    %v7436 = vld [vmem:[%s1 + $0x118] sm:$0xff]
    %7438 = vset.pattern.permute.xlu0 0
    %7439 = vperm.xlu0 %7438, %v7401
    %v7440 = vpop.permute.xlu0 %7439
    %7443 = vset.pattern.permute.xlu0 0
    %7444 = vperm.xlu0 %7443, %v7402
    %v7445 = vpop.permute.xlu0 %7444
    %7448 = vset.pattern.permute.xlu0 0
    %7449 = vperm.xlu0 %7448, %v7403
    %v7450 = vpop.permute.xlu0 %7449
    %7453 = vset.pattern.permute.xlu0 0
    %7454 = vperm.xlu0 %7453, %v7404
    %v7455 = vpop.permute.xlu0 %7454
    %7458 = vset.pattern.permute.xlu0 0
    %7459 = vperm.xlu0 %7458, %v7405
    %v7460 = vpop.permute.xlu0 %7459
    %7463 = vset.pattern.permute.xlu0 0
    %7464 = vperm.xlu0 %7463, %v7406
    %v7465 = vpop.permute.xlu0 %7464
    %7468 = vset.pattern.permute.xlu0 0
    %7469 = vperm.xlu0 %7468, %v7407
    %v7470 = vpop.permute.xlu0 %7469
    %7473 = vset.pattern.permute.xlu0 0
    %7474 = vperm.xlu0 %7473, %v7408
    %v7475 = vpop.permute.xlu0 %7474
    %7478 = vset.pattern.permute.xlu0 0
    %7479 = vperm.xlu0 %7478, %v7409
    %v7480 = vpop.permute.xlu0 %7479
    %7483 = vset.pattern.permute.xlu0 0
    %7484 = vperm.xlu0 %7483, %v7410
    %v7485 = vpop.permute.xlu0 %7484
    %7488 = vset.pattern.permute.xlu0 0
    %7489 = vperm.xlu0 %7488, %v7411
    %v7490 = vpop.permute.xlu0 %7489
    %7493 = vset.pattern.permute.xlu0 0
    %7494 = vperm.xlu0 %7493, %v7412
    %v7495 = vpop.permute.xlu0 %7494
    %7498 = vset.pattern.permute.xlu0 0
    %7499 = vperm.xlu0 %7498, %v7413
    %v7500 = vpop.permute.xlu0 %7499
    %7503 = vset.pattern.permute.xlu0 0
    %7504 = vperm.xlu0 %7503, %v7414
    %v7505 = vpop.permute.xlu0 %7504
    %7508 = vset.pattern.permute.xlu0 0
    %7509 = vperm.xlu0 %7508, %v7415
    %v7510 = vpop.permute.xlu0 %7509
    %7513 = vset.pattern.permute.xlu0 0
    %7514 = vperm.xlu0 %7513, %v7416
    %v7515 = vpop.permute.xlu0 %7514
    %7518 = vset.pattern.permute.xlu0 0
    %7519 = vperm.xlu0 %7518, %v7417
    %v7520 = vpop.permute.xlu0 %7519
    %7523 = vset.pattern.permute.xlu0 0
    %7524 = vperm.xlu0 %7523, %v7418
    %v7525 = vpop.permute.xlu0 %7524
    %7528 = vset.pattern.permute.xlu0 0
    %7529 = vperm.xlu0 %7528, %v7419
    %v7530 = vpop.permute.xlu0 %7529
    %7533 = vset.pattern.permute.xlu0 0
    %7534 = vperm.xlu0 %7533, %v7420
    %v7535 = vpop.permute.xlu0 %7534
    %7538 = vset.pattern.permute.xlu0 0
    %7539 = vperm.xlu0 %7538, %v7421
    %v7540 = vpop.permute.xlu0 %7539
    %7543 = vset.pattern.permute.xlu0 0
    %7544 = vperm.xlu0 %7543, %v7422
    %v7545 = vpop.permute.xlu0 %7544
    %7548 = vset.pattern.permute.xlu0 0
    %7549 = vperm.xlu0 %7548, %v7423
    %v7550 = vpop.permute.xlu0 %7549
    %7553 = vset.pattern.permute.xlu0 0
    %7554 = vperm.xlu0 %7553, %v7424
    %v7555 = vpop.permute.xlu0 %7554
    %7558 = vset.pattern.permute.xlu0 0
    %7559 = vperm.xlu0 %7558, %v7425
    %v7560 = vpop.permute.xlu0 %7559
    %7563 = vset.pattern.permute.xlu0 0
    %7564 = vperm.xlu0 %7563, %v7426
    %v7565 = vpop.permute.xlu0 %7564
    %7568 = vset.pattern.permute.xlu0 0
    %7569 = vperm.xlu0 %7568, %v7427
    %v7570 = vpop.permute.xlu0 %7569
    %7573 = vset.pattern.permute.xlu0 0
    %7574 = vperm.xlu0 %7573, %v7428
    %v7575 = vpop.permute.xlu0 %7574
    %7578 = vset.pattern.permute.xlu0 0
    %7579 = vperm.xlu0 %7578, %v7429
    %v7580 = vpop.permute.xlu0 %7579
    %7583 = vset.pattern.permute.xlu0 0
    %7584 = vperm.xlu0 %7583, %v7430
    %v7585 = vpop.permute.xlu0 %7584
    %7588 = vset.pattern.permute.xlu0 0
    %7589 = vperm.xlu0 %7588, %v7431
    %v7590 = vpop.permute.xlu0 %7589
    %7593 = vset.pattern.permute.xlu0 0
    %7594 = vperm.xlu0 %7593, %v7432
    %v7595 = vpop.permute.xlu0 %7594
    %7598 = vset.pattern.permute.xlu0 0
    %7599 = vperm.xlu0 %7598, %v7433
    %v7600 = vpop.permute.xlu0 %7599
    %7603 = vset.pattern.permute.xlu0 0
    %7604 = vperm.xlu0 %7603, %v7434
    %v7605 = vpop.permute.xlu0 %7604
    %7608 = vset.pattern.permute.xlu0 0
    %7609 = vperm.xlu0 %7608, %v7435
    %v7610 = vpop.permute.xlu0 %7609
    %7613 = vset.pattern.permute.xlu0 0
    %7614 = vperm.xlu0 %7613, %v7436
    %v7615 = vpop.permute.xlu0 %7614
    %v7617 = vadd.f32 %v7365, %v7440
    %v7618 = vadd.f32 %v7366, %v7445
    %v7619 = vadd.f32 %v7367, %v7450
    %v7620 = vadd.f32 %v7368, %v7455
    %v7621 = vadd.f32 %v7369, %v7460
    %v7622 = vadd.f32 %v7370, %v7465
    %v7623 = vadd.f32 %v7371, %v7470
    %v7624 = vadd.f32 %v7372, %v7475
    %v7625 = vadd.f32 %v7373, %v7480
    %v7626 = vadd.f32 %v7374, %v7485
    %v7627 = vadd.f32 %v7375, %v7490
    %v7628 = vadd.f32 %v7376, %v7495
    %v7629 = vadd.f32 %v7377, %v7500
    %v7630 = vadd.f32 %v7378, %v7505
    %v7631 = vadd.f32 %v7379, %v7510
    %v7632 = vadd.f32 %v7380, %v7515
    %v7633 = vadd.f32 %v7381, %v7520
    %v7634 = vadd.f32 %v7382, %v7525
    %v7635 = vadd.f32 %v7383, %v7530
    %v7636 = vadd.f32 %v7384, %v7535
    %v7637 = vadd.f32 %v7385, %v7540
    %v7638 = vadd.f32 %v7386, %v7545
    %v7639 = vadd.f32 %v7387, %v7550
    %v7640 = vadd.f32 %v7388, %v7555
    %v7641 = vadd.f32 %v7389, %v7560
    %v7642 = vadd.f32 %v7390, %v7565
    %v7643 = vadd.f32 %v7391, %v7570
    %v7644 = vadd.f32 %v7392, %v7575
    %v7645 = vadd.f32 %v7393, %v7580
    %v7646 = vadd.f32 %v7394, %v7585
    %v7647 = vadd.f32 %v7395, %v7590
    %v7648 = vadd.f32 %v7396, %v7595
    %v7649 = vadd.f32 %v7397, %v7600
    %v7650 = vadd.f32 %v7398, %v7605
    %v7651 = vadd.f32 %v7399, %v7610
    %v7652 = vadd.f32 %v7400, %v7615
    %v7653 = vmax.f32 %v7617, 0.0
    %v7654 = vmax.f32 %v7618, 0.0
    %v7655 = vmax.f32 %v7619, 0.0
    %v7656 = vmax.f32 %v7620, 0.0
    %v7657 = vmax.f32 %v7621, 0.0
    %v7658 = vmax.f32 %v7622, 0.0
    %v7659 = vmax.f32 %v7623, 0.0
    %v7660 = vmax.f32 %v7624, 0.0
    %v7661 = vmax.f32 %v7625, 0.0
    %v7662 = vmax.f32 %v7626, 0.0
    %v7663 = vmax.f32 %v7627, 0.0
    %v7664 = vmax.f32 %v7628, 0.0
    %v7665 = vmax.f32 %v7629, 0.0
    %v7666 = vmax.f32 %v7630, 0.0
    %v7667 = vmax.f32 %v7631, 0.0
    %v7668 = vmax.f32 %v7632, 0.0
    %v7669 = vmax.f32 %v7633, 0.0
    %v7670 = vmax.f32 %v7634, 0.0
    %v7671 = vmax.f32 %v7635, 0.0
    %v7672 = vmax.f32 %v7636, 0.0
    %v7673 = vmax.f32 %v7637, 0.0
    %v7674 = vmax.f32 %v7638, 0.0
    %v7675 = vmax.f32 %v7639, 0.0
    %v7676 = vmax.f32 %v7640, 0.0
    %v7677 = vmax.f32 %v7641, 0.0
    %v7678 = vmax.f32 %v7642, 0.0
    %v7679 = vmax.f32 %v7643, 0.0
    %v7680 = vmax.f32 %v7644, 0.0
    %v7681 = vmax.f32 %v7645, 0.0
    %v7682 = vmax.f32 %v7646, 0.0
    %v7683 = vmax.f32 %v7647, 0.0
    %v7684 = vmax.f32 %v7648, 0.0
    %v7685 = vmax.f32 %v7649, 0.0
    %v7686 = vmax.f32 %v7650, 0.0
    %v7687 = vmax.f32 %v7651, 0.0
    %v7688 = vmax.f32 %v7652, 0.0
    %v7689 = vld [vmem:[%s2] sm:$0xff]
    %v7690 = vld [vmem:[%s2 + $0x8] sm:$0xff]
    %v7691 = vld [vmem:[%s2 + $0x10] sm:$0xff]
    %v7692 = vld [vmem:[%s2 + $0x18] sm:$0xff]
    %v7693 = vld [vmem:[%s2 + $0x20] sm:$0xff]
    %v7694 = vld [vmem:[%s2 + $0x28] sm:$0xff]
    %v7695 = vld [vmem:[%s2 + $0x30] sm:$0xff]
    %v7696 = vld [vmem:[%s2 + $0x38] sm:$0xff]
    %v7697 = vld [vmem:[%s2 + $0x40] sm:$0xff]
    %v7698 = vld [vmem:[%s2 + $0x48] sm:$0xff]
    %v7699 = vld [vmem:[%s2 + $0x50] sm:$0xff]
    %v7700 = vld [vmem:[%s2 + $0x58] sm:$0xff]
    %v7701 = vld [vmem:[%s2 + $0x60] sm:$0xff]
    %v7702 = vld [vmem:[%s2 + $0x68] sm:$0xff]
    %v7703 = vld [vmem:[%s2 + $0x70] sm:$0xff]
    %v7704 = vld [vmem:[%s2 + $0x78] sm:$0xff]
    %v7705 = vld [vmem:[%s2 + $0x80] sm:$0xff]
    %v7706 = vld [vmem:[%s2 + $0x88] sm:$0xff]
    %v7707 = vld [vmem:[%s2 + $0x90] sm:$0xff]
    %v7708 = vld [vmem:[%s2 + $0x98] sm:$0xff]
    %v7709 = vld [vmem:[%s2 + $0xa0] sm:$0xff]
    %v7710 = vld [vmem:[%s2 + $0xa8] sm:$0xff]
    %v7711 = vld [vmem:[%s2 + $0xb0] sm:$0xff]
    %v7712 = vld [vmem:[%s2 + $0xb8] sm:$0xff]
    %v7713 = vld [vmem:[%s2 + $0xc0] sm:$0xff]
    %v7714 = vld [vmem:[%s2 + $0xc8] sm:$0xff]
    %v7715 = vld [vmem:[%s2 + $0xd0] sm:$0xff]
    %v7716 = vld [vmem:[%s2 + $0xd8] sm:$0xff]
    %v7717 = vld [vmem:[%s2 + $0xe0] sm:$0xff]
    %v7718 = vld [vmem:[%s2 + $0xe8] sm:$0xff]
    %v7719 = vld [vmem:[%s2 + $0xf0] sm:$0xff]
    %v7720 = vld [vmem:[%s2 + $0xf8] sm:$0xff]
    %v7721 = vld [vmem:[%s2 + $0x100] sm:$0xff]
    %v7722 = vld [vmem:[%s2 + $0x108] sm:$0xff]
    %v7723 = vld [vmem:[%s2 + $0x110] sm:$0xff]
    %v7724 = vld [vmem:[%s2 + $0x118] sm:$0xff]
    %v7725 = vsub.f32 %v7689, 1.0
    %v7726 = vsub.f32 %v7690, 1.0
    %v7727 = vsub.f32 %v7691, 1.0
    %v7728 = vsub.f32 %v7692, 1.0
    %v7729 = vsub.f32 %v7693, 1.0
    %v7730 = vsub.f32 %v7694, 1.0
    %v7731 = vsub.f32 %v7695, 1.0
    %v7732 = vsub.f32 %v7696, 1.0
    %v7733 = vsub.f32 %v7697, 1.0
    %v7734 = vsub.f32 %v7698, 1.0
    %v7735 = vsub.f32 %v7699, 1.0
    %v7736 = vsub.f32 %v7700, 1.0
    %v7737 = vsub.f32 %v7701, 1.0
    %v7738 = vsub.f32 %v7702, 1.0
    %v7739 = vsub.f32 %v7703, 1.0
    %v7740 = vsub.f32 %v7704, 1.0
    %v7741 = vsub.f32 %v7705, 1.0
    %v7742 = vsub.f32 %v7706, 1.0
    %v7743 = vsub.f32 %v7707, 1.0
    %v7744 = vsub.f32 %v7708, 1.0
    %v7745 = vsub.f32 %v7709, 1.0
    %v7746 = vsub.f32 %v7710, 1.0
    %v7747 = vsub.f32 %v7711, 1.0
    %v7748 = vsub.f32 %v7712, 1.0
    %v7749 = vsub.f32 %v7713, 1.0
    %v7750 = vsub.f32 %v7714, 1.0
    %v7751 = vsub.f32 %v7715, 1.0
    %v7752 = vsub.f32 %v7716, 1.0
    %v7753 = vsub.f32 %v7717, 1.0
    %v7754 = vsub.f32 %v7718, 1.0
    %v7755 = vsub.f32 %v7719, 1.0
    %v7756 = vsub.f32 %v7720, 1.0
    %v7757 = vsub.f32 %v7721, 1.0
    %v7758 = vsub.f32 %v7722, 1.0
    %v7759 = vsub.f32 %v7723, 1.0
    %v7760 = vsub.f32 %v7724, 1.0
    %v7761 = vmul.f32 %v7725, 1e+30
    %v7762 = vmul.f32 %v7726, 1e+30
    %v7763 = vmul.f32 %v7727, 1e+30
    %v7764 = vmul.f32 %v7728, 1e+30
    %v7765 = vmul.f32 %v7729, 1e+30
    %v7766 = vmul.f32 %v7730, 1e+30
    %v7767 = vmul.f32 %v7731, 1e+30
    %v7768 = vmul.f32 %v7732, 1e+30
    %v7769 = vmul.f32 %v7733, 1e+30
    %v7770 = vmul.f32 %v7734, 1e+30
    %v7771 = vmul.f32 %v7735, 1e+30
    %v7772 = vmul.f32 %v7736, 1e+30
    %v7773 = vmul.f32 %v7737, 1e+30
    %v7774 = vmul.f32 %v7738, 1e+30
    %v7775 = vmul.f32 %v7739, 1e+30
    %v7776 = vmul.f32 %v7740, 1e+30
    %v7777 = vmul.f32 %v7741, 1e+30
    %v7778 = vmul.f32 %v7742, 1e+30
    %v7779 = vmul.f32 %v7743, 1e+30
    %v7780 = vmul.f32 %v7744, 1e+30
    %v7781 = vmul.f32 %v7745, 1e+30
    %v7782 = vmul.f32 %v7746, 1e+30
    %v7783 = vmul.f32 %v7747, 1e+30
    %v7784 = vmul.f32 %v7748, 1e+30
    %v7785 = vmul.f32 %v7749, 1e+30
    %v7786 = vmul.f32 %v7750, 1e+30
    %v7787 = vmul.f32 %v7751, 1e+30
    %v7788 = vmul.f32 %v7752, 1e+30
    %v7789 = vmul.f32 %v7753, 1e+30
    %v7790 = vmul.f32 %v7754, 1e+30
    %v7791 = vmul.f32 %v7755, 1e+30
    %v7792 = vmul.f32 %v7756, 1e+30
    %v7793 = vmul.f32 %v7757, 1e+30
    %v7794 = vmul.f32 %v7758, 1e+30
    %v7795 = vmul.f32 %v7759, 1e+30
    %v7796 = vmul.f32 %v7760, 1e+30
    %7798 = vset.pattern.permute.xlu0 0
    %7799 = vperm.xlu0 %7798, %v7761
    %v7800 = vpop.permute.xlu0 %7799
    %7803 = vset.pattern.permute.xlu0 0
    %7804 = vperm.xlu0 %7803, %v7762
    %v7805 = vpop.permute.xlu0 %7804
    %7808 = vset.pattern.permute.xlu0 0
    %7809 = vperm.xlu0 %7808, %v7763
    %v7810 = vpop.permute.xlu0 %7809
    %7813 = vset.pattern.permute.xlu0 0
    %7814 = vperm.xlu0 %7813, %v7764
    %v7815 = vpop.permute.xlu0 %7814
    %7818 = vset.pattern.permute.xlu0 0
    %7819 = vperm.xlu0 %7818, %v7765
    %v7820 = vpop.permute.xlu0 %7819
    %7823 = vset.pattern.permute.xlu0 0
    %7824 = vperm.xlu0 %7823, %v7766
    %v7825 = vpop.permute.xlu0 %7824
    %7828 = vset.pattern.permute.xlu0 0
    %7829 = vperm.xlu0 %7828, %v7767
    %v7830 = vpop.permute.xlu0 %7829
    %7833 = vset.pattern.permute.xlu0 0
    %7834 = vperm.xlu0 %7833, %v7768
    %v7835 = vpop.permute.xlu0 %7834
    %7838 = vset.pattern.permute.xlu0 0
    %7839 = vperm.xlu0 %7838, %v7769
    %v7840 = vpop.permute.xlu0 %7839
    %7843 = vset.pattern.permute.xlu0 0
    %7844 = vperm.xlu0 %7843, %v7770
    %v7845 = vpop.permute.xlu0 %7844
    %7848 = vset.pattern.permute.xlu0 0
    %7849 = vperm.xlu0 %7848, %v7771
    %v7850 = vpop.permute.xlu0 %7849
    %7853 = vset.pattern.permute.xlu0 0
    %7854 = vperm.xlu0 %7853, %v7772
    %v7855 = vpop.permute.xlu0 %7854
    %7858 = vset.pattern.permute.xlu0 0
    %7859 = vperm.xlu0 %7858, %v7773
    %v7860 = vpop.permute.xlu0 %7859
    %7863 = vset.pattern.permute.xlu0 0
    %7864 = vperm.xlu0 %7863, %v7774
    %v7865 = vpop.permute.xlu0 %7864
    %7868 = vset.pattern.permute.xlu0 0
    %7869 = vperm.xlu0 %7868, %v7775
    %v7870 = vpop.permute.xlu0 %7869
    %7873 = vset.pattern.permute.xlu0 0
    %7874 = vperm.xlu0 %7873, %v7776
    %v7875 = vpop.permute.xlu0 %7874
    %7878 = vset.pattern.permute.xlu0 0
    %7879 = vperm.xlu0 %7878, %v7777
    %v7880 = vpop.permute.xlu0 %7879
    %7883 = vset.pattern.permute.xlu0 0
    %7884 = vperm.xlu0 %7883, %v7778
    %v7885 = vpop.permute.xlu0 %7884
    %7888 = vset.pattern.permute.xlu0 0
    %7889 = vperm.xlu0 %7888, %v7779
    %v7890 = vpop.permute.xlu0 %7889
    %7893 = vset.pattern.permute.xlu0 0
    %7894 = vperm.xlu0 %7893, %v7780
    %v7895 = vpop.permute.xlu0 %7894
    %7898 = vset.pattern.permute.xlu0 0
    %7899 = vperm.xlu0 %7898, %v7781
    %v7900 = vpop.permute.xlu0 %7899
    %7903 = vset.pattern.permute.xlu0 0
    %7904 = vperm.xlu0 %7903, %v7782
    %v7905 = vpop.permute.xlu0 %7904
    %7908 = vset.pattern.permute.xlu0 0
    %7909 = vperm.xlu0 %7908, %v7783
    %v7910 = vpop.permute.xlu0 %7909
    %7913 = vset.pattern.permute.xlu0 0
    %7914 = vperm.xlu0 %7913, %v7784
    %v7915 = vpop.permute.xlu0 %7914
    %7918 = vset.pattern.permute.xlu0 0
    %7919 = vperm.xlu0 %7918, %v7785
    %v7920 = vpop.permute.xlu0 %7919
    %7923 = vset.pattern.permute.xlu0 0
    %7924 = vperm.xlu0 %7923, %v7786
    %v7925 = vpop.permute.xlu0 %7924
    %7928 = vset.pattern.permute.xlu0 0
    %7929 = vperm.xlu0 %7928, %v7787
    %v7930 = vpop.permute.xlu0 %7929
    %7933 = vset.pattern.permute.xlu0 0
    %7934 = vperm.xlu0 %7933, %v7788
    %v7935 = vpop.permute.xlu0 %7934
    %7938 = vset.pattern.permute.xlu0 0
    %7939 = vperm.xlu0 %7938, %v7789
    %v7940 = vpop.permute.xlu0 %7939
    %7943 = vset.pattern.permute.xlu0 0
    %7944 = vperm.xlu0 %7943, %v7790
    %v7945 = vpop.permute.xlu0 %7944
    %7948 = vset.pattern.permute.xlu0 0
    %7949 = vperm.xlu0 %7948, %v7791
    %v7950 = vpop.permute.xlu0 %7949
    %7953 = vset.pattern.permute.xlu0 0
    %7954 = vperm.xlu0 %7953, %v7792
    %v7955 = vpop.permute.xlu0 %7954
    %7958 = vset.pattern.permute.xlu0 0
    %7959 = vperm.xlu0 %7958, %v7793
    %v7960 = vpop.permute.xlu0 %7959
    %7963 = vset.pattern.permute.xlu0 0
    %7964 = vperm.xlu0 %7963, %v7794
    %v7965 = vpop.permute.xlu0 %7964
    %7968 = vset.pattern.permute.xlu0 0
    %7969 = vperm.xlu0 %7968, %v7795
    %v7970 = vpop.permute.xlu0 %7969
    %7973 = vset.pattern.permute.xlu0 0
    %7974 = vperm.xlu0 %7973, %v7796
    %v7975 = vpop.permute.xlu0 %7974
    %v7977 = vadd.f32 %v7653, %v7800
    %v7978 = vadd.f32 %v7654, %v7805
    %v7979 = vadd.f32 %v7655, %v7810
    %v7980 = vadd.f32 %v7656, %v7815
    %v7981 = vadd.f32 %v7657, %v7820
    %v7982 = vadd.f32 %v7658, %v7825
    %v7983 = vadd.f32 %v7659, %v7830
    %v7984 = vadd.f32 %v7660, %v7835
    %v7985 = vadd.f32 %v7661, %v7840
    %v7986 = vadd.f32 %v7662, %v7845
    %v7987 = vadd.f32 %v7663, %v7850
    %v7988 = vadd.f32 %v7664, %v7855
    %v7989 = vadd.f32 %v7665, %v7860
    %v7990 = vadd.f32 %v7666, %v7865
    %v7991 = vadd.f32 %v7667, %v7870
    %v7992 = vadd.f32 %v7668, %v7875
    %v7993 = vadd.f32 %v7669, %v7880
    %v7994 = vadd.f32 %v7670, %v7885
    %v7995 = vadd.f32 %v7671, %v7890
    %v7996 = vadd.f32 %v7672, %v7895
    %v7997 = vadd.f32 %v7673, %v7900
    %v7998 = vadd.f32 %v7674, %v7905
    %v7999 = vadd.f32 %v7675, %v7910
    %v8000 = vadd.f32 %v7676, %v7915
    %v8001 = vadd.f32 %v7677, %v7920
    %v8002 = vadd.f32 %v7678, %v7925
    %v8003 = vadd.f32 %v7679, %v7930
    %v8004 = vadd.f32 %v7680, %v7935
    %v8005 = vadd.f32 %v7681, %v7940
    %v8006 = vadd.f32 %v7682, %v7945
    %v8007 = vadd.f32 %v7683, %v7950
    %v8008 = vadd.f32 %v7684, %v7955
    %v8009 = vadd.f32 %v7685, %v7960
    %v8010 = vadd.f32 %v7686, %v7965
    %v8011 = vadd.f32 %v7687, %v7970
    %v8012 = vadd.f32 %v7688, %v7975
    %v8013 = vmax.f32 %v7977, %v7981
    %v8014 = vmax.f32 %v7978, %v7982
    %v8015 = vmax.f32 %v7979, %v7983
    %v8016 = vmax.f32 %v7980, %v7984
    %v8017 = vmax.f32 %v8013, %v7985
    %v8018 = vmax.f32 %v8014, %v7986
    %v8019 = vmax.f32 %v8015, %v7987
    %v8020 = vmax.f32 %v8016, %v7988
    %v8021 = vmax.f32 %v8017, %v7989
    %v8022 = vmax.f32 %v8018, %v7990
    %v8023 = vmax.f32 %v8019, %v7991
    %v8024 = vmax.f32 %v8020, %v7992
    %v8025 = vmax.f32 %v8021, %v7993
    %v8026 = vmax.f32 %v8022, %v7994
    %v8027 = vmax.f32 %v8023, %v7995
    %v8028 = vmax.f32 %v8024, %v7996
    %v8029 = vmax.f32 %v8025, %v7997
    %v8030 = vmax.f32 %v8026, %v7998
    %v8031 = vmax.f32 %v8027, %v7999
    %v8032 = vmax.f32 %v8028, %v8000
    %v8033 = vmax.f32 %v8029, %v8001
    %v8034 = vmax.f32 %v8030, %v8002
    %v8035 = vmax.f32 %v8031, %v8003
    %v8036 = vmax.f32 %v8032, %v8004
    %v8037 = vmax.f32 %v8033, %v8005
    %v8038 = vmax.f32 %v8034, %v8006
    %v8039 = vmax.f32 %v8035, %v8007
    %v8040 = vmax.f32 %v8036, %v8008
    %v8041 = vmax.f32 %v8037, %v8009
    %v8042 = vmax.f32 %v8038, %v8010
    %v8043 = vmax.f32 %v8039, %v8011
    %v8044 = vmax.f32 %v8040, %v8012
    %v8045 = vld [vmem:[%s6] sm:$0xff]
    %v8046 = vld [vmem:[%s6 + $0x8] sm:$0xff]
    %v8047 = vld [vmem:[%s7] sm:$0x1]
    %v8049 = vlaneseq
    %v8050 = vshrl.u32 %v8049, 7
    %v8051 = vsub.s32 0, %v8050
    %v8052 = vrot.slane %v8047, %v8051
    %vm8054 = vcmask 130048
    %v8056 = vsel %vm8054, %v7653, 0
    %v8059 = vsel %vm8054, %v7654, 0
    %v8062 = vsel %vm8054, %v7655, 0
    %v8065 = vsel %vm8054, %v7656, 0
    %v8068 = vsel %vm8054, %v7657, 0
    %v8071 = vsel %vm8054, %v7658, 0
    %v8074 = vsel %vm8054, %v7659, 0
    %v8077 = vsel %vm8054, %v7660, 0
    %v8080 = vsel %vm8054, %v7661, 0
    %v8083 = vsel %vm8054, %v7662, 0
    %v8086 = vsel %vm8054, %v7663, 0
    %v8089 = vsel %vm8054, %v7664, 0
    %v8092 = vsel %vm8054, %v7665, 0
    %v8095 = vsel %vm8054, %v7666, 0
    %v8098 = vsel %vm8054, %v7667, 0
    %v8101 = vsel %vm8054, %v7668, 0
    %v8104 = vsel %vm8054, %v7669, 0
    %v8107 = vsel %vm8054, %v7670, 0
    %v8110 = vsel %vm8054, %v7671, 0
    %v8113 = vsel %vm8054, %v7672, 0
    %v8116 = vsel %vm8054, %v7673, 0
    %v8119 = vsel %vm8054, %v7674, 0
    %v8122 = vsel %vm8054, %v7675, 0
    %v8125 = vsel %vm8054, %v7676, 0
    %v8128 = vsel %vm8054, %v7677, 0
    %v8131 = vsel %vm8054, %v7678, 0
    %v8134 = vsel %vm8054, %v7679, 0
    %v8137 = vsel %vm8054, %v7680, 0
    %v8140 = vsel %vm8054, %v7681, 0
    %v8143 = vsel %vm8054, %v7682, 0
    %v8146 = vsel %vm8054, %v7683, 0
    %v8149 = vsel %vm8054, %v7684, 0
    %v8152 = vsel %vm8054, %v7685, 0
    %v8155 = vsel %vm8054, %v7686, 0
    %v8158 = vsel %vm8054, %v7687, 0
    %v8161 = vsel %vm8054, %v7688, 0
    %8163 = vmatprep.subr.mxu0 0.0
    %8164 = vmatpush1.msra.mxu0 0.0
    %8165 = vmatprep.subr.mxu0 0.0
    %8166 = vmatpush1.msra.mxu0 0.0
    %8167 = vmatprep.subr.mxu0 0.0
    %8168 = vmatpush1.msra.mxu0 0.0
    %8169 = vmatprep.subr.mxu0 0.0
    %8170 = vmatpush1.msra.mxu0 0.0
    %8171 = vmatprep.subr.mxu0 0.0
    %8172 = vmatpush1.msra.mxu0 0.0
    %8173 = vmatprep.subr.mxu0 0.0
    %8174 = vmatpush1.msra.mxu0 0.0
    %8175 = vmatprep.subr.mxu0 0.0
    %8176 = vmatpush1.msra.mxu0 0.0
    %8177 = vmatprep.subr.mxu0 0.0
    %8178 = vmatpush1.msra.mxu0 0.0
    %8179 = vmatprep.subr.mxu0 0.0
    %8180 = vmatpush1.msra.mxu0 0.0
    %8181 = vmatprep.subr.mxu0 0.0
    %8182 = vmatpush1.msra.mxu0 0.0
    %8183 = vmatprep.subr.mxu0 0.0
    %8184 = vmatpush1.msra.mxu0 0.0
    %8185 = vmatprep.subr.mxu0 0.0
    %8186 = vmatpush1.msra.mxu0 0.0
    %8187 = vmatprep.subr.mxu0 0.0
    %8188 = vmatpush1.msra.mxu0 0.0
    %8189 = vmatprep.subr.mxu0 0.0
    %8190 = vmatpush1.msra.mxu0 0.0
    %8191 = vmatprep.subr.mxu0 0.0
    %8192 = vmatpush1.msra.mxu0 %v8046
    %8193 = vmatprep.subr.mxu0 0.0
    %8194 = vmatpush1.msra.mxu0 %v8045
    %8195 = vmatprep.subr.mxu0 0.0
    %8196 = vmatpush2.msra.mxu0 0.0
    %8197 = vmatprep.subr.mxu0 0.0
    %8198 = vmatpush2.msra.mxu0 0.0
    %8199 = vmatprep.subr.mxu0 0.0
    %8200 = vmatpush2.msra.mxu0 0.0
    %8201 = vmatprep.subr.mxu0 0.0
    %8202 = vmatpush2.msra.mxu0 0.0
    %8203 = vmatprep.subr.mxu0 0.0
    %8204 = vmatpush2.msra.mxu0 0.0
    %8205 = vmatprep.subr.mxu0 0.0
    %8206 = vmatpush2.msra.mxu0 0.0
    %8207 = vmatprep.subr.mxu0 0.0
    %8208 = vmatpush2.msra.mxu0 0.0
    %8209 = vmatprep.subr.mxu0 0.0
    %8210 = vmatpush2.msra.mxu0 0.0
    %8211 = vmatprep.subr.mxu0 0.0
    %8212 = vmatpush2.msra.mxu0 0.0
    %8213 = vmatprep.subr.mxu0 0.0
    %8214 = vmatpush2.msra.mxu0 0.0
    %8215 = vmatprep.subr.mxu0 0.0
    %8216 = vmatpush2.msra.mxu0 0.0
    %8217 = vmatprep.subr.mxu0 0.0
    %8218 = vmatpush2.msra.mxu0 0.0
    %8219 = vmatprep.subr.mxu0 0.0
    %8220 = vmatpush2.msra.mxu0 0.0
    %8221 = vmatprep.subr.mxu0 0.0
    %8222 = vmatpush2.msra.mxu0 0.0
    %8223 = vmatprep.subr.mxu0 0.0
    %8224 = vmatpush2.msra.mxu0 0.0
    %8225 = vmatprep.subr.mxu0 0.0
    %8226 = vmatpush2.msra.mxu0 0.0
    %8227 = vmatprep.mubr.f32.mxu0 0.0
    %8228 = vmatmul.mubr.f32.gmra.mxu0 %v8056
    %v8229 = vpop.f32.mrf.mxu0
    %v8230 = vadd.f32 %v8052, %v8229
    %v8231 = vpop.f32.mrf.mxu0
    %8232 = vmatprep.mubr.f32.mxu0 0.0
    %8233 = vmatmul.mubr.f32.gmra.mxu0 %v8059
    %v8234 = vpop.f32.mrf.mxu0
    %v8235 = vadd.f32 %v8052, %v8234
    %v8236 = vpop.f32.mrf.mxu0
    %8237 = vmatprep.mubr.f32.mxu0 0.0
    %8238 = vmatmul.mubr.f32.gmra.mxu0 %v8062
    %v8239 = vpop.f32.mrf.mxu0
    %v8240 = vadd.f32 %v8052, %v8239
    %v8241 = vpop.f32.mrf.mxu0
    %8242 = vmatprep.mubr.f32.mxu0 0.0
    %8243 = vmatmul.mubr.f32.gmra.mxu0 %v8065
    %v8244 = vpop.f32.mrf.mxu0
    %v8245 = vadd.f32 %v8052, %v8244
    %v8246 = vpop.f32.mrf.mxu0
    %8247 = vmatprep.mubr.f32.mxu0 0.0
    %8248 = vmatmul.mubr.f32.gmra.mxu0 %v8068
    %v8249 = vpop.f32.mrf.mxu0
    %v8250 = vadd.f32 %v8052, %v8249
    %v8251 = vpop.f32.mrf.mxu0
    %8252 = vmatprep.mubr.f32.mxu0 0.0
    %8253 = vmatmul.mubr.f32.gmra.mxu0 %v8071
    %v8254 = vpop.f32.mrf.mxu0
    %v8255 = vadd.f32 %v8052, %v8254
    %v8256 = vpop.f32.mrf.mxu0
    %8257 = vmatprep.mubr.f32.mxu0 0.0
    %8258 = vmatmul.mubr.f32.gmra.mxu0 %v8074
    %v8259 = vpop.f32.mrf.mxu0
    %v8260 = vadd.f32 %v8052, %v8259
    %v8261 = vpop.f32.mrf.mxu0
    %8262 = vmatprep.mubr.f32.mxu0 0.0
    %8263 = vmatmul.mubr.f32.gmra.mxu0 %v8077
    %v8264 = vpop.f32.mrf.mxu0
    %v8265 = vadd.f32 %v8052, %v8264
    %v8266 = vpop.f32.mrf.mxu0
    %8267 = vmatprep.mubr.f32.mxu0 0.0
    %8268 = vmatmul.mubr.f32.gmra.mxu0 %v8080
    %v8269 = vpop.f32.mrf.mxu0
    %v8270 = vadd.f32 %v8052, %v8269
    %v8271 = vpop.f32.mrf.mxu0
    %8272 = vmatprep.mubr.f32.mxu0 0.0
    %8273 = vmatmul.mubr.f32.gmra.mxu0 %v8083
    %v8274 = vpop.f32.mrf.mxu0
    %v8275 = vadd.f32 %v8052, %v8274
    %v8276 = vpop.f32.mrf.mxu0
    %8277 = vmatprep.mubr.f32.mxu0 0.0
    %8278 = vmatmul.mubr.f32.gmra.mxu0 %v8086
    %v8279 = vpop.f32.mrf.mxu0
    %v8280 = vadd.f32 %v8052, %v8279
    %v8281 = vpop.f32.mrf.mxu0
    %8282 = vmatprep.mubr.f32.mxu0 0.0
    %8283 = vmatmul.mubr.f32.gmra.mxu0 %v8089
    %v8284 = vpop.f32.mrf.mxu0
    %v8285 = vadd.f32 %v8052, %v8284
    %v8286 = vpop.f32.mrf.mxu0
    %8287 = vmatprep.mubr.f32.mxu0 0.0
    %8288 = vmatmul.mubr.f32.gmra.mxu0 %v8092
    %v8289 = vpop.f32.mrf.mxu0
    %v8290 = vadd.f32 %v8052, %v8289
    %v8291 = vpop.f32.mrf.mxu0
    %8292 = vmatprep.mubr.f32.mxu0 0.0
    %8293 = vmatmul.mubr.f32.gmra.mxu0 %v8095
    %v8294 = vpop.f32.mrf.mxu0
    %v8295 = vadd.f32 %v8052, %v8294
    %v8296 = vpop.f32.mrf.mxu0
    %8297 = vmatprep.mubr.f32.mxu0 0.0
    %8298 = vmatmul.mubr.f32.gmra.mxu0 %v8098
    %v8299 = vpop.f32.mrf.mxu0
    %v8300 = vadd.f32 %v8052, %v8299
    %v8301 = vpop.f32.mrf.mxu0
    %8302 = vmatprep.mubr.f32.mxu0 0.0
    %8303 = vmatmul.mubr.f32.gmra.mxu0 %v8101
    %v8304 = vpop.f32.mrf.mxu0
    %v8305 = vadd.f32 %v8052, %v8304
    %v8306 = vpop.f32.mrf.mxu0
    %8307 = vmatprep.mubr.f32.mxu0 0.0
    %8308 = vmatmul.mubr.f32.gmra.mxu0 %v8104
    %v8309 = vpop.f32.mrf.mxu0
    %v8310 = vadd.f32 %v8052, %v8309
    %v8311 = vpop.f32.mrf.mxu0
    %8312 = vmatprep.mubr.f32.mxu0 0.0
    %8313 = vmatmul.mubr.f32.gmra.mxu0 %v8107
    %v8314 = vpop.f32.mrf.mxu0
    %v8315 = vadd.f32 %v8052, %v8314
    %v8316 = vpop.f32.mrf.mxu0
    %8317 = vmatprep.mubr.f32.mxu0 0.0
    %8318 = vmatmul.mubr.f32.gmra.mxu0 %v8110
    %v8319 = vpop.f32.mrf.mxu0
    %v8320 = vadd.f32 %v8052, %v8319
    %v8321 = vpop.f32.mrf.mxu0
    %8322 = vmatprep.mubr.f32.mxu0 0.0
    %8323 = vmatmul.mubr.f32.gmra.mxu0 %v8113
    %v8324 = vpop.f32.mrf.mxu0
    %v8325 = vadd.f32 %v8052, %v8324
    %v8326 = vpop.f32.mrf.mxu0
    %8327 = vmatprep.mubr.f32.mxu0 0.0
    %8328 = vmatmul.mubr.f32.gmra.mxu0 %v8116
    %v8329 = vpop.f32.mrf.mxu0
    %v8330 = vadd.f32 %v8052, %v8329
    %v8331 = vpop.f32.mrf.mxu0
    %8332 = vmatprep.mubr.f32.mxu0 0.0
    %8333 = vmatmul.mubr.f32.gmra.mxu0 %v8119
    %v8334 = vpop.f32.mrf.mxu0
    %v8335 = vadd.f32 %v8052, %v8334
    %v8336 = vpop.f32.mrf.mxu0
    %8337 = vmatprep.mubr.f32.mxu0 0.0
    %8338 = vmatmul.mubr.f32.gmra.mxu0 %v8122
    %v8339 = vpop.f32.mrf.mxu0
    %v8340 = vadd.f32 %v8052, %v8339
    %v8341 = vpop.f32.mrf.mxu0
    %8342 = vmatprep.mubr.f32.mxu0 0.0
    %8343 = vmatmul.mubr.f32.gmra.mxu0 %v8125
    %v8344 = vpop.f32.mrf.mxu0
    %v8345 = vadd.f32 %v8052, %v8344
    %v8346 = vpop.f32.mrf.mxu0
    %8347 = vmatprep.mubr.f32.mxu0 0.0
    %8348 = vmatmul.mubr.f32.gmra.mxu0 %v8128
    %v8349 = vpop.f32.mrf.mxu0
    %v8350 = vadd.f32 %v8052, %v8349
    %v8351 = vpop.f32.mrf.mxu0
    %8352 = vmatprep.mubr.f32.mxu0 0.0
    %8353 = vmatmul.mubr.f32.gmra.mxu0 %v8131
    %v8354 = vpop.f32.mrf.mxu0
    %v8355 = vadd.f32 %v8052, %v8354
    %v8356 = vpop.f32.mrf.mxu0
    %8357 = vmatprep.mubr.f32.mxu0 0.0
    %8358 = vmatmul.mubr.f32.gmra.mxu0 %v8134
    %v8359 = vpop.f32.mrf.mxu0
    %v8360 = vadd.f32 %v8052, %v8359
    %v8361 = vpop.f32.mrf.mxu0
    %8362 = vmatprep.mubr.f32.mxu0 0.0
    %8363 = vmatmul.mubr.f32.gmra.mxu0 %v8137
    %v8364 = vpop.f32.mrf.mxu0
    %v8365 = vadd.f32 %v8052, %v8364
    %v8366 = vpop.f32.mrf.mxu0
    %8367 = vmatprep.mubr.f32.mxu0 0.0
    %8368 = vmatmul.mubr.f32.gmra.mxu0 %v8140
    %v8369 = vpop.f32.mrf.mxu0
    %v8370 = vadd.f32 %v8052, %v8369
    %v8371 = vpop.f32.mrf.mxu0
    %8372 = vmatprep.mubr.f32.mxu0 0.0
    %8373 = vmatmul.mubr.f32.gmra.mxu0 %v8143
    %v8374 = vpop.f32.mrf.mxu0
    %v8375 = vadd.f32 %v8052, %v8374
    %v8376 = vpop.f32.mrf.mxu0
    %8377 = vmatprep.mubr.f32.mxu0 0.0
    %8378 = vmatmul.mubr.f32.gmra.mxu0 %v8146
    %v8379 = vpop.f32.mrf.mxu0
    %v8380 = vadd.f32 %v8052, %v8379
    %v8381 = vpop.f32.mrf.mxu0
    %8382 = vmatprep.mubr.f32.mxu0 0.0
    %8383 = vmatmul.mubr.f32.gmra.mxu0 %v8149
    %v8384 = vpop.f32.mrf.mxu0
    %v8385 = vadd.f32 %v8052, %v8384
    %v8386 = vpop.f32.mrf.mxu0
    %8387 = vmatprep.mubr.f32.mxu0 0.0
    %8388 = vmatmul.mubr.f32.gmra.mxu0 %v8152
    %v8389 = vpop.f32.mrf.mxu0
    %v8390 = vadd.f32 %v8052, %v8389
    %v8391 = vpop.f32.mrf.mxu0
    %8392 = vmatprep.mubr.f32.mxu0 0.0
    %8393 = vmatmul.mubr.f32.gmra.mxu0 %v8155
    %v8394 = vpop.f32.mrf.mxu0
    %v8395 = vadd.f32 %v8052, %v8394
    %v8396 = vpop.f32.mrf.mxu0
    %8397 = vmatprep.mubr.f32.mxu0 0.0
    %8398 = vmatmul.mubr.f32.gmra.mxu0 %v8158
    %v8399 = vpop.f32.mrf.mxu0
    %v8400 = vadd.f32 %v8052, %v8399
    %v8401 = vpop.f32.mrf.mxu0
    %8402 = vmatprep.mubr.f32.mxu0 0.0
    %8403 = vmatmul.mubr.f32.gmra.mxu0 %v8161
    %v8404 = vpop.f32.mrf.mxu0
    %v8405 = vadd.f32 %v8052, %v8404
    %v8406 = vpop.f32.mrf.mxu0
    %8407 = vdwg.mxu0
    %v8408 = vmax.f32 %v8230, 0.0
    %v8409 = vmax.f32 %v8235, 0.0
    %v8410 = vmax.f32 %v8240, 0.0
    %v8411 = vmax.f32 %v8245, 0.0
    %v8412 = vmax.f32 %v8250, 0.0
    %v8413 = vmax.f32 %v8255, 0.0
    %v8414 = vmax.f32 %v8260, 0.0
    %v8415 = vmax.f32 %v8265, 0.0
    %v8416 = vmax.f32 %v8270, 0.0
    %v8417 = vmax.f32 %v8275, 0.0
    %v8418 = vmax.f32 %v8280, 0.0
    %v8419 = vmax.f32 %v8285, 0.0
    %v8420 = vmax.f32 %v8290, 0.0
    %v8421 = vmax.f32 %v8295, 0.0
    %v8422 = vmax.f32 %v8300, 0.0
    %v8423 = vmax.f32 %v8305, 0.0
    %v8424 = vmax.f32 %v8310, 0.0
    %v8425 = vmax.f32 %v8315, 0.0
    %v8426 = vmax.f32 %v8320, 0.0
    %v8427 = vmax.f32 %v8325, 0.0
    %v8428 = vmax.f32 %v8330, 0.0
    %v8429 = vmax.f32 %v8335, 0.0
    %v8430 = vmax.f32 %v8340, 0.0
    %v8431 = vmax.f32 %v8345, 0.0
    %v8432 = vmax.f32 %v8350, 0.0
    %v8433 = vmax.f32 %v8355, 0.0
    %v8434 = vmax.f32 %v8360, 0.0
    %v8435 = vmax.f32 %v8365, 0.0
    %v8436 = vmax.f32 %v8370, 0.0
    %v8437 = vmax.f32 %v8375, 0.0
    %v8438 = vmax.f32 %v8380, 0.0
    %v8439 = vmax.f32 %v8385, 0.0
    %v8440 = vmax.f32 %v8390, 0.0
    %v8441 = vmax.f32 %v8395, 0.0
    %v8442 = vmax.f32 %v8400, 0.0
    %v8443 = vmax.f32 %v8405, 0.0
    %8445 = vset.pattern.permute.xlu0 0
    %8446 = vperm.xlu0 %8445, %v7689
    %v8447 = vpop.permute.xlu0 %8446
    %8450 = vset.pattern.permute.xlu0 0
    %8451 = vperm.xlu0 %8450, %v7690
    %v8452 = vpop.permute.xlu0 %8451
    %8455 = vset.pattern.permute.xlu0 0
    %8456 = vperm.xlu0 %8455, %v7691
    %v8457 = vpop.permute.xlu0 %8456
    %8460 = vset.pattern.permute.xlu0 0
    %8461 = vperm.xlu0 %8460, %v7692
    %v8462 = vpop.permute.xlu0 %8461
    %8465 = vset.pattern.permute.xlu0 0
    %8466 = vperm.xlu0 %8465, %v7693
    %v8467 = vpop.permute.xlu0 %8466
    %8470 = vset.pattern.permute.xlu0 0
    %8471 = vperm.xlu0 %8470, %v7694
    %v8472 = vpop.permute.xlu0 %8471
    %8475 = vset.pattern.permute.xlu0 0
    %8476 = vperm.xlu0 %8475, %v7695
    %v8477 = vpop.permute.xlu0 %8476
    %8480 = vset.pattern.permute.xlu0 0
    %8481 = vperm.xlu0 %8480, %v7696
    %v8482 = vpop.permute.xlu0 %8481
    %8485 = vset.pattern.permute.xlu0 0
    %8486 = vperm.xlu0 %8485, %v7697
    %v8487 = vpop.permute.xlu0 %8486
    %8490 = vset.pattern.permute.xlu0 0
    %8491 = vperm.xlu0 %8490, %v7698
    %v8492 = vpop.permute.xlu0 %8491
    %8495 = vset.pattern.permute.xlu0 0
    %8496 = vperm.xlu0 %8495, %v7699
    %v8497 = vpop.permute.xlu0 %8496
    %8500 = vset.pattern.permute.xlu0 0
    %8501 = vperm.xlu0 %8500, %v7700
    %v8502 = vpop.permute.xlu0 %8501
    %8505 = vset.pattern.permute.xlu0 0
    %8506 = vperm.xlu0 %8505, %v7701
    %v8507 = vpop.permute.xlu0 %8506
    %8510 = vset.pattern.permute.xlu0 0
    %8511 = vperm.xlu0 %8510, %v7702
    %v8512 = vpop.permute.xlu0 %8511
    %8515 = vset.pattern.permute.xlu0 0
    %8516 = vperm.xlu0 %8515, %v7703
    %v8517 = vpop.permute.xlu0 %8516
    %8520 = vset.pattern.permute.xlu0 0
    %8521 = vperm.xlu0 %8520, %v7704
    %v8522 = vpop.permute.xlu0 %8521
    %8525 = vset.pattern.permute.xlu0 0
    %8526 = vperm.xlu0 %8525, %v7705
    %v8527 = vpop.permute.xlu0 %8526
    %8530 = vset.pattern.permute.xlu0 0
    %8531 = vperm.xlu0 %8530, %v7706
    %v8532 = vpop.permute.xlu0 %8531
    %8535 = vset.pattern.permute.xlu0 0
    %8536 = vperm.xlu0 %8535, %v7707
    %v8537 = vpop.permute.xlu0 %8536
    %8540 = vset.pattern.permute.xlu0 0
    %8541 = vperm.xlu0 %8540, %v7708
    %v8542 = vpop.permute.xlu0 %8541
    %8545 = vset.pattern.permute.xlu0 0
    %8546 = vperm.xlu0 %8545, %v7709
    %v8547 = vpop.permute.xlu0 %8546
    %8550 = vset.pattern.permute.xlu0 0
    %8551 = vperm.xlu0 %8550, %v7710
    %v8552 = vpop.permute.xlu0 %8551
    %8555 = vset.pattern.permute.xlu0 0
    %8556 = vperm.xlu0 %8555, %v7711
    %v8557 = vpop.permute.xlu0 %8556
    %8560 = vset.pattern.permute.xlu0 0
    %8561 = vperm.xlu0 %8560, %v7712
    %v8562 = vpop.permute.xlu0 %8561
    %8565 = vset.pattern.permute.xlu0 0
    %8566 = vperm.xlu0 %8565, %v7713
    %v8567 = vpop.permute.xlu0 %8566
    %8570 = vset.pattern.permute.xlu0 0
    %8571 = vperm.xlu0 %8570, %v7714
    %v8572 = vpop.permute.xlu0 %8571
    %8575 = vset.pattern.permute.xlu0 0
    %8576 = vperm.xlu0 %8575, %v7715
    %v8577 = vpop.permute.xlu0 %8576
    %8580 = vset.pattern.permute.xlu0 0
    %8581 = vperm.xlu0 %8580, %v7716
    %v8582 = vpop.permute.xlu0 %8581
    %8585 = vset.pattern.permute.xlu0 0
    %8586 = vperm.xlu0 %8585, %v7717
    %v8587 = vpop.permute.xlu0 %8586
    %8590 = vset.pattern.permute.xlu0 0
    %8591 = vperm.xlu0 %8590, %v7718
    %v8592 = vpop.permute.xlu0 %8591
    %8595 = vset.pattern.permute.xlu0 0
    %8596 = vperm.xlu0 %8595, %v7719
    %v8597 = vpop.permute.xlu0 %8596
    %8600 = vset.pattern.permute.xlu0 0
    %8601 = vperm.xlu0 %8600, %v7720
    %v8602 = vpop.permute.xlu0 %8601
    %8605 = vset.pattern.permute.xlu0 0
    %8606 = vperm.xlu0 %8605, %v7721
    %v8607 = vpop.permute.xlu0 %8606
    %8610 = vset.pattern.permute.xlu0 0
    %8611 = vperm.xlu0 %8610, %v7722
    %v8612 = vpop.permute.xlu0 %8611
    %8615 = vset.pattern.permute.xlu0 0
    %8616 = vperm.xlu0 %8615, %v7723
    %v8617 = vpop.permute.xlu0 %8616
    %8620 = vset.pattern.permute.xlu0 0
    %8621 = vperm.xlu0 %8620, %v7724
    %v8622 = vpop.permute.xlu0 %8621
    %v8624 = vmul.f32 %v8408, %v8447
    %v8625 = vmul.f32 %v8409, %v8452
    %v8626 = vmul.f32 %v8410, %v8457
    %v8627 = vmul.f32 %v8411, %v8462
    %v8628 = vmul.f32 %v8412, %v8467
    %v8629 = vmul.f32 %v8413, %v8472
    %v8630 = vmul.f32 %v8414, %v8477
    %v8631 = vmul.f32 %v8415, %v8482
    %v8632 = vmul.f32 %v8416, %v8487
    %v8633 = vmul.f32 %v8417, %v8492
    %v8634 = vmul.f32 %v8418, %v8497
    %v8635 = vmul.f32 %v8419, %v8502
    %v8636 = vmul.f32 %v8420, %v8507
    %v8637 = vmul.f32 %v8421, %v8512
    %v8638 = vmul.f32 %v8422, %v8517
    %v8639 = vmul.f32 %v8423, %v8522
    %v8640 = vmul.f32 %v8424, %v8527
    %v8641 = vmul.f32 %v8425, %v8532
    %v8642 = vmul.f32 %v8426, %v8537
    %v8643 = vmul.f32 %v8427, %v8542
    %v8644 = vmul.f32 %v8428, %v8547
    %v8645 = vmul.f32 %v8429, %v8552
    %v8646 = vmul.f32 %v8430, %v8557
    %v8647 = vmul.f32 %v8431, %v8562
    %v8648 = vmul.f32 %v8432, %v8567
    %v8649 = vmul.f32 %v8433, %v8572
    %v8650 = vmul.f32 %v8434, %v8577
    %v8651 = vmul.f32 %v8435, %v8582
    %v8652 = vmul.f32 %v8436, %v8587
    %v8653 = vmul.f32 %v8437, %v8592
    %v8654 = vmul.f32 %v8438, %v8597
    %v8655 = vmul.f32 %v8439, %v8602
    %v8656 = vmul.f32 %v8440, %v8607
    %v8657 = vmul.f32 %v8441, %v8612
    %v8658 = vmul.f32 %v8442, %v8617
    %v8659 = vmul.f32 %v8443, %v8622
    %v8660 = vld [vmem:[%s8] sm:$0xf]
    %s8661 = scalar_lea.vmem %s8, 4
    %v8662 = vld [vmem:[%s8661] sm:$0xf]
    %v8664 = vsel %vm911, %v8628, 0
    %v8667 = vsel %vm911, %v8629, 0
    %v8670 = vsel %vm911, %v8630, 0
    %v8673 = vsel %vm911, %v8631, 0
    %v8676 = vsel %vm1020, %v8662, 0
    %8678 = vmatprep.subr.mxu0 0.0
    %8679 = vmatpush1.msra.mxu0 0.0
    %8680 = vmatprep.subr.mxu0 0.0
    %8681 = vmatpush1.msra.mxu0 0.0
    %8682 = vmatprep.subr.mxu0 0.0
    %8683 = vmatpush1.msra.mxu0 0.0
    %8684 = vmatprep.subr.mxu0 0.0
    %8685 = vmatpush1.msra.mxu0 0.0
    %8686 = vmatprep.subr.mxu0 0.0
    %8687 = vmatpush1.msra.mxu0 0.0
    %8688 = vmatprep.subr.mxu0 0.0
    %8689 = vmatpush1.msra.mxu0 0.0
    %8690 = vmatprep.subr.mxu0 0.0
    %8691 = vmatpush1.msra.mxu0 0.0
    %8692 = vmatprep.subr.mxu0 0.0
    %8693 = vmatpush1.msra.mxu0 0.0
    %8694 = vmatprep.subr.mxu0 0.0
    %8695 = vmatpush1.msra.mxu0 0.0
    %8696 = vmatprep.subr.mxu0 0.0
    %8697 = vmatpush1.msra.mxu0 0.0
    %8698 = vmatprep.subr.mxu0 0.0
    %8699 = vmatpush1.msra.mxu0 0.0
    %8700 = vmatprep.subr.mxu0 0.0
    %8701 = vmatpush1.msra.mxu0 0.0
    %8702 = vmatprep.subr.mxu0 0.0
    %8703 = vmatpush1.msra.mxu0 0.0
    %8704 = vmatprep.subr.mxu0 0.0
    %8705 = vmatpush1.msra.mxu0 0.0
    %8706 = vmatprep.subr.mxu0 0.0
    %8707 = vmatpush1.msra.mxu0 0.0
    %8708 = vmatprep.subr.mxu0 0.0
    %8709 = vmatpush1.msra.mxu0 %v8676
    %8710 = vmatprep.subr.mxu0 0.0
    %8711 = vmatpush2.msra.mxu0 0.0
    %8712 = vmatprep.subr.mxu0 0.0
    %8713 = vmatpush2.msra.mxu0 0.0
    %8714 = vmatprep.subr.mxu0 0.0
    %8715 = vmatpush2.msra.mxu0 0.0
    %8716 = vmatprep.subr.mxu0 0.0
    %8717 = vmatpush2.msra.mxu0 0.0
    %8718 = vmatprep.subr.mxu0 0.0
    %8719 = vmatpush2.msra.mxu0 0.0
    %8720 = vmatprep.subr.mxu0 0.0
    %8721 = vmatpush2.msra.mxu0 0.0
    %8722 = vmatprep.subr.mxu0 0.0
    %8723 = vmatpush2.msra.mxu0 0.0
    %8724 = vmatprep.subr.mxu0 0.0
    %8725 = vmatpush2.msra.mxu0 0.0
    %8726 = vmatprep.subr.mxu0 0.0
    %8727 = vmatpush2.msra.mxu0 0.0
    %8728 = vmatprep.subr.mxu0 0.0
    %8729 = vmatpush2.msra.mxu0 0.0
    %8730 = vmatprep.subr.mxu0 0.0
    %8731 = vmatpush2.msra.mxu0 0.0
    %8732 = vmatprep.subr.mxu0 0.0
    %8733 = vmatpush2.msra.mxu0 0.0
    %8734 = vmatprep.subr.mxu0 0.0
    %8735 = vmatpush2.msra.mxu0 0.0
    %8736 = vmatprep.subr.mxu0 0.0
    %8737 = vmatpush2.msra.mxu0 0.0
    %8738 = vmatprep.subr.mxu0 0.0
    %8739 = vmatpush2.msra.mxu0 0.0
    %8740 = vmatprep.subr.mxu0 0.0
    %8741 = vmatpush2.msra.mxu0 0.0
    %8742 = vmatprep.mubr.f32.mxu0 0.0
    %8743 = vmatmul.mubr.f32.gmra.mxu0 %v8664
    %v8744 = vpop.f32.mrf.mxu0
    %v8745 = vadd.f32 0.0, %v8744
    %v8746 = vpop.f32.mrf.mxu0
    %8747 = vmatprep.mubr.f32.mxu0 0.0
    %8748 = vmatmul.mubr.f32.gmra.mxu0 %v8667
    %v8749 = vpop.f32.mrf.mxu0
    %v8750 = vadd.f32 0.0, %v8749
    %v8751 = vpop.f32.mrf.mxu0
    %8752 = vmatprep.mubr.f32.mxu0 0.0
    %8753 = vmatmul.mubr.f32.gmra.mxu0 %v8670
    %v8754 = vpop.f32.mrf.mxu0
    %v8755 = vadd.f32 0.0, %v8754
    %v8756 = vpop.f32.mrf.mxu0
    %8757 = vmatprep.mubr.f32.mxu0 0.0
    %8758 = vmatmul.mubr.f32.gmra.mxu0 %v8673
    %v8759 = vpop.f32.mrf.mxu0
    %v8760 = vadd.f32 0.0, %v8759
    %v8761 = vpop.f32.mrf.mxu0
    %8762 = vdwg.mxu0
    %v8764 = vsel %vm911, %v8624, 0
    %v8767 = vsel %vm911, %v8625, 0
    %v8770 = vsel %vm911, %v8626, 0
    %v8773 = vsel %vm911, %v8627, 0
    %v8776 = vsel %vm1020, %v8660, 0
    %8778 = vmatprep.subr.mxu0 0.0
    %8779 = vmatpush1.msra.mxu0 0.0
    %8780 = vmatprep.subr.mxu0 0.0
    %8781 = vmatpush1.msra.mxu0 0.0
    %8782 = vmatprep.subr.mxu0 0.0
    %8783 = vmatpush1.msra.mxu0 0.0
    %8784 = vmatprep.subr.mxu0 0.0
    %8785 = vmatpush1.msra.mxu0 0.0
    %8786 = vmatprep.subr.mxu0 0.0
    %8787 = vmatpush1.msra.mxu0 0.0
    %8788 = vmatprep.subr.mxu0 0.0
    %8789 = vmatpush1.msra.mxu0 0.0
    %8790 = vmatprep.subr.mxu0 0.0
    %8791 = vmatpush1.msra.mxu0 0.0
    %8792 = vmatprep.subr.mxu0 0.0
    %8793 = vmatpush1.msra.mxu0 0.0
    %8794 = vmatprep.subr.mxu0 0.0
    %8795 = vmatpush1.msra.mxu0 0.0
    %8796 = vmatprep.subr.mxu0 0.0
    %8797 = vmatpush1.msra.mxu0 0.0
    %8798 = vmatprep.subr.mxu0 0.0
    %8799 = vmatpush1.msra.mxu0 0.0
    %8800 = vmatprep.subr.mxu0 0.0
    %8801 = vmatpush1.msra.mxu0 0.0
    %8802 = vmatprep.subr.mxu0 0.0
    %8803 = vmatpush1.msra.mxu0 0.0
    %8804 = vmatprep.subr.mxu0 0.0
    %8805 = vmatpush1.msra.mxu0 0.0
    %8806 = vmatprep.subr.mxu0 0.0
    %8807 = vmatpush1.msra.mxu0 0.0
    %8808 = vmatprep.subr.mxu0 0.0
    %8809 = vmatpush1.msra.mxu0 %v8776
    %8810 = vmatprep.subr.mxu0 0.0
    %8811 = vmatpush2.msra.mxu0 0.0
    %8812 = vmatprep.subr.mxu0 0.0
    %8813 = vmatpush2.msra.mxu0 0.0
    %8814 = vmatprep.subr.mxu0 0.0
    %8815 = vmatpush2.msra.mxu0 0.0
    %8816 = vmatprep.subr.mxu0 0.0
    %8817 = vmatpush2.msra.mxu0 0.0
    %8818 = vmatprep.subr.mxu0 0.0
    %8819 = vmatpush2.msra.mxu0 0.0
    %8820 = vmatprep.subr.mxu0 0.0
    %8821 = vmatpush2.msra.mxu0 0.0
    %8822 = vmatprep.subr.mxu0 0.0
    %8823 = vmatpush2.msra.mxu0 0.0
    %8824 = vmatprep.subr.mxu0 0.0
    %8825 = vmatpush2.msra.mxu0 0.0
    %8826 = vmatprep.subr.mxu0 0.0
    %8827 = vmatpush2.msra.mxu0 0.0
    %8828 = vmatprep.subr.mxu0 0.0
    %8829 = vmatpush2.msra.mxu0 0.0
    %8830 = vmatprep.subr.mxu0 0.0
    %8831 = vmatpush2.msra.mxu0 0.0
    %8832 = vmatprep.subr.mxu0 0.0
    %8833 = vmatpush2.msra.mxu0 0.0
    %8834 = vmatprep.subr.mxu0 0.0
    %8835 = vmatpush2.msra.mxu0 0.0
    %8836 = vmatprep.subr.mxu0 0.0
    %8837 = vmatpush2.msra.mxu0 0.0
    %8838 = vmatprep.subr.mxu0 0.0
    %8839 = vmatpush2.msra.mxu0 0.0
    %8840 = vmatprep.subr.mxu0 0.0
    %8841 = vmatpush2.msra.mxu0 0.0
    %8842 = vmatprep.mubr.f32.mxu0 0.0
    %8843 = vmatmul.mubr.f32.gmra.mxu0 %v8764
    %v8844 = vpop.f32.mrf.mxu0
    %v8845 = vadd.f32 %v8745, %v8844
    %v8846 = vpop.f32.mrf.mxu0
    %8847 = vmatprep.mubr.f32.mxu0 0.0
    %8848 = vmatmul.mubr.f32.gmra.mxu0 %v8767
    %v8849 = vpop.f32.mrf.mxu0
    %v8850 = vadd.f32 %v8750, %v8849
    %v8851 = vpop.f32.mrf.mxu0
    %8852 = vmatprep.mubr.f32.mxu0 0.0
    %8853 = vmatmul.mubr.f32.gmra.mxu0 %v8770
    %v8854 = vpop.f32.mrf.mxu0
    %v8855 = vadd.f32 %v8755, %v8854
    %v8856 = vpop.f32.mrf.mxu0
    %8857 = vmatprep.mubr.f32.mxu0 0.0
    %8858 = vmatmul.mubr.f32.gmra.mxu0 %v8773
    %v8859 = vpop.f32.mrf.mxu0
    %v8860 = vadd.f32 %v8760, %v8859
    %v8861 = vpop.f32.mrf.mxu0
    %8862 = vdwg.mxu0
    %s8863 = scalar_lea.vmem %s8, 8
    %v8864 = vld [vmem:[%s8863] sm:$0xf]
    %v8866 = vsel %vm911, %v8632, 0
    %v8869 = vsel %vm911, %v8633, 0
    %v8872 = vsel %vm911, %v8634, 0
    %v8875 = vsel %vm911, %v8635, 0
    %v8878 = vsel %vm1020, %v8864, 0
    %8880 = vmatprep.subr.mxu0 0.0
    %8881 = vmatpush1.msra.mxu0 0.0
    %8882 = vmatprep.subr.mxu0 0.0
    %8883 = vmatpush1.msra.mxu0 0.0
    %8884 = vmatprep.subr.mxu0 0.0
    %8885 = vmatpush1.msra.mxu0 0.0
    %8886 = vmatprep.subr.mxu0 0.0
    %8887 = vmatpush1.msra.mxu0 0.0
    %8888 = vmatprep.subr.mxu0 0.0
    %8889 = vmatpush1.msra.mxu0 0.0
    %8890 = vmatprep.subr.mxu0 0.0
    %8891 = vmatpush1.msra.mxu0 0.0
    %8892 = vmatprep.subr.mxu0 0.0
    %8893 = vmatpush1.msra.mxu0 0.0
    %8894 = vmatprep.subr.mxu0 0.0
    %8895 = vmatpush1.msra.mxu0 0.0
    %8896 = vmatprep.subr.mxu0 0.0
    %8897 = vmatpush1.msra.mxu0 0.0
    %8898 = vmatprep.subr.mxu0 0.0
    %8899 = vmatpush1.msra.mxu0 0.0
    %8900 = vmatprep.subr.mxu0 0.0
    %8901 = vmatpush1.msra.mxu0 0.0
    %8902 = vmatprep.subr.mxu0 0.0
    %8903 = vmatpush1.msra.mxu0 0.0
    %8904 = vmatprep.subr.mxu0 0.0
    %8905 = vmatpush1.msra.mxu0 0.0
    %8906 = vmatprep.subr.mxu0 0.0
    %8907 = vmatpush1.msra.mxu0 0.0
    %8908 = vmatprep.subr.mxu0 0.0
    %8909 = vmatpush1.msra.mxu0 0.0
    %8910 = vmatprep.subr.mxu0 0.0
    %8911 = vmatpush1.msra.mxu0 %v8878
    %8912 = vmatprep.subr.mxu0 0.0
    %8913 = vmatpush2.msra.mxu0 0.0
    %8914 = vmatprep.subr.mxu0 0.0
    %8915 = vmatpush2.msra.mxu0 0.0
    %8916 = vmatprep.subr.mxu0 0.0
    %8917 = vmatpush2.msra.mxu0 0.0
    %8918 = vmatprep.subr.mxu0 0.0
    %8919 = vmatpush2.msra.mxu0 0.0
    %8920 = vmatprep.subr.mxu0 0.0
    %8921 = vmatpush2.msra.mxu0 0.0
    %8922 = vmatprep.subr.mxu0 0.0
    %8923 = vmatpush2.msra.mxu0 0.0
    %8924 = vmatprep.subr.mxu0 0.0
    %8925 = vmatpush2.msra.mxu0 0.0
    %8926 = vmatprep.subr.mxu0 0.0
    %8927 = vmatpush2.msra.mxu0 0.0
    %8928 = vmatprep.subr.mxu0 0.0
    %8929 = vmatpush2.msra.mxu0 0.0
    %8930 = vmatprep.subr.mxu0 0.0
    %8931 = vmatpush2.msra.mxu0 0.0
    %8932 = vmatprep.subr.mxu0 0.0
    %8933 = vmatpush2.msra.mxu0 0.0
    %8934 = vmatprep.subr.mxu0 0.0
    %8935 = vmatpush2.msra.mxu0 0.0
    %8936 = vmatprep.subr.mxu0 0.0
    %8937 = vmatpush2.msra.mxu0 0.0
    %8938 = vmatprep.subr.mxu0 0.0
    %8939 = vmatpush2.msra.mxu0 0.0
    %8940 = vmatprep.subr.mxu0 0.0
    %8941 = vmatpush2.msra.mxu0 0.0
    %8942 = vmatprep.subr.mxu0 0.0
    %8943 = vmatpush2.msra.mxu0 0.0
    %8944 = vmatprep.mubr.f32.mxu0 0.0
    %8945 = vmatmul.mubr.f32.gmra.mxu0 %v8866
    %v8946 = vpop.f32.mrf.mxu0
    %v8947 = vadd.f32 0.0, %v8946
    %v8948 = vpop.f32.mrf.mxu0
    %8949 = vmatprep.mubr.f32.mxu0 0.0
    %8950 = vmatmul.mubr.f32.gmra.mxu0 %v8869
    %v8951 = vpop.f32.mrf.mxu0
    %v8952 = vadd.f32 0.0, %v8951
    %v8953 = vpop.f32.mrf.mxu0
    %8954 = vmatprep.mubr.f32.mxu0 0.0
    %8955 = vmatmul.mubr.f32.gmra.mxu0 %v8872
    %v8956 = vpop.f32.mrf.mxu0
    %v8957 = vadd.f32 0.0, %v8956
    %v8958 = vpop.f32.mrf.mxu0
    %8959 = vmatprep.mubr.f32.mxu0 0.0
    %8960 = vmatmul.mubr.f32.gmra.mxu0 %v8875
    %v8961 = vpop.f32.mrf.mxu0
    %v8962 = vadd.f32 0.0, %v8961
    %v8963 = vpop.f32.mrf.mxu0
    %8964 = vdwg.mxu0
    %v8965 = vadd.f32 %v8845, %v8947
    %v8966 = vadd.f32 %v8850, %v8952
    %v8967 = vadd.f32 %v8855, %v8957
    %v8968 = vadd.f32 %v8860, %v8962
    %s8969 = scalar_lea.vmem %s8, 12
    %v8970 = vld [vmem:[%s8969] sm:$0xf]
    %v8972 = vsel %vm911, %v8636, 0
    %v8975 = vsel %vm911, %v8637, 0
    %v8978 = vsel %vm911, %v8638, 0
    %v8981 = vsel %vm911, %v8639, 0
    %v8984 = vsel %vm1020, %v8970, 0
    %8986 = vmatprep.subr.mxu0 0.0
    %8987 = vmatpush1.msra.mxu0 0.0
    %8988 = vmatprep.subr.mxu0 0.0
    %8989 = vmatpush1.msra.mxu0 0.0
    %8990 = vmatprep.subr.mxu0 0.0
    %8991 = vmatpush1.msra.mxu0 0.0
    %8992 = vmatprep.subr.mxu0 0.0
    %8993 = vmatpush1.msra.mxu0 0.0
    %8994 = vmatprep.subr.mxu0 0.0
    %8995 = vmatpush1.msra.mxu0 0.0
    %8996 = vmatprep.subr.mxu0 0.0
    %8997 = vmatpush1.msra.mxu0 0.0
    %8998 = vmatprep.subr.mxu0 0.0
    %8999 = vmatpush1.msra.mxu0 0.0
    %9000 = vmatprep.subr.mxu0 0.0
    %9001 = vmatpush1.msra.mxu0 0.0
    %9002 = vmatprep.subr.mxu0 0.0
    %9003 = vmatpush1.msra.mxu0 0.0
    %9004 = vmatprep.subr.mxu0 0.0
    %9005 = vmatpush1.msra.mxu0 0.0
    %9006 = vmatprep.subr.mxu0 0.0
    %9007 = vmatpush1.msra.mxu0 0.0
    %9008 = vmatprep.subr.mxu0 0.0
    %9009 = vmatpush1.msra.mxu0 0.0
    %9010 = vmatprep.subr.mxu0 0.0
    %9011 = vmatpush1.msra.mxu0 0.0
    %9012 = vmatprep.subr.mxu0 0.0
    %9013 = vmatpush1.msra.mxu0 0.0
    %9014 = vmatprep.subr.mxu0 0.0
    %9015 = vmatpush1.msra.mxu0 0.0
    %9016 = vmatprep.subr.mxu0 0.0
    %9017 = vmatpush1.msra.mxu0 %v8984
    %9018 = vmatprep.subr.mxu0 0.0
    %9019 = vmatpush2.msra.mxu0 0.0
    %9020 = vmatprep.subr.mxu0 0.0
    %9021 = vmatpush2.msra.mxu0 0.0
    %9022 = vmatprep.subr.mxu0 0.0
    %9023 = vmatpush2.msra.mxu0 0.0
    %9024 = vmatprep.subr.mxu0 0.0
    %9025 = vmatpush2.msra.mxu0 0.0
    %9026 = vmatprep.subr.mxu0 0.0
    %9027 = vmatpush2.msra.mxu0 0.0
    %9028 = vmatprep.subr.mxu0 0.0
    %9029 = vmatpush2.msra.mxu0 0.0
    %9030 = vmatprep.subr.mxu0 0.0
    %9031 = vmatpush2.msra.mxu0 0.0
    %9032 = vmatprep.subr.mxu0 0.0
    %9033 = vmatpush2.msra.mxu0 0.0
    %9034 = vmatprep.subr.mxu0 0.0
    %9035 = vmatpush2.msra.mxu0 0.0
    %9036 = vmatprep.subr.mxu0 0.0
    %9037 = vmatpush2.msra.mxu0 0.0
    %9038 = vmatprep.subr.mxu0 0.0
    %9039 = vmatpush2.msra.mxu0 0.0
    %9040 = vmatprep.subr.mxu0 0.0
    %9041 = vmatpush2.msra.mxu0 0.0
    %9042 = vmatprep.subr.mxu0 0.0
    %9043 = vmatpush2.msra.mxu0 0.0
    %9044 = vmatprep.subr.mxu0 0.0
    %9045 = vmatpush2.msra.mxu0 0.0
    %9046 = vmatprep.subr.mxu0 0.0
    %9047 = vmatpush2.msra.mxu0 0.0
    %9048 = vmatprep.subr.mxu0 0.0
    %9049 = vmatpush2.msra.mxu0 0.0
    %9050 = vmatprep.mubr.f32.mxu0 0.0
    %9051 = vmatmul.mubr.f32.gmra.mxu0 %v8972
    %v9052 = vpop.f32.mrf.mxu0
    %v9053 = vadd.f32 0.0, %v9052
    %v9054 = vpop.f32.mrf.mxu0
    %9055 = vmatprep.mubr.f32.mxu0 0.0
    %9056 = vmatmul.mubr.f32.gmra.mxu0 %v8975
    %v9057 = vpop.f32.mrf.mxu0
    %v9058 = vadd.f32 0.0, %v9057
    %v9059 = vpop.f32.mrf.mxu0
    %9060 = vmatprep.mubr.f32.mxu0 0.0
    %9061 = vmatmul.mubr.f32.gmra.mxu0 %v8978
    %v9062 = vpop.f32.mrf.mxu0
    %v9063 = vadd.f32 0.0, %v9062
    %v9064 = vpop.f32.mrf.mxu0
    %9065 = vmatprep.mubr.f32.mxu0 0.0
    %9066 = vmatmul.mubr.f32.gmra.mxu0 %v8981
    %v9067 = vpop.f32.mrf.mxu0
    %v9068 = vadd.f32 0.0, %v9067
    %v9069 = vpop.f32.mrf.mxu0
    %9070 = vdwg.mxu0
    %v9071 = vadd.f32 %v8965, %v9053
    %v9072 = vadd.f32 %v8966, %v9058
    %v9073 = vadd.f32 %v8967, %v9063
    %v9074 = vadd.f32 %v8968, %v9068
    %s9075 = scalar_lea.vmem %s8, 16
    %v9076 = vld [vmem:[%s9075] sm:$0xf]
    %v9078 = vsel %vm911, %v8640, 0
    %v9081 = vsel %vm911, %v8641, 0
    %v9084 = vsel %vm911, %v8642, 0
    %v9087 = vsel %vm911, %v8643, 0
    %v9090 = vsel %vm1020, %v9076, 0
    %9092 = vmatprep.subr.mxu0 0.0
    %9093 = vmatpush1.msra.mxu0 0.0
    %9094 = vmatprep.subr.mxu0 0.0
    %9095 = vmatpush1.msra.mxu0 0.0
    %9096 = vmatprep.subr.mxu0 0.0
    %9097 = vmatpush1.msra.mxu0 0.0
    %9098 = vmatprep.subr.mxu0 0.0
    %9099 = vmatpush1.msra.mxu0 0.0
    %9100 = vmatprep.subr.mxu0 0.0
    %9101 = vmatpush1.msra.mxu0 0.0
    %9102 = vmatprep.subr.mxu0 0.0
    %9103 = vmatpush1.msra.mxu0 0.0
    %9104 = vmatprep.subr.mxu0 0.0
    %9105 = vmatpush1.msra.mxu0 0.0
    %9106 = vmatprep.subr.mxu0 0.0
    %9107 = vmatpush1.msra.mxu0 0.0
    %9108 = vmatprep.subr.mxu0 0.0
    %9109 = vmatpush1.msra.mxu0 0.0
    %9110 = vmatprep.subr.mxu0 0.0
    %9111 = vmatpush1.msra.mxu0 0.0
    %9112 = vmatprep.subr.mxu0 0.0
    %9113 = vmatpush1.msra.mxu0 0.0
    %9114 = vmatprep.subr.mxu0 0.0
    %9115 = vmatpush1.msra.mxu0 0.0
    %9116 = vmatprep.subr.mxu0 0.0
    %9117 = vmatpush1.msra.mxu0 0.0
    %9118 = vmatprep.subr.mxu0 0.0
    %9119 = vmatpush1.msra.mxu0 0.0
    %9120 = vmatprep.subr.mxu0 0.0
    %9121 = vmatpush1.msra.mxu0 0.0
    %9122 = vmatprep.subr.mxu0 0.0
    %9123 = vmatpush1.msra.mxu0 %v9090
    %9124 = vmatprep.subr.mxu0 0.0
    %9125 = vmatpush2.msra.mxu0 0.0
    %9126 = vmatprep.subr.mxu0 0.0
    %9127 = vmatpush2.msra.mxu0 0.0
    %9128 = vmatprep.subr.mxu0 0.0
    %9129 = vmatpush2.msra.mxu0 0.0
    %9130 = vmatprep.subr.mxu0 0.0
    %9131 = vmatpush2.msra.mxu0 0.0
    %9132 = vmatprep.subr.mxu0 0.0
    %9133 = vmatpush2.msra.mxu0 0.0
    %9134 = vmatprep.subr.mxu0 0.0
    %9135 = vmatpush2.msra.mxu0 0.0
    %9136 = vmatprep.subr.mxu0 0.0
    %9137 = vmatpush2.msra.mxu0 0.0
    %9138 = vmatprep.subr.mxu0 0.0
    %9139 = vmatpush2.msra.mxu0 0.0
    %9140 = vmatprep.subr.mxu0 0.0
    %9141 = vmatpush2.msra.mxu0 0.0
    %9142 = vmatprep.subr.mxu0 0.0
    %9143 = vmatpush2.msra.mxu0 0.0
    %9144 = vmatprep.subr.mxu0 0.0
    %9145 = vmatpush2.msra.mxu0 0.0
    %9146 = vmatprep.subr.mxu0 0.0
    %9147 = vmatpush2.msra.mxu0 0.0
    %9148 = vmatprep.subr.mxu0 0.0
    %9149 = vmatpush2.msra.mxu0 0.0
    %9150 = vmatprep.subr.mxu0 0.0
    %9151 = vmatpush2.msra.mxu0 0.0
    %9152 = vmatprep.subr.mxu0 0.0
    %9153 = vmatpush2.msra.mxu0 0.0
    %9154 = vmatprep.subr.mxu0 0.0
    %9155 = vmatpush2.msra.mxu0 0.0
    %9156 = vmatprep.mubr.f32.mxu0 0.0
    %9157 = vmatmul.mubr.f32.gmra.mxu0 %v9078
    %v9158 = vpop.f32.mrf.mxu0
    %v9159 = vadd.f32 0.0, %v9158
    %v9160 = vpop.f32.mrf.mxu0
    %9161 = vmatprep.mubr.f32.mxu0 0.0
    %9162 = vmatmul.mubr.f32.gmra.mxu0 %v9081
    %v9163 = vpop.f32.mrf.mxu0
    %v9164 = vadd.f32 0.0, %v9163
    %v9165 = vpop.f32.mrf.mxu0
    %9166 = vmatprep.mubr.f32.mxu0 0.0
    %9167 = vmatmul.mubr.f32.gmra.mxu0 %v9084
    %v9168 = vpop.f32.mrf.mxu0
    %v9169 = vadd.f32 0.0, %v9168
    %v9170 = vpop.f32.mrf.mxu0
    %9171 = vmatprep.mubr.f32.mxu0 0.0
    %9172 = vmatmul.mubr.f32.gmra.mxu0 %v9087
    %v9173 = vpop.f32.mrf.mxu0
    %v9174 = vadd.f32 0.0, %v9173
    %v9175 = vpop.f32.mrf.mxu0
    %9176 = vdwg.mxu0
    %v9177 = vadd.f32 %v9071, %v9159
    %v9178 = vadd.f32 %v9072, %v9164
    %v9179 = vadd.f32 %v9073, %v9169
    %v9180 = vadd.f32 %v9074, %v9174
    %s9181 = scalar_lea.vmem %s8, 20
    %v9182 = vld [vmem:[%s9181] sm:$0xf]
    %v9184 = vsel %vm911, %v8644, 0
    %v9187 = vsel %vm911, %v8645, 0
    %v9190 = vsel %vm911, %v8646, 0
    %v9193 = vsel %vm911, %v8647, 0
    %v9196 = vsel %vm1020, %v9182, 0
    %9198 = vmatprep.subr.mxu0 0.0
    %9199 = vmatpush1.msra.mxu0 0.0
    %9200 = vmatprep.subr.mxu0 0.0
    %9201 = vmatpush1.msra.mxu0 0.0
    %9202 = vmatprep.subr.mxu0 0.0
    %9203 = vmatpush1.msra.mxu0 0.0
    %9204 = vmatprep.subr.mxu0 0.0
    %9205 = vmatpush1.msra.mxu0 0.0
    %9206 = vmatprep.subr.mxu0 0.0
    %9207 = vmatpush1.msra.mxu0 0.0
    %9208 = vmatprep.subr.mxu0 0.0
    %9209 = vmatpush1.msra.mxu0 0.0
    %9210 = vmatprep.subr.mxu0 0.0
    %9211 = vmatpush1.msra.mxu0 0.0
    %9212 = vmatprep.subr.mxu0 0.0
    %9213 = vmatpush1.msra.mxu0 0.0
    %9214 = vmatprep.subr.mxu0 0.0
    %9215 = vmatpush1.msra.mxu0 0.0
    %9216 = vmatprep.subr.mxu0 0.0
    %9217 = vmatpush1.msra.mxu0 0.0
    %9218 = vmatprep.subr.mxu0 0.0
    %9219 = vmatpush1.msra.mxu0 0.0
    %9220 = vmatprep.subr.mxu0 0.0
    %9221 = vmatpush1.msra.mxu0 0.0
    %9222 = vmatprep.subr.mxu0 0.0
    %9223 = vmatpush1.msra.mxu0 0.0
    %9224 = vmatprep.subr.mxu0 0.0
    %9225 = vmatpush1.msra.mxu0 0.0
    %9226 = vmatprep.subr.mxu0 0.0
    %9227 = vmatpush1.msra.mxu0 0.0
    %9228 = vmatprep.subr.mxu0 0.0
    %9229 = vmatpush1.msra.mxu0 %v9196
    %9230 = vmatprep.subr.mxu0 0.0
    %9231 = vmatpush2.msra.mxu0 0.0
    %9232 = vmatprep.subr.mxu0 0.0
    %9233 = vmatpush2.msra.mxu0 0.0
    %9234 = vmatprep.subr.mxu0 0.0
    %9235 = vmatpush2.msra.mxu0 0.0
    %9236 = vmatprep.subr.mxu0 0.0
    %9237 = vmatpush2.msra.mxu0 0.0
    %9238 = vmatprep.subr.mxu0 0.0
    %9239 = vmatpush2.msra.mxu0 0.0
    %9240 = vmatprep.subr.mxu0 0.0
    %9241 = vmatpush2.msra.mxu0 0.0
    %9242 = vmatprep.subr.mxu0 0.0
    %9243 = vmatpush2.msra.mxu0 0.0
    %9244 = vmatprep.subr.mxu0 0.0
    %9245 = vmatpush2.msra.mxu0 0.0
    %9246 = vmatprep.subr.mxu0 0.0
    %9247 = vmatpush2.msra.mxu0 0.0
    %9248 = vmatprep.subr.mxu0 0.0
    %9249 = vmatpush2.msra.mxu0 0.0
    %9250 = vmatprep.subr.mxu0 0.0
    %9251 = vmatpush2.msra.mxu0 0.0
    %9252 = vmatprep.subr.mxu0 0.0
    %9253 = vmatpush2.msra.mxu0 0.0
    %9254 = vmatprep.subr.mxu0 0.0
    %9255 = vmatpush2.msra.mxu0 0.0
    %9256 = vmatprep.subr.mxu0 0.0
    %9257 = vmatpush2.msra.mxu0 0.0
    %9258 = vmatprep.subr.mxu0 0.0
    %9259 = vmatpush2.msra.mxu0 0.0
    %9260 = vmatprep.subr.mxu0 0.0
    %9261 = vmatpush2.msra.mxu0 0.0
    %9262 = vmatprep.mubr.f32.mxu0 0.0
    %9263 = vmatmul.mubr.f32.gmra.mxu0 %v9184
    %v9264 = vpop.f32.mrf.mxu0
    %v9265 = vadd.f32 0.0, %v9264
    %v9266 = vpop.f32.mrf.mxu0
    %9267 = vmatprep.mubr.f32.mxu0 0.0
    %9268 = vmatmul.mubr.f32.gmra.mxu0 %v9187
    %v9269 = vpop.f32.mrf.mxu0
    %v9270 = vadd.f32 0.0, %v9269
    %v9271 = vpop.f32.mrf.mxu0
    %9272 = vmatprep.mubr.f32.mxu0 0.0
    %9273 = vmatmul.mubr.f32.gmra.mxu0 %v9190
    %v9274 = vpop.f32.mrf.mxu0
    %v9275 = vadd.f32 0.0, %v9274
    %v9276 = vpop.f32.mrf.mxu0
    %9277 = vmatprep.mubr.f32.mxu0 0.0
    %9278 = vmatmul.mubr.f32.gmra.mxu0 %v9193
    %v9279 = vpop.f32.mrf.mxu0
    %v9280 = vadd.f32 0.0, %v9279
    %v9281 = vpop.f32.mrf.mxu0
    %9282 = vdwg.mxu0
    %v9283 = vadd.f32 %v9177, %v9265
    %v9284 = vadd.f32 %v9178, %v9270
    %v9285 = vadd.f32 %v9179, %v9275
    %v9286 = vadd.f32 %v9180, %v9280
    %s9287 = scalar_lea.vmem %s8, 24
    %v9288 = vld [vmem:[%s9287] sm:$0xf]
    %v9290 = vsel %vm911, %v8648, 0
    %v9293 = vsel %vm911, %v8649, 0
    %v9296 = vsel %vm911, %v8650, 0
    %v9299 = vsel %vm911, %v8651, 0
    %v9302 = vsel %vm1020, %v9288, 0
    %9304 = vmatprep.subr.mxu0 0.0
    %9305 = vmatpush1.msra.mxu0 0.0
    %9306 = vmatprep.subr.mxu0 0.0
    %9307 = vmatpush1.msra.mxu0 0.0
    %9308 = vmatprep.subr.mxu0 0.0
    %9309 = vmatpush1.msra.mxu0 0.0
    %9310 = vmatprep.subr.mxu0 0.0
    %9311 = vmatpush1.msra.mxu0 0.0
    %9312 = vmatprep.subr.mxu0 0.0
    %9313 = vmatpush1.msra.mxu0 0.0
    %9314 = vmatprep.subr.mxu0 0.0
    %9315 = vmatpush1.msra.mxu0 0.0
    %9316 = vmatprep.subr.mxu0 0.0
    %9317 = vmatpush1.msra.mxu0 0.0
    %9318 = vmatprep.subr.mxu0 0.0
    %9319 = vmatpush1.msra.mxu0 0.0
    %9320 = vmatprep.subr.mxu0 0.0
    %9321 = vmatpush1.msra.mxu0 0.0
    %9322 = vmatprep.subr.mxu0 0.0
    %9323 = vmatpush1.msra.mxu0 0.0
    %9324 = vmatprep.subr.mxu0 0.0
    %9325 = vmatpush1.msra.mxu0 0.0
    %9326 = vmatprep.subr.mxu0 0.0
    %9327 = vmatpush1.msra.mxu0 0.0
    %9328 = vmatprep.subr.mxu0 0.0
    %9329 = vmatpush1.msra.mxu0 0.0
    %9330 = vmatprep.subr.mxu0 0.0
    %9331 = vmatpush1.msra.mxu0 0.0
    %9332 = vmatprep.subr.mxu0 0.0
    %9333 = vmatpush1.msra.mxu0 0.0
    %9334 = vmatprep.subr.mxu0 0.0
    %9335 = vmatpush1.msra.mxu0 %v9302
    %9336 = vmatprep.subr.mxu0 0.0
    %9337 = vmatpush2.msra.mxu0 0.0
    %9338 = vmatprep.subr.mxu0 0.0
    %9339 = vmatpush2.msra.mxu0 0.0
    %9340 = vmatprep.subr.mxu0 0.0
    %9341 = vmatpush2.msra.mxu0 0.0
    %9342 = vmatprep.subr.mxu0 0.0
    %9343 = vmatpush2.msra.mxu0 0.0
    %9344 = vmatprep.subr.mxu0 0.0
    %9345 = vmatpush2.msra.mxu0 0.0
    %9346 = vmatprep.subr.mxu0 0.0
    %9347 = vmatpush2.msra.mxu0 0.0
    %9348 = vmatprep.subr.mxu0 0.0
    %9349 = vmatpush2.msra.mxu0 0.0
    %9350 = vmatprep.subr.mxu0 0.0
    %9351 = vmatpush2.msra.mxu0 0.0
    %9352 = vmatprep.subr.mxu0 0.0
    %9353 = vmatpush2.msra.mxu0 0.0
    %9354 = vmatprep.subr.mxu0 0.0
    %9355 = vmatpush2.msra.mxu0 0.0
    %9356 = vmatprep.subr.mxu0 0.0
    %9357 = vmatpush2.msra.mxu0 0.0
    %9358 = vmatprep.subr.mxu0 0.0
    %9359 = vmatpush2.msra.mxu0 0.0
    %9360 = vmatprep.subr.mxu0 0.0
    %9361 = vmatpush2.msra.mxu0 0.0
    %9362 = vmatprep.subr.mxu0 0.0
    %9363 = vmatpush2.msra.mxu0 0.0
    %9364 = vmatprep.subr.mxu0 0.0
    %9365 = vmatpush2.msra.mxu0 0.0
    %9366 = vmatprep.subr.mxu0 0.0
    %9367 = vmatpush2.msra.mxu0 0.0
    %9368 = vmatprep.mubr.f32.mxu0 0.0
    %9369 = vmatmul.mubr.f32.gmra.mxu0 %v9290
    %v9370 = vpop.f32.mrf.mxu0
    %v9371 = vadd.f32 0.0, %v9370
    %v9372 = vpop.f32.mrf.mxu0
    %9373 = vmatprep.mubr.f32.mxu0 0.0
    %9374 = vmatmul.mubr.f32.gmra.mxu0 %v9293
    %v9375 = vpop.f32.mrf.mxu0
    %v9376 = vadd.f32 0.0, %v9375
    %v9377 = vpop.f32.mrf.mxu0
    %9378 = vmatprep.mubr.f32.mxu0 0.0
    %9379 = vmatmul.mubr.f32.gmra.mxu0 %v9296
    %v9380 = vpop.f32.mrf.mxu0
    %v9381 = vadd.f32 0.0, %v9380
    %v9382 = vpop.f32.mrf.mxu0
    %9383 = vmatprep.mubr.f32.mxu0 0.0
    %9384 = vmatmul.mubr.f32.gmra.mxu0 %v9299
    %v9385 = vpop.f32.mrf.mxu0
    %v9386 = vadd.f32 0.0, %v9385
    %v9387 = vpop.f32.mrf.mxu0
    %9388 = vdwg.mxu0
    %v9389 = vadd.f32 %v9283, %v9371
    %v9390 = vadd.f32 %v9284, %v9376
    %v9391 = vadd.f32 %v9285, %v9381
    %v9392 = vadd.f32 %v9286, %v9386
    %s9393 = scalar_lea.vmem %s8, 28
    %v9394 = vld [vmem:[%s9393] sm:$0xf]
    %v9396 = vsel %vm911, %v8652, 0
    %v9399 = vsel %vm911, %v8653, 0
    %v9402 = vsel %vm911, %v8654, 0
    %v9405 = vsel %vm911, %v8655, 0
    %v9408 = vsel %vm1020, %v9394, 0
    %9410 = vmatprep.subr.mxu0 0.0
    %9411 = vmatpush1.msra.mxu0 0.0
    %9412 = vmatprep.subr.mxu0 0.0
    %9413 = vmatpush1.msra.mxu0 0.0
    %9414 = vmatprep.subr.mxu0 0.0
    %9415 = vmatpush1.msra.mxu0 0.0
    %9416 = vmatprep.subr.mxu0 0.0
    %9417 = vmatpush1.msra.mxu0 0.0
    %9418 = vmatprep.subr.mxu0 0.0
    %9419 = vmatpush1.msra.mxu0 0.0
    %9420 = vmatprep.subr.mxu0 0.0
    %9421 = vmatpush1.msra.mxu0 0.0
    %9422 = vmatprep.subr.mxu0 0.0
    %9423 = vmatpush1.msra.mxu0 0.0
    %9424 = vmatprep.subr.mxu0 0.0
    %9425 = vmatpush1.msra.mxu0 0.0
    %9426 = vmatprep.subr.mxu0 0.0
    %9427 = vmatpush1.msra.mxu0 0.0
    %9428 = vmatprep.subr.mxu0 0.0
    %9429 = vmatpush1.msra.mxu0 0.0
    %9430 = vmatprep.subr.mxu0 0.0
    %9431 = vmatpush1.msra.mxu0 0.0
    %9432 = vmatprep.subr.mxu0 0.0
    %9433 = vmatpush1.msra.mxu0 0.0
    %9434 = vmatprep.subr.mxu0 0.0
    %9435 = vmatpush1.msra.mxu0 0.0
    %9436 = vmatprep.subr.mxu0 0.0
    %9437 = vmatpush1.msra.mxu0 0.0
    %9438 = vmatprep.subr.mxu0 0.0
    %9439 = vmatpush1.msra.mxu0 0.0
    %9440 = vmatprep.subr.mxu0 0.0
    %9441 = vmatpush1.msra.mxu0 %v9408
    %9442 = vmatprep.subr.mxu0 0.0
    %9443 = vmatpush2.msra.mxu0 0.0
    %9444 = vmatprep.subr.mxu0 0.0
    %9445 = vmatpush2.msra.mxu0 0.0
    %9446 = vmatprep.subr.mxu0 0.0
    %9447 = vmatpush2.msra.mxu0 0.0
    %9448 = vmatprep.subr.mxu0 0.0
    %9449 = vmatpush2.msra.mxu0 0.0
    %9450 = vmatprep.subr.mxu0 0.0
    %9451 = vmatpush2.msra.mxu0 0.0
    %9452 = vmatprep.subr.mxu0 0.0
    %9453 = vmatpush2.msra.mxu0 0.0
    %9454 = vmatprep.subr.mxu0 0.0
    %9455 = vmatpush2.msra.mxu0 0.0
    %9456 = vmatprep.subr.mxu0 0.0
    %9457 = vmatpush2.msra.mxu0 0.0
    %9458 = vmatprep.subr.mxu0 0.0
    %9459 = vmatpush2.msra.mxu0 0.0
    %9460 = vmatprep.subr.mxu0 0.0
    %9461 = vmatpush2.msra.mxu0 0.0
    %9462 = vmatprep.subr.mxu0 0.0
    %9463 = vmatpush2.msra.mxu0 0.0
    %9464 = vmatprep.subr.mxu0 0.0
    %9465 = vmatpush2.msra.mxu0 0.0
    %9466 = vmatprep.subr.mxu0 0.0
    %9467 = vmatpush2.msra.mxu0 0.0
    %9468 = vmatprep.subr.mxu0 0.0
    %9469 = vmatpush2.msra.mxu0 0.0
    %9470 = vmatprep.subr.mxu0 0.0
    %9471 = vmatpush2.msra.mxu0 0.0
    %9472 = vmatprep.subr.mxu0 0.0
    %9473 = vmatpush2.msra.mxu0 0.0
    %9474 = vmatprep.mubr.f32.mxu0 0.0
    %9475 = vmatmul.mubr.f32.gmra.mxu0 %v9396
    %v9476 = vpop.f32.mrf.mxu0
    %v9477 = vadd.f32 0.0, %v9476
    %v9478 = vpop.f32.mrf.mxu0
    %9479 = vmatprep.mubr.f32.mxu0 0.0
    %9480 = vmatmul.mubr.f32.gmra.mxu0 %v9399
    %v9481 = vpop.f32.mrf.mxu0
    %v9482 = vadd.f32 0.0, %v9481
    %v9483 = vpop.f32.mrf.mxu0
    %9484 = vmatprep.mubr.f32.mxu0 0.0
    %9485 = vmatmul.mubr.f32.gmra.mxu0 %v9402
    %v9486 = vpop.f32.mrf.mxu0
    %v9487 = vadd.f32 0.0, %v9486
    %v9488 = vpop.f32.mrf.mxu0
    %9489 = vmatprep.mubr.f32.mxu0 0.0
    %9490 = vmatmul.mubr.f32.gmra.mxu0 %v9405
    %v9491 = vpop.f32.mrf.mxu0
    %v9492 = vadd.f32 0.0, %v9491
    %v9493 = vpop.f32.mrf.mxu0
    %9494 = vdwg.mxu0
    %v9495 = vadd.f32 %v9389, %v9477
    %v9496 = vadd.f32 %v9390, %v9482
    %v9497 = vadd.f32 %v9391, %v9487
    %v9498 = vadd.f32 %v9392, %v9492
    %s9499 = scalar_lea.vmem %s8, 32
    %v9500 = vld [vmem:[%s9499] sm:$0xf]
    %v9502 = vsel %vm911, %v8656, 0
    %v9505 = vsel %vm911, %v8657, 0
    %v9508 = vsel %vm911, %v8658, 0
    %v9511 = vsel %vm911, %v8659, 0
    %v9514 = vsel %vm1020, %v9500, 0
    %9516 = vmatprep.subr.mxu0 0.0
    %9517 = vmatpush1.msra.mxu0 0.0
    %9518 = vmatprep.subr.mxu0 0.0
    %9519 = vmatpush1.msra.mxu0 0.0
    %9520 = vmatprep.subr.mxu0 0.0
    %9521 = vmatpush1.msra.mxu0 0.0
    %9522 = vmatprep.subr.mxu0 0.0
    %9523 = vmatpush1.msra.mxu0 0.0
    %9524 = vmatprep.subr.mxu0 0.0
    %9525 = vmatpush1.msra.mxu0 0.0
    %9526 = vmatprep.subr.mxu0 0.0
    %9527 = vmatpush1.msra.mxu0 0.0
    %9528 = vmatprep.subr.mxu0 0.0
    %9529 = vmatpush1.msra.mxu0 0.0
    %9530 = vmatprep.subr.mxu0 0.0
    %9531 = vmatpush1.msra.mxu0 0.0
    %9532 = vmatprep.subr.mxu0 0.0
    %9533 = vmatpush1.msra.mxu0 0.0
    %9534 = vmatprep.subr.mxu0 0.0
    %9535 = vmatpush1.msra.mxu0 0.0
    %9536 = vmatprep.subr.mxu0 0.0
    %9537 = vmatpush1.msra.mxu0 0.0
    %9538 = vmatprep.subr.mxu0 0.0
    %9539 = vmatpush1.msra.mxu0 0.0
    %9540 = vmatprep.subr.mxu0 0.0
    %9541 = vmatpush1.msra.mxu0 0.0
    %9542 = vmatprep.subr.mxu0 0.0
    %9543 = vmatpush1.msra.mxu0 0.0
    %9544 = vmatprep.subr.mxu0 0.0
    %9545 = vmatpush1.msra.mxu0 0.0
    %9546 = vmatprep.subr.mxu0 0.0
    %9547 = vmatpush1.msra.mxu0 %v9514
    %9548 = vmatprep.subr.mxu0 0.0
    %9549 = vmatpush2.msra.mxu0 0.0
    %9550 = vmatprep.subr.mxu0 0.0
    %9551 = vmatpush2.msra.mxu0 0.0
    %9552 = vmatprep.subr.mxu0 0.0
    %9553 = vmatpush2.msra.mxu0 0.0
    %9554 = vmatprep.subr.mxu0 0.0
    %9555 = vmatpush2.msra.mxu0 0.0
    %9556 = vmatprep.subr.mxu0 0.0
    %9557 = vmatpush2.msra.mxu0 0.0
    %9558 = vmatprep.subr.mxu0 0.0
    %9559 = vmatpush2.msra.mxu0 0.0
    %9560 = vmatprep.subr.mxu0 0.0
    %9561 = vmatpush2.msra.mxu0 0.0
    %9562 = vmatprep.subr.mxu0 0.0
    %9563 = vmatpush2.msra.mxu0 0.0
    %9564 = vmatprep.subr.mxu0 0.0
    %9565 = vmatpush2.msra.mxu0 0.0
    %9566 = vmatprep.subr.mxu0 0.0
    %9567 = vmatpush2.msra.mxu0 0.0
    %9568 = vmatprep.subr.mxu0 0.0
    %9569 = vmatpush2.msra.mxu0 0.0
    %9570 = vmatprep.subr.mxu0 0.0
    %9571 = vmatpush2.msra.mxu0 0.0
    %9572 = vmatprep.subr.mxu0 0.0
    %9573 = vmatpush2.msra.mxu0 0.0
    %9574 = vmatprep.subr.mxu0 0.0
    %9575 = vmatpush2.msra.mxu0 0.0
    %9576 = vmatprep.subr.mxu0 0.0
    %9577 = vmatpush2.msra.mxu0 0.0
    %9578 = vmatprep.subr.mxu0 0.0
    %9579 = vmatpush2.msra.mxu0 0.0
    %9580 = vmatprep.mubr.f32.mxu0 0.0
    %9581 = vmatmul.mubr.f32.gmra.mxu0 %v9502
    %v9582 = vpop.f32.mrf.mxu0
    %v9583 = vadd.f32 0.0, %v9582
    %v9584 = vpop.f32.mrf.mxu0
    %9585 = vmatprep.mubr.f32.mxu0 0.0
    %9586 = vmatmul.mubr.f32.gmra.mxu0 %v9505
    %v9587 = vpop.f32.mrf.mxu0
    %v9588 = vadd.f32 0.0, %v9587
    %v9589 = vpop.f32.mrf.mxu0
    %9590 = vmatprep.mubr.f32.mxu0 0.0
    %9591 = vmatmul.mubr.f32.gmra.mxu0 %v9508
    %v9592 = vpop.f32.mrf.mxu0
    %v9593 = vadd.f32 0.0, %v9592
    %v9594 = vpop.f32.mrf.mxu0
    %9595 = vmatprep.mubr.f32.mxu0 0.0
    %9596 = vmatmul.mubr.f32.gmra.mxu0 %v9511
    %v9597 = vpop.f32.mrf.mxu0
    %v9598 = vadd.f32 0.0, %v9597
    %v9599 = vpop.f32.mrf.mxu0
    %9600 = vdwg.mxu0
    %v9601 = vadd.f32 %v9495, %v9583
    %v9602 = vadd.f32 %v9496, %v9588
    %v9603 = vadd.f32 %v9497, %v9593
    %v9604 = vadd.f32 %v9498, %v9598
    %v9605 = vld [vmem:[%s9] sm:$0x1]
    %v9607 = vlaneseq
    %v9608 = vshrl.u32 %v9607, 7
    %v9609 = vsub.s32 0, %v9608
    %v9610 = vrot.slane %v9605, %v9609
    %v9612 = vadd.f32 %v9601, %v9610
    %v9613 = vadd.f32 %v9602, %v9610
    %v9614 = vadd.f32 %v9603, %v9610
    %v9615 = vadd.f32 %v9604, %v9610
    %v9616 = vmax.f32 %v9612, 0.0
    %v9617 = vmax.f32 %v9613, 0.0
    %v9618 = vmax.f32 %v9614, 0.0
    %v9619 = vmax.f32 %v9615, 0.0
    %v9620 = vld [vmem:[%s10] sm:$0xf]
    %v9621 = vld [vmem:[%s11] sm:$0x1]
    %v9623 = vlaneseq
    %v9624 = vshrl.u32 %v9623, 7
    %v9625 = vsub.s32 0, %v9624
    %v9626 = vrot.slane %v9621, %v9625
    %v9629 = vsel %vm911, %v9616, 0
    %v9632 = vsel %vm911, %v9617, 0
    %v9635 = vsel %vm911, %v9618, 0
    %v9638 = vsel %vm911, %v9619, 0
    %v9641 = vsel %vm1020, %v9620, 0
    %9643 = vmatprep.subr.mxu0 0.0
    %9644 = vmatpush1.msra.mxu0 0.0
    %9645 = vmatprep.subr.mxu0 0.0
    %9646 = vmatpush1.msra.mxu0 0.0
    %9647 = vmatprep.subr.mxu0 0.0
    %9648 = vmatpush1.msra.mxu0 0.0
    %9649 = vmatprep.subr.mxu0 0.0
    %9650 = vmatpush1.msra.mxu0 0.0
    %9651 = vmatprep.subr.mxu0 0.0
    %9652 = vmatpush1.msra.mxu0 0.0
    %9653 = vmatprep.subr.mxu0 0.0
    %9654 = vmatpush1.msra.mxu0 0.0
    %9655 = vmatprep.subr.mxu0 0.0
    %9656 = vmatpush1.msra.mxu0 0.0
    %9657 = vmatprep.subr.mxu0 0.0
    %9658 = vmatpush1.msra.mxu0 0.0
    %9659 = vmatprep.subr.mxu0 0.0
    %9660 = vmatpush1.msra.mxu0 0.0
    %9661 = vmatprep.subr.mxu0 0.0
    %9662 = vmatpush1.msra.mxu0 0.0
    %9663 = vmatprep.subr.mxu0 0.0
    %9664 = vmatpush1.msra.mxu0 0.0
    %9665 = vmatprep.subr.mxu0 0.0
    %9666 = vmatpush1.msra.mxu0 0.0
    %9667 = vmatprep.subr.mxu0 0.0
    %9668 = vmatpush1.msra.mxu0 0.0
    %9669 = vmatprep.subr.mxu0 0.0
    %9670 = vmatpush1.msra.mxu0 0.0
    %9671 = vmatprep.subr.mxu0 0.0
    %9672 = vmatpush1.msra.mxu0 0.0
    %9673 = vmatprep.subr.mxu0 0.0
    %9674 = vmatpush1.msra.mxu0 %v9641
    %9675 = vmatprep.subr.mxu0 0.0
    %9676 = vmatpush2.msra.mxu0 0.0
    %9677 = vmatprep.subr.mxu0 0.0
    %9678 = vmatpush2.msra.mxu0 0.0
    %9679 = vmatprep.subr.mxu0 0.0
    %9680 = vmatpush2.msra.mxu0 0.0
    %9681 = vmatprep.subr.mxu0 0.0
    %9682 = vmatpush2.msra.mxu0 0.0
    %9683 = vmatprep.subr.mxu0 0.0
    %9684 = vmatpush2.msra.mxu0 0.0
    %9685 = vmatprep.subr.mxu0 0.0
    %9686 = vmatpush2.msra.mxu0 0.0
    %9687 = vmatprep.subr.mxu0 0.0
    %9688 = vmatpush2.msra.mxu0 0.0
    %9689 = vmatprep.subr.mxu0 0.0
    %9690 = vmatpush2.msra.mxu0 0.0
    %9691 = vmatprep.subr.mxu0 0.0
    %9692 = vmatpush2.msra.mxu0 0.0
    %9693 = vmatprep.subr.mxu0 0.0
    %9694 = vmatpush2.msra.mxu0 0.0
    %9695 = vmatprep.subr.mxu0 0.0
    %9696 = vmatpush2.msra.mxu0 0.0
    %9697 = vmatprep.subr.mxu0 0.0
    %9698 = vmatpush2.msra.mxu0 0.0
    %9699 = vmatprep.subr.mxu0 0.0
    %9700 = vmatpush2.msra.mxu0 0.0
    %9701 = vmatprep.subr.mxu0 0.0
    %9702 = vmatpush2.msra.mxu0 0.0
    %9703 = vmatprep.subr.mxu0 0.0
    %9704 = vmatpush2.msra.mxu0 0.0
    %9705 = vmatprep.subr.mxu0 0.0
    %9706 = vmatpush2.msra.mxu0 0.0
    %9707 = vmatprep.mubr.f32.mxu0 0.0
    %9708 = vmatmul.mubr.f32.gmra.mxu0 %v9629
    %v9709 = vpop.f32.mrf.mxu0
    %v9710 = vadd.f32 %v9626, %v9709
    %v9711 = vpop.f32.mrf.mxu0
    %9712 = vmatprep.mubr.f32.mxu0 0.0
    %9713 = vmatmul.mubr.f32.gmra.mxu0 %v9632
    %v9714 = vpop.f32.mrf.mxu0
    %v9715 = vadd.f32 %v9626, %v9714
    %v9716 = vpop.f32.mrf.mxu0
    %9717 = vmatprep.mubr.f32.mxu0 0.0
    %9718 = vmatmul.mubr.f32.gmra.mxu0 %v9635
    %v9719 = vpop.f32.mrf.mxu0
    %v9720 = vadd.f32 %v9626, %v9719
    %v9721 = vpop.f32.mrf.mxu0
    %9722 = vmatprep.mubr.f32.mxu0 0.0
    %9723 = vmatmul.mubr.f32.gmra.mxu0 %v9638
    %v9724 = vpop.f32.mrf.mxu0
    %v9725 = vadd.f32 %v9626, %v9724
    %v9726 = vpop.f32.mrf.mxu0
    %9727 = vdwg.mxu0
    %v9728 = vadd.f32 %v9710, %v8041
    %v9729 = vadd.f32 %v9715, %v8042
    %v9730 = vadd.f32 %v9720, %v8043
    %v9731 = vadd.f32 %v9725, %v8044
    %v9732 = vmax.f32 %v9728, 0.0
    %v9733 = vmax.f32 %v9729, 0.0
    %v9734 = vmax.f32 %v9730, 0.0
    %v9735 = vmax.f32 %v9731, 0.0
    %v9736 = vld [vmem:[%s14] sm:$0x1]
    %v9738 = vlaneseq
    %v9739 = vshrl.u32 %v9738, 7
    %v9740 = vsub.s32 0, %v9739
    %v9741 = vrot.slane %v9736, %v9740
    %v9743 = vadd.f32 %v9741, 0.0
    %v9744 = vld [vmem:[%s12] sm:$0x3]
    %vm9745 = vcmask 261120
    %v9747 = vsel %vm9745, %v9744, 0
    %9749 = vmatprep.subr.mxu0 0.0
    %9750 = vmatpush1.msra.mxu0 0.0
    %9751 = vmatprep.subr.mxu0 0.0
    %9752 = vmatpush1.msra.mxu0 0.0
    %9753 = vmatprep.subr.mxu0 0.0
    %9754 = vmatpush1.msra.mxu0 0.0
    %9755 = vmatprep.subr.mxu0 0.0
    %9756 = vmatpush1.msra.mxu0 0.0
    %9757 = vmatprep.subr.mxu0 0.0
    %9758 = vmatpush1.msra.mxu0 0.0
    %9759 = vmatprep.subr.mxu0 0.0
    %9760 = vmatpush1.msra.mxu0 0.0
    %9761 = vmatprep.subr.mxu0 0.0
    %9762 = vmatpush1.msra.mxu0 0.0
    %9763 = vmatprep.subr.mxu0 0.0
    %9764 = vmatpush1.msra.mxu0 0.0
    %9765 = vmatprep.subr.mxu0 0.0
    %9766 = vmatpush1.msra.mxu0 0.0
    %9767 = vmatprep.subr.mxu0 0.0
    %9768 = vmatpush1.msra.mxu0 0.0
    %9769 = vmatprep.subr.mxu0 0.0
    %9770 = vmatpush1.msra.mxu0 0.0
    %9771 = vmatprep.subr.mxu0 0.0
    %9772 = vmatpush1.msra.mxu0 0.0
    %9773 = vmatprep.subr.mxu0 0.0
    %9774 = vmatpush1.msra.mxu0 %v9735
    %9775 = vmatprep.subr.mxu0 0.0
    %9776 = vmatpush1.msra.mxu0 %v9734
    %9777 = vmatprep.subr.mxu0 0.0
    %9778 = vmatpush1.msra.mxu0 %v9733
    %9779 = vmatprep.subr.mxu0 0.0
    %9780 = vmatpush1.msra.mxu0 %v9732
    %9781 = vmatprep.subr.mxu0 0.0
    %9782 = vmatpush2.msra.mxu0 0.0
    %9783 = vmatprep.subr.mxu0 0.0
    %9784 = vmatpush2.msra.mxu0 0.0
    %9785 = vmatprep.subr.mxu0 0.0
    %9786 = vmatpush2.msra.mxu0 0.0
    %9787 = vmatprep.subr.mxu0 0.0
    %9788 = vmatpush2.msra.mxu0 0.0
    %9789 = vmatprep.subr.mxu0 0.0
    %9790 = vmatpush2.msra.mxu0 0.0
    %9791 = vmatprep.subr.mxu0 0.0
    %9792 = vmatpush2.msra.mxu0 0.0
    %9793 = vmatprep.subr.mxu0 0.0
    %9794 = vmatpush2.msra.mxu0 0.0
    %9795 = vmatprep.subr.mxu0 0.0
    %9796 = vmatpush2.msra.mxu0 0.0
    %9797 = vmatprep.subr.mxu0 0.0
    %9798 = vmatpush2.msra.mxu0 0.0
    %9799 = vmatprep.subr.mxu0 0.0
    %9800 = vmatpush2.msra.mxu0 0.0
    %9801 = vmatprep.subr.mxu0 0.0
    %9802 = vmatpush2.msra.mxu0 0.0
    %9803 = vmatprep.subr.mxu0 0.0
    %9804 = vmatpush2.msra.mxu0 0.0
    %9805 = vmatprep.subr.mxu0 0.0
    %9806 = vmatpush2.msra.mxu0 0.0
    %9807 = vmatprep.subr.mxu0 0.0
    %9808 = vmatpush2.msra.mxu0 0.0
    %9809 = vmatprep.subr.mxu0 0.0
    %9810 = vmatpush2.msra.mxu0 0.0
    %9811 = vmatprep.subr.mxu0 0.0
    %9812 = vmatpush2.msra.mxu0 0.0
    %9813 = vmatprep.mubr.f32.mxu0 0.0
    %9814 = vmatmul.mubr.f32.gmra.mxu0 %v9747
    %v9815 = vpop.f32.mrf.mxu0
    %v9816 = vadd.f32 0.0, %v9815
    %v9817 = vpop.f32.mrf.mxu0
    %9818 = vdwg.mxu0
    %v9819 = vld [vmem:[%s13] sm:$0xff]
    %v9820 = vld [vmem:[%s13 + $0x8] sm:$0xff]
    %v9822 = vsel %vm8054, %v9816, 0
    %9824 = vmatprep.subr.mxu0 0.0
    %9825 = vmatpush1.msra.mxu0 0.0
    %9826 = vmatprep.subr.mxu0 0.0
    %9827 = vmatpush1.msra.mxu0 0.0
    %9828 = vmatprep.subr.mxu0 0.0
    %9829 = vmatpush1.msra.mxu0 0.0
    %9830 = vmatprep.subr.mxu0 0.0
    %9831 = vmatpush1.msra.mxu0 0.0
    %9832 = vmatprep.subr.mxu0 0.0
    %9833 = vmatpush1.msra.mxu0 0.0
    %9834 = vmatprep.subr.mxu0 0.0
    %9835 = vmatpush1.msra.mxu0 0.0
    %9836 = vmatprep.subr.mxu0 0.0
    %9837 = vmatpush1.msra.mxu0 0.0
    %9838 = vmatprep.subr.mxu0 0.0
    %9839 = vmatpush1.msra.mxu0 0.0
    %9840 = vmatprep.subr.mxu0 0.0
    %9841 = vmatpush1.msra.mxu0 0.0
    %9842 = vmatprep.subr.mxu0 0.0
    %9843 = vmatpush1.msra.mxu0 0.0
    %9844 = vmatprep.subr.mxu0 0.0
    %9845 = vmatpush1.msra.mxu0 0.0
    %9846 = vmatprep.subr.mxu0 0.0
    %9847 = vmatpush1.msra.mxu0 0.0
    %9848 = vmatprep.subr.mxu0 0.0
    %9849 = vmatpush1.msra.mxu0 0.0
    %9850 = vmatprep.subr.mxu0 0.0
    %9851 = vmatpush1.msra.mxu0 0.0
    %9852 = vmatprep.subr.mxu0 0.0
    %9853 = vmatpush1.msra.mxu0 %v9820
    %9854 = vmatprep.subr.mxu0 0.0
    %9855 = vmatpush1.msra.mxu0 %v9819
    %9856 = vmatprep.subr.mxu0 0.0
    %9857 = vmatpush2.msra.mxu0 0.0
    %9858 = vmatprep.subr.mxu0 0.0
    %9859 = vmatpush2.msra.mxu0 0.0
    %9860 = vmatprep.subr.mxu0 0.0
    %9861 = vmatpush2.msra.mxu0 0.0
    %9862 = vmatprep.subr.mxu0 0.0
    %9863 = vmatpush2.msra.mxu0 0.0
    %9864 = vmatprep.subr.mxu0 0.0
    %9865 = vmatpush2.msra.mxu0 0.0
    %9866 = vmatprep.subr.mxu0 0.0
    %9867 = vmatpush2.msra.mxu0 0.0
    %9868 = vmatprep.subr.mxu0 0.0
    %9869 = vmatpush2.msra.mxu0 0.0
    %9870 = vmatprep.subr.mxu0 0.0
    %9871 = vmatpush2.msra.mxu0 0.0
    %9872 = vmatprep.subr.mxu0 0.0
    %9873 = vmatpush2.msra.mxu0 0.0
    %9874 = vmatprep.subr.mxu0 0.0
    %9875 = vmatpush2.msra.mxu0 0.0
    %9876 = vmatprep.subr.mxu0 0.0
    %9877 = vmatpush2.msra.mxu0 0.0
    %9878 = vmatprep.subr.mxu0 0.0
    %9879 = vmatpush2.msra.mxu0 0.0
    %9880 = vmatprep.subr.mxu0 0.0
    %9881 = vmatpush2.msra.mxu0 0.0
    %9882 = vmatprep.subr.mxu0 0.0
    %9883 = vmatpush2.msra.mxu0 0.0
    %9884 = vmatprep.subr.mxu0 0.0
    %9885 = vmatpush2.msra.mxu0 0.0
    %9886 = vmatprep.subr.mxu0 0.0
    %9887 = vmatpush2.msra.mxu0 0.0
    %9888 = vmatprep.mubr.f32.mxu0 0.0
    %9889 = vmatmul.mubr.f32.gmra.mxu0 %v9822
    %v9890 = vpop.f32.mrf.mxu0
    %v9891 = vadd.f32 0.0, %v9890
    %v9892 = vpop.f32.mrf.mxu0
    %9893 = vdwg.mxu0
    %v9894 = vadd.f32 %v9743, %v9891
    %s9895 = scalar_lea.vmem %s12, 2
    %v9896 = vld [vmem:[%s9895] sm:$0x3]
    %v9898 = vsel %vm9745, %v9896, 0
    %9900 = vmatprep.subr.mxu0 0.0
    %9901 = vmatpush1.msra.mxu0 0.0
    %9902 = vmatprep.subr.mxu0 0.0
    %9903 = vmatpush1.msra.mxu0 0.0
    %9904 = vmatprep.subr.mxu0 0.0
    %9905 = vmatpush1.msra.mxu0 0.0
    %9906 = vmatprep.subr.mxu0 0.0
    %9907 = vmatpush1.msra.mxu0 0.0
    %9908 = vmatprep.subr.mxu0 0.0
    %9909 = vmatpush1.msra.mxu0 0.0
    %9910 = vmatprep.subr.mxu0 0.0
    %9911 = vmatpush1.msra.mxu0 0.0
    %9912 = vmatprep.subr.mxu0 0.0
    %9913 = vmatpush1.msra.mxu0 0.0
    %9914 = vmatprep.subr.mxu0 0.0
    %9915 = vmatpush1.msra.mxu0 0.0
    %9916 = vmatprep.subr.mxu0 0.0
    %9917 = vmatpush1.msra.mxu0 0.0
    %9918 = vmatprep.subr.mxu0 0.0
    %9919 = vmatpush1.msra.mxu0 0.0
    %9920 = vmatprep.subr.mxu0 0.0
    %9921 = vmatpush1.msra.mxu0 0.0
    %9922 = vmatprep.subr.mxu0 0.0
    %9923 = vmatpush1.msra.mxu0 0.0
    %9924 = vmatprep.subr.mxu0 0.0
    %9925 = vmatpush1.msra.mxu0 %v9735
    %9926 = vmatprep.subr.mxu0 0.0
    %9927 = vmatpush1.msra.mxu0 %v9734
    %9928 = vmatprep.subr.mxu0 0.0
    %9929 = vmatpush1.msra.mxu0 %v9733
    %9930 = vmatprep.subr.mxu0 0.0
    %9931 = vmatpush1.msra.mxu0 %v9732
    %9932 = vmatprep.subr.mxu0 0.0
    %9933 = vmatpush2.msra.mxu0 0.0
    %9934 = vmatprep.subr.mxu0 0.0
    %9935 = vmatpush2.msra.mxu0 0.0
    %9936 = vmatprep.subr.mxu0 0.0
    %9937 = vmatpush2.msra.mxu0 0.0
    %9938 = vmatprep.subr.mxu0 0.0
    %9939 = vmatpush2.msra.mxu0 0.0
    %9940 = vmatprep.subr.mxu0 0.0
    %9941 = vmatpush2.msra.mxu0 0.0
    %9942 = vmatprep.subr.mxu0 0.0
    %9943 = vmatpush2.msra.mxu0 0.0
    %9944 = vmatprep.subr.mxu0 0.0
    %9945 = vmatpush2.msra.mxu0 0.0
    %9946 = vmatprep.subr.mxu0 0.0
    %9947 = vmatpush2.msra.mxu0 0.0
    %9948 = vmatprep.subr.mxu0 0.0
    %9949 = vmatpush2.msra.mxu0 0.0
    %9950 = vmatprep.subr.mxu0 0.0
    %9951 = vmatpush2.msra.mxu0 0.0
    %9952 = vmatprep.subr.mxu0 0.0
    %9953 = vmatpush2.msra.mxu0 0.0
    %9954 = vmatprep.subr.mxu0 0.0
    %9955 = vmatpush2.msra.mxu0 0.0
    %9956 = vmatprep.subr.mxu0 0.0
    %9957 = vmatpush2.msra.mxu0 0.0
    %9958 = vmatprep.subr.mxu0 0.0
    %9959 = vmatpush2.msra.mxu0 0.0
    %9960 = vmatprep.subr.mxu0 0.0
    %9961 = vmatpush2.msra.mxu0 0.0
    %9962 = vmatprep.subr.mxu0 0.0
    %9963 = vmatpush2.msra.mxu0 0.0
    %9964 = vmatprep.mubr.f32.mxu0 0.0
    %9965 = vmatmul.mubr.f32.gmra.mxu0 %v9898
    %v9966 = vpop.f32.mrf.mxu0
    %v9967 = vadd.f32 0.0, %v9966
    %v9968 = vpop.f32.mrf.mxu0
    %9969 = vdwg.mxu0
    %s9970 = scalar_lea.vmem %s13, 16
    %v9971 = vld [vmem:[%s9970] sm:$0xff]
    %v9972 = vld [vmem:[%s9970 + $0x8] sm:$0xff]
    %v9974 = vsel %vm8054, %v9967, 0
    %9976 = vmatprep.subr.mxu0 0.0
    %9977 = vmatpush1.msra.mxu0 0.0
    %9978 = vmatprep.subr.mxu0 0.0
    %9979 = vmatpush1.msra.mxu0 0.0
    %9980 = vmatprep.subr.mxu0 0.0
    %9981 = vmatpush1.msra.mxu0 0.0
    %9982 = vmatprep.subr.mxu0 0.0
    %9983 = vmatpush1.msra.mxu0 0.0
    %9984 = vmatprep.subr.mxu0 0.0
    %9985 = vmatpush1.msra.mxu0 0.0
    %9986 = vmatprep.subr.mxu0 0.0
    %9987 = vmatpush1.msra.mxu0 0.0
    %9988 = vmatprep.subr.mxu0 0.0
    %9989 = vmatpush1.msra.mxu0 0.0
    %9990 = vmatprep.subr.mxu0 0.0
    %9991 = vmatpush1.msra.mxu0 0.0
    %9992 = vmatprep.subr.mxu0 0.0
    %9993 = vmatpush1.msra.mxu0 0.0
    %9994 = vmatprep.subr.mxu0 0.0
    %9995 = vmatpush1.msra.mxu0 0.0
    %9996 = vmatprep.subr.mxu0 0.0
    %9997 = vmatpush1.msra.mxu0 0.0
    %9998 = vmatprep.subr.mxu0 0.0
    %9999 = vmatpush1.msra.mxu0 0.0
    %10000 = vmatprep.subr.mxu0 0.0
    %10001 = vmatpush1.msra.mxu0 0.0
    %10002 = vmatprep.subr.mxu0 0.0
    %10003 = vmatpush1.msra.mxu0 0.0
    %10004 = vmatprep.subr.mxu0 0.0
    %10005 = vmatpush1.msra.mxu0 %v9972
    %10006 = vmatprep.subr.mxu0 0.0
    %10007 = vmatpush1.msra.mxu0 %v9971
    %10008 = vmatprep.subr.mxu0 0.0
    %10009 = vmatpush2.msra.mxu0 0.0
    %10010 = vmatprep.subr.mxu0 0.0
    %10011 = vmatpush2.msra.mxu0 0.0
    %10012 = vmatprep.subr.mxu0 0.0
    %10013 = vmatpush2.msra.mxu0 0.0
    %10014 = vmatprep.subr.mxu0 0.0
    %10015 = vmatpush2.msra.mxu0 0.0
    %10016 = vmatprep.subr.mxu0 0.0
    %10017 = vmatpush2.msra.mxu0 0.0
    %10018 = vmatprep.subr.mxu0 0.0
    %10019 = vmatpush2.msra.mxu0 0.0
    %10020 = vmatprep.subr.mxu0 0.0
    %10021 = vmatpush2.msra.mxu0 0.0
    %10022 = vmatprep.subr.mxu0 0.0
    %10023 = vmatpush2.msra.mxu0 0.0
    %10024 = vmatprep.subr.mxu0 0.0
    %10025 = vmatpush2.msra.mxu0 0.0
    %10026 = vmatprep.subr.mxu0 0.0
    %10027 = vmatpush2.msra.mxu0 0.0
    %10028 = vmatprep.subr.mxu0 0.0
    %10029 = vmatpush2.msra.mxu0 0.0
    %10030 = vmatprep.subr.mxu0 0.0
    %10031 = vmatpush2.msra.mxu0 0.0
    %10032 = vmatprep.subr.mxu0 0.0
    %10033 = vmatpush2.msra.mxu0 0.0
    %10034 = vmatprep.subr.mxu0 0.0
    %10035 = vmatpush2.msra.mxu0 0.0
    %10036 = vmatprep.subr.mxu0 0.0
    %10037 = vmatpush2.msra.mxu0 0.0
    %10038 = vmatprep.subr.mxu0 0.0
    %10039 = vmatpush2.msra.mxu0 0.0
    %10040 = vmatprep.mubr.f32.mxu0 0.0
    %10041 = vmatmul.mubr.f32.gmra.mxu0 %v9974
    %v10042 = vpop.f32.mrf.mxu0
    %v10043 = vadd.f32 0.0, %v10042
    %v10044 = vpop.f32.mrf.mxu0
    %10045 = vdwg.mxu0
    %v10046 = vadd.f32 %v9894, %v10043
    %s10047 = scalar_lea.vmem %s12, 4
    %v10048 = vld [vmem:[%s10047] sm:$0x3]
    %v10050 = vsel %vm9745, %v10048, 0
    %10052 = vmatprep.subr.mxu0 0.0
    %10053 = vmatpush1.msra.mxu0 0.0
    %10054 = vmatprep.subr.mxu0 0.0
    %10055 = vmatpush1.msra.mxu0 0.0
    %10056 = vmatprep.subr.mxu0 0.0
    %10057 = vmatpush1.msra.mxu0 0.0
    %10058 = vmatprep.subr.mxu0 0.0
    %10059 = vmatpush1.msra.mxu0 0.0
    %10060 = vmatprep.subr.mxu0 0.0
    %10061 = vmatpush1.msra.mxu0 0.0
    %10062 = vmatprep.subr.mxu0 0.0
    %10063 = vmatpush1.msra.mxu0 0.0
    %10064 = vmatprep.subr.mxu0 0.0
    %10065 = vmatpush1.msra.mxu0 0.0
    %10066 = vmatprep.subr.mxu0 0.0
    %10067 = vmatpush1.msra.mxu0 0.0
    %10068 = vmatprep.subr.mxu0 0.0
    %10069 = vmatpush1.msra.mxu0 0.0
    %10070 = vmatprep.subr.mxu0 0.0
    %10071 = vmatpush1.msra.mxu0 0.0
    %10072 = vmatprep.subr.mxu0 0.0
    %10073 = vmatpush1.msra.mxu0 0.0
    %10074 = vmatprep.subr.mxu0 0.0
    %10075 = vmatpush1.msra.mxu0 0.0
    %10076 = vmatprep.subr.mxu0 0.0
    %10077 = vmatpush1.msra.mxu0 %v9735
    %10078 = vmatprep.subr.mxu0 0.0
    %10079 = vmatpush1.msra.mxu0 %v9734
    %10080 = vmatprep.subr.mxu0 0.0
    %10081 = vmatpush1.msra.mxu0 %v9733
    %10082 = vmatprep.subr.mxu0 0.0
    %10083 = vmatpush1.msra.mxu0 %v9732
    %10084 = vmatprep.subr.mxu0 0.0
    %10085 = vmatpush2.msra.mxu0 0.0
    %10086 = vmatprep.subr.mxu0 0.0
    %10087 = vmatpush2.msra.mxu0 0.0
    %10088 = vmatprep.subr.mxu0 0.0
    %10089 = vmatpush2.msra.mxu0 0.0
    %10090 = vmatprep.subr.mxu0 0.0
    %10091 = vmatpush2.msra.mxu0 0.0
    %10092 = vmatprep.subr.mxu0 0.0
    %10093 = vmatpush2.msra.mxu0 0.0
    %10094 = vmatprep.subr.mxu0 0.0
    %10095 = vmatpush2.msra.mxu0 0.0
    %10096 = vmatprep.subr.mxu0 0.0
    %10097 = vmatpush2.msra.mxu0 0.0
    %10098 = vmatprep.subr.mxu0 0.0
    %10099 = vmatpush2.msra.mxu0 0.0
    %10100 = vmatprep.subr.mxu0 0.0
    %10101 = vmatpush2.msra.mxu0 0.0
    %10102 = vmatprep.subr.mxu0 0.0
    %10103 = vmatpush2.msra.mxu0 0.0
    %10104 = vmatprep.subr.mxu0 0.0
    %10105 = vmatpush2.msra.mxu0 0.0
    %10106 = vmatprep.subr.mxu0 0.0
    %10107 = vmatpush2.msra.mxu0 0.0
    %10108 = vmatprep.subr.mxu0 0.0
    %10109 = vmatpush2.msra.mxu0 0.0
    %10110 = vmatprep.subr.mxu0 0.0
    %10111 = vmatpush2.msra.mxu0 0.0
    %10112 = vmatprep.subr.mxu0 0.0
    %10113 = vmatpush2.msra.mxu0 0.0
    %10114 = vmatprep.subr.mxu0 0.0
    %10115 = vmatpush2.msra.mxu0 0.0
    %10116 = vmatprep.mubr.f32.mxu0 0.0
    %10117 = vmatmul.mubr.f32.gmra.mxu0 %v10050
    %v10118 = vpop.f32.mrf.mxu0
    %v10119 = vadd.f32 0.0, %v10118
    %v10120 = vpop.f32.mrf.mxu0
    %10121 = vdwg.mxu0
    %s10122 = scalar_lea.vmem %s13, 32
    %v10123 = vld [vmem:[%s10122] sm:$0xff]
    %v10124 = vld [vmem:[%s10122 + $0x8] sm:$0xff]
    %v10126 = vsel %vm8054, %v10119, 0
    %10128 = vmatprep.subr.mxu0 0.0
    %10129 = vmatpush1.msra.mxu0 0.0
    %10130 = vmatprep.subr.mxu0 0.0
    %10131 = vmatpush1.msra.mxu0 0.0
    %10132 = vmatprep.subr.mxu0 0.0
    %10133 = vmatpush1.msra.mxu0 0.0
    %10134 = vmatprep.subr.mxu0 0.0
    %10135 = vmatpush1.msra.mxu0 0.0
    %10136 = vmatprep.subr.mxu0 0.0
    %10137 = vmatpush1.msra.mxu0 0.0
    %10138 = vmatprep.subr.mxu0 0.0
    %10139 = vmatpush1.msra.mxu0 0.0
    %10140 = vmatprep.subr.mxu0 0.0
    %10141 = vmatpush1.msra.mxu0 0.0
    %10142 = vmatprep.subr.mxu0 0.0
    %10143 = vmatpush1.msra.mxu0 0.0
    %10144 = vmatprep.subr.mxu0 0.0
    %10145 = vmatpush1.msra.mxu0 0.0
    %10146 = vmatprep.subr.mxu0 0.0
    %10147 = vmatpush1.msra.mxu0 0.0
    %10148 = vmatprep.subr.mxu0 0.0
    %10149 = vmatpush1.msra.mxu0 0.0
    %10150 = vmatprep.subr.mxu0 0.0
    %10151 = vmatpush1.msra.mxu0 0.0
    %10152 = vmatprep.subr.mxu0 0.0
    %10153 = vmatpush1.msra.mxu0 0.0
    %10154 = vmatprep.subr.mxu0 0.0
    %10155 = vmatpush1.msra.mxu0 0.0
    %10156 = vmatprep.subr.mxu0 0.0
    %10157 = vmatpush1.msra.mxu0 %v10124
    %10158 = vmatprep.subr.mxu0 0.0
    %10159 = vmatpush1.msra.mxu0 %v10123
    %10160 = vmatprep.subr.mxu0 0.0
    %10161 = vmatpush2.msra.mxu0 0.0
    %10162 = vmatprep.subr.mxu0 0.0
    %10163 = vmatpush2.msra.mxu0 0.0
    %10164 = vmatprep.subr.mxu0 0.0
    %10165 = vmatpush2.msra.mxu0 0.0
    %10166 = vmatprep.subr.mxu0 0.0
    %10167 = vmatpush2.msra.mxu0 0.0
    %10168 = vmatprep.subr.mxu0 0.0
    %10169 = vmatpush2.msra.mxu0 0.0
    %10170 = vmatprep.subr.mxu0 0.0
    %10171 = vmatpush2.msra.mxu0 0.0
    %10172 = vmatprep.subr.mxu0 0.0
    %10173 = vmatpush2.msra.mxu0 0.0
    %10174 = vmatprep.subr.mxu0 0.0
    %10175 = vmatpush2.msra.mxu0 0.0
    %10176 = vmatprep.subr.mxu0 0.0
    %10177 = vmatpush2.msra.mxu0 0.0
    %10178 = vmatprep.subr.mxu0 0.0
    %10179 = vmatpush2.msra.mxu0 0.0
    %10180 = vmatprep.subr.mxu0 0.0
    %10181 = vmatpush2.msra.mxu0 0.0
    %10182 = vmatprep.subr.mxu0 0.0
    %10183 = vmatpush2.msra.mxu0 0.0
    %10184 = vmatprep.subr.mxu0 0.0
    %10185 = vmatpush2.msra.mxu0 0.0
    %10186 = vmatprep.subr.mxu0 0.0
    %10187 = vmatpush2.msra.mxu0 0.0
    %10188 = vmatprep.subr.mxu0 0.0
    %10189 = vmatpush2.msra.mxu0 0.0
    %10190 = vmatprep.subr.mxu0 0.0
    %10191 = vmatpush2.msra.mxu0 0.0
    %10192 = vmatprep.mubr.f32.mxu0 0.0
    %10193 = vmatmul.mubr.f32.gmra.mxu0 %v10126
    %v10194 = vpop.f32.mrf.mxu0
    %v10195 = vadd.f32 0.0, %v10194
    %v10196 = vpop.f32.mrf.mxu0
    %10197 = vdwg.mxu0
    %v10198 = vadd.f32 %v10046, %v10195
    %s10199 = scalar_lea.vmem %s12, 6
    %v10200 = vld [vmem:[%s10199] sm:$0x3]
    %v10202 = vsel %vm9745, %v10200, 0
    %10204 = vmatprep.subr.mxu0 0.0
    %10205 = vmatpush1.msra.mxu0 0.0
    %10206 = vmatprep.subr.mxu0 0.0
    %10207 = vmatpush1.msra.mxu0 0.0
    %10208 = vmatprep.subr.mxu0 0.0
    %10209 = vmatpush1.msra.mxu0 0.0
    %10210 = vmatprep.subr.mxu0 0.0
    %10211 = vmatpush1.msra.mxu0 0.0
    %10212 = vmatprep.subr.mxu0 0.0
    %10213 = vmatpush1.msra.mxu0 0.0
    %10214 = vmatprep.subr.mxu0 0.0
    %10215 = vmatpush1.msra.mxu0 0.0
    %10216 = vmatprep.subr.mxu0 0.0
    %10217 = vmatpush1.msra.mxu0 0.0
    %10218 = vmatprep.subr.mxu0 0.0
    %10219 = vmatpush1.msra.mxu0 0.0
    %10220 = vmatprep.subr.mxu0 0.0
    %10221 = vmatpush1.msra.mxu0 0.0
    %10222 = vmatprep.subr.mxu0 0.0
    %10223 = vmatpush1.msra.mxu0 0.0
    %10224 = vmatprep.subr.mxu0 0.0
    %10225 = vmatpush1.msra.mxu0 0.0
    %10226 = vmatprep.subr.mxu0 0.0
    %10227 = vmatpush1.msra.mxu0 0.0
    %10228 = vmatprep.subr.mxu0 0.0
    %10229 = vmatpush1.msra.mxu0 %v9735
    %10230 = vmatprep.subr.mxu0 0.0
    %10231 = vmatpush1.msra.mxu0 %v9734
    %10232 = vmatprep.subr.mxu0 0.0
    %10233 = vmatpush1.msra.mxu0 %v9733
    %10234 = vmatprep.subr.mxu0 0.0
    %10235 = vmatpush1.msra.mxu0 %v9732
    %10236 = vmatprep.subr.mxu0 0.0
    %10237 = vmatpush2.msra.mxu0 0.0
    %10238 = vmatprep.subr.mxu0 0.0
    %10239 = vmatpush2.msra.mxu0 0.0
    %10240 = vmatprep.subr.mxu0 0.0
    %10241 = vmatpush2.msra.mxu0 0.0
    %10242 = vmatprep.subr.mxu0 0.0
    %10243 = vmatpush2.msra.mxu0 0.0
    %10244 = vmatprep.subr.mxu0 0.0
    %10245 = vmatpush2.msra.mxu0 0.0
    %10246 = vmatprep.subr.mxu0 0.0
    %10247 = vmatpush2.msra.mxu0 0.0
    %10248 = vmatprep.subr.mxu0 0.0
    %10249 = vmatpush2.msra.mxu0 0.0
    %10250 = vmatprep.subr.mxu0 0.0
    %10251 = vmatpush2.msra.mxu0 0.0
    %10252 = vmatprep.subr.mxu0 0.0
    %10253 = vmatpush2.msra.mxu0 0.0
    %10254 = vmatprep.subr.mxu0 0.0
    %10255 = vmatpush2.msra.mxu0 0.0
    %10256 = vmatprep.subr.mxu0 0.0
    %10257 = vmatpush2.msra.mxu0 0.0
    %10258 = vmatprep.subr.mxu0 0.0
    %10259 = vmatpush2.msra.mxu0 0.0
    %10260 = vmatprep.subr.mxu0 0.0
    %10261 = vmatpush2.msra.mxu0 0.0
    %10262 = vmatprep.subr.mxu0 0.0
    %10263 = vmatpush2.msra.mxu0 0.0
    %10264 = vmatprep.subr.mxu0 0.0
    %10265 = vmatpush2.msra.mxu0 0.0
    %10266 = vmatprep.subr.mxu0 0.0
    %10267 = vmatpush2.msra.mxu0 0.0
    %10268 = vmatprep.mubr.f32.mxu0 0.0
    %10269 = vmatmul.mubr.f32.gmra.mxu0 %v10202
    %v10270 = vpop.f32.mrf.mxu0
    %v10271 = vadd.f32 0.0, %v10270
    %v10272 = vpop.f32.mrf.mxu0
    %10273 = vdwg.mxu0
    %s10274 = scalar_lea.vmem %s13, 48
    %v10275 = vld [vmem:[%s10274] sm:$0xff]
    %v10276 = vld [vmem:[%s10274 + $0x8] sm:$0xff]
    %v10278 = vsel %vm8054, %v10271, 0
    %10280 = vmatprep.subr.mxu0 0.0
    %10281 = vmatpush1.msra.mxu0 0.0
    %10282 = vmatprep.subr.mxu0 0.0
    %10283 = vmatpush1.msra.mxu0 0.0
    %10284 = vmatprep.subr.mxu0 0.0
    %10285 = vmatpush1.msra.mxu0 0.0
    %10286 = vmatprep.subr.mxu0 0.0
    %10287 = vmatpush1.msra.mxu0 0.0
    %10288 = vmatprep.subr.mxu0 0.0
    %10289 = vmatpush1.msra.mxu0 0.0
    %10290 = vmatprep.subr.mxu0 0.0
    %10291 = vmatpush1.msra.mxu0 0.0
    %10292 = vmatprep.subr.mxu0 0.0
    %10293 = vmatpush1.msra.mxu0 0.0
    %10294 = vmatprep.subr.mxu0 0.0
    %10295 = vmatpush1.msra.mxu0 0.0
    %10296 = vmatprep.subr.mxu0 0.0
    %10297 = vmatpush1.msra.mxu0 0.0
    %10298 = vmatprep.subr.mxu0 0.0
    %10299 = vmatpush1.msra.mxu0 0.0
    %10300 = vmatprep.subr.mxu0 0.0
    %10301 = vmatpush1.msra.mxu0 0.0
    %10302 = vmatprep.subr.mxu0 0.0
    %10303 = vmatpush1.msra.mxu0 0.0
    %10304 = vmatprep.subr.mxu0 0.0
    %10305 = vmatpush1.msra.mxu0 0.0
    %10306 = vmatprep.subr.mxu0 0.0
    %10307 = vmatpush1.msra.mxu0 0.0
    %10308 = vmatprep.subr.mxu0 0.0
    %10309 = vmatpush1.msra.mxu0 %v10276
    %10310 = vmatprep.subr.mxu0 0.0
    %10311 = vmatpush1.msra.mxu0 %v10275
    %10312 = vmatprep.subr.mxu0 0.0
    %10313 = vmatpush2.msra.mxu0 0.0
    %10314 = vmatprep.subr.mxu0 0.0
    %10315 = vmatpush2.msra.mxu0 0.0
    %10316 = vmatprep.subr.mxu0 0.0
    %10317 = vmatpush2.msra.mxu0 0.0
    %10318 = vmatprep.subr.mxu0 0.0
    %10319 = vmatpush2.msra.mxu0 0.0
    %10320 = vmatprep.subr.mxu0 0.0
    %10321 = vmatpush2.msra.mxu0 0.0
    %10322 = vmatprep.subr.mxu0 0.0
    %10323 = vmatpush2.msra.mxu0 0.0
    %10324 = vmatprep.subr.mxu0 0.0
    %10325 = vmatpush2.msra.mxu0 0.0
    %10326 = vmatprep.subr.mxu0 0.0
    %10327 = vmatpush2.msra.mxu0 0.0
    %10328 = vmatprep.subr.mxu0 0.0
    %10329 = vmatpush2.msra.mxu0 0.0
    %10330 = vmatprep.subr.mxu0 0.0
    %10331 = vmatpush2.msra.mxu0 0.0
    %10332 = vmatprep.subr.mxu0 0.0
    %10333 = vmatpush2.msra.mxu0 0.0
    %10334 = vmatprep.subr.mxu0 0.0
    %10335 = vmatpush2.msra.mxu0 0.0
    %10336 = vmatprep.subr.mxu0 0.0
    %10337 = vmatpush2.msra.mxu0 0.0
    %10338 = vmatprep.subr.mxu0 0.0
    %10339 = vmatpush2.msra.mxu0 0.0
    %10340 = vmatprep.subr.mxu0 0.0
    %10341 = vmatpush2.msra.mxu0 0.0
    %10342 = vmatprep.subr.mxu0 0.0
    %10343 = vmatpush2.msra.mxu0 0.0
    %10344 = vmatprep.mubr.f32.mxu0 0.0
    %10345 = vmatmul.mubr.f32.gmra.mxu0 %v10278
    %v10346 = vpop.f32.mrf.mxu0
    %v10347 = vadd.f32 0.0, %v10346
    %v10348 = vpop.f32.mrf.mxu0
    %10349 = vdwg.mxu0
    %v10350 = vadd.f32 %v10198, %v10347
    %vm10351 = vcmask 74752
    %10352 = vst.msk [vmem:[#allocation2] sm:$0x3] %vm10351, %v10350
    // Predicated region
    $region62: #{forward.1} parent=1 // pred_check
      _
    $region63: #{forward.1} parent=1 // pred_check_branch
      %10354 = sbr.rel (0) target = $region65
    $region64: #{forward.1} parent=1 // pred_region
      %s10356 = ssub.s32 32, 32
      %10357 = vsyncadd [#allocation3], %s10356
      %s10359 = sshll.u32 [#allocation2], 4
      %s10360 = int_to_ptr.vmem [resolvable:$true] %s10359
      %10362 = dma.vmem_to_hbm [thread:$0]  %s10360, 32, %s15, [#allocation3]
    $region65: #{forward.1} parent=1 // pred_fallthru
      _
    // Predicated region
    $region66: #{forward.1} parent=1 // pred_check
      _
    $region67: #{forward.1} parent=1 // pred_check_branch
      %10364 = sbr.rel (0) target = $region69
    $region68: #{forward.1} parent=1 // pred_region
      %10365 = dma.done [#allocation3], 32
    $region69: #{forward.1} parent=1 // pred_fallthru
      _
    %10366 = vsyncpa [#allocation3], 1

</llo_original>
